<compile_context>
chip_gen: v5e
topology: v5e:2x2
jax: 0.10.0
libtpu: 0.0.40
codegen_flags: <defaults>
</compile_context>

<pallas_src>
import functools

import jax
import jax.numpy as jnp
from jax import lax
from jax.experimental import pallas as pl
from jax.experimental.pallas import tpu as pltpu


# ----------------------------------------------------------------------------
# shared in-kernel helpers
# ----------------------------------------------------------------------------
def _masked_tap(cur, row, col, *, d, kh, kw, H, W, K):
    """Tap for kernel offset (kh, kw) at dilation d.

    cur: (rows, L) activation with flattened spatial L = H*W on lanes.
    row/col: (1, L) int32 pixel-row / pixel-col index per flattened position.
    Rolls along lanes and zeroes every position whose source pixel lies in the
    conv's zero-padding halo (this also kills any roll wrap-around, including
    wraps across image-row boundaries and across the whole L axis).
    """
    L = cur.shape[-1]
    ctr = (K - 1) // 2
    dh = (kh - ctr) * d
    dw = (kw - ctr) * d
    shift = dh * W + dw
    if shift % L != 0:
        src = pltpu.roll(cur, shift=(-shift) % L, axis=1)
    else:
        src = cur

    conds = []
    if dh > 0:
        conds.append(row < (H - dh))
    elif dh < 0:
        conds.append(row >= (-dh))
    if dw > 0:
        conds.append(col < (W - dw))
    elif dw < 0:
        conds.append(col >= (-dw))
    if not conds:                      # center tap: fully in-bounds
        return src
    valid = conds[0]
    for c in conds[1:]:
        valid = jnp.logical_and(valid, c)
    return jnp.where(valid, src, jnp.zeros([], src.dtype))


# ----------------------------------------------------------------------------
# kernels
# ----------------------------------------------------------------------------
def _mse_vpu_kernel(x_ref, rc_ref, w_sref, b_sref, o_ref, *,
                    H, W, K, C, nb, dilations, activation):
    """Fused multi-dilation conv chain, pure-VPU broadcast-MAC (small C).

    Layout: sublanes = nb*C packed rows (batch-major, channel-minor), lanes = L.
      x_ref : (1, nb*C, L) f32     rc_ref: (2, L) int32 (row idx / col idx)
      w_sref: (num_d*C*C*K*K,) f32 in SMEM, index [li, co, ci, kh, kw]
      b_sref: (num_d*C,) f32 in SMEM
      o_ref : (1, nb*C, L) f32
    """
    rc = rc_ref[...]
    row = rc[0:1, :]
    col = rc[1:2, :]
    cur = x_ref[0]                                            # (nb*C, L) f32

    for li, d in enumerate(dilations):
        acc = [None] * (nb * C)
        for kh in range(K):
            for kw in range(K):
                # dense roll + compare/select on the packed (nb*C, L) value
                tap = _masked_tap(cur, row, col, d=d, kh=kh, kw=kw,
                                  H=H, W=W, K=K)
                for b in range(nb):
                    for ci in range(C):
                        r_in = b * C + ci
                        src_row = tap[r_in:r_in + 1, :]        # (1, L)
                        for co in range(C):
                            widx = (((li * C + co) * C + ci) * (K * K)
                                    + kh * K + kw)
                            w = w_sref[widx]                   # scalar from SMEM
                            r_out = b * C + co
                            contrib = w * src_row
                            acc[r_out] = (contrib if acc[r_out] is None
                                          else acc[r_out] + contrib)
        rows = []
        for b in range(nb):
            for co in range(C):
                rows.append(acc[b * C + co] + b_sref[li * C + co])
        y = jnp.concatenate(rows, axis=0)                      # (nb*C, L) f32
        cur = jnp.maximum(y, 0.0) if activation == "relu" else jax.nn.sigmoid(y)

    o_ref[0] = cur.astype(o_ref.dtype)                         # lane-dense store


def _mse_mxu_kernel(x_ref, rc_ref, w_ref, b_ref, o_ref, *,
                    H, W, K, C, nb, dilations, activation):
    """Fused chain via register-resident im2col + one MXU matmul per layer.

      x_ref : (1, nb*C, L) f32     rc_ref: (2, L) int32
      w_ref : (num_d, C, K*K*C) bf16   (columns ordered (kh, kw, ci))
      b_ref : (num_d, C, 1) f32
      o_ref : (1, nb*C, L) f32
    """
    rc = rc_ref[...]
    row = rc[0:1, :]
    col = rc[1:2, :]
    cur = x_ref[0]                                             # (nb*C, L) f32

    for li, d in enumerate(dilations):
        w_l = w_ref[li]                                        # (C, K*K*C) bf16
        b_l = b_ref[li]                                        # (C, 1) f32
        # hoisted bf16 cast: cast once, roll/mask in bf16 (v5e note: no bf16 VALU)
        cur_bf = cur.astype(jnp.bfloat16)
        taps = [_masked_tap(cur_bf, row, col, d=d, kh=kh, kw=kw, H=H, W=W, K=K)
                for kh in range(K) for kw in range(K)]         # (nb*C, L) bf16 each
        outs = []
        for b in range(nb):
            # register-resident im2col (no VMEM scratch, no 36-row stores)
            patches = jnp.concatenate(
                [t[b * C:(b + 1) * C, :] for t in taps], axis=0)   # (K*K*C, L)
            acc = jnp.dot(w_l, patches,
                          preferred_element_type=jnp.float32)      # (C, L) f32
            outs.append(acc + b_l)
        y = jnp.concatenate(outs, axis=0) if nb > 1 else outs[0]
        cur = jnp.maximum(y, 0.0) if activation == "relu" else jax.nn.sigmoid(y)

    o_ref[0] = cur.astype(o_ref.dtype)


# ----------------------------------------------------------------------------
# wrapper
# ----------------------------------------------------------------------------
def _row_col_index(H, W):
    r = jnp.repeat(jnp.arange(H, dtype=jnp.int32), W)
    c = jnp.tile(jnp.arange(W, dtype=jnp.int32), H)
    return jnp.stack([r, c], axis=0)                           # (2, H*W) int32


def _batches_per_block(N, C):
    """Pack batches on sublanes so nb*C fills a f32 vreg (8 rows) when C < 8."""
    target = max(1, 8 // C)
    for cand in range(min(N, target), 0, -1):
        if N % cand == 0:
            return cand
    return 1


def _vmem_limit_bytes():
    # ~3/4 of physical VMEM: ~48 MiB on v7x (64 MiB), ~96 MiB on v5e/v6e (128 MiB).
    try:
        cap = pltpu.get_tpu_info().vmem_capacity_bytes
        return int(min(max(cap * 3 // 4, 32 * 1024 * 1024), 100 * 1024 * 1024))
    except Exception:  # pragma: no cover - conservative fallback
        return 48 * 1024 * 1024


def mse_forward(x_nchw, *, w_flat, b_flat, w_mxu, b_mxu,
                kernel_size, dilations, activation, use_mxu):
    """Run the whole MSE dilation chain in one pallas_call. x: (N, C, H, W) f32."""
    N, C, H, W = x_nchw.shape
    K = kernel_size
    L = H * W
    num_d = len(dilations)
    nb = _batches_per_block(N, C)
    NB = N // nb
    nbC = nb * C
    x_packed = x_nchw.reshape(NB, nbC, L)      # contiguous: pure reshape, no copy
    rc = _row_col_index(H, W)

    io_in = pl.BlockSpec((1, nbC, L), lambda n: (n, 0, 0))
    io_out = pl.BlockSpec((1, nbC, L), lambda n: (n, 0, 0))
    rc_spec = pl.BlockSpec((2, L), lambda n: (0, 0))
    cparams = pltpu.CompilerParams(
        dimension_semantics=("parallel",),
        vmem_limit_bytes=_vmem_limit_bytes())

    if use_mxu:
        kernel = functools.partial(
            _mse_mxu_kernel, H=H, W=W, K=K, C=C, nb=nb,
            dilations=tuple(dilations), activation=activation)
        out = pl.pallas_call(
            kernel,
            out_shape=jax.ShapeDtypeStruct((NB, nbC, L), x_nchw.dtype),
            grid_spec=pltpu.PrefetchScalarGridSpec(
                num_scalar_prefetch=0,
                grid=(NB,),
                in_specs=[
                    io_in,
                    rc_spec,
                    pl.BlockSpec((num_d, C, K * K * C), lambda n: (0, 0, 0)),
                    pl.BlockSpec((num_d, C, 1), lambda n: (0, 0, 0)),
                ],
                out_specs=io_out),
            compiler_params=cparams,
        )(x_packed, rc, w_mxu, b_mxu)
    else:
        kernel = functools.partial(
            _mse_vpu_kernel, H=H, W=W, K=K, C=C, nb=nb,
            dilations=tuple(dilations), activation=activation)
        out = pl.pallas_call(
            kernel,
            out_shape=jax.ShapeDtypeStruct((NB, nbC, L), x_nchw.dtype),
            grid_spec=pltpu.PrefetchScalarGridSpec(
                num_scalar_prefetch=0,
                grid=(NB,),
                in_specs=[
                    io_in,
                    rc_spec,
                    pl.BlockSpec(memory_space=pltpu.MemorySpace.SMEM),  # weights
                    pl.BlockSpec(memory_space=pltpu.MemorySpace.SMEM),  # bias
                ],
                out_specs=io_out),
            compiler_params=cparams,
        )(x_packed, rc, w_flat, b_flat)

    return out.reshape(N, C, H, W)


class MSEPallas:
    """JAX/Pallas port of the PyTorch MSE module (NCHW in, NCHW out)."""

    def __init__(self, in_channels, out_channels, kernel_size, dilation_rates,
                 activation, key, path="auto"):
        assert in_channels == out_channels, (
            "PyTorch MSE Sequential only type-checks when Cin == Cout")
        assert kernel_size == 3, (
            "padding=dilation preserves spatial size only for kernel_size == 3")
        assert activation in ("relu", "sigmoid")
        assert path in ("auto", "vpu", "mxu")
        C, K = in_channels, kernel_size
        self.C, self.K = C, K
        self.dilations = tuple(dilation_rates)
        self.activation = activation
        self.use_mxu = (C > 8) if path == "auto" else (path == "mxu")

        fan_in = C * K * K
        bound = float(1.0 / (fan_in ** 0.5))
        ws, bs = [], []
        for _ in self.dilations:
            key, kw_, kb_ = jax.random.split(key, 3)
            ws.append(jax.random.uniform(kw_, (C, C, K, K), jnp.float32,
                                         -bound, bound))
            bs.append(jax.random.uniform(kb_, (C,), jnp.float32, -bound, bound))
        self.torch_params = list(zip(ws, bs))                  # f32, for reference

        # VPU path: flat f32 scalar tables for SMEM, index [li, co, ci, kh, kw]
        self.w_flat = jnp.stack(ws, 0).reshape(-1)
        self.b_flat = jnp.stack(bs, 0).reshape(-1)
        # MXU path: (num_d, Cout, K*K*Cin) bf16 (cols (kh, kw, ci)) + (num_d, C, 1)
        self.w_mxu = jnp.stack(
            [jnp.transpose(w, (0, 2, 3, 1)).reshape(C, K * K * C) for w in ws],
            0).astype(jnp.bfloat16)
        self.b_mxu = jnp.stack([b.reshape(C, 1) for b in bs], 0)

    def __call__(self, x_nchw):
        N, C, H, W = x_nchw.shape
        assert C == self.C
        return mse_forward(
            x_nchw, w_flat=self.w_flat, b_flat=self.b_flat,
            w_mxu=self.w_mxu, b_mxu=self.b_mxu,
            kernel_size=self.K, dilations=self.dilations,
            activation=self.activation, use_mxu=self.use_mxu)

    def reference(self, x_nchw):
        """Pure-JAX reference matching the selected path's numerics."""
        dt = jnp.bfloat16 if self.use_mxu else jnp.float32
        x = x_nchw
        for (w, b), d in zip(self.torch_params, self.dilations):
            y = lax.conv_general_dilated(
                x.astype(dt), w.astype(dt),
                window_strides=(1, 1), padding=[(d, d), (d, d)],
                rhs_dilation=(d, d),
                dimension_numbers=("NCHW", "OIHW", "NCHW"),
                preferred_element_type=jnp.float32)
            y = y + b.reshape(1, -1, 1, 1)
            x = jnp.maximum(y, 0.0) if self.activation == "relu" else jax.nn.sigmoid(y)
        return x


if __name__ == "__main__":
    key = jax.random.PRNGKey(0)
    k_in, k_p1, k_p2 = jax.random.split(key, 3)

    N, C, H, W = 2, 4, 16, 16
    x = jax.random.normal(k_in, (N, C, H, W), jnp.float32)

    # auto -> VPU broadcast-MAC path at C=4; "mxu" forces the register-im2col path
    checks = [("relu", k_p1, "auto"), ("sigmoid", k_p2, "auto"), ("relu", k_p1, "mxu")]
    for act, kp, path in checks:
        model = MSEPallas(in_channels=C, out_channels=C, kernel_size=3,
                          dilation_rates=(1, 2), activation=act, key=kp, path=path)
        out = jax.block_until_ready(model(x))
        ref = jax.block_until_ready(model.reference(x))
        assert out.shape == (N, C, H, W)
        tol = 5e-3 if model.use_mxu else 1e-4
        assert jnp.allclose(out, ref, atol=tol, rtol=tol), (
            f"{act}/{path}: mismatch vs JAX reference")

    print("KERNEL_OK")
</pallas_src>

<mosaic_0001>
module attributes {stable_mosaic.version = 11 : i64} {
  func.func @_mse_vpu_kernel(%arg0: i32, %arg1: memref<1x8x256xf32, #tpu.memory_space<vmem>>, %arg2: memref<2x256xi32, #tpu.memory_space<vmem>>, %arg3: memref<288xf32, #tpu.memory_space<smem>>, %arg4: memref<8xf32, #tpu.memory_space<smem>>, %arg5: memref<1x8x256xf32, #tpu.memory_space<vmem>>) attributes {dimension_semantics = [#tpu.dimension_semantics<parallel>], iteration_bounds = array<i64: 1>, scalar_prefetch = 0 : i64, scratch_operands = 0 : i64, tpu.core_type = #tpu.core_type<tc>, window_params = [{transform_indices = @transform_0, window_bounds = array<i64: 1, 8, 256>}, {pipeline_mode = #tpu.pipeline_mode<synchronous>, transform_indices = @transform_1, window_bounds = array<i64: 2, 256>}, {transform_indices = @transform_2, window_bounds = array<i64: 288>}, {transform_indices = @transform_3, window_bounds = array<i64: 8>}, {transform_indices = @transform_4, window_bounds = array<i64: 1, 8, 256>}]} {
    %c0 = arith.constant 0 : index
    %c0_0 = arith.constant 0 : index
    %0 = vector.load %arg2[%c0, %c0_0] : memref<2x256xi32, #tpu.memory_space<vmem>>, vector<2x256xi32>
    %1 = vector.extract_strided_slice %0 {offsets = [0, 0], sizes = [1, 256], strides = [1, 1]} : vector<2x256xi32> to vector<1x256xi32>
    %2 = vector.extract_strided_slice %0 {offsets = [1, 0], sizes = [1, 256], strides = [1, 1]} : vector<2x256xi32> to vector<1x256xi32>
    %c0_1 = arith.constant 0 : index
    %c0_2 = arith.constant 0 : index
    %c0_3 = arith.constant 0 : index
    %3 = vector.load %arg1[%c0_1, %c0_2, %c0_3] : memref<1x8x256xf32, #tpu.memory_space<vmem>>, vector<1x8x256xf32>
    %4 = vector.shape_cast %3 : vector<1x8x256xf32> to vector<8x256xf32>
    %c17_i32 = arith.constant 17 : i32
    %5 = tpu.dynamic_rotate %4 by %c17_i32 dim 1 : vector<8x256xf32>, i32 -> vector<8x256xf32>
    %c1_i32 = arith.constant 1 : i32
    %6 = vector.broadcast %c1_i32 : i32 to vector<1x256xi32>
    %7 = arith.cmpi sge, %1, %6 : vector<1x256xi32>
    %c1_i32_4 = arith.constant 1 : i32
    %8 = vector.broadcast %c1_i32_4 : i32 to vector<1x256xi32>
    %9 = arith.cmpi sge, %2, %8 : vector<1x256xi32>
    %10 = arith.andi %7, %9 : vector<1x256xi1>
    %cst = arith.constant 0.000000e+00 : f32
    %11 = vector.shape_cast %10 : vector<1x256xi1> to vector<1x256xi1>
    %12 = vector.broadcast %11 : vector<1x256xi1> to vector<8x256xi1>
    %13 = vector.broadcast %cst : f32 to vector<8x256xf32>
    %14 = arith.select %12, %5, %13 : vector<8x256xi1>, vector<8x256xf32>
    %15 = vector.extract_strided_slice %14 {offsets = [0, 0], sizes = [1, 256], strides = [1, 1]} : vector<8x256xf32> to vector<1x256xf32>
    %c0_5 = arith.constant 0 : index
    %16 = memref.load %arg3[%c0_5] : memref<288xf32, #tpu.memory_space<smem>>
    %17 = vector.broadcast %16 : f32 to vector<1x256xf32>
    %18 = arith.mulf %17, %15 : vector<1x256xf32>
    %c36 = arith.constant 36 : index
    %19 = memref.load %arg3[%c36] : memref<288xf32, #tpu.memory_space<smem>>
    %20 = vector.broadcast %19 : f32 to vector<1x256xf32>
    %21 = arith.mulf %20, %15 : vector<1x256xf32>
    %c72 = arith.constant 72 : index
    %22 = memref.load %arg3[%c72] : memref<288xf32, #tpu.memory_space<smem>>
    %23 = vector.broadcast %22 : f32 to vector<1x256xf32>
    %24 = arith.mulf %23, %15 : vector<1x256xf32>
    %c108 = arith.constant 108 : index
    %25 = memref.load %arg3[%c108] : memref<288xf32, #tpu.memory_space<smem>>
    %26 = vector.broadcast %25 : f32 to vector<1x256xf32>
    %27 = arith.mulf %26, %15 : vector<1x256xf32>
    %28 = vector.extract_strided_slice %14 {offsets = [1, 0], sizes = [1, 256], strides = [1, 1]} : vector<8x256xf32> to vector<1x256xf32>
    %c9 = arith.constant 9 : index
    %29 = memref.load %arg3[%c9] : memref<288xf32, #tpu.memory_space<smem>>
    %30 = vector.broadcast %29 : f32 to vector<1x256xf32>
    %31 = arith.mulf %30, %28 : vector<1x256xf32>
    %32 = arith.addf %18, %31 : vector<1x256xf32>
    %c45 = arith.constant 45 : index
    %33 = memref.load %arg3[%c45] : memref<288xf32, #tpu.memory_space<smem>>
    %34 = vector.broadcast %33 : f32 to vector<1x256xf32>
    %35 = arith.mulf %34, %28 : vector<1x256xf32>
    %36 = arith.addf %21, %35 : vector<1x256xf32>
    %c81 = arith.constant 81 : index
    %37 = memref.load %arg3[%c81] : memref<288xf32, #tpu.memory_space<smem>>
    %38 = vector.broadcast %37 : f32 to vector<1x256xf32>
    %39 = arith.mulf %38, %28 : vector<1x256xf32>
    %40 = arith.addf %24, %39 : vector<1x256xf32>
    %c117 = arith.constant 117 : index
    %41 = memref.load %arg3[%c117] : memref<288xf32, #tpu.memory_space<smem>>
    %42 = vector.broadcast %41 : f32 to vector<1x256xf32>
    %43 = arith.mulf %42, %28 : vector<1x256xf32>
    %44 = arith.addf %27, %43 : vector<1x256xf32>
    %45 = vector.extract_strided_slice %14 {offsets = [2, 0], sizes = [1, 256], strides = [1, 1]} : vector<8x256xf32> to vector<1x256xf32>
    %c18 = arith.constant 18 : index
    %46 = memref.load %arg3[%c18] : memref<288xf32, #tpu.memory_space<smem>>
    %47 = vector.broadcast %46 : f32 to vector<1x256xf32>
    %48 = arith.mulf %47, %45 : vector<1x256xf32>
    %49 = arith.addf %32, %48 : vector<1x256xf32>
    %c54 = arith.constant 54 : index
    %50 = memref.load %arg3[%c54] : memref<288xf32, #tpu.memory_space<smem>>
    %51 = vector.broadcast %50 : f32 to vector<1x256xf32>
    %52 = arith.mulf %51, %45 : vector<1x256xf32>
    %53 = arith.addf %36, %52 : vector<1x256xf32>
    %c90 = arith.constant 90 : index
    %54 = memref.load %arg3[%c90] : memref<288xf32, #tpu.memory_space<smem>>
    %55 = vector.broadcast %54 : f32 to vector<1x256xf32>
    %56 = arith.mulf %55, %45 : vector<1x256xf32>
    %57 = arith.addf %40, %56 : vector<1x256xf32>
    %c126 = arith.constant 126 : index
    %58 = memref.load %arg3[%c126] : memref<288xf32, #tpu.memory_space<smem>>
    %59 = vector.broadcast %58 : f32 to vector<1x256xf32>
    %60 = arith.mulf %59, %45 : vector<1x256xf32>
    %61 = arith.addf %44, %60 : vector<1x256xf32>
    %62 = vector.extract_strided_slice %14 {offsets = [3, 0], sizes = [1, 256], strides = [1, 1]} : vector<8x256xf32> to vector<1x256xf32>
    %c27 = arith.constant 27 : index
    %63 = memref.load %arg3[%c27] : memref<288xf32, #tpu.memory_space<smem>>
    %64 = vector.broadcast %63 : f32 to vector<1x256xf32>
    %65 = arith.mulf %64, %62 : vector<1x256xf32>
    %66 = arith.addf %49, %65 : vector<1x256xf32>
    %c63 = arith.constant 63 : index
    %67 = memref.load %arg3[%c63] : memref<288xf32, #tpu.memory_space<smem>>
    %68 = vector.broadcast %67 : f32 to vector<1x256xf32>
    %69 = arith.mulf %68, %62 : vector<1x256xf32>
    %70 = arith.addf %53, %69 : vector<1x256xf32>
    %c99 = arith.constant 99 : index
    %71 = memref.load %arg3[%c99] : memref<288xf32, #tpu.memory_space<smem>>
    %72 = vector.broadcast %71 : f32 to vector<1x256xf32>
    %73 = arith.mulf %72, %62 : vector<1x256xf32>
    %74 = arith.addf %57, %73 : vector<1x256xf32>
    %c135 = arith.constant 135 : index
    %75 = memref.load %arg3[%c135] : memref<288xf32, #tpu.memory_space<smem>>
    %76 = vector.broadcast %75 : f32 to vector<1x256xf32>
    %77 = arith.mulf %76, %62 : vector<1x256xf32>
    %78 = arith.addf %61, %77 : vector<1x256xf32>
    %79 = vector.extract_strided_slice %14 {offsets = [4, 0], sizes = [1, 256], strides = [1, 1]} : vector<8x256xf32> to vector<1x256xf32>
    %c0_6 = arith.constant 0 : index
    %80 = memref.load %arg3[%c0_6] : memref<288xf32, #tpu.memory_space<smem>>
    %81 = vector.broadcast %80 : f32 to vector<1x256xf32>
    %82 = arith.mulf %81, %79 : vector<1x256xf32>
    %c36_7 = arith.constant 36 : index
    %83 = memref.load %arg3[%c36_7] : memref<288xf32, #tpu.memory_space<smem>>
    %84 = vector.broadcast %83 : f32 to vector<1x256xf32>
    %85 = arith.mulf %84, %79 : vector<1x256xf32>
    %c72_8 = arith.constant 72 : index
    %86 = memref.load %arg3[%c72_8] : memref<288xf32, #tpu.memory_space<smem>>
    %87 = vector.broadcast %86 : f32 to vector<1x256xf32>
    %88 = arith.mulf %87, %79 : vector<1x256xf32>
    %c108_9 = arith.constant 108 : index
    %89 = memref.load %arg3[%c108_9] : memref<288xf32, #tpu.memory_space<smem>>
    %90 = vector.broadcast %89 : f32 to vector<1x256xf32>
    %91 = arith.mulf %90, %79 : vector<1x256xf32>
    %92 = vector.extract_strided_slice %14 {offsets = [5, 0], sizes = [1, 256], strides = [1, 1]} : vector<8x256xf32> to vector<1x256xf32>
    %c9_10 = arith.constant 9 : index
    %93 = memref.load %arg3[%c9_10] : memref<288xf32, #tpu.memory_space<smem>>
    %94 = vector.broadcast %93 : f32 to vector<1x256xf32>
    %95 = arith.mulf %94, %92 : vector<1x256xf32>
    %96 = arith.addf %82, %95 : vector<1x256xf32>
    %c45_11 = arith.constant 45 : index
    %97 = memref.load %arg3[%c45_11] : memref<288xf32, #tpu.memory_space<smem>>
    %98 = vector.broadcast %97 : f32 to vector<1x256xf32>
    %99 = arith.mulf %98, %92 : vector<1x256xf32>
    %100 = arith.addf %85, %99 : vector<1x256xf32>
    %c81_12 = arith.constant 81 : index
    %101 = memref.load %arg3[%c81_12] : memref<288xf32, #tpu.memory_space<smem>>
    %102 = vector.broadcast %101 : f32 to vector<1x256xf32>
    %103 = arith.mulf %102, %92 : vector<1x256xf32>
    %104 = arith.addf %88, %103 : vector<1x256xf32>
    %c117_13 = arith.constant 117 : index
    %105 = memref.load %arg3[%c117_13] : memref<288xf32, #tpu.memory_space<smem>>
    %106 = vector.broadcast %105 : f32 to vector<1x256xf32>
    %107 = arith.mulf %106, %92 : vector<1x256xf32>
    %108 = arith.addf %91, %107 : vector<1x256xf32>
    %109 = vector.extract_strided_slice %14 {offsets = [6, 0], sizes = [1, 256], strides = [1, 1]} : vector<8x256xf32> to vector<1x256xf32>
    %c18_14 = arith.constant 18 : index
    %110 = memref.load %arg3[%c18_14] : memref<288xf32, #tpu.memory_space<smem>>
    %111 = vector.broadcast %110 : f32 to vector<1x256xf32>
    %112 = arith.mulf %111, %109 : vector<1x256xf32>
    %113 = arith.addf %96, %112 : vector<1x256xf32>
    %c54_15 = arith.constant 54 : index
    %114 = memref.load %arg3[%c54_15] : memref<288xf32, #tpu.memory_space<smem>>
    %115 = vector.broadcast %114 : f32 to vector<1x256xf32>
    %116 = arith.mulf %115, %109 : vector<1x256xf32>
    %117 = arith.addf %100, %116 : vector<1x256xf32>
    %c90_16 = arith.constant 90 : index
    %118 = memref.load %arg3[%c90_16] : memref<288xf32, #tpu.memory_space<smem>>
    %119 = vector.broadcast %118 : f32 to vector<1x256xf32>
    %120 = arith.mulf %119, %109 : vector<1x256xf32>
    %121 = arith.addf %104, %120 : vector<1x256xf32>
    %c126_17 = arith.constant 126 : index
    %122 = memref.load %arg3[%c126_17] : memref<288xf32, #tpu.memory_space<smem>>
    %123 = vector.broadcast %122 : f32 to vector<1x256xf32>
    %124 = arith.mulf %123, %109 : vector<1x256xf32>
    %125 = arith.addf %108, %124 : vector<1x256xf32>
    %126 = vector.extract_strided_slice %14 {offsets = [7, 0], sizes = [1, 256], strides = [1, 1]} : vector<8x256xf32> to vector<1x256xf32>
    %c27_18 = arith.constant 27 : index
    %127 = memref.load %arg3[%c27_18] : memref<288xf32, #tpu.memory_space<smem>>
    %128 = vector.broadcast %127 : f32 to vector<1x256xf32>
    %129 = arith.mulf %128, %126 : vector<1x256xf32>
    %130 = arith.addf %113, %129 : vector<1x256xf32>
    %c63_19 = arith.constant 63 : index
    %131 = memref.load %arg3[%c63_19] : memref<288xf32, #tpu.memory_space<smem>>
    %132 = vector.broadcast %131 : f32 to vector<1x256xf32>
    %133 = arith.mulf %132, %126 : vector<1x256xf32>
    %134 = arith.addf %117, %133 : vector<1x256xf32>
    %c99_20 = arith.constant 99 : index
    %135 = memref.load %arg3[%c99_20] : memref<288xf32, #tpu.memory_space<smem>>
    %136 = vector.broadcast %135 : f32 to vector<1x256xf32>
    %137 = arith.mulf %136, %126 : vector<1x256xf32>
    %138 = arith.addf %121, %137 : vector<1x256xf32>
    %c135_21 = arith.constant 135 : index
    %139 = memref.load %arg3[%c135_21] : memref<288xf32, #tpu.memory_space<smem>>
    %140 = vector.broadcast %139 : f32 to vector<1x256xf32>
    %141 = arith.mulf %140, %126 : vector<1x256xf32>
    %142 = arith.addf %125, %141 : vector<1x256xf32>
    %c16_i32 = arith.constant 16 : i32
    %143 = tpu.dynamic_rotate %4 by %c16_i32 dim 1 : vector<8x256xf32>, i32 -> vector<8x256xf32>
    %c1_i32_22 = arith.constant 1 : i32
    %144 = vector.broadcast %c1_i32_22 : i32 to vector<1x256xi32>
    %145 = arith.cmpi sge, %1, %144 : vector<1x256xi32>
    %cst_23 = arith.constant 0.000000e+00 : f32
    %146 = vector.shape_cast %145 : vector<1x256xi1> to vector<1x256xi1>
    %147 = vector.broadcast %146 : vector<1x256xi1> to vector<8x256xi1>
    %148 = vector.broadcast %cst_23 : f32 to vector<8x256xf32>
    %149 = arith.select %147, %143, %148 : vector<8x256xi1>, vector<8x256xf32>
    %150 = vector.extract_strided_slice %149 {offsets = [0, 0], sizes = [1, 256], strides = [1, 1]} : vector<8x256xf32> to vector<1x256xf32>
    %c1 = arith.constant 1 : index
    %151 = memref.load %arg3[%c1] : memref<288xf32, #tpu.memory_space<smem>>
    %152 = vector.broadcast %151 : f32 to vector<1x256xf32>
    %153 = arith.mulf %152, %150 : vector<1x256xf32>
    %154 = arith.addf %66, %153 : vector<1x256xf32>
    %c37 = arith.constant 37 : index
    %155 = memref.load %arg3[%c37] : memref<288xf32, #tpu.memory_space<smem>>
    %156 = vector.broadcast %155 : f32 to vector<1x256xf32>
    %157 = arith.mulf %156, %150 : vector<1x256xf32>
    %158 = arith.addf %70, %157 : vector<1x256xf32>
    %c73 = arith.constant 73 : index
    %159 = memref.load %arg3[%c73] : memref<288xf32, #tpu.memory_space<smem>>
    %160 = vector.broadcast %159 : f32 to vector<1x256xf32>
    %161 = arith.mulf %160, %150 : vector<1x256xf32>
    %162 = arith.addf %74, %161 : vector<1x256xf32>
    %c109 = arith.constant 109 : index
    %163 = memref.load %arg3[%c109] : memref<288xf32, #tpu.memory_space<smem>>
    %164 = vector.broadcast %163 : f32 to vector<1x256xf32>
    %165 = arith.mulf %164, %150 : vector<1x256xf32>
    %166 = arith.addf %78, %165 : vector<1x256xf32>
    %167 = vector.extract_strided_slice %149 {offsets = [1, 0], sizes = [1, 256], strides = [1, 1]} : vector<8x256xf32> to vector<1x256xf32>
    %c10 = arith.constant 10 : index
    %168 = memref.load %arg3[%c10] : memref<288xf32, #tpu.memory_space<smem>>
    %169 = vector.broadcast %168 : f32 to vector<1x256xf32>
    %170 = arith.mulf %169, %167 : vector<1x256xf32>
    %171 = arith.addf %154, %170 : vector<1x256xf32>
    %c46 = arith.constant 46 : index
    %172 = memref.load %arg3[%c46] : memref<288xf32, #tpu.memory_space<smem>>
    %173 = vector.broadcast %172 : f32 to vector<1x256xf32>
    %174 = arith.mulf %173, %167 : vector<1x256xf32>
    %175 = arith.addf %158, %174 : vector<1x256xf32>
    %c82 = arith.constant 82 : index
    %176 = memref.load %arg3[%c82] : memref<288xf32, #tpu.memory_space<smem>>
    %177 = vector.broadcast %176 : f32 to vector<1x256xf32>
    %178 = arith.mulf %177, %167 : vector<1x256xf32>
    %179 = arith.addf %162, %178 : vector<1x256xf32>
    %c118 = arith.constant 118 : index
    %180 = memref.load %arg3[%c118] : memref<288xf32, #tpu.memory_space<smem>>
    %181 = vector.broadcast %180 : f32 to vector<1x256xf32>
    %182 = arith.mulf %181, %167 : vector<1x256xf32>
    %183 = arith.addf %166, %182 : vector<1x256xf32>
    %184 = vector.extract_strided_slice %149 {offsets = [2, 0], sizes = [1, 256], strides = [1, 1]} : vector<8x256xf32> to vector<1x256xf32>
    %c19 = arith.constant 19 : index
    %185 = memref.load %arg3[%c19] : memref<288xf32, #tpu.memory_space<smem>>
    %186 = vector.broadcast %185 : f32 to vector<1x256xf32>
    %187 = arith.mulf %186, %184 : vector<1x256xf32>
    %188 = arith.addf %171, %187 : vector<1x256xf32>
    %c55 = arith.constant 55 : index
    %189 = memref.load %arg3[%c55] : memref<288xf32, #tpu.memory_space<smem>>
    %190 = vector.broadcast %189 : f32 to vector<1x256xf32>
    %191 = arith.mulf %190, %184 : vector<1x256xf32>
    %192 = arith.addf %175, %191 : vector<1x256xf32>
    %c91 = arith.constant 91 : index
    %193 = memref.load %arg3[%c91] : memref<288xf32, #tpu.memory_space<smem>>
    %194 = vector.broadcast %193 : f32 to vector<1x256xf32>
    %195 = arith.mulf %194, %184 : vector<1x256xf32>
    %196 = arith.addf %179, %195 : vector<1x256xf32>
    %c127 = arith.constant 127 : index
    %197 = memref.load %arg3[%c127] : memref<288xf32, #tpu.memory_space<smem>>
    %198 = vector.broadcast %197 : f32 to vector<1x256xf32>
    %199 = arith.mulf %198, %184 : vector<1x256xf32>
    %200 = arith.addf %183, %199 : vector<1x256xf32>
    %201 = vector.extract_strided_slice %149 {offsets = [3, 0], sizes = [1, 256], strides = [1, 1]} : vector<8x256xf32> to vector<1x256xf32>
    %c28 = arith.constant 28 : index
    %202 = memref.load %arg3[%c28] : memref<288xf32, #tpu.memory_space<smem>>
    %203 = vector.broadcast %202 : f32 to vector<1x256xf32>
    %204 = arith.mulf %203, %201 : vector<1x256xf32>
    %205 = arith.addf %188, %204 : vector<1x256xf32>
    %c64 = arith.constant 64 : index
    %206 = memref.load %arg3[%c64] : memref<288xf32, #tpu.memory_space<smem>>
    %207 = vector.broadcast %206 : f32 to vector<1x256xf32>
    %208 = arith.mulf %207, %201 : vector<1x256xf32>
    %209 = arith.addf %192, %208 : vector<1x256xf32>
    %c100 = arith.constant 100 : index
    %210 = memref.load %arg3[%c100] : memref<288xf32, #tpu.memory_space<smem>>
    %211 = vector.broadcast %210 : f32 to vector<1x256xf32>
    %212 = arith.mulf %211, %201 : vector<1x256xf32>
    %213 = arith.addf %196, %212 : vector<1x256xf32>
    %c136 = arith.constant 136 : index
    %214 = memref.load %arg3[%c136] : memref<288xf32, #tpu.memory_space<smem>>
    %215 = vector.broadcast %214 : f32 to vector<1x256xf32>
    %216 = arith.mulf %215, %201 : vector<1x256xf32>
    %217 = arith.addf %200, %216 : vector<1x256xf32>
    %218 = vector.extract_strided_slice %149 {offsets = [4, 0], sizes = [1, 256], strides = [1, 1]} : vector<8x256xf32> to vector<1x256xf32>
    %c1_24 = arith.constant 1 : index
    %219 = memref.load %arg3[%c1_24] : memref<288xf32, #tpu.memory_space<smem>>
    %220 = vector.broadcast %219 : f32 to vector<1x256xf32>
    %221 = arith.mulf %220, %218 : vector<1x256xf32>
    %222 = arith.addf %130, %221 : vector<1x256xf32>
    %c37_25 = arith.constant 37 : index
    %223 = memref.load %arg3[%c37_25] : memref<288xf32, #tpu.memory_space<smem>>
    %224 = vector.broadcast %223 : f32 to vector<1x256xf32>
    %225 = arith.mulf %224, %218 : vector<1x256xf32>
    %226 = arith.addf %134, %225 : vector<1x256xf32>
    %c73_26 = arith.constant 73 : index
    %227 = memref.load %arg3[%c73_26] : memref<288xf32, #tpu.memory_space<smem>>
    %228 = vector.broadcast %227 : f32 to vector<1x256xf32>
    %229 = arith.mulf %228, %218 : vector<1x256xf32>
    %230 = arith.addf %138, %229 : vector<1x256xf32>
    %c109_27 = arith.constant 109 : index
    %231 = memref.load %arg3[%c109_27] : memref<288xf32, #tpu.memory_space<smem>>
    %232 = vector.broadcast %231 : f32 to vector<1x256xf32>
    %233 = arith.mulf %232, %218 : vector<1x256xf32>
    %234 = arith.addf %142, %233 : vector<1x256xf32>
    %235 = vector.extract_strided_slice %149 {offsets = [5, 0], sizes = [1, 256], strides = [1, 1]} : vector<8x256xf32> to vector<1x256xf32>
    %c10_28 = arith.constant 10 : index
    %236 = memref.load %arg3[%c10_28] : memref<288xf32, #tpu.memory_space<smem>>
    %237 = vector.broadcast %236 : f32 to vector<1x256xf32>
    %238 = arith.mulf %237, %235 : vector<1x256xf32>
    %239 = arith.addf %222, %238 : vector<1x256xf32>
    %c46_29 = arith.constant 46 : index
    %240 = memref.load %arg3[%c46_29] : memref<288xf32, #tpu.memory_space<smem>>
    %241 = vector.broadcast %240 : f32 to vector<1x256xf32>
    %242 = arith.mulf %241, %235 : vector<1x256xf32>
    %243 = arith.addf %226, %242 : vector<1x256xf32>
    %c82_30 = arith.constant 82 : index
    %244 = memref.load %arg3[%c82_30] : memref<288xf32, #tpu.memory_space<smem>>
    %245 = vector.broadcast %244 : f32 to vector<1x256xf32>
    %246 = arith.mulf %245, %235 : vector<1x256xf32>
    %247 = arith.addf %230, %246 : vector<1x256xf32>
    %c118_31 = arith.constant 118 : index
    %248 = memref.load %arg3[%c118_31] : memref<288xf32, #tpu.memory_space<smem>>
    %249 = vector.broadcast %248 : f32 to vector<1x256xf32>
    %250 = arith.mulf %249, %235 : vector<1x256xf32>
    %251 = arith.addf %234, %250 : vector<1x256xf32>
    %252 = vector.extract_strided_slice %149 {offsets = [6, 0], sizes = [1, 256], strides = [1, 1]} : vector<8x256xf32> to vector<1x256xf32>
    %c19_32 = arith.constant 19 : index
    %253 = memref.load %arg3[%c19_32] : memref<288xf32, #tpu.memory_space<smem>>
    %254 = vector.broadcast %253 : f32 to vector<1x256xf32>
    %255 = arith.mulf %254, %252 : vector<1x256xf32>
    %256 = arith.addf %239, %255 : vector<1x256xf32>
    %c55_33 = arith.constant 55 : index
    %257 = memref.load %arg3[%c55_33] : memref<288xf32, #tpu.memory_space<smem>>
    %258 = vector.broadcast %257 : f32 to vector<1x256xf32>
    %259 = arith.mulf %258, %252 : vector<1x256xf32>
    %260 = arith.addf %243, %259 : vector<1x256xf32>
    %c91_34 = arith.constant 91 : index
    %261 = memref.load %arg3[%c91_34] : memref<288xf32, #tpu.memory_space<smem>>
    %262 = vector.broadcast %261 : f32 to vector<1x256xf32>
    %263 = arith.mulf %262, %252 : vector<1x256xf32>
    %264 = arith.addf %247, %263 : vector<1x256xf32>
    %c127_35 = arith.constant 127 : index
    %265 = memref.load %arg3[%c127_35] : memref<288xf32, #tpu.memory_space<smem>>
    %266 = vector.broadcast %265 : f32 to vector<1x256xf32>
    %267 = arith.mulf %266, %252 : vector<1x256xf32>
    %268 = arith.addf %251, %267 : vector<1x256xf32>
    %269 = vector.extract_strided_slice %149 {offsets = [7, 0], sizes = [1, 256], strides = [1, 1]} : vector<8x256xf32> to vector<1x256xf32>
    %c28_36 = arith.constant 28 : index
    %270 = memref.load %arg3[%c28_36] : memref<288xf32, #tpu.memory_space<smem>>
    %271 = vector.broadcast %270 : f32 to vector<1x256xf32>
    %272 = arith.mulf %271, %269 : vector<1x256xf32>
    %273 = arith.addf %256, %272 : vector<1x256xf32>
    %c64_37 = arith.constant 64 : index
    %274 = memref.load %arg3[%c64_37] : memref<288xf32, #tpu.memory_space<smem>>
    %275 = vector.broadcast %274 : f32 to vector<1x256xf32>
    %276 = arith.mulf %275, %269 : vector<1x256xf32>
    %277 = arith.addf %260, %276 : vector<1x256xf32>
    %c100_38 = arith.constant 100 : index
    %278 = memref.load %arg3[%c100_38] : memref<288xf32, #tpu.memory_space<smem>>
    %279 = vector.broadcast %278 : f32 to vector<1x256xf32>
    %280 = arith.mulf %279, %269 : vector<1x256xf32>
    %281 = arith.addf %264, %280 : vector<1x256xf32>
    %c136_39 = arith.constant 136 : index
    %282 = memref.load %arg3[%c136_39] : memref<288xf32, #tpu.memory_space<smem>>
    %283 = vector.broadcast %282 : f32 to vector<1x256xf32>
    %284 = arith.mulf %283, %269 : vector<1x256xf32>
    %285 = arith.addf %268, %284 : vector<1x256xf32>
    %c15_i32 = arith.constant 15 : i32
    %286 = tpu.dynamic_rotate %4 by %c15_i32 dim 1 : vector<8x256xf32>, i32 -> vector<8x256xf32>
    %c1_i32_40 = arith.constant 1 : i32
    %287 = vector.broadcast %c1_i32_40 : i32 to vector<1x256xi32>
    %288 = arith.cmpi sge, %1, %287 : vector<1x256xi32>
    %c15_i32_41 = arith.constant 15 : i32
    %289 = vector.broadcast %c15_i32_41 : i32 to vector<1x256xi32>
    %290 = arith.cmpi slt, %2, %289 : vector<1x256xi32>
    %291 = arith.andi %288, %290 : vector<1x256xi1>
    %cst_42 = arith.constant 0.000000e+00 : f32
    %292 = vector.shape_cast %291 : vector<1x256xi1> to vector<1x256xi1>
    %293 = vector.broadcast %292 : vector<1x256xi1> to vector<8x256xi1>
    %294 = vector.broadcast %cst_42 : f32 to vector<8x256xf32>
    %295 = arith.select %293, %286, %294 : vector<8x256xi1>, vector<8x256xf32>
    %296 = vector.extract_strided_slice %295 {offsets = [0, 0], sizes = [1, 256], strides = [1, 1]} : vector<8x256xf32> to vector<1x256xf32>
    %c2 = arith.constant 2 : index
    %297 = memref.load %arg3[%c2] : memref<288xf32, #tpu.memory_space<smem>>
    %298 = vector.broadcast %297 : f32 to vector<1x256xf32>
    %299 = arith.mulf %298, %296 : vector<1x256xf32>
    %300 = arith.addf %205, %299 : vector<1x256xf32>
    %c38 = arith.constant 38 : index
    %301 = memref.load %arg3[%c38] : memref<288xf32, #tpu.memory_space<smem>>
    %302 = vector.broadcast %301 : f32 to vector<1x256xf32>
    %303 = arith.mulf %302, %296 : vector<1x256xf32>
    %304 = arith.addf %209, %303 : vector<1x256xf32>
    %c74 = arith.constant 74 : index
    %305 = memref.load %arg3[%c74] : memref<288xf32, #tpu.memory_space<smem>>
    %306 = vector.broadcast %305 : f32 to vector<1x256xf32>
    %307 = arith.mulf %306, %296 : vector<1x256xf32>
    %308 = arith.addf %213, %307 : vector<1x256xf32>
    %c110 = arith.constant 110 : index
    %309 = memref.load %arg3[%c110] : memref<288xf32, #tpu.memory_space<smem>>
    %310 = vector.broadcast %309 : f32 to vector<1x256xf32>
    %311 = arith.mulf %310, %296 : vector<1x256xf32>
    %312 = arith.addf %217, %311 : vector<1x256xf32>
    %313 = vector.extract_strided_slice %295 {offsets = [1, 0], sizes = [1, 256], strides = [1, 1]} : vector<8x256xf32> to vector<1x256xf32>
    %c11 = arith.constant 11 : index
    %314 = memref.load %arg3[%c11] : memref<288xf32, #tpu.memory_space<smem>>
    %315 = vector.broadcast %314 : f32 to vector<1x256xf32>
    %316 = arith.mulf %315, %313 : vector<1x256xf32>
    %317 = arith.addf %300, %316 : vector<1x256xf32>
    %c47 = arith.constant 47 : index
    %318 = memref.load %arg3[%c47] : memref<288xf32, #tpu.memory_space<smem>>
    %319 = vector.broadcast %318 : f32 to vector<1x256xf32>
    %320 = arith.mulf %319, %313 : vector<1x256xf32>
    %321 = arith.addf %304, %320 : vector<1x256xf32>
    %c83 = arith.constant 83 : index
    %322 = memref.load %arg3[%c83] : memref<288xf32, #tpu.memory_space<smem>>
    %323 = vector.broadcast %322 : f32 to vector<1x256xf32>
    %324 = arith.mulf %323, %313 : vector<1x256xf32>
    %325 = arith.addf %308, %324 : vector<1x256xf32>
    %c119 = arith.constant 119 : index
    %326 = memref.load %arg3[%c119] : memref<288xf32, #tpu.memory_space<smem>>
    %327 = vector.broadcast %326 : f32 to vector<1x256xf32>
    %328 = arith.mulf %327, %313 : vector<1x256xf32>
    %329 = arith.addf %312, %328 : vector<1x256xf32>
    %330 = vector.extract_strided_slice %295 {offsets = [2, 0], sizes = [1, 256], strides = [1, 1]} : vector<8x256xf32> to vector<1x256xf32>
    %c20 = arith.constant 20 : index
    %331 = memref.load %arg3[%c20] : memref<288xf32, #tpu.memory_space<smem>>
    %332 = vector.broadcast %331 : f32 to vector<1x256xf32>
    %333 = arith.mulf %332, %330 : vector<1x256xf32>
    %334 = arith.addf %317, %333 : vector<1x256xf32>
    %c56 = arith.constant 56 : index
    %335 = memref.load %arg3[%c56] : memref<288xf32, #tpu.memory_space<smem>>
    %336 = vector.broadcast %335 : f32 to vector<1x256xf32>
    %337 = arith.mulf %336, %330 : vector<1x256xf32>
    %338 = arith.addf %321, %337 : vector<1x256xf32>
    %c92 = arith.constant 92 : index
    %339 = memref.load %arg3[%c92] : memref<288xf32, #tpu.memory_space<smem>>
    %340 = vector.broadcast %339 : f32 to vector<1x256xf32>
    %341 = arith.mulf %340, %330 : vector<1x256xf32>
    %342 = arith.addf %325, %341 : vector<1x256xf32>
    %c128 = arith.constant 128 : index
    %343 = memref.load %arg3[%c128] : memref<288xf32, #tpu.memory_space<smem>>
    %344 = vector.broadcast %343 : f32 to vector<1x256xf32>
    %345 = arith.mulf %344, %330 : vector<1x256xf32>
    %346 = arith.addf %329, %345 : vector<1x256xf32>
    %347 = vector.extract_strided_slice %295 {offsets = [3, 0], sizes = [1, 256], strides = [1, 1]} : vector<8x256xf32> to vector<1x256xf32>
    %c29 = arith.constant 29 : index
    %348 = memref.load %arg3[%c29] : memref<288xf32, #tpu.memory_space<smem>>
    %349 = vector.broadcast %348 : f32 to vector<1x256xf32>
    %350 = arith.mulf %349, %347 : vector<1x256xf32>
    %351 = arith.addf %334, %350 : vector<1x256xf32>
    %c65 = arith.constant 65 : index
    %352 = memref.load %arg3[%c65] : memref<288xf32, #tpu.memory_space<smem>>
    %353 = vector.broadcast %352 : f32 to vector<1x256xf32>
    %354 = arith.mulf %353, %347 : vector<1x256xf32>
    %355 = arith.addf %338, %354 : vector<1x256xf32>
    %c101 = arith.constant 101 : index
    %356 = memref.load %arg3[%c101] : memref<288xf32, #tpu.memory_space<smem>>
    %357 = vector.broadcast %356 : f32 to vector<1x256xf32>
    %358 = arith.mulf %357, %347 : vector<1x256xf32>
    %359 = arith.addf %342, %358 : vector<1x256xf32>
    %c137 = arith.constant 137 : index
    %360 = memref.load %arg3[%c137] : memref<288xf32, #tpu.memory_space<smem>>
    %361 = vector.broadcast %360 : f32 to vector<1x256xf32>
    %362 = arith.mulf %361, %347 : vector<1x256xf32>
    %363 = arith.addf %346, %362 : vector<1x256xf32>
    %364 = vector.extract_strided_slice %295 {offsets = [4, 0], sizes = [1, 256], strides = [1, 1]} : vector<8x256xf32> to vector<1x256xf32>
    %c2_43 = arith.constant 2 : index
    %365 = memref.load %arg3[%c2_43] : memref<288xf32, #tpu.memory_space<smem>>
    %366 = vector.broadcast %365 : f32 to vector<1x256xf32>
    %367 = arith.mulf %366, %364 : vector<1x256xf32>
    %368 = arith.addf %273, %367 : vector<1x256xf32>
    %c38_44 = arith.constant 38 : index
    %369 = memref.load %arg3[%c38_44] : memref<288xf32, #tpu.memory_space<smem>>
    %370 = vector.broadcast %369 : f32 to vector<1x256xf32>
    %371 = arith.mulf %370, %364 : vector<1x256xf32>
    %372 = arith.addf %277, %371 : vector<1x256xf32>
    %c74_45 = arith.constant 74 : index
    %373 = memref.load %arg3[%c74_45] : memref<288xf32, #tpu.memory_space<smem>>
    %374 = vector.broadcast %373 : f32 to vector<1x256xf32>
    %375 = arith.mulf %374, %364 : vector<1x256xf32>
    %376 = arith.addf %281, %375 : vector<1x256xf32>
    %c110_46 = arith.constant 110 : index
    %377 = memref.load %arg3[%c110_46] : memref<288xf32, #tpu.memory_space<smem>>
    %378 = vector.broadcast %377 : f32 to vector<1x256xf32>
    %379 = arith.mulf %378, %364 : vector<1x256xf32>
    %380 = arith.addf %285, %379 : vector<1x256xf32>
    %381 = vector.extract_strided_slice %295 {offsets = [5, 0], sizes = [1, 256], strides = [1, 1]} : vector<8x256xf32> to vector<1x256xf32>
    %c11_47 = arith.constant 11 : index
    %382 = memref.load %arg3[%c11_47] : memref<288xf32, #tpu.memory_space<smem>>
    %383 = vector.broadcast %382 : f32 to vector<1x256xf32>
    %384 = arith.mulf %383, %381 : vector<1x256xf32>
    %385 = arith.addf %368, %384 : vector<1x256xf32>
    %c47_48 = arith.constant 47 : index
    %386 = memref.load %arg3[%c47_48] : memref<288xf32, #tpu.memory_space<smem>>
    %387 = vector.broadcast %386 : f32 to vector<1x256xf32>
    %388 = arith.mulf %387, %381 : vector<1x256xf32>
    %389 = arith.addf %372, %388 : vector<1x256xf32>
    %c83_49 = arith.constant 83 : index
    %390 = memref.load %arg3[%c83_49] : memref<288xf32, #tpu.memory_space<smem>>
    %391 = vector.broadcast %390 : f32 to vector<1x256xf32>
    %392 = arith.mulf %391, %381 : vector<1x256xf32>
    %393 = arith.addf %376, %392 : vector<1x256xf32>
    %c119_50 = arith.constant 119 : index
    %394 = memref.load %arg3[%c119_50] : memref<288xf32, #tpu.memory_space<smem>>
    %395 = vector.broadcast %394 : f32 to vector<1x256xf32>
    %396 = arith.mulf %395, %381 : vector<1x256xf32>
    %397 = arith.addf %380, %396 : vector<1x256xf32>
    %398 = vector.extract_strided_slice %295 {offsets = [6, 0], sizes = [1, 256], strides = [1, 1]} : vector<8x256xf32> to vector<1x256xf32>
    %c20_51 = arith.constant 20 : index
    %399 = memref.load %arg3[%c20_51] : memref<288xf32, #tpu.memory_space<smem>>
    %400 = vector.broadcast %399 : f32 to vector<1x256xf32>
    %401 = arith.mulf %400, %398 : vector<1x256xf32>
    %402 = arith.addf %385, %401 : vector<1x256xf32>
    %c56_52 = arith.constant 56 : index
    %403 = memref.load %arg3[%c56_52] : memref<288xf32, #tpu.memory_space<smem>>
    %404 = vector.broadcast %403 : f32 to vector<1x256xf32>
    %405 = arith.mulf %404, %398 : vector<1x256xf32>
    %406 = arith.addf %389, %405 : vector<1x256xf32>
    %c92_53 = arith.constant 92 : index
    %407 = memref.load %arg3[%c92_53] : memref<288xf32, #tpu.memory_space<smem>>
    %408 = vector.broadcast %407 : f32 to vector<1x256xf32>
    %409 = arith.mulf %408, %398 : vector<1x256xf32>
    %410 = arith.addf %393, %409 : vector<1x256xf32>
    %c128_54 = arith.constant 128 : index
    %411 = memref.load %arg3[%c128_54] : memref<288xf32, #tpu.memory_space<smem>>
    %412 = vector.broadcast %411 : f32 to vector<1x256xf32>
    %413 = arith.mulf %412, %398 : vector<1x256xf32>
    %414 = arith.addf %397, %413 : vector<1x256xf32>
    %415 = vector.extract_strided_slice %295 {offsets = [7, 0], sizes = [1, 256], strides = [1, 1]} : vector<8x256xf32> to vector<1x256xf32>
    %c29_55 = arith.constant 29 : index
    %416 = memref.load %arg3[%c29_55] : memref<288xf32, #tpu.memory_space<smem>>
    %417 = vector.broadcast %416 : f32 to vector<1x256xf32>
    %418 = arith.mulf %417, %415 : vector<1x256xf32>
    %419 = arith.addf %402, %418 : vector<1x256xf32>
    %c65_56 = arith.constant 65 : index
    %420 = memref.load %arg3[%c65_56] : memref<288xf32, #tpu.memory_space<smem>>
    %421 = vector.broadcast %420 : f32 to vector<1x256xf32>
    %422 = arith.mulf %421, %415 : vector<1x256xf32>
    %423 = arith.addf %406, %422 : vector<1x256xf32>
    %c101_57 = arith.constant 101 : index
    %424 = memref.load %arg3[%c101_57] : memref<288xf32, #tpu.memory_space<smem>>
    %425 = vector.broadcast %424 : f32 to vector<1x256xf32>
    %426 = arith.mulf %425, %415 : vector<1x256xf32>
    %427 = arith.addf %410, %426 : vector<1x256xf32>
    %c137_58 = arith.constant 137 : index
    %428 = memref.load %arg3[%c137_58] : memref<288xf32, #tpu.memory_space<smem>>
    %429 = vector.broadcast %428 : f32 to vector<1x256xf32>
    %430 = arith.mulf %429, %415 : vector<1x256xf32>
    %431 = arith.addf %414, %430 : vector<1x256xf32>
    %c1_i32_59 = arith.constant 1 : i32
    %432 = tpu.dynamic_rotate %4 by %c1_i32_59 dim 1 : vector<8x256xf32>, i32 -> vector<8x256xf32>
    %c1_i32_60 = arith.constant 1 : i32
    %433 = vector.broadcast %c1_i32_60 : i32 to vector<1x256xi32>
    %434 = arith.cmpi sge, %2, %433 : vector<1x256xi32>
    %cst_61 = arith.constant 0.000000e+00 : f32
    %435 = vector.shape_cast %434 : vector<1x256xi1> to vector<1x256xi1>
    %436 = vector.broadcast %435 : vector<1x256xi1> to vector<8x256xi1>
    %437 = vector.broadcast %cst_61 : f32 to vector<8x256xf32>
    %438 = arith.select %436, %432, %437 : vector<8x256xi1>, vector<8x256xf32>
    %439 = vector.extract_strided_slice %438 {offsets = [0, 0], sizes = [1, 256], strides = [1, 1]} : vector<8x256xf32> to vector<1x256xf32>
    %c3 = arith.constant 3 : index
    %440 = memref.load %arg3[%c3] : memref<288xf32, #tpu.memory_space<smem>>
    %441 = vector.broadcast %440 : f32 to vector<1x256xf32>
    %442 = arith.mulf %441, %439 : vector<1x256xf32>
    %443 = arith.addf %351, %442 : vector<1x256xf32>
    %c39 = arith.constant 39 : index
    %444 = memref.load %arg3[%c39] : memref<288xf32, #tpu.memory_space<smem>>
    %445 = vector.broadcast %444 : f32 to vector<1x256xf32>
    %446 = arith.mulf %445, %439 : vector<1x256xf32>
    %447 = arith.addf %355, %446 : vector<1x256xf32>
    %c75 = arith.constant 75 : index
    %448 = memref.load %arg3[%c75] : memref<288xf32, #tpu.memory_space<smem>>
    %449 = vector.broadcast %448 : f32 to vector<1x256xf32>
    %450 = arith.mulf %449, %439 : vector<1x256xf32>
    %451 = arith.addf %359, %450 : vector<1x256xf32>
    %c111 = arith.constant 111 : index
    %452 = memref.load %arg3[%c111] : memref<288xf32, #tpu.memory_space<smem>>
    %453 = vector.broadcast %452 : f32 to vector<1x256xf32>
    %454 = arith.mulf %453, %439 : vector<1x256xf32>
    %455 = arith.addf %363, %454 : vector<1x256xf32>
    %456 = vector.extract_strided_slice %438 {offsets = [1, 0], sizes = [1, 256], strides = [1, 1]} : vector<8x256xf32> to vector<1x256xf32>
    %c12 = arith.constant 12 : index
    %457 = memref.load %arg3[%c12] : memref<288xf32, #tpu.memory_space<smem>>
    %458 = vector.broadcast %457 : f32 to vector<1x256xf32>
    %459 = arith.mulf %458, %456 : vector<1x256xf32>
    %460 = arith.addf %443, %459 : vector<1x256xf32>
    %c48 = arith.constant 48 : index
    %461 = memref.load %arg3[%c48] : memref<288xf32, #tpu.memory_space<smem>>
    %462 = vector.broadcast %461 : f32 to vector<1x256xf32>
    %463 = arith.mulf %462, %456 : vector<1x256xf32>
    %464 = arith.addf %447, %463 : vector<1x256xf32>
    %c84 = arith.constant 84 : index
    %465 = memref.load %arg3[%c84] : memref<288xf32, #tpu.memory_space<smem>>
    %466 = vector.broadcast %465 : f32 to vector<1x256xf32>
    %467 = arith.mulf %466, %456 : vector<1x256xf32>
    %468 = arith.addf %451, %467 : vector<1x256xf32>
    %c120 = arith.constant 120 : index
    %469 = memref.load %arg3[%c120] : memref<288xf32, #tpu.memory_space<smem>>
    %470 = vector.broadcast %469 : f32 to vector<1x256xf32>
    %471 = arith.mulf %470, %456 : vector<1x256xf32>
    %472 = arith.addf %455, %471 : vector<1x256xf32>
    %473 = vector.extract_strided_slice %438 {offsets = [2, 0], sizes = [1, 256], strides = [1, 1]} : vector<8x256xf32> to vector<1x256xf32>
    %c21 = arith.constant 21 : index
    %474 = memref.load %arg3[%c21] : memref<288xf32, #tpu.memory_space<smem>>
    %475 = vector.broadcast %474 : f32 to vector<1x256xf32>
    %476 = arith.mulf %475, %473 : vector<1x256xf32>
    %477 = arith.addf %460, %476 : vector<1x256xf32>
    %c57 = arith.constant 57 : index
    %478 = memref.load %arg3[%c57] : memref<288xf32, #tpu.memory_space<smem>>
    %479 = vector.broadcast %478 : f32 to vector<1x256xf32>
    %480 = arith.mulf %479, %473 : vector<1x256xf32>
    %481 = arith.addf %464, %480 : vector<1x256xf32>
    %c93 = arith.constant 93 : index
    %482 = memref.load %arg3[%c93] : memref<288xf32, #tpu.memory_space<smem>>
    %483 = vector.broadcast %482 : f32 to vector<1x256xf32>
    %484 = arith.mulf %483, %473 : vector<1x256xf32>
    %485 = arith.addf %468, %484 : vector<1x256xf32>
    %c129 = arith.constant 129 : index
    %486 = memref.load %arg3[%c129] : memref<288xf32, #tpu.memory_space<smem>>
    %487 = vector.broadcast %486 : f32 to vector<1x256xf32>
    %488 = arith.mulf %487, %473 : vector<1x256xf32>
    %489 = arith.addf %472, %488 : vector<1x256xf32>
    %490 = vector.extract_strided_slice %438 {offsets = [3, 0], sizes = [1, 256], strides = [1, 1]} : vector<8x256xf32> to vector<1x256xf32>
    %c30 = arith.constant 30 : index
    %491 = memref.load %arg3[%c30] : memref<288xf32, #tpu.memory_space<smem>>
    %492 = vector.broadcast %491 : f32 to vector<1x256xf32>
    %493 = arith.mulf %492, %490 : vector<1x256xf32>
    %494 = arith.addf %477, %493 : vector<1x256xf32>
    %c66 = arith.constant 66 : index
    %495 = memref.load %arg3[%c66] : memref<288xf32, #tpu.memory_space<smem>>
    %496 = vector.broadcast %495 : f32 to vector<1x256xf32>
    %497 = arith.mulf %496, %490 : vector<1x256xf32>
    %498 = arith.addf %481, %497 : vector<1x256xf32>
    %c102 = arith.constant 102 : index
    %499 = memref.load %arg3[%c102] : memref<288xf32, #tpu.memory_space<smem>>
    %500 = vector.broadcast %499 : f32 to vector<1x256xf32>
    %501 = arith.mulf %500, %490 : vector<1x256xf32>
    %502 = arith.addf %485, %501 : vector<1x256xf32>
    %c138 = arith.constant 138 : index
    %503 = memref.load %arg3[%c138] : memref<288xf32, #tpu.memory_space<smem>>
    %504 = vector.broadcast %503 : f32 to vector<1x256xf32>
    %505 = arith.mulf %504, %490 : vector<1x256xf32>
    %506 = arith.addf %489, %505 : vector<1x256xf32>
    %507 = vector.extract_strided_slice %438 {offsets = [4, 0], sizes = [1, 256], strides = [1, 1]} : vector<8x256xf32> to vector<1x256xf32>
    %c3_62 = arith.constant 3 : index
    %508 = memref.load %arg3[%c3_62] : memref<288xf32, #tpu.memory_space<smem>>
    %509 = vector.broadcast %508 : f32 to vector<1x256xf32>
    %510 = arith.mulf %509, %507 : vector<1x256xf32>
    %511 = arith.addf %419, %510 : vector<1x256xf32>
    %c39_63 = arith.constant 39 : index
    %512 = memref.load %arg3[%c39_63] : memref<288xf32, #tpu.memory_space<smem>>
    %513 = vector.broadcast %512 : f32 to vector<1x256xf32>
    %514 = arith.mulf %513, %507 : vector<1x256xf32>
    %515 = arith.addf %423, %514 : vector<1x256xf32>
    %c75_64 = arith.constant 75 : index
    %516 = memref.load %arg3[%c75_64] : memref<288xf32, #tpu.memory_space<smem>>
    %517 = vector.broadcast %516 : f32 to vector<1x256xf32>
    %518 = arith.mulf %517, %507 : vector<1x256xf32>
    %519 = arith.addf %427, %518 : vector<1x256xf32>
    %c111_65 = arith.constant 111 : index
    %520 = memref.load %arg3[%c111_65] : memref<288xf32, #tpu.memory_space<smem>>
    %521 = vector.broadcast %520 : f32 to vector<1x256xf32>
    %522 = arith.mulf %521, %507 : vector<1x256xf32>
    %523 = arith.addf %431, %522 : vector<1x256xf32>
    %524 = vector.extract_strided_slice %438 {offsets = [5, 0], sizes = [1, 256], strides = [1, 1]} : vector<8x256xf32> to vector<1x256xf32>
    %c12_66 = arith.constant 12 : index
    %525 = memref.load %arg3[%c12_66] : memref<288xf32, #tpu.memory_space<smem>>
    %526 = vector.broadcast %525 : f32 to vector<1x256xf32>
    %527 = arith.mulf %526, %524 : vector<1x256xf32>
    %528 = arith.addf %511, %527 : vector<1x256xf32>
    %c48_67 = arith.constant 48 : index
    %529 = memref.load %arg3[%c48_67] : memref<288xf32, #tpu.memory_space<smem>>
    %530 = vector.broadcast %529 : f32 to vector<1x256xf32>
    %531 = arith.mulf %530, %524 : vector<1x256xf32>
    %532 = arith.addf %515, %531 : vector<1x256xf32>
    %c84_68 = arith.constant 84 : index
    %533 = memref.load %arg3[%c84_68] : memref<288xf32, #tpu.memory_space<smem>>
    %534 = vector.broadcast %533 : f32 to vector<1x256xf32>
    %535 = arith.mulf %534, %524 : vector<1x256xf32>
    %536 = arith.addf %519, %535 : vector<1x256xf32>
    %c120_69 = arith.constant 120 : index
    %537 = memref.load %arg3[%c120_69] : memref<288xf32, #tpu.memory_space<smem>>
    %538 = vector.broadcast %537 : f32 to vector<1x256xf32>
    %539 = arith.mulf %538, %524 : vector<1x256xf32>
    %540 = arith.addf %523, %539 : vector<1x256xf32>
    %541 = vector.extract_strided_slice %438 {offsets = [6, 0], sizes = [1, 256], strides = [1, 1]} : vector<8x256xf32> to vector<1x256xf32>
    %c21_70 = arith.constant 21 : index
    %542 = memref.load %arg3[%c21_70] : memref<288xf32, #tpu.memory_space<smem>>
    %543 = vector.broadcast %542 : f32 to vector<1x256xf32>
    %544 = arith.mulf %543, %541 : vector<1x256xf32>
    %545 = arith.addf %528, %544 : vector<1x256xf32>
    %c57_71 = arith.constant 57 : index
    %546 = memref.load %arg3[%c57_71] : memref<288xf32, #tpu.memory_space<smem>>
    %547 = vector.broadcast %546 : f32 to vector<1x256xf32>
    %548 = arith.mulf %547, %541 : vector<1x256xf32>
    %549 = arith.addf %532, %548 : vector<1x256xf32>
    %c93_72 = arith.constant 93 : index
    %550 = memref.load %arg3[%c93_72] : memref<288xf32, #tpu.memory_space<smem>>
    %551 = vector.broadcast %550 : f32 to vector<1x256xf32>
    %552 = arith.mulf %551, %541 : vector<1x256xf32>
    %553 = arith.addf %536, %552 : vector<1x256xf32>
    %c129_73 = arith.constant 129 : index
    %554 = memref.load %arg3[%c129_73] : memref<288xf32, #tpu.memory_space<smem>>
    %555 = vector.broadcast %554 : f32 to vector<1x256xf32>
    %556 = arith.mulf %555, %541 : vector<1x256xf32>
    %557 = arith.addf %540, %556 : vector<1x256xf32>
    %558 = vector.extract_strided_slice %438 {offsets = [7, 0], sizes = [1, 256], strides = [1, 1]} : vector<8x256xf32> to vector<1x256xf32>
    %c30_74 = arith.constant 30 : index
    %559 = memref.load %arg3[%c30_74] : memref<288xf32, #tpu.memory_space<smem>>
    %560 = vector.broadcast %559 : f32 to vector<1x256xf32>
    %561 = arith.mulf %560, %558 : vector<1x256xf32>
    %562 = arith.addf %545, %561 : vector<1x256xf32>
    %c66_75 = arith.constant 66 : index
    %563 = memref.load %arg3[%c66_75] : memref<288xf32, #tpu.memory_space<smem>>
    %564 = vector.broadcast %563 : f32 to vector<1x256xf32>
    %565 = arith.mulf %564, %558 : vector<1x256xf32>
    %566 = arith.addf %549, %565 : vector<1x256xf32>
    %c102_76 = arith.constant 102 : index
    %567 = memref.load %arg3[%c102_76] : memref<288xf32, #tpu.memory_space<smem>>
    %568 = vector.broadcast %567 : f32 to vector<1x256xf32>
    %569 = arith.mulf %568, %558 : vector<1x256xf32>
    %570 = arith.addf %553, %569 : vector<1x256xf32>
    %c138_77 = arith.constant 138 : index
    %571 = memref.load %arg3[%c138_77] : memref<288xf32, #tpu.memory_space<smem>>
    %572 = vector.broadcast %571 : f32 to vector<1x256xf32>
    %573 = arith.mulf %572, %558 : vector<1x256xf32>
    %574 = arith.addf %557, %573 : vector<1x256xf32>
    %575 = vector.extract_strided_slice %4 {offsets = [0, 0], sizes = [1, 256], strides = [1, 1]} : vector<8x256xf32> to vector<1x256xf32>
    %c4 = arith.constant 4 : index
    %576 = memref.load %arg3[%c4] : memref<288xf32, #tpu.memory_space<smem>>
    %577 = vector.broadcast %576 : f32 to vector<1x256xf32>
    %578 = arith.mulf %577, %575 : vector<1x256xf32>
    %579 = arith.addf %494, %578 : vector<1x256xf32>
    %c40 = arith.constant 40 : index
    %580 = memref.load %arg3[%c40] : memref<288xf32, #tpu.memory_space<smem>>
    %581 = vector.broadcast %580 : f32 to vector<1x256xf32>
    %582 = arith.mulf %581, %575 : vector<1x256xf32>
    %583 = arith.addf %498, %582 : vector<1x256xf32>
    %c76 = arith.constant 76 : index
    %584 = memref.load %arg3[%c76] : memref<288xf32, #tpu.memory_space<smem>>
    %585 = vector.broadcast %584 : f32 to vector<1x256xf32>
    %586 = arith.mulf %585, %575 : vector<1x256xf32>
    %587 = arith.addf %502, %586 : vector<1x256xf32>
    %c112 = arith.constant 112 : index
    %588 = memref.load %arg3[%c112] : memref<288xf32, #tpu.memory_space<smem>>
    %589 = vector.broadcast %588 : f32 to vector<1x256xf32>
    %590 = arith.mulf %589, %575 : vector<1x256xf32>
    %591 = arith.addf %506, %590 : vector<1x256xf32>
    %592 = vector.extract_strided_slice %4 {offsets = [1, 0], sizes = [1, 256], strides = [1, 1]} : vector<8x256xf32> to vector<1x256xf32>
    %c13 = arith.constant 13 : index
    %593 = memref.load %arg3[%c13] : memref<288xf32, #tpu.memory_space<smem>>
    %594 = vector.broadcast %593 : f32 to vector<1x256xf32>
    %595 = arith.mulf %594, %592 : vector<1x256xf32>
    %596 = arith.addf %579, %595 : vector<1x256xf32>
    %c49 = arith.constant 49 : index
    %597 = memref.load %arg3[%c49] : memref<288xf32, #tpu.memory_space<smem>>
    %598 = vector.broadcast %597 : f32 to vector<1x256xf32>
    %599 = arith.mulf %598, %592 : vector<1x256xf32>
    %600 = arith.addf %583, %599 : vector<1x256xf32>
    %c85 = arith.constant 85 : index
    %601 = memref.load %arg3[%c85] : memref<288xf32, #tpu.memory_space<smem>>
    %602 = vector.broadcast %601 : f32 to vector<1x256xf32>
    %603 = arith.mulf %602, %592 : vector<1x256xf32>
    %604 = arith.addf %587, %603 : vector<1x256xf32>
    %c121 = arith.constant 121 : index
    %605 = memref.load %arg3[%c121] : memref<288xf32, #tpu.memory_space<smem>>
    %606 = vector.broadcast %605 : f32 to vector<1x256xf32>
    %607 = arith.mulf %606, %592 : vector<1x256xf32>
    %608 = arith.addf %591, %607 : vector<1x256xf32>
    %609 = vector.extract_strided_slice %4 {offsets = [2, 0], sizes = [1, 256], strides = [1, 1]} : vector<8x256xf32> to vector<1x256xf32>
    %c22 = arith.constant 22 : index
    %610 = memref.load %arg3[%c22] : memref<288xf32, #tpu.memory_space<smem>>
    %611 = vector.broadcast %610 : f32 to vector<1x256xf32>
    %612 = arith.mulf %611, %609 : vector<1x256xf32>
    %613 = arith.addf %596, %612 : vector<1x256xf32>
    %c58 = arith.constant 58 : index
    %614 = memref.load %arg3[%c58] : memref<288xf32, #tpu.memory_space<smem>>
    %615 = vector.broadcast %614 : f32 to vector<1x256xf32>
    %616 = arith.mulf %615, %609 : vector<1x256xf32>
    %617 = arith.addf %600, %616 : vector<1x256xf32>
    %c94 = arith.constant 94 : index
    %618 = memref.load %arg3[%c94] : memref<288xf32, #tpu.memory_space<smem>>
    %619 = vector.broadcast %618 : f32 to vector<1x256xf32>
    %620 = arith.mulf %619, %609 : vector<1x256xf32>
    %621 = arith.addf %604, %620 : vector<1x256xf32>
    %c130 = arith.constant 130 : index
    %622 = memref.load %arg3[%c130] : memref<288xf32, #tpu.memory_space<smem>>
    %623 = vector.broadcast %622 : f32 to vector<1x256xf32>
    %624 = arith.mulf %623, %609 : vector<1x256xf32>
    %625 = arith.addf %608, %624 : vector<1x256xf32>
    %626 = vector.extract_strided_slice %4 {offsets = [3, 0], sizes = [1, 256], strides = [1, 1]} : vector<8x256xf32> to vector<1x256xf32>
    %c31 = arith.constant 31 : index
    %627 = memref.load %arg3[%c31] : memref<288xf32, #tpu.memory_space<smem>>
    %628 = vector.broadcast %627 : f32 to vector<1x256xf32>
    %629 = arith.mulf %628, %626 : vector<1x256xf32>
    %630 = arith.addf %613, %629 : vector<1x256xf32>
    %c67 = arith.constant 67 : index
    %631 = memref.load %arg3[%c67] : memref<288xf32, #tpu.memory_space<smem>>
    %632 = vector.broadcast %631 : f32 to vector<1x256xf32>
    %633 = arith.mulf %632, %626 : vector<1x256xf32>
    %634 = arith.addf %617, %633 : vector<1x256xf32>
    %c103 = arith.constant 103 : index
    %635 = memref.load %arg3[%c103] : memref<288xf32, #tpu.memory_space<smem>>
    %636 = vector.broadcast %635 : f32 to vector<1x256xf32>
    %637 = arith.mulf %636, %626 : vector<1x256xf32>
    %638 = arith.addf %621, %637 : vector<1x256xf32>
    %c139 = arith.constant 139 : index
    %639 = memref.load %arg3[%c139] : memref<288xf32, #tpu.memory_space<smem>>
    %640 = vector.broadcast %639 : f32 to vector<1x256xf32>
    %641 = arith.mulf %640, %626 : vector<1x256xf32>
    %642 = arith.addf %625, %641 : vector<1x256xf32>
    %643 = vector.extract_strided_slice %4 {offsets = [4, 0], sizes = [1, 256], strides = [1, 1]} : vector<8x256xf32> to vector<1x256xf32>
    %c4_78 = arith.constant 4 : index
    %644 = memref.load %arg3[%c4_78] : memref<288xf32, #tpu.memory_space<smem>>
    %645 = vector.broadcast %644 : f32 to vector<1x256xf32>
    %646 = arith.mulf %645, %643 : vector<1x256xf32>
    %647 = arith.addf %562, %646 : vector<1x256xf32>
    %c40_79 = arith.constant 40 : index
    %648 = memref.load %arg3[%c40_79] : memref<288xf32, #tpu.memory_space<smem>>
    %649 = vector.broadcast %648 : f32 to vector<1x256xf32>
    %650 = arith.mulf %649, %643 : vector<1x256xf32>
    %651 = arith.addf %566, %650 : vector<1x256xf32>
    %c76_80 = arith.constant 76 : index
    %652 = memref.load %arg3[%c76_80] : memref<288xf32, #tpu.memory_space<smem>>
    %653 = vector.broadcast %652 : f32 to vector<1x256xf32>
    %654 = arith.mulf %653, %643 : vector<1x256xf32>
    %655 = arith.addf %570, %654 : vector<1x256xf32>
    %c112_81 = arith.constant 112 : index
    %656 = memref.load %arg3[%c112_81] : memref<288xf32, #tpu.memory_space<smem>>
    %657 = vector.broadcast %656 : f32 to vector<1x256xf32>
    %658 = arith.mulf %657, %643 : vector<1x256xf32>
    %659 = arith.addf %574, %658 : vector<1x256xf32>
    %660 = vector.extract_strided_slice %4 {offsets = [5, 0], sizes = [1, 256], strides = [1, 1]} : vector<8x256xf32> to vector<1x256xf32>
    %c13_82 = arith.constant 13 : index
    %661 = memref.load %arg3[%c13_82] : memref<288xf32, #tpu.memory_space<smem>>
    %662 = vector.broadcast %661 : f32 to vector<1x256xf32>
    %663 = arith.mulf %662, %660 : vector<1x256xf32>
    %664 = arith.addf %647, %663 : vector<1x256xf32>
    %c49_83 = arith.constant 49 : index
    %665 = memref.load %arg3[%c49_83] : memref<288xf32, #tpu.memory_space<smem>>
    %666 = vector.broadcast %665 : f32 to vector<1x256xf32>
    %667 = arith.mulf %666, %660 : vector<1x256xf32>
    %668 = arith.addf %651, %667 : vector<1x256xf32>
    %c85_84 = arith.constant 85 : index
    %669 = memref.load %arg3[%c85_84] : memref<288xf32, #tpu.memory_space<smem>>
    %670 = vector.broadcast %669 : f32 to vector<1x256xf32>
    %671 = arith.mulf %670, %660 : vector<1x256xf32>
    %672 = arith.addf %655, %671 : vector<1x256xf32>
    %c121_85 = arith.constant 121 : index
    %673 = memref.load %arg3[%c121_85] : memref<288xf32, #tpu.memory_space<smem>>
    %674 = vector.broadcast %673 : f32 to vector<1x256xf32>
    %675 = arith.mulf %674, %660 : vector<1x256xf32>
    %676 = arith.addf %659, %675 : vector<1x256xf32>
    %677 = vector.extract_strided_slice %4 {offsets = [6, 0], sizes = [1, 256], strides = [1, 1]} : vector<8x256xf32> to vector<1x256xf32>
    %c22_86 = arith.constant 22 : index
    %678 = memref.load %arg3[%c22_86] : memref<288xf32, #tpu.memory_space<smem>>
    %679 = vector.broadcast %678 : f32 to vector<1x256xf32>
    %680 = arith.mulf %679, %677 : vector<1x256xf32>
    %681 = arith.addf %664, %680 : vector<1x256xf32>
    %c58_87 = arith.constant 58 : index
    %682 = memref.load %arg3[%c58_87] : memref<288xf32, #tpu.memory_space<smem>>
    %683 = vector.broadcast %682 : f32 to vector<1x256xf32>
    %684 = arith.mulf %683, %677 : vector<1x256xf32>
    %685 = arith.addf %668, %684 : vector<1x256xf32>
    %c94_88 = arith.constant 94 : index
    %686 = memref.load %arg3[%c94_88] : memref<288xf32, #tpu.memory_space<smem>>
    %687 = vector.broadcast %686 : f32 to vector<1x256xf32>
    %688 = arith.mulf %687, %677 : vector<1x256xf32>
    %689 = arith.addf %672, %688 : vector<1x256xf32>
    %c130_89 = arith.constant 130 : index
    %690 = memref.load %arg3[%c130_89] : memref<288xf32, #tpu.memory_space<smem>>
    %691 = vector.broadcast %690 : f32 to vector<1x256xf32>
    %692 = arith.mulf %691, %677 : vector<1x256xf32>
    %693 = arith.addf %676, %692 : vector<1x256xf32>
    %694 = vector.extract_strided_slice %4 {offsets = [7, 0], sizes = [1, 256], strides = [1, 1]} : vector<8x256xf32> to vector<1x256xf32>
    %c31_90 = arith.constant 31 : index
    %695 = memref.load %arg3[%c31_90] : memref<288xf32, #tpu.memory_space<smem>>
    %696 = vector.broadcast %695 : f32 to vector<1x256xf32>
    %697 = arith.mulf %696, %694 : vector<1x256xf32>
    %698 = arith.addf %681, %697 : vector<1x256xf32>
    %c67_91 = arith.constant 67 : index
    %699 = memref.load %arg3[%c67_91] : memref<288xf32, #tpu.memory_space<smem>>
    %700 = vector.broadcast %699 : f32 to vector<1x256xf32>
    %701 = arith.mulf %700, %694 : vector<1x256xf32>
    %702 = arith.addf %685, %701 : vector<1x256xf32>
    %c103_92 = arith.constant 103 : index
    %703 = memref.load %arg3[%c103_92] : memref<288xf32, #tpu.memory_space<smem>>
    %704 = vector.broadcast %703 : f32 to vector<1x256xf32>
    %705 = arith.mulf %704, %694 : vector<1x256xf32>
    %706 = arith.addf %689, %705 : vector<1x256xf32>
    %c139_93 = arith.constant 139 : index
    %707 = memref.load %arg3[%c139_93] : memref<288xf32, #tpu.memory_space<smem>>
    %708 = vector.broadcast %707 : f32 to vector<1x256xf32>
    %709 = arith.mulf %708, %694 : vector<1x256xf32>
    %710 = arith.addf %693, %709 : vector<1x256xf32>
    %c255_i32 = arith.constant 255 : i32
    %711 = tpu.dynamic_rotate %4 by %c255_i32 dim 1 : vector<8x256xf32>, i32 -> vector<8x256xf32>
    %c15_i32_94 = arith.constant 15 : i32
    %712 = vector.broadcast %c15_i32_94 : i32 to vector<1x256xi32>
    %713 = arith.cmpi slt, %2, %712 : vector<1x256xi32>
    %cst_95 = arith.constant 0.000000e+00 : f32
    %714 = vector.shape_cast %713 : vector<1x256xi1> to vector<1x256xi1>
    %715 = vector.broadcast %714 : vector<1x256xi1> to vector<8x256xi1>
    %716 = vector.broadcast %cst_95 : f32 to vector<8x256xf32>
    %717 = arith.select %715, %711, %716 : vector<8x256xi1>, vector<8x256xf32>
    %718 = vector.extract_strided_slice %717 {offsets = [0, 0], sizes = [1, 256], strides = [1, 1]} : vector<8x256xf32> to vector<1x256xf32>
    %c5 = arith.constant 5 : index
    %719 = memref.load %arg3[%c5] : memref<288xf32, #tpu.memory_space<smem>>
    %720 = vector.broadcast %719 : f32 to vector<1x256xf32>
    %721 = arith.mulf %720, %718 : vector<1x256xf32>
    %722 = arith.addf %630, %721 : vector<1x256xf32>
    %c41 = arith.constant 41 : index
    %723 = memref.load %arg3[%c41] : memref<288xf32, #tpu.memory_space<smem>>
    %724 = vector.broadcast %723 : f32 to vector<1x256xf32>
    %725 = arith.mulf %724, %718 : vector<1x256xf32>
    %726 = arith.addf %634, %725 : vector<1x256xf32>
    %c77 = arith.constant 77 : index
    %727 = memref.load %arg3[%c77] : memref<288xf32, #tpu.memory_space<smem>>
    %728 = vector.broadcast %727 : f32 to vector<1x256xf32>
    %729 = arith.mulf %728, %718 : vector<1x256xf32>
    %730 = arith.addf %638, %729 : vector<1x256xf32>
    %c113 = arith.constant 113 : index
    %731 = memref.load %arg3[%c113] : memref<288xf32, #tpu.memory_space<smem>>
    %732 = vector.broadcast %731 : f32 to vector<1x256xf32>
    %733 = arith.mulf %732, %718 : vector<1x256xf32>
    %734 = arith.addf %642, %733 : vector<1x256xf32>
    %735 = vector.extract_strided_slice %717 {offsets = [1, 0], sizes = [1, 256], strides = [1, 1]} : vector<8x256xf32> to vector<1x256xf32>
    %c14 = arith.constant 14 : index
    %736 = memref.load %arg3[%c14] : memref<288xf32, #tpu.memory_space<smem>>
    %737 = vector.broadcast %736 : f32 to vector<1x256xf32>
    %738 = arith.mulf %737, %735 : vector<1x256xf32>
    %739 = arith.addf %722, %738 : vector<1x256xf32>
    %c50 = arith.constant 50 : index
    %740 = memref.load %arg3[%c50] : memref<288xf32, #tpu.memory_space<smem>>
    %741 = vector.broadcast %740 : f32 to vector<1x256xf32>
    %742 = arith.mulf %741, %735 : vector<1x256xf32>
    %743 = arith.addf %726, %742 : vector<1x256xf32>
    %c86 = arith.constant 86 : index
    %744 = memref.load %arg3[%c86] : memref<288xf32, #tpu.memory_space<smem>>
    %745 = vector.broadcast %744 : f32 to vector<1x256xf32>
    %746 = arith.mulf %745, %735 : vector<1x256xf32>
    %747 = arith.addf %730, %746 : vector<1x256xf32>
    %c122 = arith.constant 122 : index
    %748 = memref.load %arg3[%c122] : memref<288xf32, #tpu.memory_space<smem>>
    %749 = vector.broadcast %748 : f32 to vector<1x256xf32>
    %750 = arith.mulf %749, %735 : vector<1x256xf32>
    %751 = arith.addf %734, %750 : vector<1x256xf32>
    %752 = vector.extract_strided_slice %717 {offsets = [2, 0], sizes = [1, 256], strides = [1, 1]} : vector<8x256xf32> to vector<1x256xf32>
    %c23 = arith.constant 23 : index
    %753 = memref.load %arg3[%c23] : memref<288xf32, #tpu.memory_space<smem>>
    %754 = vector.broadcast %753 : f32 to vector<1x256xf32>
    %755 = arith.mulf %754, %752 : vector<1x256xf32>
    %756 = arith.addf %739, %755 : vector<1x256xf32>
    %c59 = arith.constant 59 : index
    %757 = memref.load %arg3[%c59] : memref<288xf32, #tpu.memory_space<smem>>
    %758 = vector.broadcast %757 : f32 to vector<1x256xf32>
    %759 = arith.mulf %758, %752 : vector<1x256xf32>
    %760 = arith.addf %743, %759 : vector<1x256xf32>
    %c95 = arith.constant 95 : index
    %761 = memref.load %arg3[%c95] : memref<288xf32, #tpu.memory_space<smem>>
    %762 = vector.broadcast %761 : f32 to vector<1x256xf32>
    %763 = arith.mulf %762, %752 : vector<1x256xf32>
    %764 = arith.addf %747, %763 : vector<1x256xf32>
    %c131 = arith.constant 131 : index
    %765 = memref.load %arg3[%c131] : memref<288xf32, #tpu.memory_space<smem>>
    %766 = vector.broadcast %765 : f32 to vector<1x256xf32>
    %767 = arith.mulf %766, %752 : vector<1x256xf32>
    %768 = arith.addf %751, %767 : vector<1x256xf32>
    %769 = vector.extract_strided_slice %717 {offsets = [3, 0], sizes = [1, 256], strides = [1, 1]} : vector<8x256xf32> to vector<1x256xf32>
    %c32 = arith.constant 32 : index
    %770 = memref.load %arg3[%c32] : memref<288xf32, #tpu.memory_space<smem>>
    %771 = vector.broadcast %770 : f32 to vector<1x256xf32>
    %772 = arith.mulf %771, %769 : vector<1x256xf32>
    %773 = arith.addf %756, %772 : vector<1x256xf32>
    %c68 = arith.constant 68 : index
    %774 = memref.load %arg3[%c68] : memref<288xf32, #tpu.memory_space<smem>>
    %775 = vector.broadcast %774 : f32 to vector<1x256xf32>
    %776 = arith.mulf %775, %769 : vector<1x256xf32>
    %777 = arith.addf %760, %776 : vector<1x256xf32>
    %c104 = arith.constant 104 : index
    %778 = memref.load %arg3[%c104] : memref<288xf32, #tpu.memory_space<smem>>
    %779 = vector.broadcast %778 : f32 to vector<1x256xf32>
    %780 = arith.mulf %779, %769 : vector<1x256xf32>
    %781 = arith.addf %764, %780 : vector<1x256xf32>
    %c140 = arith.constant 140 : index
    %782 = memref.load %arg3[%c140] : memref<288xf32, #tpu.memory_space<smem>>
    %783 = vector.broadcast %782 : f32 to vector<1x256xf32>
    %784 = arith.mulf %783, %769 : vector<1x256xf32>
    %785 = arith.addf %768, %784 : vector<1x256xf32>
    %786 = vector.extract_strided_slice %717 {offsets = [4, 0], sizes = [1, 256], strides = [1, 1]} : vector<8x256xf32> to vector<1x256xf32>
    %c5_96 = arith.constant 5 : index
    %787 = memref.load %arg3[%c5_96] : memref<288xf32, #tpu.memory_space<smem>>
    %788 = vector.broadcast %787 : f32 to vector<1x256xf32>
    %789 = arith.mulf %788, %786 : vector<1x256xf32>
    %790 = arith.addf %698, %789 : vector<1x256xf32>
    %c41_97 = arith.constant 41 : index
    %791 = memref.load %arg3[%c41_97] : memref<288xf32, #tpu.memory_space<smem>>
    %792 = vector.broadcast %791 : f32 to vector<1x256xf32>
    %793 = arith.mulf %792, %786 : vector<1x256xf32>
    %794 = arith.addf %702, %793 : vector<1x256xf32>
    %c77_98 = arith.constant 77 : index
    %795 = memref.load %arg3[%c77_98] : memref<288xf32, #tpu.memory_space<smem>>
    %796 = vector.broadcast %795 : f32 to vector<1x256xf32>
    %797 = arith.mulf %796, %786 : vector<1x256xf32>
    %798 = arith.addf %706, %797 : vector<1x256xf32>
    %c113_99 = arith.constant 113 : index
    %799 = memref.load %arg3[%c113_99] : memref<288xf32, #tpu.memory_space<smem>>
    %800 = vector.broadcast %799 : f32 to vector<1x256xf32>
    %801 = arith.mulf %800, %786 : vector<1x256xf32>
    %802 = arith.addf %710, %801 : vector<1x256xf32>
    %803 = vector.extract_strided_slice %717 {offsets = [5, 0], sizes = [1, 256], strides = [1, 1]} : vector<8x256xf32> to vector<1x256xf32>
    %c14_100 = arith.constant 14 : index
    %804 = memref.load %arg3[%c14_100] : memref<288xf32, #tpu.memory_space<smem>>
    %805 = vector.broadcast %804 : f32 to vector<1x256xf32>
    %806 = arith.mulf %805, %803 : vector<1x256xf32>
    %807 = arith.addf %790, %806 : vector<1x256xf32>
    %c50_101 = arith.constant 50 : index
    %808 = memref.load %arg3[%c50_101] : memref<288xf32, #tpu.memory_space<smem>>
    %809 = vector.broadcast %808 : f32 to vector<1x256xf32>
    %810 = arith.mulf %809, %803 : vector<1x256xf32>
    %811 = arith.addf %794, %810 : vector<1x256xf32>
    %c86_102 = arith.constant 86 : index
    %812 = memref.load %arg3[%c86_102] : memref<288xf32, #tpu.memory_space<smem>>
    %813 = vector.broadcast %812 : f32 to vector<1x256xf32>
    %814 = arith.mulf %813, %803 : vector<1x256xf32>
    %815 = arith.addf %798, %814 : vector<1x256xf32>
    %c122_103 = arith.constant 122 : index
    %816 = memref.load %arg3[%c122_103] : memref<288xf32, #tpu.memory_space<smem>>
    %817 = vector.broadcast %816 : f32 to vector<1x256xf32>
    %818 = arith.mulf %817, %803 : vector<1x256xf32>
    %819 = arith.addf %802, %818 : vector<1x256xf32>
    %820 = vector.extract_strided_slice %717 {offsets = [6, 0], sizes = [1, 256], strides = [1, 1]} : vector<8x256xf32> to vector<1x256xf32>
    %c23_104 = arith.constant 23 : index
    %821 = memref.load %arg3[%c23_104] : memref<288xf32, #tpu.memory_space<smem>>
    %822 = vector.broadcast %821 : f32 to vector<1x256xf32>
    %823 = arith.mulf %822, %820 : vector<1x256xf32>
    %824 = arith.addf %807, %823 : vector<1x256xf32>
    %c59_105 = arith.constant 59 : index
    %825 = memref.load %arg3[%c59_105] : memref<288xf32, #tpu.memory_space<smem>>
    %826 = vector.broadcast %825 : f32 to vector<1x256xf32>
    %827 = arith.mulf %826, %820 : vector<1x256xf32>
    %828 = arith.addf %811, %827 : vector<1x256xf32>
    %c95_106 = arith.constant 95 : index
    %829 = memref.load %arg3[%c95_106] : memref<288xf32, #tpu.memory_space<smem>>
    %830 = vector.broadcast %829 : f32 to vector<1x256xf32>
    %831 = arith.mulf %830, %820 : vector<1x256xf32>
    %832 = arith.addf %815, %831 : vector<1x256xf32>
    %c131_107 = arith.constant 131 : index
    %833 = memref.load %arg3[%c131_107] : memref<288xf32, #tpu.memory_space<smem>>
    %834 = vector.broadcast %833 : f32 to vector<1x256xf32>
    %835 = arith.mulf %834, %820 : vector<1x256xf32>
    %836 = arith.addf %819, %835 : vector<1x256xf32>
    %837 = vector.extract_strided_slice %717 {offsets = [7, 0], sizes = [1, 256], strides = [1, 1]} : vector<8x256xf32> to vector<1x256xf32>
    %c32_108 = arith.constant 32 : index
    %838 = memref.load %arg3[%c32_108] : memref<288xf32, #tpu.memory_space<smem>>
    %839 = vector.broadcast %838 : f32 to vector<1x256xf32>
    %840 = arith.mulf %839, %837 : vector<1x256xf32>
    %841 = arith.addf %824, %840 : vector<1x256xf32>
    %c68_109 = arith.constant 68 : index
    %842 = memref.load %arg3[%c68_109] : memref<288xf32, #tpu.memory_space<smem>>
    %843 = vector.broadcast %842 : f32 to vector<1x256xf32>
    %844 = arith.mulf %843, %837 : vector<1x256xf32>
    %845 = arith.addf %828, %844 : vector<1x256xf32>
    %c104_110 = arith.constant 104 : index
    %846 = memref.load %arg3[%c104_110] : memref<288xf32, #tpu.memory_space<smem>>
    %847 = vector.broadcast %846 : f32 to vector<1x256xf32>
    %848 = arith.mulf %847, %837 : vector<1x256xf32>
    %849 = arith.addf %832, %848 : vector<1x256xf32>
    %c140_111 = arith.constant 140 : index
    %850 = memref.load %arg3[%c140_111] : memref<288xf32, #tpu.memory_space<smem>>
    %851 = vector.broadcast %850 : f32 to vector<1x256xf32>
    %852 = arith.mulf %851, %837 : vector<1x256xf32>
    %853 = arith.addf %836, %852 : vector<1x256xf32>
    %c241_i32 = arith.constant 241 : i32
    %854 = tpu.dynamic_rotate %4 by %c241_i32 dim 1 : vector<8x256xf32>, i32 -> vector<8x256xf32>
    %c15_i32_112 = arith.constant 15 : i32
    %855 = vector.broadcast %c15_i32_112 : i32 to vector<1x256xi32>
    %856 = arith.cmpi slt, %1, %855 : vector<1x256xi32>
    %c1_i32_113 = arith.constant 1 : i32
    %857 = vector.broadcast %c1_i32_113 : i32 to vector<1x256xi32>
    %858 = arith.cmpi sge, %2, %857 : vector<1x256xi32>
    %859 = arith.andi %856, %858 : vector<1x256xi1>
    %cst_114 = arith.constant 0.000000e+00 : f32
    %860 = vector.shape_cast %859 : vector<1x256xi1> to vector<1x256xi1>
    %861 = vector.broadcast %860 : vector<1x256xi1> to vector<8x256xi1>
    %862 = vector.broadcast %cst_114 : f32 to vector<8x256xf32>
    %863 = arith.select %861, %854, %862 : vector<8x256xi1>, vector<8x256xf32>
    %864 = vector.extract_strided_slice %863 {offsets = [0, 0], sizes = [1, 256], strides = [1, 1]} : vector<8x256xf32> to vector<1x256xf32>
    %c6 = arith.constant 6 : index
    %865 = memref.load %arg3[%c6] : memref<288xf32, #tpu.memory_space<smem>>
    %866 = vector.broadcast %865 : f32 to vector<1x256xf32>
    %867 = arith.mulf %866, %864 : vector<1x256xf32>
    %868 = arith.addf %773, %867 : vector<1x256xf32>
    %c42 = arith.constant 42 : index
    %869 = memref.load %arg3[%c42] : memref<288xf32, #tpu.memory_space<smem>>
    %870 = vector.broadcast %869 : f32 to vector<1x256xf32>
    %871 = arith.mulf %870, %864 : vector<1x256xf32>
    %872 = arith.addf %777, %871 : vector<1x256xf32>
    %c78 = arith.constant 78 : index
    %873 = memref.load %arg3[%c78] : memref<288xf32, #tpu.memory_space<smem>>
    %874 = vector.broadcast %873 : f32 to vector<1x256xf32>
    %875 = arith.mulf %874, %864 : vector<1x256xf32>
    %876 = arith.addf %781, %875 : vector<1x256xf32>
    %c114 = arith.constant 114 : index
    %877 = memref.load %arg3[%c114] : memref<288xf32, #tpu.memory_space<smem>>
    %878 = vector.broadcast %877 : f32 to vector<1x256xf32>
    %879 = arith.mulf %878, %864 : vector<1x256xf32>
    %880 = arith.addf %785, %879 : vector<1x256xf32>
    %881 = vector.extract_strided_slice %863 {offsets = [1, 0], sizes = [1, 256], strides = [1, 1]} : vector<8x256xf32> to vector<1x256xf32>
    %c15 = arith.constant 15 : index
    %882 = memref.load %arg3[%c15] : memref<288xf32, #tpu.memory_space<smem>>
    %883 = vector.broadcast %882 : f32 to vector<1x256xf32>
    %884 = arith.mulf %883, %881 : vector<1x256xf32>
    %885 = arith.addf %868, %884 : vector<1x256xf32>
    %c51 = arith.constant 51 : index
    %886 = memref.load %arg3[%c51] : memref<288xf32, #tpu.memory_space<smem>>
    %887 = vector.broadcast %886 : f32 to vector<1x256xf32>
    %888 = arith.mulf %887, %881 : vector<1x256xf32>
    %889 = arith.addf %872, %888 : vector<1x256xf32>
    %c87 = arith.constant 87 : index
    %890 = memref.load %arg3[%c87] : memref<288xf32, #tpu.memory_space<smem>>
    %891 = vector.broadcast %890 : f32 to vector<1x256xf32>
    %892 = arith.mulf %891, %881 : vector<1x256xf32>
    %893 = arith.addf %876, %892 : vector<1x256xf32>
    %c123 = arith.constant 123 : index
    %894 = memref.load %arg3[%c123] : memref<288xf32, #tpu.memory_space<smem>>
    %895 = vector.broadcast %894 : f32 to vector<1x256xf32>
    %896 = arith.mulf %895, %881 : vector<1x256xf32>
    %897 = arith.addf %880, %896 : vector<1x256xf32>
    %898 = vector.extract_strided_slice %863 {offsets = [2, 0], sizes = [1, 256], strides = [1, 1]} : vector<8x256xf32> to vector<1x256xf32>
    %c24 = arith.constant 24 : index
    %899 = memref.load %arg3[%c24] : memref<288xf32, #tpu.memory_space<smem>>
    %900 = vector.broadcast %899 : f32 to vector<1x256xf32>
    %901 = arith.mulf %900, %898 : vector<1x256xf32>
    %902 = arith.addf %885, %901 : vector<1x256xf32>
    %c60 = arith.constant 60 : index
    %903 = memref.load %arg3[%c60] : memref<288xf32, #tpu.memory_space<smem>>
    %904 = vector.broadcast %903 : f32 to vector<1x256xf32>
    %905 = arith.mulf %904, %898 : vector<1x256xf32>
    %906 = arith.addf %889, %905 : vector<1x256xf32>
    %c96 = arith.constant 96 : index
    %907 = memref.load %arg3[%c96] : memref<288xf32, #tpu.memory_space<smem>>
    %908 = vector.broadcast %907 : f32 to vector<1x256xf32>
    %909 = arith.mulf %908, %898 : vector<1x256xf32>
    %910 = arith.addf %893, %909 : vector<1x256xf32>
    %c132 = arith.constant 132 : index
    %911 = memref.load %arg3[%c132] : memref<288xf32, #tpu.memory_space<smem>>
    %912 = vector.broadcast %911 : f32 to vector<1x256xf32>
    %913 = arith.mulf %912, %898 : vector<1x256xf32>
    %914 = arith.addf %897, %913 : vector<1x256xf32>
    %915 = vector.extract_strided_slice %863 {offsets = [3, 0], sizes = [1, 256], strides = [1, 1]} : vector<8x256xf32> to vector<1x256xf32>
    %c33 = arith.constant 33 : index
    %916 = memref.load %arg3[%c33] : memref<288xf32, #tpu.memory_space<smem>>
    %917 = vector.broadcast %916 : f32 to vector<1x256xf32>
    %918 = arith.mulf %917, %915 : vector<1x256xf32>
    %919 = arith.addf %902, %918 : vector<1x256xf32>
    %c69 = arith.constant 69 : index
    %920 = memref.load %arg3[%c69] : memref<288xf32, #tpu.memory_space<smem>>
    %921 = vector.broadcast %920 : f32 to vector<1x256xf32>
    %922 = arith.mulf %921, %915 : vector<1x256xf32>
    %923 = arith.addf %906, %922 : vector<1x256xf32>
    %c105 = arith.constant 105 : index
    %924 = memref.load %arg3[%c105] : memref<288xf32, #tpu.memory_space<smem>>
    %925 = vector.broadcast %924 : f32 to vector<1x256xf32>
    %926 = arith.mulf %925, %915 : vector<1x256xf32>
    %927 = arith.addf %910, %926 : vector<1x256xf32>
    %c141 = arith.constant 141 : index
    %928 = memref.load %arg3[%c141] : memref<288xf32, #tpu.memory_space<smem>>
    %929 = vector.broadcast %928 : f32 to vector<1x256xf32>
    %930 = arith.mulf %929, %915 : vector<1x256xf32>
    %931 = arith.addf %914, %930 : vector<1x256xf32>
    %932 = vector.extract_strided_slice %863 {offsets = [4, 0], sizes = [1, 256], strides = [1, 1]} : vector<8x256xf32> to vector<1x256xf32>
    %c6_115 = arith.constant 6 : index
    %933 = memref.load %arg3[%c6_115] : memref<288xf32, #tpu.memory_space<smem>>
    %934 = vector.broadcast %933 : f32 to vector<1x256xf32>
    %935 = arith.mulf %934, %932 : vector<1x256xf32>
    %936 = arith.addf %841, %935 : vector<1x256xf32>
    %c42_116 = arith.constant 42 : index
    %937 = memref.load %arg3[%c42_116] : memref<288xf32, #tpu.memory_space<smem>>
    %938 = vector.broadcast %937 : f32 to vector<1x256xf32>
    %939 = arith.mulf %938, %932 : vector<1x256xf32>
    %940 = arith.addf %845, %939 : vector<1x256xf32>
    %c78_117 = arith.constant 78 : index
    %941 = memref.load %arg3[%c78_117] : memref<288xf32, #tpu.memory_space<smem>>
    %942 = vector.broadcast %941 : f32 to vector<1x256xf32>
    %943 = arith.mulf %942, %932 : vector<1x256xf32>
    %944 = arith.addf %849, %943 : vector<1x256xf32>
    %c114_118 = arith.constant 114 : index
    %945 = memref.load %arg3[%c114_118] : memref<288xf32, #tpu.memory_space<smem>>
    %946 = vector.broadcast %945 : f32 to vector<1x256xf32>
    %947 = arith.mulf %946, %932 : vector<1x256xf32>
    %948 = arith.addf %853, %947 : vector<1x256xf32>
    %949 = vector.extract_strided_slice %863 {offsets = [5, 0], sizes = [1, 256], strides = [1, 1]} : vector<8x256xf32> to vector<1x256xf32>
    %c15_119 = arith.constant 15 : index
    %950 = memref.load %arg3[%c15_119] : memref<288xf32, #tpu.memory_space<smem>>
    %951 = vector.broadcast %950 : f32 to vector<1x256xf32>
    %952 = arith.mulf %951, %949 : vector<1x256xf32>
    %953 = arith.addf %936, %952 : vector<1x256xf32>
    %c51_120 = arith.constant 51 : index
    %954 = memref.load %arg3[%c51_120] : memref<288xf32, #tpu.memory_space<smem>>
    %955 = vector.broadcast %954 : f32 to vector<1x256xf32>
    %956 = arith.mulf %955, %949 : vector<1x256xf32>
    %957 = arith.addf %940, %956 : vector<1x256xf32>
    %c87_121 = arith.constant 87 : index
    %958 = memref.load %arg3[%c87_121] : memref<288xf32, #tpu.memory_space<smem>>
    %959 = vector.broadcast %958 : f32 to vector<1x256xf32>
    %960 = arith.mulf %959, %949 : vector<1x256xf32>
    %961 = arith.addf %944, %960 : vector<1x256xf32>
    %c123_122 = arith.constant 123 : index
    %962 = memref.load %arg3[%c123_122] : memref<288xf32, #tpu.memory_space<smem>>
    %963 = vector.broadcast %962 : f32 to vector<1x256xf32>
    %964 = arith.mulf %963, %949 : vector<1x256xf32>
    %965 = arith.addf %948, %964 : vector<1x256xf32>
    %966 = vector.extract_strided_slice %863 {offsets = [6, 0], sizes = [1, 256], strides = [1, 1]} : vector<8x256xf32> to vector<1x256xf32>
    %c24_123 = arith.constant 24 : index
    %967 = memref.load %arg3[%c24_123] : memref<288xf32, #tpu.memory_space<smem>>
    %968 = vector.broadcast %967 : f32 to vector<1x256xf32>
    %969 = arith.mulf %968, %966 : vector<1x256xf32>
    %970 = arith.addf %953, %969 : vector<1x256xf32>
    %c60_124 = arith.constant 60 : index
    %971 = memref.load %arg3[%c60_124] : memref<288xf32, #tpu.memory_space<smem>>
    %972 = vector.broadcast %971 : f32 to vector<1x256xf32>
    %973 = arith.mulf %972, %966 : vector<1x256xf32>
    %974 = arith.addf %957, %973 : vector<1x256xf32>
    %c96_125 = arith.constant 96 : index
    %975 = memref.load %arg3[%c96_125] : memref<288xf32, #tpu.memory_space<smem>>
    %976 = vector.broadcast %975 : f32 to vector<1x256xf32>
    %977 = arith.mulf %976, %966 : vector<1x256xf32>
    %978 = arith.addf %961, %977 : vector<1x256xf32>
    %c132_126 = arith.constant 132 : index
    %979 = memref.load %arg3[%c132_126] : memref<288xf32, #tpu.memory_space<smem>>
    %980 = vector.broadcast %979 : f32 to vector<1x256xf32>
    %981 = arith.mulf %980, %966 : vector<1x256xf32>
    %982 = arith.addf %965, %981 : vector<1x256xf32>
    %983 = vector.extract_strided_slice %863 {offsets = [7, 0], sizes = [1, 256], strides = [1, 1]} : vector<8x256xf32> to vector<1x256xf32>
    %c33_127 = arith.constant 33 : index
    %984 = memref.load %arg3[%c33_127] : memref<288xf32, #tpu.memory_space<smem>>
    %985 = vector.broadcast %984 : f32 to vector<1x256xf32>
    %986 = arith.mulf %985, %983 : vector<1x256xf32>
    %987 = arith.addf %970, %986 : vector<1x256xf32>
    %c69_128 = arith.constant 69 : index
    %988 = memref.load %arg3[%c69_128] : memref<288xf32, #tpu.memory_space<smem>>
    %989 = vector.broadcast %988 : f32 to vector<1x256xf32>
    %990 = arith.mulf %989, %983 : vector<1x256xf32>
    %991 = arith.addf %974, %990 : vector<1x256xf32>
    %c105_129 = arith.constant 105 : index
    %992 = memref.load %arg3[%c105_129] : memref<288xf32, #tpu.memory_space<smem>>
    %993 = vector.broadcast %992 : f32 to vector<1x256xf32>
    %994 = arith.mulf %993, %983 : vector<1x256xf32>
    %995 = arith.addf %978, %994 : vector<1x256xf32>
    %c141_130 = arith.constant 141 : index
    %996 = memref.load %arg3[%c141_130] : memref<288xf32, #tpu.memory_space<smem>>
    %997 = vector.broadcast %996 : f32 to vector<1x256xf32>
    %998 = arith.mulf %997, %983 : vector<1x256xf32>
    %999 = arith.addf %982, %998 : vector<1x256xf32>
    %c240_i32 = arith.constant 240 : i32
    %1000 = tpu.dynamic_rotate %4 by %c240_i32 dim 1 : vector<8x256xf32>, i32 -> vector<8x256xf32>
    %c15_i32_131 = arith.constant 15 : i32
    %1001 = vector.broadcast %c15_i32_131 : i32 to vector<1x256xi32>
    %1002 = arith.cmpi slt, %1, %1001 : vector<1x256xi32>
    %cst_132 = arith.constant 0.000000e+00 : f32
    %1003 = vector.shape_cast %1002 : vector<1x256xi1> to vector<1x256xi1>
    %1004 = vector.broadcast %1003 : vector<1x256xi1> to vector<8x256xi1>
    %1005 = vector.broadcast %cst_132 : f32 to vector<8x256xf32>
    %1006 = arith.select %1004, %1000, %1005 : vector<8x256xi1>, vector<8x256xf32>
    %1007 = vector.extract_strided_slice %1006 {offsets = [0, 0], sizes = [1, 256], strides = [1, 1]} : vector<8x256xf32> to vector<1x256xf32>
    %c7 = arith.constant 7 : index
    %1008 = memref.load %arg3[%c7] : memref<288xf32, #tpu.memory_space<smem>>
    %1009 = vector.broadcast %1008 : f32 to vector<1x256xf32>
    %1010 = arith.mulf %1009, %1007 : vector<1x256xf32>
    %1011 = arith.addf %919, %1010 : vector<1x256xf32>
    %c43 = arith.constant 43 : index
    %1012 = memref.load %arg3[%c43] : memref<288xf32, #tpu.memory_space<smem>>
    %1013 = vector.broadcast %1012 : f32 to vector<1x256xf32>
    %1014 = arith.mulf %1013, %1007 : vector<1x256xf32>
    %1015 = arith.addf %923, %1014 : vector<1x256xf32>
    %c79 = arith.constant 79 : index
    %1016 = memref.load %arg3[%c79] : memref<288xf32, #tpu.memory_space<smem>>
    %1017 = vector.broadcast %1016 : f32 to vector<1x256xf32>
    %1018 = arith.mulf %1017, %1007 : vector<1x256xf32>
    %1019 = arith.addf %927, %1018 : vector<1x256xf32>
    %c115 = arith.constant 115 : index
    %1020 = memref.load %arg3[%c115] : memref<288xf32, #tpu.memory_space<smem>>
    %1021 = vector.broadcast %1020 : f32 to vector<1x256xf32>
    %1022 = arith.mulf %1021, %1007 : vector<1x256xf32>
    %1023 = arith.addf %931, %1022 : vector<1x256xf32>
    %1024 = vector.extract_strided_slice %1006 {offsets = [1, 0], sizes = [1, 256], strides = [1, 1]} : vector<8x256xf32> to vector<1x256xf32>
    %c16 = arith.constant 16 : index
    %1025 = memref.load %arg3[%c16] : memref<288xf32, #tpu.memory_space<smem>>
    %1026 = vector.broadcast %1025 : f32 to vector<1x256xf32>
    %1027 = arith.mulf %1026, %1024 : vector<1x256xf32>
    %1028 = arith.addf %1011, %1027 : vector<1x256xf32>
    %c52 = arith.constant 52 : index
    %1029 = memref.load %arg3[%c52] : memref<288xf32, #tpu.memory_space<smem>>
    %1030 = vector.broadcast %1029 : f32 to vector<1x256xf32>
    %1031 = arith.mulf %1030, %1024 : vector<1x256xf32>
    %1032 = arith.addf %1015, %1031 : vector<1x256xf32>
    %c88 = arith.constant 88 : index
    %1033 = memref.load %arg3[%c88] : memref<288xf32, #tpu.memory_space<smem>>
    %1034 = vector.broadcast %1033 : f32 to vector<1x256xf32>
    %1035 = arith.mulf %1034, %1024 : vector<1x256xf32>
    %1036 = arith.addf %1019, %1035 : vector<1x256xf32>
    %c124 = arith.constant 124 : index
    %1037 = memref.load %arg3[%c124] : memref<288xf32, #tpu.memory_space<smem>>
    %1038 = vector.broadcast %1037 : f32 to vector<1x256xf32>
    %1039 = arith.mulf %1038, %1024 : vector<1x256xf32>
    %1040 = arith.addf %1023, %1039 : vector<1x256xf32>
    %1041 = vector.extract_strided_slice %1006 {offsets = [2, 0], sizes = [1, 256], strides = [1, 1]} : vector<8x256xf32> to vector<1x256xf32>
    %c25 = arith.constant 25 : index
    %1042 = memref.load %arg3[%c25] : memref<288xf32, #tpu.memory_space<smem>>
    %1043 = vector.broadcast %1042 : f32 to vector<1x256xf32>
    %1044 = arith.mulf %1043, %1041 : vector<1x256xf32>
    %1045 = arith.addf %1028, %1044 : vector<1x256xf32>
    %c61 = arith.constant 61 : index
    %1046 = memref.load %arg3[%c61] : memref<288xf32, #tpu.memory_space<smem>>
    %1047 = vector.broadcast %1046 : f32 to vector<1x256xf32>
    %1048 = arith.mulf %1047, %1041 : vector<1x256xf32>
    %1049 = arith.addf %1032, %1048 : vector<1x256xf32>
    %c97 = arith.constant 97 : index
    %1050 = memref.load %arg3[%c97] : memref<288xf32, #tpu.memory_space<smem>>
    %1051 = vector.broadcast %1050 : f32 to vector<1x256xf32>
    %1052 = arith.mulf %1051, %1041 : vector<1x256xf32>
    %1053 = arith.addf %1036, %1052 : vector<1x256xf32>
    %c133 = arith.constant 133 : index
    %1054 = memref.load %arg3[%c133] : memref<288xf32, #tpu.memory_space<smem>>
    %1055 = vector.broadcast %1054 : f32 to vector<1x256xf32>
    %1056 = arith.mulf %1055, %1041 : vector<1x256xf32>
    %1057 = arith.addf %1040, %1056 : vector<1x256xf32>
    %1058 = vector.extract_strided_slice %1006 {offsets = [3, 0], sizes = [1, 256], strides = [1, 1]} : vector<8x256xf32> to vector<1x256xf32>
    %c34 = arith.constant 34 : index
    %1059 = memref.load %arg3[%c34] : memref<288xf32, #tpu.memory_space<smem>>
    %1060 = vector.broadcast %1059 : f32 to vector<1x256xf32>
    %1061 = arith.mulf %1060, %1058 : vector<1x256xf32>
    %1062 = arith.addf %1045, %1061 : vector<1x256xf32>
    %c70 = arith.constant 70 : index
    %1063 = memref.load %arg3[%c70] : memref<288xf32, #tpu.memory_space<smem>>
    %1064 = vector.broadcast %1063 : f32 to vector<1x256xf32>
    %1065 = arith.mulf %1064, %1058 : vector<1x256xf32>
    %1066 = arith.addf %1049, %1065 : vector<1x256xf32>
    %c106 = arith.constant 106 : index
    %1067 = memref.load %arg3[%c106] : memref<288xf32, #tpu.memory_space<smem>>
    %1068 = vector.broadcast %1067 : f32 to vector<1x256xf32>
    %1069 = arith.mulf %1068, %1058 : vector<1x256xf32>
    %1070 = arith.addf %1053, %1069 : vector<1x256xf32>
    %c142 = arith.constant 142 : index
    %1071 = memref.load %arg3[%c142] : memref<288xf32, #tpu.memory_space<smem>>
    %1072 = vector.broadcast %1071 : f32 to vector<1x256xf32>
    %1073 = arith.mulf %1072, %1058 : vector<1x256xf32>
    %1074 = arith.addf %1057, %1073 : vector<1x256xf32>
    %1075 = vector.extract_strided_slice %1006 {offsets = [4, 0], sizes = [1, 256], strides = [1, 1]} : vector<8x256xf32> to vector<1x256xf32>
    %c7_133 = arith.constant 7 : index
    %1076 = memref.load %arg3[%c7_133] : memref<288xf32, #tpu.memory_space<smem>>
    %1077 = vector.broadcast %1076 : f32 to vector<1x256xf32>
    %1078 = arith.mulf %1077, %1075 : vector<1x256xf32>
    %1079 = arith.addf %987, %1078 : vector<1x256xf32>
    %c43_134 = arith.constant 43 : index
    %1080 = memref.load %arg3[%c43_134] : memref<288xf32, #tpu.memory_space<smem>>
    %1081 = vector.broadcast %1080 : f32 to vector<1x256xf32>
    %1082 = arith.mulf %1081, %1075 : vector<1x256xf32>
    %1083 = arith.addf %991, %1082 : vector<1x256xf32>
    %c79_135 = arith.constant 79 : index
    %1084 = memref.load %arg3[%c79_135] : memref<288xf32, #tpu.memory_space<smem>>
    %1085 = vector.broadcast %1084 : f32 to vector<1x256xf32>
    %1086 = arith.mulf %1085, %1075 : vector<1x256xf32>
    %1087 = arith.addf %995, %1086 : vector<1x256xf32>
    %c115_136 = arith.constant 115 : index
    %1088 = memref.load %arg3[%c115_136] : memref<288xf32, #tpu.memory_space<smem>>
    %1089 = vector.broadcast %1088 : f32 to vector<1x256xf32>
    %1090 = arith.mulf %1089, %1075 : vector<1x256xf32>
    %1091 = arith.addf %999, %1090 : vector<1x256xf32>
    %1092 = vector.extract_strided_slice %1006 {offsets = [5, 0], sizes = [1, 256], strides = [1, 1]} : vector<8x256xf32> to vector<1x256xf32>
    %c16_137 = arith.constant 16 : index
    %1093 = memref.load %arg3[%c16_137] : memref<288xf32, #tpu.memory_space<smem>>
    %1094 = vector.broadcast %1093 : f32 to vector<1x256xf32>
    %1095 = arith.mulf %1094, %1092 : vector<1x256xf32>
    %1096 = arith.addf %1079, %1095 : vector<1x256xf32>
    %c52_138 = arith.constant 52 : index
    %1097 = memref.load %arg3[%c52_138] : memref<288xf32, #tpu.memory_space<smem>>
    %1098 = vector.broadcast %1097 : f32 to vector<1x256xf32>
    %1099 = arith.mulf %1098, %1092 : vector<1x256xf32>
    %1100 = arith.addf %1083, %1099 : vector<1x256xf32>
    %c88_139 = arith.constant 88 : index
    %1101 = memref.load %arg3[%c88_139] : memref<288xf32, #tpu.memory_space<smem>>
    %1102 = vector.broadcast %1101 : f32 to vector<1x256xf32>
    %1103 = arith.mulf %1102, %1092 : vector<1x256xf32>
    %1104 = arith.addf %1087, %1103 : vector<1x256xf32>
    %c124_140 = arith.constant 124 : index
    %1105 = memref.load %arg3[%c124_140] : memref<288xf32, #tpu.memory_space<smem>>
    %1106 = vector.broadcast %1105 : f32 to vector<1x256xf32>
    %1107 = arith.mulf %1106, %1092 : vector<1x256xf32>
    %1108 = arith.addf %1091, %1107 : vector<1x256xf32>
    %1109 = vector.extract_strided_slice %1006 {offsets = [6, 0], sizes = [1, 256], strides = [1, 1]} : vector<8x256xf32> to vector<1x256xf32>
    %c25_141 = arith.constant 25 : index
    %1110 = memref.load %arg3[%c25_141] : memref<288xf32, #tpu.memory_space<smem>>
    %1111 = vector.broadcast %1110 : f32 to vector<1x256xf32>
    %1112 = arith.mulf %1111, %1109 : vector<1x256xf32>
    %1113 = arith.addf %1096, %1112 : vector<1x256xf32>
    %c61_142 = arith.constant 61 : index
    %1114 = memref.load %arg3[%c61_142] : memref<288xf32, #tpu.memory_space<smem>>
    %1115 = vector.broadcast %1114 : f32 to vector<1x256xf32>
    %1116 = arith.mulf %1115, %1109 : vector<1x256xf32>
    %1117 = arith.addf %1100, %1116 : vector<1x256xf32>
    %c97_143 = arith.constant 97 : index
    %1118 = memref.load %arg3[%c97_143] : memref<288xf32, #tpu.memory_space<smem>>
    %1119 = vector.broadcast %1118 : f32 to vector<1x256xf32>
    %1120 = arith.mulf %1119, %1109 : vector<1x256xf32>
    %1121 = arith.addf %1104, %1120 : vector<1x256xf32>
    %c133_144 = arith.constant 133 : index
    %1122 = memref.load %arg3[%c133_144] : memref<288xf32, #tpu.memory_space<smem>>
    %1123 = vector.broadcast %1122 : f32 to vector<1x256xf32>
    %1124 = arith.mulf %1123, %1109 : vector<1x256xf32>
    %1125 = arith.addf %1108, %1124 : vector<1x256xf32>
    %1126 = vector.extract_strided_slice %1006 {offsets = [7, 0], sizes = [1, 256], strides = [1, 1]} : vector<8x256xf32> to vector<1x256xf32>
    %c34_145 = arith.constant 34 : index
    %1127 = memref.load %arg3[%c34_145] : memref<288xf32, #tpu.memory_space<smem>>
    %1128 = vector.broadcast %1127 : f32 to vector<1x256xf32>
    %1129 = arith.mulf %1128, %1126 : vector<1x256xf32>
    %1130 = arith.addf %1113, %1129 : vector<1x256xf32>
    %c70_146 = arith.constant 70 : index
    %1131 = memref.load %arg3[%c70_146] : memref<288xf32, #tpu.memory_space<smem>>
    %1132 = vector.broadcast %1131 : f32 to vector<1x256xf32>
    %1133 = arith.mulf %1132, %1126 : vector<1x256xf32>
    %1134 = arith.addf %1117, %1133 : vector<1x256xf32>
    %c106_147 = arith.constant 106 : index
    %1135 = memref.load %arg3[%c106_147] : memref<288xf32, #tpu.memory_space<smem>>
    %1136 = vector.broadcast %1135 : f32 to vector<1x256xf32>
    %1137 = arith.mulf %1136, %1126 : vector<1x256xf32>
    %1138 = arith.addf %1121, %1137 : vector<1x256xf32>
    %c142_148 = arith.constant 142 : index
    %1139 = memref.load %arg3[%c142_148] : memref<288xf32, #tpu.memory_space<smem>>
    %1140 = vector.broadcast %1139 : f32 to vector<1x256xf32>
    %1141 = arith.mulf %1140, %1126 : vector<1x256xf32>
    %1142 = arith.addf %1125, %1141 : vector<1x256xf32>
    %c239_i32 = arith.constant 239 : i32
    %1143 = tpu.dynamic_rotate %4 by %c239_i32 dim 1 : vector<8x256xf32>, i32 -> vector<8x256xf32>
    %c15_i32_149 = arith.constant 15 : i32
    %1144 = vector.broadcast %c15_i32_149 : i32 to vector<1x256xi32>
    %1145 = arith.cmpi slt, %1, %1144 : vector<1x256xi32>
    %c15_i32_150 = arith.constant 15 : i32
    %1146 = vector.broadcast %c15_i32_150 : i32 to vector<1x256xi32>
    %1147 = arith.cmpi slt, %2, %1146 : vector<1x256xi32>
    %1148 = arith.andi %1145, %1147 : vector<1x256xi1>
    %cst_151 = arith.constant 0.000000e+00 : f32
    %1149 = vector.shape_cast %1148 : vector<1x256xi1> to vector<1x256xi1>
    %1150 = vector.broadcast %1149 : vector<1x256xi1> to vector<8x256xi1>
    %1151 = vector.broadcast %cst_151 : f32 to vector<8x256xf32>
    %1152 = arith.select %1150, %1143, %1151 : vector<8x256xi1>, vector<8x256xf32>
    %1153 = vector.extract_strided_slice %1152 {offsets = [0, 0], sizes = [1, 256], strides = [1, 1]} : vector<8x256xf32> to vector<1x256xf32>
    %c8 = arith.constant 8 : index
    %1154 = memref.load %arg3[%c8] : memref<288xf32, #tpu.memory_space<smem>>
    %1155 = vector.broadcast %1154 : f32 to vector<1x256xf32>
    %1156 = arith.mulf %1155, %1153 : vector<1x256xf32>
    %1157 = arith.addf %1062, %1156 : vector<1x256xf32>
    %c44 = arith.constant 44 : index
    %1158 = memref.load %arg3[%c44] : memref<288xf32, #tpu.memory_space<smem>>
    %1159 = vector.broadcast %1158 : f32 to vector<1x256xf32>
    %1160 = arith.mulf %1159, %1153 : vector<1x256xf32>
    %1161 = arith.addf %1066, %1160 : vector<1x256xf32>
    %c80 = arith.constant 80 : index
    %1162 = memref.load %arg3[%c80] : memref<288xf32, #tpu.memory_space<smem>>
    %1163 = vector.broadcast %1162 : f32 to vector<1x256xf32>
    %1164 = arith.mulf %1163, %1153 : vector<1x256xf32>
    %1165 = arith.addf %1070, %1164 : vector<1x256xf32>
    %c116 = arith.constant 116 : index
    %1166 = memref.load %arg3[%c116] : memref<288xf32, #tpu.memory_space<smem>>
    %1167 = vector.broadcast %1166 : f32 to vector<1x256xf32>
    %1168 = arith.mulf %1167, %1153 : vector<1x256xf32>
    %1169 = arith.addf %1074, %1168 : vector<1x256xf32>
    %1170 = vector.extract_strided_slice %1152 {offsets = [1, 0], sizes = [1, 256], strides = [1, 1]} : vector<8x256xf32> to vector<1x256xf32>
    %c17 = arith.constant 17 : index
    %1171 = memref.load %arg3[%c17] : memref<288xf32, #tpu.memory_space<smem>>
    %1172 = vector.broadcast %1171 : f32 to vector<1x256xf32>
    %1173 = arith.mulf %1172, %1170 : vector<1x256xf32>
    %1174 = arith.addf %1157, %1173 : vector<1x256xf32>
    %c53 = arith.constant 53 : index
    %1175 = memref.load %arg3[%c53] : memref<288xf32, #tpu.memory_space<smem>>
    %1176 = vector.broadcast %1175 : f32 to vector<1x256xf32>
    %1177 = arith.mulf %1176, %1170 : vector<1x256xf32>
    %1178 = arith.addf %1161, %1177 : vector<1x256xf32>
    %c89 = arith.constant 89 : index
    %1179 = memref.load %arg3[%c89] : memref<288xf32, #tpu.memory_space<smem>>
    %1180 = vector.broadcast %1179 : f32 to vector<1x256xf32>
    %1181 = arith.mulf %1180, %1170 : vector<1x256xf32>
    %1182 = arith.addf %1165, %1181 : vector<1x256xf32>
    %c125 = arith.constant 125 : index
    %1183 = memref.load %arg3[%c125] : memref<288xf32, #tpu.memory_space<smem>>
    %1184 = vector.broadcast %1183 : f32 to vector<1x256xf32>
    %1185 = arith.mulf %1184, %1170 : vector<1x256xf32>
    %1186 = arith.addf %1169, %1185 : vector<1x256xf32>
    %1187 = vector.extract_strided_slice %1152 {offsets = [2, 0], sizes = [1, 256], strides = [1, 1]} : vector<8x256xf32> to vector<1x256xf32>
    %c26 = arith.constant 26 : index
    %1188 = memref.load %arg3[%c26] : memref<288xf32, #tpu.memory_space<smem>>
    %1189 = vector.broadcast %1188 : f32 to vector<1x256xf32>
    %1190 = arith.mulf %1189, %1187 : vector<1x256xf32>
    %1191 = arith.addf %1174, %1190 : vector<1x256xf32>
    %c62 = arith.constant 62 : index
    %1192 = memref.load %arg3[%c62] : memref<288xf32, #tpu.memory_space<smem>>
    %1193 = vector.broadcast %1192 : f32 to vector<1x256xf32>
    %1194 = arith.mulf %1193, %1187 : vector<1x256xf32>
    %1195 = arith.addf %1178, %1194 : vector<1x256xf32>
    %c98 = arith.constant 98 : index
    %1196 = memref.load %arg3[%c98] : memref<288xf32, #tpu.memory_space<smem>>
    %1197 = vector.broadcast %1196 : f32 to vector<1x256xf32>
    %1198 = arith.mulf %1197, %1187 : vector<1x256xf32>
    %1199 = arith.addf %1182, %1198 : vector<1x256xf32>
    %c134 = arith.constant 134 : index
    %1200 = memref.load %arg3[%c134] : memref<288xf32, #tpu.memory_space<smem>>
    %1201 = vector.broadcast %1200 : f32 to vector<1x256xf32>
    %1202 = arith.mulf %1201, %1187 : vector<1x256xf32>
    %1203 = arith.addf %1186, %1202 : vector<1x256xf32>
    %1204 = vector.extract_strided_slice %1152 {offsets = [3, 0], sizes = [1, 256], strides = [1, 1]} : vector<8x256xf32> to vector<1x256xf32>
    %c35 = arith.constant 35 : index
    %1205 = memref.load %arg3[%c35] : memref<288xf32, #tpu.memory_space<smem>>
    %1206 = vector.broadcast %1205 : f32 to vector<1x256xf32>
    %1207 = arith.mulf %1206, %1204 : vector<1x256xf32>
    %1208 = arith.addf %1191, %1207 : vector<1x256xf32>
    %c71 = arith.constant 71 : index
    %1209 = memref.load %arg3[%c71] : memref<288xf32, #tpu.memory_space<smem>>
    %1210 = vector.broadcast %1209 : f32 to vector<1x256xf32>
    %1211 = arith.mulf %1210, %1204 : vector<1x256xf32>
    %1212 = arith.addf %1195, %1211 : vector<1x256xf32>
    %c107 = arith.constant 107 : index
    %1213 = memref.load %arg3[%c107] : memref<288xf32, #tpu.memory_space<smem>>
    %1214 = vector.broadcast %1213 : f32 to vector<1x256xf32>
    %1215 = arith.mulf %1214, %1204 : vector<1x256xf32>
    %1216 = arith.addf %1199, %1215 : vector<1x256xf32>
    %c143 = arith.constant 143 : index
    %1217 = memref.load %arg3[%c143] : memref<288xf32, #tpu.memory_space<smem>>
    %1218 = vector.broadcast %1217 : f32 to vector<1x256xf32>
    %1219 = arith.mulf %1218, %1204 : vector<1x256xf32>
    %1220 = arith.addf %1203, %1219 : vector<1x256xf32>
    %1221 = vector.extract_strided_slice %1152 {offsets = [4, 0], sizes = [1, 256], strides = [1, 1]} : vector<8x256xf32> to vector<1x256xf32>
    %c8_152 = arith.constant 8 : index
    %1222 = memref.load %arg3[%c8_152] : memref<288xf32, #tpu.memory_space<smem>>
    %1223 = vector.broadcast %1222 : f32 to vector<1x256xf32>
    %1224 = arith.mulf %1223, %1221 : vector<1x256xf32>
    %1225 = arith.addf %1130, %1224 : vector<1x256xf32>
    %c44_153 = arith.constant 44 : index
    %1226 = memref.load %arg3[%c44_153] : memref<288xf32, #tpu.memory_space<smem>>
    %1227 = vector.broadcast %1226 : f32 to vector<1x256xf32>
    %1228 = arith.mulf %1227, %1221 : vector<1x256xf32>
    %1229 = arith.addf %1134, %1228 : vector<1x256xf32>
    %c80_154 = arith.constant 80 : index
    %1230 = memref.load %arg3[%c80_154] : memref<288xf32, #tpu.memory_space<smem>>
    %1231 = vector.broadcast %1230 : f32 to vector<1x256xf32>
    %1232 = arith.mulf %1231, %1221 : vector<1x256xf32>
    %1233 = arith.addf %1138, %1232 : vector<1x256xf32>
    %c116_155 = arith.constant 116 : index
    %1234 = memref.load %arg3[%c116_155] : memref<288xf32, #tpu.memory_space<smem>>
    %1235 = vector.broadcast %1234 : f32 to vector<1x256xf32>
    %1236 = arith.mulf %1235, %1221 : vector<1x256xf32>
    %1237 = arith.addf %1142, %1236 : vector<1x256xf32>
    %1238 = vector.extract_strided_slice %1152 {offsets = [5, 0], sizes = [1, 256], strides = [1, 1]} : vector<8x256xf32> to vector<1x256xf32>
    %c17_156 = arith.constant 17 : index
    %1239 = memref.load %arg3[%c17_156] : memref<288xf32, #tpu.memory_space<smem>>
    %1240 = vector.broadcast %1239 : f32 to vector<1x256xf32>
    %1241 = arith.mulf %1240, %1238 : vector<1x256xf32>
    %1242 = arith.addf %1225, %1241 : vector<1x256xf32>
    %c53_157 = arith.constant 53 : index
    %1243 = memref.load %arg3[%c53_157] : memref<288xf32, #tpu.memory_space<smem>>
    %1244 = vector.broadcast %1243 : f32 to vector<1x256xf32>
    %1245 = arith.mulf %1244, %1238 : vector<1x256xf32>
    %1246 = arith.addf %1229, %1245 : vector<1x256xf32>
    %c89_158 = arith.constant 89 : index
    %1247 = memref.load %arg3[%c89_158] : memref<288xf32, #tpu.memory_space<smem>>
    %1248 = vector.broadcast %1247 : f32 to vector<1x256xf32>
    %1249 = arith.mulf %1248, %1238 : vector<1x256xf32>
    %1250 = arith.addf %1233, %1249 : vector<1x256xf32>
    %c125_159 = arith.constant 125 : index
    %1251 = memref.load %arg3[%c125_159] : memref<288xf32, #tpu.memory_space<smem>>
    %1252 = vector.broadcast %1251 : f32 to vector<1x256xf32>
    %1253 = arith.mulf %1252, %1238 : vector<1x256xf32>
    %1254 = arith.addf %1237, %1253 : vector<1x256xf32>
    %1255 = vector.extract_strided_slice %1152 {offsets = [6, 0], sizes = [1, 256], strides = [1, 1]} : vector<8x256xf32> to vector<1x256xf32>
    %c26_160 = arith.constant 26 : index
    %1256 = memref.load %arg3[%c26_160] : memref<288xf32, #tpu.memory_space<smem>>
    %1257 = vector.broadcast %1256 : f32 to vector<1x256xf32>
    %1258 = arith.mulf %1257, %1255 : vector<1x256xf32>
    %1259 = arith.addf %1242, %1258 : vector<1x256xf32>
    %c62_161 = arith.constant 62 : index
    %1260 = memref.load %arg3[%c62_161] : memref<288xf32, #tpu.memory_space<smem>>
    %1261 = vector.broadcast %1260 : f32 to vector<1x256xf32>
    %1262 = arith.mulf %1261, %1255 : vector<1x256xf32>
    %1263 = arith.addf %1246, %1262 : vector<1x256xf32>
    %c98_162 = arith.constant 98 : index
    %1264 = memref.load %arg3[%c98_162] : memref<288xf32, #tpu.memory_space<smem>>
    %1265 = vector.broadcast %1264 : f32 to vector<1x256xf32>
    %1266 = arith.mulf %1265, %1255 : vector<1x256xf32>
    %1267 = arith.addf %1250, %1266 : vector<1x256xf32>
    %c134_163 = arith.constant 134 : index
    %1268 = memref.load %arg3[%c134_163] : memref<288xf32, #tpu.memory_space<smem>>
    %1269 = vector.broadcast %1268 : f32 to vector<1x256xf32>
    %1270 = arith.mulf %1269, %1255 : vector<1x256xf32>
    %1271 = arith.addf %1254, %1270 : vector<1x256xf32>
    %1272 = vector.extract_strided_slice %1152 {offsets = [7, 0], sizes = [1, 256], strides = [1, 1]} : vector<8x256xf32> to vector<1x256xf32>
    %c35_164 = arith.constant 35 : index
    %1273 = memref.load %arg3[%c35_164] : memref<288xf32, #tpu.memory_space<smem>>
    %1274 = vector.broadcast %1273 : f32 to vector<1x256xf32>
    %1275 = arith.mulf %1274, %1272 : vector<1x256xf32>
    %1276 = arith.addf %1259, %1275 : vector<1x256xf32>
    %c71_165 = arith.constant 71 : index
    %1277 = memref.load %arg3[%c71_165] : memref<288xf32, #tpu.memory_space<smem>>
    %1278 = vector.broadcast %1277 : f32 to vector<1x256xf32>
    %1279 = arith.mulf %1278, %1272 : vector<1x256xf32>
    %1280 = arith.addf %1263, %1279 : vector<1x256xf32>
    %c107_166 = arith.constant 107 : index
    %1281 = memref.load %arg3[%c107_166] : memref<288xf32, #tpu.memory_space<smem>>
    %1282 = vector.broadcast %1281 : f32 to vector<1x256xf32>
    %1283 = arith.mulf %1282, %1272 : vector<1x256xf32>
    %1284 = arith.addf %1267, %1283 : vector<1x256xf32>
    %c143_167 = arith.constant 143 : index
    %1285 = memref.load %arg3[%c143_167] : memref<288xf32, #tpu.memory_space<smem>>
    %1286 = vector.broadcast %1285 : f32 to vector<1x256xf32>
    %1287 = arith.mulf %1286, %1272 : vector<1x256xf32>
    %1288 = arith.addf %1271, %1287 : vector<1x256xf32>
    %c0_168 = arith.constant 0 : index
    %1289 = memref.load %arg4[%c0_168] : memref<8xf32, #tpu.memory_space<smem>>
    %1290 = vector.broadcast %1289 : f32 to vector<1x256xf32>
    %1291 = arith.addf %1208, %1290 : vector<1x256xf32>
    %c1_169 = arith.constant 1 : index
    %1292 = memref.load %arg4[%c1_169] : memref<8xf32, #tpu.memory_space<smem>>
    %1293 = vector.broadcast %1292 : f32 to vector<1x256xf32>
    %1294 = arith.addf %1212, %1293 : vector<1x256xf32>
    %c2_170 = arith.constant 2 : index
    %1295 = memref.load %arg4[%c2_170] : memref<8xf32, #tpu.memory_space<smem>>
    %1296 = vector.broadcast %1295 : f32 to vector<1x256xf32>
    %1297 = arith.addf %1216, %1296 : vector<1x256xf32>
    %c3_171 = arith.constant 3 : index
    %1298 = memref.load %arg4[%c3_171] : memref<8xf32, #tpu.memory_space<smem>>
    %1299 = vector.broadcast %1298 : f32 to vector<1x256xf32>
    %1300 = arith.addf %1220, %1299 : vector<1x256xf32>
    %c0_172 = arith.constant 0 : index
    %1301 = memref.load %arg4[%c0_172] : memref<8xf32, #tpu.memory_space<smem>>
    %1302 = vector.broadcast %1301 : f32 to vector<1x256xf32>
    %1303 = arith.addf %1276, %1302 : vector<1x256xf32>
    %c1_173 = arith.constant 1 : index
    %1304 = memref.load %arg4[%c1_173] : memref<8xf32, #tpu.memory_space<smem>>
    %1305 = vector.broadcast %1304 : f32 to vector<1x256xf32>
    %1306 = arith.addf %1280, %1305 : vector<1x256xf32>
    %c2_174 = arith.constant 2 : index
    %1307 = memref.load %arg4[%c2_174] : memref<8xf32, #tpu.memory_space<smem>>
    %1308 = vector.broadcast %1307 : f32 to vector<1x256xf32>
    %1309 = arith.addf %1284, %1308 : vector<1x256xf32>
    %c3_175 = arith.constant 3 : index
    %1310 = memref.load %arg4[%c3_175] : memref<8xf32, #tpu.memory_space<smem>>
    %1311 = vector.broadcast %1310 : f32 to vector<1x256xf32>
    %1312 = arith.addf %1288, %1311 : vector<1x256xf32>
    %1313 = tpu.concatenate %1291, %1294, %1297, %1300, %1303, %1306, %1309, %1312 in 0 : vector<1x256xf32>, vector<1x256xf32>, vector<1x256xf32>, vector<1x256xf32>, vector<1x256xf32>, vector<1x256xf32>, vector<1x256xf32>, vector<1x256xf32> -> vector<8x256xf32>
    %cst_176 = arith.constant 0.000000e+00 : f32
    %1314 = vector.broadcast %cst_176 : f32 to vector<8x256xf32>
    %1315 = arith.maximumf %1313, %1314 : vector<8x256xf32>
    %c34_i32 = arith.constant 34 : i32
    %1316 = tpu.dynamic_rotate %1315 by %c34_i32 dim 1 : vector<8x256xf32>, i32 -> vector<8x256xf32>
    %c2_i32 = arith.constant 2 : i32
    %1317 = vector.broadcast %c2_i32 : i32 to vector<1x256xi32>
    %1318 = arith.cmpi sge, %1, %1317 : vector<1x256xi32>
    %c2_i32_177 = arith.constant 2 : i32
    %1319 = vector.broadcast %c2_i32_177 : i32 to vector<1x256xi32>
    %1320 = arith.cmpi sge, %2, %1319 : vector<1x256xi32>
    %1321 = arith.andi %1318, %1320 : vector<1x256xi1>
    %cst_178 = arith.constant 0.000000e+00 : f32
    %1322 = vector.shape_cast %1321 : vector<1x256xi1> to vector<1x256xi1>
    %1323 = vector.broadcast %1322 : vector<1x256xi1> to vector<8x256xi1>
    %1324 = vector.broadcast %cst_178 : f32 to vector<8x256xf32>
    %1325 = arith.select %1323, %1316, %1324 : vector<8x256xi1>, vector<8x256xf32>
    %1326 = vector.extract_strided_slice %1325 {offsets = [0, 0], sizes = [1, 256], strides = [1, 1]} : vector<8x256xf32> to vector<1x256xf32>
    %c144 = arith.constant 144 : index
    %1327 = memref.load %arg3[%c144] : memref<288xf32, #tpu.memory_space<smem>>
    %1328 = vector.broadcast %1327 : f32 to vector<1x256xf32>
    %1329 = arith.mulf %1328, %1326 : vector<1x256xf32>
    %c180 = arith.constant 180 : index
    %1330 = memref.load %arg3[%c180] : memref<288xf32, #tpu.memory_space<smem>>
    %1331 = vector.broadcast %1330 : f32 to vector<1x256xf32>
    %1332 = arith.mulf %1331, %1326 : vector<1x256xf32>
    %c216 = arith.constant 216 : index
    %1333 = memref.load %arg3[%c216] : memref<288xf32, #tpu.memory_space<smem>>
    %1334 = vector.broadcast %1333 : f32 to vector<1x256xf32>
    %1335 = arith.mulf %1334, %1326 : vector<1x256xf32>
    %c252 = arith.constant 252 : index
    %1336 = memref.load %arg3[%c252] : memref<288xf32, #tpu.memory_space<smem>>
    %1337 = vector.broadcast %1336 : f32 to vector<1x256xf32>
    %1338 = arith.mulf %1337, %1326 : vector<1x256xf32>
    %1339 = vector.extract_strided_slice %1325 {offsets = [1, 0], sizes = [1, 256], strides = [1, 1]} : vector<8x256xf32> to vector<1x256xf32>
    %c153 = arith.constant 153 : index
    %1340 = memref.load %arg3[%c153] : memref<288xf32, #tpu.memory_space<smem>>
    %1341 = vector.broadcast %1340 : f32 to vector<1x256xf32>
    %1342 = arith.mulf %1341, %1339 : vector<1x256xf32>
    %1343 = arith.addf %1329, %1342 : vector<1x256xf32>
    %c189 = arith.constant 189 : index
    %1344 = memref.load %arg3[%c189] : memref<288xf32, #tpu.memory_space<smem>>
    %1345 = vector.broadcast %1344 : f32 to vector<1x256xf32>
    %1346 = arith.mulf %1345, %1339 : vector<1x256xf32>
    %1347 = arith.addf %1332, %1346 : vector<1x256xf32>
    %c225 = arith.constant 225 : index
    %1348 = memref.load %arg3[%c225] : memref<288xf32, #tpu.memory_space<smem>>
    %1349 = vector.broadcast %1348 : f32 to vector<1x256xf32>
    %1350 = arith.mulf %1349, %1339 : vector<1x256xf32>
    %1351 = arith.addf %1335, %1350 : vector<1x256xf32>
    %c261 = arith.constant 261 : index
    %1352 = memref.load %arg3[%c261] : memref<288xf32, #tpu.memory_space<smem>>
    %1353 = vector.broadcast %1352 : f32 to vector<1x256xf32>
    %1354 = arith.mulf %1353, %1339 : vector<1x256xf32>
    %1355 = arith.addf %1338, %1354 : vector<1x256xf32>
    %1356 = vector.extract_strided_slice %1325 {offsets = [2, 0], sizes = [1, 256], strides = [1, 1]} : vector<8x256xf32> to vector<1x256xf32>
    %c162 = arith.constant 162 : index
    %1357 = memref.load %arg3[%c162] : memref<288xf32, #tpu.memory_space<smem>>
    %1358 = vector.broadcast %1357 : f32 to vector<1x256xf32>
    %1359 = arith.mulf %1358, %1356 : vector<1x256xf32>
    %1360 = arith.addf %1343, %1359 : vector<1x256xf32>
    %c198 = arith.constant 198 : index
    %1361 = memref.load %arg3[%c198] : memref<288xf32, #tpu.memory_space<smem>>
    %1362 = vector.broadcast %1361 : f32 to vector<1x256xf32>
    %1363 = arith.mulf %1362, %1356 : vector<1x256xf32>
    %1364 = arith.addf %1347, %1363 : vector<1x256xf32>
    %c234 = arith.constant 234 : index
    %1365 = memref.load %arg3[%c234] : memref<288xf32, #tpu.memory_space<smem>>
    %1366 = vector.broadcast %1365 : f32 to vector<1x256xf32>
    %1367 = arith.mulf %1366, %1356 : vector<1x256xf32>
    %1368 = arith.addf %1351, %1367 : vector<1x256xf32>
    %c270 = arith.constant 270 : index
    %1369 = memref.load %arg3[%c270] : memref<288xf32, #tpu.memory_space<smem>>
    %1370 = vector.broadcast %1369 : f32 to vector<1x256xf32>
    %1371 = arith.mulf %1370, %1356 : vector<1x256xf32>
    %1372 = arith.addf %1355, %1371 : vector<1x256xf32>
    %1373 = vector.extract_strided_slice %1325 {offsets = [3, 0], sizes = [1, 256], strides = [1, 1]} : vector<8x256xf32> to vector<1x256xf32>
    %c171 = arith.constant 171 : index
    %1374 = memref.load %arg3[%c171] : memref<288xf32, #tpu.memory_space<smem>>
    %1375 = vector.broadcast %1374 : f32 to vector<1x256xf32>
    %1376 = arith.mulf %1375, %1373 : vector<1x256xf32>
    %1377 = arith.addf %1360, %1376 : vector<1x256xf32>
    %c207 = arith.constant 207 : index
    %1378 = memref.load %arg3[%c207] : memref<288xf32, #tpu.memory_space<smem>>
    %1379 = vector.broadcast %1378 : f32 to vector<1x256xf32>
    %1380 = arith.mulf %1379, %1373 : vector<1x256xf32>
    %1381 = arith.addf %1364, %1380 : vector<1x256xf32>
    %c243 = arith.constant 243 : index
    %1382 = memref.load %arg3[%c243] : memref<288xf32, #tpu.memory_space<smem>>
    %1383 = vector.broadcast %1382 : f32 to vector<1x256xf32>
    %1384 = arith.mulf %1383, %1373 : vector<1x256xf32>
    %1385 = arith.addf %1368, %1384 : vector<1x256xf32>
    %c279 = arith.constant 279 : index
    %1386 = memref.load %arg3[%c279] : memref<288xf32, #tpu.memory_space<smem>>
    %1387 = vector.broadcast %1386 : f32 to vector<1x256xf32>
    %1388 = arith.mulf %1387, %1373 : vector<1x256xf32>
    %1389 = arith.addf %1372, %1388 : vector<1x256xf32>
    %1390 = vector.extract_strided_slice %1325 {offsets = [4, 0], sizes = [1, 256], strides = [1, 1]} : vector<8x256xf32> to vector<1x256xf32>
    %c144_179 = arith.constant 144 : index
    %1391 = memref.load %arg3[%c144_179] : memref<288xf32, #tpu.memory_space<smem>>
    %1392 = vector.broadcast %1391 : f32 to vector<1x256xf32>
    %1393 = arith.mulf %1392, %1390 : vector<1x256xf32>
    %c180_180 = arith.constant 180 : index
    %1394 = memref.load %arg3[%c180_180] : memref<288xf32, #tpu.memory_space<smem>>
    %1395 = vector.broadcast %1394 : f32 to vector<1x256xf32>
    %1396 = arith.mulf %1395, %1390 : vector<1x256xf32>
    %c216_181 = arith.constant 216 : index
    %1397 = memref.load %arg3[%c216_181] : memref<288xf32, #tpu.memory_space<smem>>
    %1398 = vector.broadcast %1397 : f32 to vector<1x256xf32>
    %1399 = arith.mulf %1398, %1390 : vector<1x256xf32>
    %c252_182 = arith.constant 252 : index
    %1400 = memref.load %arg3[%c252_182] : memref<288xf32, #tpu.memory_space<smem>>
    %1401 = vector.broadcast %1400 : f32 to vector<1x256xf32>
    %1402 = arith.mulf %1401, %1390 : vector<1x256xf32>
    %1403 = vector.extract_strided_slice %1325 {offsets = [5, 0], sizes = [1, 256], strides = [1, 1]} : vector<8x256xf32> to vector<1x256xf32>
    %c153_183 = arith.constant 153 : index
    %1404 = memref.load %arg3[%c153_183] : memref<288xf32, #tpu.memory_space<smem>>
    %1405 = vector.broadcast %1404 : f32 to vector<1x256xf32>
    %1406 = arith.mulf %1405, %1403 : vector<1x256xf32>
    %1407 = arith.addf %1393, %1406 : vector<1x256xf32>
    %c189_184 = arith.constant 189 : index
    %1408 = memref.load %arg3[%c189_184] : memref<288xf32, #tpu.memory_space<smem>>
    %1409 = vector.broadcast %1408 : f32 to vector<1x256xf32>
    %1410 = arith.mulf %1409, %1403 : vector<1x256xf32>
    %1411 = arith.addf %1396, %1410 : vector<1x256xf32>
    %c225_185 = arith.constant 225 : index
    %1412 = memref.load %arg3[%c225_185] : memref<288xf32, #tpu.memory_space<smem>>
    %1413 = vector.broadcast %1412 : f32 to vector<1x256xf32>
    %1414 = arith.mulf %1413, %1403 : vector<1x256xf32>
    %1415 = arith.addf %1399, %1414 : vector<1x256xf32>
    %c261_186 = arith.constant 261 : index
    %1416 = memref.load %arg3[%c261_186] : memref<288xf32, #tpu.memory_space<smem>>
    %1417 = vector.broadcast %1416 : f32 to vector<1x256xf32>
    %1418 = arith.mulf %1417, %1403 : vector<1x256xf32>
    %1419 = arith.addf %1402, %1418 : vector<1x256xf32>
    %1420 = vector.extract_strided_slice %1325 {offsets = [6, 0], sizes = [1, 256], strides = [1, 1]} : vector<8x256xf32> to vector<1x256xf32>
    %c162_187 = arith.constant 162 : index
    %1421 = memref.load %arg3[%c162_187] : memref<288xf32, #tpu.memory_space<smem>>
    %1422 = vector.broadcast %1421 : f32 to vector<1x256xf32>
    %1423 = arith.mulf %1422, %1420 : vector<1x256xf32>
    %1424 = arith.addf %1407, %1423 : vector<1x256xf32>
    %c198_188 = arith.constant 198 : index
    %1425 = memref.load %arg3[%c198_188] : memref<288xf32, #tpu.memory_space<smem>>
    %1426 = vector.broadcast %1425 : f32 to vector<1x256xf32>
    %1427 = arith.mulf %1426, %1420 : vector<1x256xf32>
    %1428 = arith.addf %1411, %1427 : vector<1x256xf32>
    %c234_189 = arith.constant 234 : index
    %1429 = memref.load %arg3[%c234_189] : memref<288xf32, #tpu.memory_space<smem>>
    %1430 = vector.broadcast %1429 : f32 to vector<1x256xf32>
    %1431 = arith.mulf %1430, %1420 : vector<1x256xf32>
    %1432 = arith.addf %1415, %1431 : vector<1x256xf32>
    %c270_190 = arith.constant 270 : index
    %1433 = memref.load %arg3[%c270_190] : memref<288xf32, #tpu.memory_space<smem>>
    %1434 = vector.broadcast %1433 : f32 to vector<1x256xf32>
    %1435 = arith.mulf %1434, %1420 : vector<1x256xf32>
    %1436 = arith.addf %1419, %1435 : vector<1x256xf32>
    %1437 = vector.extract_strided_slice %1325 {offsets = [7, 0], sizes = [1, 256], strides = [1, 1]} : vector<8x256xf32> to vector<1x256xf32>
    %c171_191 = arith.constant 171 : index
    %1438 = memref.load %arg3[%c171_191] : memref<288xf32, #tpu.memory_space<smem>>
    %1439 = vector.broadcast %1438 : f32 to vector<1x256xf32>
    %1440 = arith.mulf %1439, %1437 : vector<1x256xf32>
    %1441 = arith.addf %1424, %1440 : vector<1x256xf32>
    %c207_192 = arith.constant 207 : index
    %1442 = memref.load %arg3[%c207_192] : memref<288xf32, #tpu.memory_space<smem>>
    %1443 = vector.broadcast %1442 : f32 to vector<1x256xf32>
    %1444 = arith.mulf %1443, %1437 : vector<1x256xf32>
    %1445 = arith.addf %1428, %1444 : vector<1x256xf32>
    %c243_193 = arith.constant 243 : index
    %1446 = memref.load %arg3[%c243_193] : memref<288xf32, #tpu.memory_space<smem>>
    %1447 = vector.broadcast %1446 : f32 to vector<1x256xf32>
    %1448 = arith.mulf %1447, %1437 : vector<1x256xf32>
    %1449 = arith.addf %1432, %1448 : vector<1x256xf32>
    %c279_194 = arith.constant 279 : index
    %1450 = memref.load %arg3[%c279_194] : memref<288xf32, #tpu.memory_space<smem>>
    %1451 = vector.broadcast %1450 : f32 to vector<1x256xf32>
    %1452 = arith.mulf %1451, %1437 : vector<1x256xf32>
    %1453 = arith.addf %1436, %1452 : vector<1x256xf32>
    %c32_i32 = arith.constant 32 : i32
    %1454 = tpu.dynamic_rotate %1315 by %c32_i32 dim 1 : vector<8x256xf32>, i32 -> vector<8x256xf32>
    %c2_i32_195 = arith.constant 2 : i32
    %1455 = vector.broadcast %c2_i32_195 : i32 to vector<1x256xi32>
    %1456 = arith.cmpi sge, %1, %1455 : vector<1x256xi32>
    %cst_196 = arith.constant 0.000000e+00 : f32
    %1457 = vector.shape_cast %1456 : vector<1x256xi1> to vector<1x256xi1>
    %1458 = vector.broadcast %1457 : vector<1x256xi1> to vector<8x256xi1>
    %1459 = vector.broadcast %cst_196 : f32 to vector<8x256xf32>
    %1460 = arith.select %1458, %1454, %1459 : vector<8x256xi1>, vector<8x256xf32>
    %1461 = vector.extract_strided_slice %1460 {offsets = [0, 0], sizes = [1, 256], strides = [1, 1]} : vector<8x256xf32> to vector<1x256xf32>
    %c145 = arith.constant 145 : index
    %1462 = memref.load %arg3[%c145] : memref<288xf32, #tpu.memory_space<smem>>
    %1463 = vector.broadcast %1462 : f32 to vector<1x256xf32>
    %1464 = arith.mulf %1463, %1461 : vector<1x256xf32>
    %1465 = arith.addf %1377, %1464 : vector<1x256xf32>
    %c181 = arith.constant 181 : index
    %1466 = memref.load %arg3[%c181] : memref<288xf32, #tpu.memory_space<smem>>
    %1467 = vector.broadcast %1466 : f32 to vector<1x256xf32>
    %1468 = arith.mulf %1467, %1461 : vector<1x256xf32>
    %1469 = arith.addf %1381, %1468 : vector<1x256xf32>
    %c217 = arith.constant 217 : index
    %1470 = memref.load %arg3[%c217] : memref<288xf32, #tpu.memory_space<smem>>
    %1471 = vector.broadcast %1470 : f32 to vector<1x256xf32>
    %1472 = arith.mulf %1471, %1461 : vector<1x256xf32>
    %1473 = arith.addf %1385, %1472 : vector<1x256xf32>
    %c253 = arith.constant 253 : index
    %1474 = memref.load %arg3[%c253] : memref<288xf32, #tpu.memory_space<smem>>
    %1475 = vector.broadcast %1474 : f32 to vector<1x256xf32>
    %1476 = arith.mulf %1475, %1461 : vector<1x256xf32>
    %1477 = arith.addf %1389, %1476 : vector<1x256xf32>
    %1478 = vector.extract_strided_slice %1460 {offsets = [1, 0], sizes = [1, 256], strides = [1, 1]} : vector<8x256xf32> to vector<1x256xf32>
    %c154 = arith.constant 154 : index
    %1479 = memref.load %arg3[%c154] : memref<288xf32, #tpu.memory_space<smem>>
    %1480 = vector.broadcast %1479 : f32 to vector<1x256xf32>
    %1481 = arith.mulf %1480, %1478 : vector<1x256xf32>
    %1482 = arith.addf %1465, %1481 : vector<1x256xf32>
    %c190 = arith.constant 190 : index
    %1483 = memref.load %arg3[%c190] : memref<288xf32, #tpu.memory_space<smem>>
    %1484 = vector.broadcast %1483 : f32 to vector<1x256xf32>
    %1485 = arith.mulf %1484, %1478 : vector<1x256xf32>
    %1486 = arith.addf %1469, %1485 : vector<1x256xf32>
    %c226 = arith.constant 226 : index
    %1487 = memref.load %arg3[%c226] : memref<288xf32, #tpu.memory_space<smem>>
    %1488 = vector.broadcast %1487 : f32 to vector<1x256xf32>
    %1489 = arith.mulf %1488, %1478 : vector<1x256xf32>
    %1490 = arith.addf %1473, %1489 : vector<1x256xf32>
    %c262 = arith.constant 262 : index
    %1491 = memref.load %arg3[%c262] : memref<288xf32, #tpu.memory_space<smem>>
    %1492 = vector.broadcast %1491 : f32 to vector<1x256xf32>
    %1493 = arith.mulf %1492, %1478 : vector<1x256xf32>
    %1494 = arith.addf %1477, %1493 : vector<1x256xf32>
    %1495 = vector.extract_strided_slice %1460 {offsets = [2, 0], sizes = [1, 256], strides = [1, 1]} : vector<8x256xf32> to vector<1x256xf32>
    %c163 = arith.constant 163 : index
    %1496 = memref.load %arg3[%c163] : memref<288xf32, #tpu.memory_space<smem>>
    %1497 = vector.broadcast %1496 : f32 to vector<1x256xf32>
    %1498 = arith.mulf %1497, %1495 : vector<1x256xf32>
    %1499 = arith.addf %1482, %1498 : vector<1x256xf32>
    %c199 = arith.constant 199 : index
    %1500 = memref.load %arg3[%c199] : memref<288xf32, #tpu.memory_space<smem>>
    %1501 = vector.broadcast %1500 : f32 to vector<1x256xf32>
    %1502 = arith.mulf %1501, %1495 : vector<1x256xf32>
    %1503 = arith.addf %1486, %1502 : vector<1x256xf32>
    %c235 = arith.constant 235 : index
    %1504 = memref.load %arg3[%c235] : memref<288xf32, #tpu.memory_space<smem>>
    %1505 = vector.broadcast %1504 : f32 to vector<1x256xf32>
    %1506 = arith.mulf %1505, %1495 : vector<1x256xf32>
    %1507 = arith.addf %1490, %1506 : vector<1x256xf32>
    %c271 = arith.constant 271 : index
    %1508 = memref.load %arg3[%c271] : memref<288xf32, #tpu.memory_space<smem>>
    %1509 = vector.broadcast %1508 : f32 to vector<1x256xf32>
    %1510 = arith.mulf %1509, %1495 : vector<1x256xf32>
    %1511 = arith.addf %1494, %1510 : vector<1x256xf32>
    %1512 = vector.extract_strided_slice %1460 {offsets = [3, 0], sizes = [1, 256], strides = [1, 1]} : vector<8x256xf32> to vector<1x256xf32>
    %c172 = arith.constant 172 : index
    %1513 = memref.load %arg3[%c172] : memref<288xf32, #tpu.memory_space<smem>>
    %1514 = vector.broadcast %1513 : f32 to vector<1x256xf32>
    %1515 = arith.mulf %1514, %1512 : vector<1x256xf32>
    %1516 = arith.addf %1499, %1515 : vector<1x256xf32>
    %c208 = arith.constant 208 : index
    %1517 = memref.load %arg3[%c208] : memref<288xf32, #tpu.memory_space<smem>>
    %1518 = vector.broadcast %1517 : f32 to vector<1x256xf32>
    %1519 = arith.mulf %1518, %1512 : vector<1x256xf32>
    %1520 = arith.addf %1503, %1519 : vector<1x256xf32>
    %c244 = arith.constant 244 : index
    %1521 = memref.load %arg3[%c244] : memref<288xf32, #tpu.memory_space<smem>>
    %1522 = vector.broadcast %1521 : f32 to vector<1x256xf32>
    %1523 = arith.mulf %1522, %1512 : vector<1x256xf32>
    %1524 = arith.addf %1507, %1523 : vector<1x256xf32>
    %c280 = arith.constant 280 : index
    %1525 = memref.load %arg3[%c280] : memref<288xf32, #tpu.memory_space<smem>>
    %1526 = vector.broadcast %1525 : f32 to vector<1x256xf32>
    %1527 = arith.mulf %1526, %1512 : vector<1x256xf32>
    %1528 = arith.addf %1511, %1527 : vector<1x256xf32>
    %1529 = vector.extract_strided_slice %1460 {offsets = [4, 0], sizes = [1, 256], strides = [1, 1]} : vector<8x256xf32> to vector<1x256xf32>
    %c145_197 = arith.constant 145 : index
    %1530 = memref.load %arg3[%c145_197] : memref<288xf32, #tpu.memory_space<smem>>
    %1531 = vector.broadcast %1530 : f32 to vector<1x256xf32>
    %1532 = arith.mulf %1531, %1529 : vector<1x256xf32>
    %1533 = arith.addf %1441, %1532 : vector<1x256xf32>
    %c181_198 = arith.constant 181 : index
    %1534 = memref.load %arg3[%c181_198] : memref<288xf32, #tpu.memory_space<smem>>
    %1535 = vector.broadcast %1534 : f32 to vector<1x256xf32>
    %1536 = arith.mulf %1535, %1529 : vector<1x256xf32>
    %1537 = arith.addf %1445, %1536 : vector<1x256xf32>
    %c217_199 = arith.constant 217 : index
    %1538 = memref.load %arg3[%c217_199] : memref<288xf32, #tpu.memory_space<smem>>
    %1539 = vector.broadcast %1538 : f32 to vector<1x256xf32>
    %1540 = arith.mulf %1539, %1529 : vector<1x256xf32>
    %1541 = arith.addf %1449, %1540 : vector<1x256xf32>
    %c253_200 = arith.constant 253 : index
    %1542 = memref.load %arg3[%c253_200] : memref<288xf32, #tpu.memory_space<smem>>
    %1543 = vector.broadcast %1542 : f32 to vector<1x256xf32>
    %1544 = arith.mulf %1543, %1529 : vector<1x256xf32>
    %1545 = arith.addf %1453, %1544 : vector<1x256xf32>
    %1546 = vector.extract_strided_slice %1460 {offsets = [5, 0], sizes = [1, 256], strides = [1, 1]} : vector<8x256xf32> to vector<1x256xf32>
    %c154_201 = arith.constant 154 : index
    %1547 = memref.load %arg3[%c154_201] : memref<288xf32, #tpu.memory_space<smem>>
    %1548 = vector.broadcast %1547 : f32 to vector<1x256xf32>
    %1549 = arith.mulf %1548, %1546 : vector<1x256xf32>
    %1550 = arith.addf %1533, %1549 : vector<1x256xf32>
    %c190_202 = arith.constant 190 : index
    %1551 = memref.load %arg3[%c190_202] : memref<288xf32, #tpu.memory_space<smem>>
    %1552 = vector.broadcast %1551 : f32 to vector<1x256xf32>
    %1553 = arith.mulf %1552, %1546 : vector<1x256xf32>
    %1554 = arith.addf %1537, %1553 : vector<1x256xf32>
    %c226_203 = arith.constant 226 : index
    %1555 = memref.load %arg3[%c226_203] : memref<288xf32, #tpu.memory_space<smem>>
    %1556 = vector.broadcast %1555 : f32 to vector<1x256xf32>
    %1557 = arith.mulf %1556, %1546 : vector<1x256xf32>
    %1558 = arith.addf %1541, %1557 : vector<1x256xf32>
    %c262_204 = arith.constant 262 : index
    %1559 = memref.load %arg3[%c262_204] : memref<288xf32, #tpu.memory_space<smem>>
    %1560 = vector.broadcast %1559 : f32 to vector<1x256xf32>
    %1561 = arith.mulf %1560, %1546 : vector<1x256xf32>
    %1562 = arith.addf %1545, %1561 : vector<1x256xf32>
    %1563 = vector.extract_strided_slice %1460 {offsets = [6, 0], sizes = [1, 256], strides = [1, 1]} : vector<8x256xf32> to vector<1x256xf32>
    %c163_205 = arith.constant 163 : index
    %1564 = memref.load %arg3[%c163_205] : memref<288xf32, #tpu.memory_space<smem>>
    %1565 = vector.broadcast %1564 : f32 to vector<1x256xf32>
    %1566 = arith.mulf %1565, %1563 : vector<1x256xf32>
    %1567 = arith.addf %1550, %1566 : vector<1x256xf32>
    %c199_206 = arith.constant 199 : index
    %1568 = memref.load %arg3[%c199_206] : memref<288xf32, #tpu.memory_space<smem>>
    %1569 = vector.broadcast %1568 : f32 to vector<1x256xf32>
    %1570 = arith.mulf %1569, %1563 : vector<1x256xf32>
    %1571 = arith.addf %1554, %1570 : vector<1x256xf32>
    %c235_207 = arith.constant 235 : index
    %1572 = memref.load %arg3[%c235_207] : memref<288xf32, #tpu.memory_space<smem>>
    %1573 = vector.broadcast %1572 : f32 to vector<1x256xf32>
    %1574 = arith.mulf %1573, %1563 : vector<1x256xf32>
    %1575 = arith.addf %1558, %1574 : vector<1x256xf32>
    %c271_208 = arith.constant 271 : index
    %1576 = memref.load %arg3[%c271_208] : memref<288xf32, #tpu.memory_space<smem>>
    %1577 = vector.broadcast %1576 : f32 to vector<1x256xf32>
    %1578 = arith.mulf %1577, %1563 : vector<1x256xf32>
    %1579 = arith.addf %1562, %1578 : vector<1x256xf32>
    %1580 = vector.extract_strided_slice %1460 {offsets = [7, 0], sizes = [1, 256], strides = [1, 1]} : vector<8x256xf32> to vector<1x256xf32>
    %c172_209 = arith.constant 172 : index
    %1581 = memref.load %arg3[%c172_209] : memref<288xf32, #tpu.memory_space<smem>>
    %1582 = vector.broadcast %1581 : f32 to vector<1x256xf32>
    %1583 = arith.mulf %1582, %1580 : vector<1x256xf32>
    %1584 = arith.addf %1567, %1583 : vector<1x256xf32>
    %c208_210 = arith.constant 208 : index
    %1585 = memref.load %arg3[%c208_210] : memref<288xf32, #tpu.memory_space<smem>>
    %1586 = vector.broadcast %1585 : f32 to vector<1x256xf32>
    %1587 = arith.mulf %1586, %1580 : vector<1x256xf32>
    %1588 = arith.addf %1571, %1587 : vector<1x256xf32>
    %c244_211 = arith.constant 244 : index
    %1589 = memref.load %arg3[%c244_211] : memref<288xf32, #tpu.memory_space<smem>>
    %1590 = vector.broadcast %1589 : f32 to vector<1x256xf32>
    %1591 = arith.mulf %1590, %1580 : vector<1x256xf32>
    %1592 = arith.addf %1575, %1591 : vector<1x256xf32>
    %c280_212 = arith.constant 280 : index
    %1593 = memref.load %arg3[%c280_212] : memref<288xf32, #tpu.memory_space<smem>>
    %1594 = vector.broadcast %1593 : f32 to vector<1x256xf32>
    %1595 = arith.mulf %1594, %1580 : vector<1x256xf32>
    %1596 = arith.addf %1579, %1595 : vector<1x256xf32>
    %c30_i32 = arith.constant 30 : i32
    %1597 = tpu.dynamic_rotate %1315 by %c30_i32 dim 1 : vector<8x256xf32>, i32 -> vector<8x256xf32>
    %c2_i32_213 = arith.constant 2 : i32
    %1598 = vector.broadcast %c2_i32_213 : i32 to vector<1x256xi32>
    %1599 = arith.cmpi sge, %1, %1598 : vector<1x256xi32>
    %c14_i32 = arith.constant 14 : i32
    %1600 = vector.broadcast %c14_i32 : i32 to vector<1x256xi32>
    %1601 = arith.cmpi slt, %2, %1600 : vector<1x256xi32>
    %1602 = arith.andi %1599, %1601 : vector<1x256xi1>
    %cst_214 = arith.constant 0.000000e+00 : f32
    %1603 = vector.shape_cast %1602 : vector<1x256xi1> to vector<1x256xi1>
    %1604 = vector.broadcast %1603 : vector<1x256xi1> to vector<8x256xi1>
    %1605 = vector.broadcast %cst_214 : f32 to vector<8x256xf32>
    %1606 = arith.select %1604, %1597, %1605 : vector<8x256xi1>, vector<8x256xf32>
    %1607 = vector.extract_strided_slice %1606 {offsets = [0, 0], sizes = [1, 256], strides = [1, 1]} : vector<8x256xf32> to vector<1x256xf32>
    %c146 = arith.constant 146 : index
    %1608 = memref.load %arg3[%c146] : memref<288xf32, #tpu.memory_space<smem>>
    %1609 = vector.broadcast %1608 : f32 to vector<1x256xf32>
    %1610 = arith.mulf %1609, %1607 : vector<1x256xf32>
    %1611 = arith.addf %1516, %1610 : vector<1x256xf32>
    %c182 = arith.constant 182 : index
    %1612 = memref.load %arg3[%c182] : memref<288xf32, #tpu.memory_space<smem>>
    %1613 = vector.broadcast %1612 : f32 to vector<1x256xf32>
    %1614 = arith.mulf %1613, %1607 : vector<1x256xf32>
    %1615 = arith.addf %1520, %1614 : vector<1x256xf32>
    %c218 = arith.constant 218 : index
    %1616 = memref.load %arg3[%c218] : memref<288xf32, #tpu.memory_space<smem>>
    %1617 = vector.broadcast %1616 : f32 to vector<1x256xf32>
    %1618 = arith.mulf %1617, %1607 : vector<1x256xf32>
    %1619 = arith.addf %1524, %1618 : vector<1x256xf32>
    %c254 = arith.constant 254 : index
    %1620 = memref.load %arg3[%c254] : memref<288xf32, #tpu.memory_space<smem>>
    %1621 = vector.broadcast %1620 : f32 to vector<1x256xf32>
    %1622 = arith.mulf %1621, %1607 : vector<1x256xf32>
    %1623 = arith.addf %1528, %1622 : vector<1x256xf32>
    %1624 = vector.extract_strided_slice %1606 {offsets = [1, 0], sizes = [1, 256], strides = [1, 1]} : vector<8x256xf32> to vector<1x256xf32>
    %c155 = arith.constant 155 : index
    %1625 = memref.load %arg3[%c155] : memref<288xf32, #tpu.memory_space<smem>>
    %1626 = vector.broadcast %1625 : f32 to vector<1x256xf32>
    %1627 = arith.mulf %1626, %1624 : vector<1x256xf32>
    %1628 = arith.addf %1611, %1627 : vector<1x256xf32>
    %c191 = arith.constant 191 : index
    %1629 = memref.load %arg3[%c191] : memref<288xf32, #tpu.memory_space<smem>>
    %1630 = vector.broadcast %1629 : f32 to vector<1x256xf32>
    %1631 = arith.mulf %1630, %1624 : vector<1x256xf32>
    %1632 = arith.addf %1615, %1631 : vector<1x256xf32>
    %c227 = arith.constant 227 : index
    %1633 = memref.load %arg3[%c227] : memref<288xf32, #tpu.memory_space<smem>>
    %1634 = vector.broadcast %1633 : f32 to vector<1x256xf32>
    %1635 = arith.mulf %1634, %1624 : vector<1x256xf32>
    %1636 = arith.addf %1619, %1635 : vector<1x256xf32>
    %c263 = arith.constant 263 : index
    %1637 = memref.load %arg3[%c263] : memref<288xf32, #tpu.memory_space<smem>>
    %1638 = vector.broadcast %1637 : f32 to vector<1x256xf32>
    %1639 = arith.mulf %1638, %1624 : vector<1x256xf32>
    %1640 = arith.addf %1623, %1639 : vector<1x256xf32>
    %1641 = vector.extract_strided_slice %1606 {offsets = [2, 0], sizes = [1, 256], strides = [1, 1]} : vector<8x256xf32> to vector<1x256xf32>
    %c164 = arith.constant 164 : index
    %1642 = memref.load %arg3[%c164] : memref<288xf32, #tpu.memory_space<smem>>
    %1643 = vector.broadcast %1642 : f32 to vector<1x256xf32>
    %1644 = arith.mulf %1643, %1641 : vector<1x256xf32>
    %1645 = arith.addf %1628, %1644 : vector<1x256xf32>
    %c200 = arith.constant 200 : index
    %1646 = memref.load %arg3[%c200] : memref<288xf32, #tpu.memory_space<smem>>
    %1647 = vector.broadcast %1646 : f32 to vector<1x256xf32>
    %1648 = arith.mulf %1647, %1641 : vector<1x256xf32>
    %1649 = arith.addf %1632, %1648 : vector<1x256xf32>
    %c236 = arith.constant 236 : index
    %1650 = memref.load %arg3[%c236] : memref<288xf32, #tpu.memory_space<smem>>
    %1651 = vector.broadcast %1650 : f32 to vector<1x256xf32>
    %1652 = arith.mulf %1651, %1641 : vector<1x256xf32>
    %1653 = arith.addf %1636, %1652 : vector<1x256xf32>
    %c272 = arith.constant 272 : index
    %1654 = memref.load %arg3[%c272] : memref<288xf32, #tpu.memory_space<smem>>
    %1655 = vector.broadcast %1654 : f32 to vector<1x256xf32>
    %1656 = arith.mulf %1655, %1641 : vector<1x256xf32>
    %1657 = arith.addf %1640, %1656 : vector<1x256xf32>
    %1658 = vector.extract_strided_slice %1606 {offsets = [3, 0], sizes = [1, 256], strides = [1, 1]} : vector<8x256xf32> to vector<1x256xf32>
    %c173 = arith.constant 173 : index
    %1659 = memref.load %arg3[%c173] : memref<288xf32, #tpu.memory_space<smem>>
    %1660 = vector.broadcast %1659 : f32 to vector<1x256xf32>
    %1661 = arith.mulf %1660, %1658 : vector<1x256xf32>
    %1662 = arith.addf %1645, %1661 : vector<1x256xf32>
    %c209 = arith.constant 209 : index
    %1663 = memref.load %arg3[%c209] : memref<288xf32, #tpu.memory_space<smem>>
    %1664 = vector.broadcast %1663 : f32 to vector<1x256xf32>
    %1665 = arith.mulf %1664, %1658 : vector<1x256xf32>
    %1666 = arith.addf %1649, %1665 : vector<1x256xf32>
    %c245 = arith.constant 245 : index
    %1667 = memref.load %arg3[%c245] : memref<288xf32, #tpu.memory_space<smem>>
    %1668 = vector.broadcast %1667 : f32 to vector<1x256xf32>
    %1669 = arith.mulf %1668, %1658 : vector<1x256xf32>
    %1670 = arith.addf %1653, %1669 : vector<1x256xf32>
    %c281 = arith.constant 281 : index
    %1671 = memref.load %arg3[%c281] : memref<288xf32, #tpu.memory_space<smem>>
    %1672 = vector.broadcast %1671 : f32 to vector<1x256xf32>
    %1673 = arith.mulf %1672, %1658 : vector<1x256xf32>
    %1674 = arith.addf %1657, %1673 : vector<1x256xf32>
    %1675 = vector.extract_strided_slice %1606 {offsets = [4, 0], sizes = [1, 256], strides = [1, 1]} : vector<8x256xf32> to vector<1x256xf32>
    %c146_215 = arith.constant 146 : index
    %1676 = memref.load %arg3[%c146_215] : memref<288xf32, #tpu.memory_space<smem>>
    %1677 = vector.broadcast %1676 : f32 to vector<1x256xf32>
    %1678 = arith.mulf %1677, %1675 : vector<1x256xf32>
    %1679 = arith.addf %1584, %1678 : vector<1x256xf32>
    %c182_216 = arith.constant 182 : index
    %1680 = memref.load %arg3[%c182_216] : memref<288xf32, #tpu.memory_space<smem>>
    %1681 = vector.broadcast %1680 : f32 to vector<1x256xf32>
    %1682 = arith.mulf %1681, %1675 : vector<1x256xf32>
    %1683 = arith.addf %1588, %1682 : vector<1x256xf32>
    %c218_217 = arith.constant 218 : index
    %1684 = memref.load %arg3[%c218_217] : memref<288xf32, #tpu.memory_space<smem>>
    %1685 = vector.broadcast %1684 : f32 to vector<1x256xf32>
    %1686 = arith.mulf %1685, %1675 : vector<1x256xf32>
    %1687 = arith.addf %1592, %1686 : vector<1x256xf32>
    %c254_218 = arith.constant 254 : index
    %1688 = memref.load %arg3[%c254_218] : memref<288xf32, #tpu.memory_space<smem>>
    %1689 = vector.broadcast %1688 : f32 to vector<1x256xf32>
    %1690 = arith.mulf %1689, %1675 : vector<1x256xf32>
    %1691 = arith.addf %1596, %1690 : vector<1x256xf32>
    %1692 = vector.extract_strided_slice %1606 {offsets = [5, 0], sizes = [1, 256], strides = [1, 1]} : vector<8x256xf32> to vector<1x256xf32>
    %c155_219 = arith.constant 155 : index
    %1693 = memref.load %arg3[%c155_219] : memref<288xf32, #tpu.memory_space<smem>>
    %1694 = vector.broadcast %1693 : f32 to vector<1x256xf32>
    %1695 = arith.mulf %1694, %1692 : vector<1x256xf32>
    %1696 = arith.addf %1679, %1695 : vector<1x256xf32>
    %c191_220 = arith.constant 191 : index
    %1697 = memref.load %arg3[%c191_220] : memref<288xf32, #tpu.memory_space<smem>>
    %1698 = vector.broadcast %1697 : f32 to vector<1x256xf32>
    %1699 = arith.mulf %1698, %1692 : vector<1x256xf32>
    %1700 = arith.addf %1683, %1699 : vector<1x256xf32>
    %c227_221 = arith.constant 227 : index
    %1701 = memref.load %arg3[%c227_221] : memref<288xf32, #tpu.memory_space<smem>>
    %1702 = vector.broadcast %1701 : f32 to vector<1x256xf32>
    %1703 = arith.mulf %1702, %1692 : vector<1x256xf32>
    %1704 = arith.addf %1687, %1703 : vector<1x256xf32>
    %c263_222 = arith.constant 263 : index
    %1705 = memref.load %arg3[%c263_222] : memref<288xf32, #tpu.memory_space<smem>>
    %1706 = vector.broadcast %1705 : f32 to vector<1x256xf32>
    %1707 = arith.mulf %1706, %1692 : vector<1x256xf32>
    %1708 = arith.addf %1691, %1707 : vector<1x256xf32>
    %1709 = vector.extract_strided_slice %1606 {offsets = [6, 0], sizes = [1, 256], strides = [1, 1]} : vector<8x256xf32> to vector<1x256xf32>
    %c164_223 = arith.constant 164 : index
    %1710 = memref.load %arg3[%c164_223] : memref<288xf32, #tpu.memory_space<smem>>
    %1711 = vector.broadcast %1710 : f32 to vector<1x256xf32>
    %1712 = arith.mulf %1711, %1709 : vector<1x256xf32>
    %1713 = arith.addf %1696, %1712 : vector<1x256xf32>
    %c200_224 = arith.constant 200 : index
    %1714 = memref.load %arg3[%c200_224] : memref<288xf32, #tpu.memory_space<smem>>
    %1715 = vector.broadcast %1714 : f32 to vector<1x256xf32>
    %1716 = arith.mulf %1715, %1709 : vector<1x256xf32>
    %1717 = arith.addf %1700, %1716 : vector<1x256xf32>
    %c236_225 = arith.constant 236 : index
    %1718 = memref.load %arg3[%c236_225] : memref<288xf32, #tpu.memory_space<smem>>
    %1719 = vector.broadcast %1718 : f32 to vector<1x256xf32>
    %1720 = arith.mulf %1719, %1709 : vector<1x256xf32>
    %1721 = arith.addf %1704, %1720 : vector<1x256xf32>
    %c272_226 = arith.constant 272 : index
    %1722 = memref.load %arg3[%c272_226] : memref<288xf32, #tpu.memory_space<smem>>
    %1723 = vector.broadcast %1722 : f32 to vector<1x256xf32>
    %1724 = arith.mulf %1723, %1709 : vector<1x256xf32>
    %1725 = arith.addf %1708, %1724 : vector<1x256xf32>
    %1726 = vector.extract_strided_slice %1606 {offsets = [7, 0], sizes = [1, 256], strides = [1, 1]} : vector<8x256xf32> to vector<1x256xf32>
    %c173_227 = arith.constant 173 : index
    %1727 = memref.load %arg3[%c173_227] : memref<288xf32, #tpu.memory_space<smem>>
    %1728 = vector.broadcast %1727 : f32 to vector<1x256xf32>
    %1729 = arith.mulf %1728, %1726 : vector<1x256xf32>
    %1730 = arith.addf %1713, %1729 : vector<1x256xf32>
    %c209_228 = arith.constant 209 : index
    %1731 = memref.load %arg3[%c209_228] : memref<288xf32, #tpu.memory_space<smem>>
    %1732 = vector.broadcast %1731 : f32 to vector<1x256xf32>
    %1733 = arith.mulf %1732, %1726 : vector<1x256xf32>
    %1734 = arith.addf %1717, %1733 : vector<1x256xf32>
    %c245_229 = arith.constant 245 : index
    %1735 = memref.load %arg3[%c245_229] : memref<288xf32, #tpu.memory_space<smem>>
    %1736 = vector.broadcast %1735 : f32 to vector<1x256xf32>
    %1737 = arith.mulf %1736, %1726 : vector<1x256xf32>
    %1738 = arith.addf %1721, %1737 : vector<1x256xf32>
    %c281_230 = arith.constant 281 : index
    %1739 = memref.load %arg3[%c281_230] : memref<288xf32, #tpu.memory_space<smem>>
    %1740 = vector.broadcast %1739 : f32 to vector<1x256xf32>
    %1741 = arith.mulf %1740, %1726 : vector<1x256xf32>
    %1742 = arith.addf %1725, %1741 : vector<1x256xf32>
    %c2_i32_231 = arith.constant 2 : i32
    %1743 = tpu.dynamic_rotate %1315 by %c2_i32_231 dim 1 : vector<8x256xf32>, i32 -> vector<8x256xf32>
    %c2_i32_232 = arith.constant 2 : i32
    %1744 = vector.broadcast %c2_i32_232 : i32 to vector<1x256xi32>
    %1745 = arith.cmpi sge, %2, %1744 : vector<1x256xi32>
    %cst_233 = arith.constant 0.000000e+00 : f32
    %1746 = vector.shape_cast %1745 : vector<1x256xi1> to vector<1x256xi1>
    %1747 = vector.broadcast %1746 : vector<1x256xi1> to vector<8x256xi1>
    %1748 = vector.broadcast %cst_233 : f32 to vector<8x256xf32>
    %1749 = arith.select %1747, %1743, %1748 : vector<8x256xi1>, vector<8x256xf32>
    %1750 = vector.extract_strided_slice %1749 {offsets = [0, 0], sizes = [1, 256], strides = [1, 1]} : vector<8x256xf32> to vector<1x256xf32>
    %c147 = arith.constant 147 : index
    %1751 = memref.load %arg3[%c147] : memref<288xf32, #tpu.memory_space<smem>>
    %1752 = vector.broadcast %1751 : f32 to vector<1x256xf32>
    %1753 = arith.mulf %1752, %1750 : vector<1x256xf32>
    %1754 = arith.addf %1662, %1753 : vector<1x256xf32>
    %c183 = arith.constant 183 : index
    %1755 = memref.load %arg3[%c183] : memref<288xf32, #tpu.memory_space<smem>>
    %1756 = vector.broadcast %1755 : f32 to vector<1x256xf32>
    %1757 = arith.mulf %1756, %1750 : vector<1x256xf32>
    %1758 = arith.addf %1666, %1757 : vector<1x256xf32>
    %c219 = arith.constant 219 : index
    %1759 = memref.load %arg3[%c219] : memref<288xf32, #tpu.memory_space<smem>>
    %1760 = vector.broadcast %1759 : f32 to vector<1x256xf32>
    %1761 = arith.mulf %1760, %1750 : vector<1x256xf32>
    %1762 = arith.addf %1670, %1761 : vector<1x256xf32>
    %c255 = arith.constant 255 : index
    %1763 = memref.load %arg3[%c255] : memref<288xf32, #tpu.memory_space<smem>>
    %1764 = vector.broadcast %1763 : f32 to vector<1x256xf32>
    %1765 = arith.mulf %1764, %1750 : vector<1x256xf32>
    %1766 = arith.addf %1674, %1765 : vector<1x256xf32>
    %1767 = vector.extract_strided_slice %1749 {offsets = [1, 0], sizes = [1, 256], strides = [1, 1]} : vector<8x256xf32> to vector<1x256xf32>
    %c156 = arith.constant 156 : index
    %1768 = memref.load %arg3[%c156] : memref<288xf32, #tpu.memory_space<smem>>
    %1769 = vector.broadcast %1768 : f32 to vector<1x256xf32>
    %1770 = arith.mulf %1769, %1767 : vector<1x256xf32>
    %1771 = arith.addf %1754, %1770 : vector<1x256xf32>
    %c192 = arith.constant 192 : index
    %1772 = memref.load %arg3[%c192] : memref<288xf32, #tpu.memory_space<smem>>
    %1773 = vector.broadcast %1772 : f32 to vector<1x256xf32>
    %1774 = arith.mulf %1773, %1767 : vector<1x256xf32>
    %1775 = arith.addf %1758, %1774 : vector<1x256xf32>
    %c228 = arith.constant 228 : index
    %1776 = memref.load %arg3[%c228] : memref<288xf32, #tpu.memory_space<smem>>
    %1777 = vector.broadcast %1776 : f32 to vector<1x256xf32>
    %1778 = arith.mulf %1777, %1767 : vector<1x256xf32>
    %1779 = arith.addf %1762, %1778 : vector<1x256xf32>
    %c264 = arith.constant 264 : index
    %1780 = memref.load %arg3[%c264] : memref<288xf32, #tpu.memory_space<smem>>
    %1781 = vector.broadcast %1780 : f32 to vector<1x256xf32>
    %1782 = arith.mulf %1781, %1767 : vector<1x256xf32>
    %1783 = arith.addf %1766, %1782 : vector<1x256xf32>
    %1784 = vector.extract_strided_slice %1749 {offsets = [2, 0], sizes = [1, 256], strides = [1, 1]} : vector<8x256xf32> to vector<1x256xf32>
    %c165 = arith.constant 165 : index
    %1785 = memref.load %arg3[%c165] : memref<288xf32, #tpu.memory_space<smem>>
    %1786 = vector.broadcast %1785 : f32 to vector<1x256xf32>
    %1787 = arith.mulf %1786, %1784 : vector<1x256xf32>
    %1788 = arith.addf %1771, %1787 : vector<1x256xf32>
    %c201 = arith.constant 201 : index
    %1789 = memref.load %arg3[%c201] : memref<288xf32, #tpu.memory_space<smem>>
    %1790 = vector.broadcast %1789 : f32 to vector<1x256xf32>
    %1791 = arith.mulf %1790, %1784 : vector<1x256xf32>
    %1792 = arith.addf %1775, %1791 : vector<1x256xf32>
    %c237 = arith.constant 237 : index
    %1793 = memref.load %arg3[%c237] : memref<288xf32, #tpu.memory_space<smem>>
    %1794 = vector.broadcast %1793 : f32 to vector<1x256xf32>
    %1795 = arith.mulf %1794, %1784 : vector<1x256xf32>
    %1796 = arith.addf %1779, %1795 : vector<1x256xf32>
    %c273 = arith.constant 273 : index
    %1797 = memref.load %arg3[%c273] : memref<288xf32, #tpu.memory_space<smem>>
    %1798 = vector.broadcast %1797 : f32 to vector<1x256xf32>
    %1799 = arith.mulf %1798, %1784 : vector<1x256xf32>
    %1800 = arith.addf %1783, %1799 : vector<1x256xf32>
    %1801 = vector.extract_strided_slice %1749 {offsets = [3, 0], sizes = [1, 256], strides = [1, 1]} : vector<8x256xf32> to vector<1x256xf32>
    %c174 = arith.constant 174 : index
    %1802 = memref.load %arg3[%c174] : memref<288xf32, #tpu.memory_space<smem>>
    %1803 = vector.broadcast %1802 : f32 to vector<1x256xf32>
    %1804 = arith.mulf %1803, %1801 : vector<1x256xf32>
    %1805 = arith.addf %1788, %1804 : vector<1x256xf32>
    %c210 = arith.constant 210 : index
    %1806 = memref.load %arg3[%c210] : memref<288xf32, #tpu.memory_space<smem>>
    %1807 = vector.broadcast %1806 : f32 to vector<1x256xf32>
    %1808 = arith.mulf %1807, %1801 : vector<1x256xf32>
    %1809 = arith.addf %1792, %1808 : vector<1x256xf32>
    %c246 = arith.constant 246 : index
    %1810 = memref.load %arg3[%c246] : memref<288xf32, #tpu.memory_space<smem>>
    %1811 = vector.broadcast %1810 : f32 to vector<1x256xf32>
    %1812 = arith.mulf %1811, %1801 : vector<1x256xf32>
    %1813 = arith.addf %1796, %1812 : vector<1x256xf32>
    %c282 = arith.constant 282 : index
    %1814 = memref.load %arg3[%c282] : memref<288xf32, #tpu.memory_space<smem>>
    %1815 = vector.broadcast %1814 : f32 to vector<1x256xf32>
    %1816 = arith.mulf %1815, %1801 : vector<1x256xf32>
    %1817 = arith.addf %1800, %1816 : vector<1x256xf32>
    %1818 = vector.extract_strided_slice %1749 {offsets = [4, 0], sizes = [1, 256], strides = [1, 1]} : vector<8x256xf32> to vector<1x256xf32>
    %c147_234 = arith.constant 147 : index
    %1819 = memref.load %arg3[%c147_234] : memref<288xf32, #tpu.memory_space<smem>>
    %1820 = vector.broadcast %1819 : f32 to vector<1x256xf32>
    %1821 = arith.mulf %1820, %1818 : vector<1x256xf32>
    %1822 = arith.addf %1730, %1821 : vector<1x256xf32>
    %c183_235 = arith.constant 183 : index
    %1823 = memref.load %arg3[%c183_235] : memref<288xf32, #tpu.memory_space<smem>>
    %1824 = vector.broadcast %1823 : f32 to vector<1x256xf32>
    %1825 = arith.mulf %1824, %1818 : vector<1x256xf32>
    %1826 = arith.addf %1734, %1825 : vector<1x256xf32>
    %c219_236 = arith.constant 219 : index
    %1827 = memref.load %arg3[%c219_236] : memref<288xf32, #tpu.memory_space<smem>>
    %1828 = vector.broadcast %1827 : f32 to vector<1x256xf32>
    %1829 = arith.mulf %1828, %1818 : vector<1x256xf32>
    %1830 = arith.addf %1738, %1829 : vector<1x256xf32>
    %c255_237 = arith.constant 255 : index
    %1831 = memref.load %arg3[%c255_237] : memref<288xf32, #tpu.memory_space<smem>>
    %1832 = vector.broadcast %1831 : f32 to vector<1x256xf32>
    %1833 = arith.mulf %1832, %1818 : vector<1x256xf32>
    %1834 = arith.addf %1742, %1833 : vector<1x256xf32>
    %1835 = vector.extract_strided_slice %1749 {offsets = [5, 0], sizes = [1, 256], strides = [1, 1]} : vector<8x256xf32> to vector<1x256xf32>
    %c156_238 = arith.constant 156 : index
    %1836 = memref.load %arg3[%c156_238] : memref<288xf32, #tpu.memory_space<smem>>
    %1837 = vector.broadcast %1836 : f32 to vector<1x256xf32>
    %1838 = arith.mulf %1837, %1835 : vector<1x256xf32>
    %1839 = arith.addf %1822, %1838 : vector<1x256xf32>
    %c192_239 = arith.constant 192 : index
    %1840 = memref.load %arg3[%c192_239] : memref<288xf32, #tpu.memory_space<smem>>
    %1841 = vector.broadcast %1840 : f32 to vector<1x256xf32>
    %1842 = arith.mulf %1841, %1835 : vector<1x256xf32>
    %1843 = arith.addf %1826, %1842 : vector<1x256xf32>
    %c228_240 = arith.constant 228 : index
    %1844 = memref.load %arg3[%c228_240] : memref<288xf32, #tpu.memory_space<smem>>
    %1845 = vector.broadcast %1844 : f32 to vector<1x256xf32>
    %1846 = arith.mulf %1845, %1835 : vector<1x256xf32>
    %1847 = arith.addf %1830, %1846 : vector<1x256xf32>
    %c264_241 = arith.constant 264 : index
    %1848 = memref.load %arg3[%c264_241] : memref<288xf32, #tpu.memory_space<smem>>
    %1849 = vector.broadcast %1848 : f32 to vector<1x256xf32>
    %1850 = arith.mulf %1849, %1835 : vector<1x256xf32>
    %1851 = arith.addf %1834, %1850 : vector<1x256xf32>
    %1852 = vector.extract_strided_slice %1749 {offsets = [6, 0], sizes = [1, 256], strides = [1, 1]} : vector<8x256xf32> to vector<1x256xf32>
    %c165_242 = arith.constant 165 : index
    %1853 = memref.load %arg3[%c165_242] : memref<288xf32, #tpu.memory_space<smem>>
    %1854 = vector.broadcast %1853 : f32 to vector<1x256xf32>
    %1855 = arith.mulf %1854, %1852 : vector<1x256xf32>
    %1856 = arith.addf %1839, %1855 : vector<1x256xf32>
    %c201_243 = arith.constant 201 : index
    %1857 = memref.load %arg3[%c201_243] : memref<288xf32, #tpu.memory_space<smem>>
    %1858 = vector.broadcast %1857 : f32 to vector<1x256xf32>
    %1859 = arith.mulf %1858, %1852 : vector<1x256xf32>
    %1860 = arith.addf %1843, %1859 : vector<1x256xf32>
    %c237_244 = arith.constant 237 : index
    %1861 = memref.load %arg3[%c237_244] : memref<288xf32, #tpu.memory_space<smem>>
    %1862 = vector.broadcast %1861 : f32 to vector<1x256xf32>
    %1863 = arith.mulf %1862, %1852 : vector<1x256xf32>
    %1864 = arith.addf %1847, %1863 : vector<1x256xf32>
    %c273_245 = arith.constant 273 : index
    %1865 = memref.load %arg3[%c273_245] : memref<288xf32, #tpu.memory_space<smem>>
    %1866 = vector.broadcast %1865 : f32 to vector<1x256xf32>
    %1867 = arith.mulf %1866, %1852 : vector<1x256xf32>
    %1868 = arith.addf %1851, %1867 : vector<1x256xf32>
    %1869 = vector.extract_strided_slice %1749 {offsets = [7, 0], sizes = [1, 256], strides = [1, 1]} : vector<8x256xf32> to vector<1x256xf32>
    %c174_246 = arith.constant 174 : index
    %1870 = memref.load %arg3[%c174_246] : memref<288xf32, #tpu.memory_space<smem>>
    %1871 = vector.broadcast %1870 : f32 to vector<1x256xf32>
    %1872 = arith.mulf %1871, %1869 : vector<1x256xf32>
    %1873 = arith.addf %1856, %1872 : vector<1x256xf32>
    %c210_247 = arith.constant 210 : index
    %1874 = memref.load %arg3[%c210_247] : memref<288xf32, #tpu.memory_space<smem>>
    %1875 = vector.broadcast %1874 : f32 to vector<1x256xf32>
    %1876 = arith.mulf %1875, %1869 : vector<1x256xf32>
    %1877 = arith.addf %1860, %1876 : vector<1x256xf32>
    %c246_248 = arith.constant 246 : index
    %1878 = memref.load %arg3[%c246_248] : memref<288xf32, #tpu.memory_space<smem>>
    %1879 = vector.broadcast %1878 : f32 to vector<1x256xf32>
    %1880 = arith.mulf %1879, %1869 : vector<1x256xf32>
    %1881 = arith.addf %1864, %1880 : vector<1x256xf32>
    %c282_249 = arith.constant 282 : index
    %1882 = memref.load %arg3[%c282_249] : memref<288xf32, #tpu.memory_space<smem>>
    %1883 = vector.broadcast %1882 : f32 to vector<1x256xf32>
    %1884 = arith.mulf %1883, %1869 : vector<1x256xf32>
    %1885 = arith.addf %1868, %1884 : vector<1x256xf32>
    %1886 = vector.extract_strided_slice %1315 {offsets = [0, 0], sizes = [1, 256], strides = [1, 1]} : vector<8x256xf32> to vector<1x256xf32>
    %c148 = arith.constant 148 : index
    %1887 = memref.load %arg3[%c148] : memref<288xf32, #tpu.memory_space<smem>>
    %1888 = vector.broadcast %1887 : f32 to vector<1x256xf32>
    %1889 = arith.mulf %1888, %1886 : vector<1x256xf32>
    %1890 = arith.addf %1805, %1889 : vector<1x256xf32>
    %c184 = arith.constant 184 : index
    %1891 = memref.load %arg3[%c184] : memref<288xf32, #tpu.memory_space<smem>>
    %1892 = vector.broadcast %1891 : f32 to vector<1x256xf32>
    %1893 = arith.mulf %1892, %1886 : vector<1x256xf32>
    %1894 = arith.addf %1809, %1893 : vector<1x256xf32>
    %c220 = arith.constant 220 : index
    %1895 = memref.load %arg3[%c220] : memref<288xf32, #tpu.memory_space<smem>>
    %1896 = vector.broadcast %1895 : f32 to vector<1x256xf32>
    %1897 = arith.mulf %1896, %1886 : vector<1x256xf32>
    %1898 = arith.addf %1813, %1897 : vector<1x256xf32>
    %c256 = arith.constant 256 : index
    %1899 = memref.load %arg3[%c256] : memref<288xf32, #tpu.memory_space<smem>>
    %1900 = vector.broadcast %1899 : f32 to vector<1x256xf32>
    %1901 = arith.mulf %1900, %1886 : vector<1x256xf32>
    %1902 = arith.addf %1817, %1901 : vector<1x256xf32>
    %1903 = vector.extract_strided_slice %1315 {offsets = [1, 0], sizes = [1, 256], strides = [1, 1]} : vector<8x256xf32> to vector<1x256xf32>
    %c157 = arith.constant 157 : index
    %1904 = memref.load %arg3[%c157] : memref<288xf32, #tpu.memory_space<smem>>
    %1905 = vector.broadcast %1904 : f32 to vector<1x256xf32>
    %1906 = arith.mulf %1905, %1903 : vector<1x256xf32>
    %1907 = arith.addf %1890, %1906 : vector<1x256xf32>
    %c193 = arith.constant 193 : index
    %1908 = memref.load %arg3[%c193] : memref<288xf32, #tpu.memory_space<smem>>
    %1909 = vector.broadcast %1908 : f32 to vector<1x256xf32>
    %1910 = arith.mulf %1909, %1903 : vector<1x256xf32>
    %1911 = arith.addf %1894, %1910 : vector<1x256xf32>
    %c229 = arith.constant 229 : index
    %1912 = memref.load %arg3[%c229] : memref<288xf32, #tpu.memory_space<smem>>
    %1913 = vector.broadcast %1912 : f32 to vector<1x256xf32>
    %1914 = arith.mulf %1913, %1903 : vector<1x256xf32>
    %1915 = arith.addf %1898, %1914 : vector<1x256xf32>
    %c265 = arith.constant 265 : index
    %1916 = memref.load %arg3[%c265] : memref<288xf32, #tpu.memory_space<smem>>
    %1917 = vector.broadcast %1916 : f32 to vector<1x256xf32>
    %1918 = arith.mulf %1917, %1903 : vector<1x256xf32>
    %1919 = arith.addf %1902, %1918 : vector<1x256xf32>
    %1920 = vector.extract_strided_slice %1315 {offsets = [2, 0], sizes = [1, 256], strides = [1, 1]} : vector<8x256xf32> to vector<1x256xf32>
    %c166 = arith.constant 166 : index
    %1921 = memref.load %arg3[%c166] : memref<288xf32, #tpu.memory_space<smem>>
    %1922 = vector.broadcast %1921 : f32 to vector<1x256xf32>
    %1923 = arith.mulf %1922, %1920 : vector<1x256xf32>
    %1924 = arith.addf %1907, %1923 : vector<1x256xf32>
    %c202 = arith.constant 202 : index
    %1925 = memref.load %arg3[%c202] : memref<288xf32, #tpu.memory_space<smem>>
    %1926 = vector.broadcast %1925 : f32 to vector<1x256xf32>
    %1927 = arith.mulf %1926, %1920 : vector<1x256xf32>
    %1928 = arith.addf %1911, %1927 : vector<1x256xf32>
    %c238 = arith.constant 238 : index
    %1929 = memref.load %arg3[%c238] : memref<288xf32, #tpu.memory_space<smem>>
    %1930 = vector.broadcast %1929 : f32 to vector<1x256xf32>
    %1931 = arith.mulf %1930, %1920 : vector<1x256xf32>
    %1932 = arith.addf %1915, %1931 : vector<1x256xf32>
    %c274 = arith.constant 274 : index
    %1933 = memref.load %arg3[%c274] : memref<288xf32, #tpu.memory_space<smem>>
    %1934 = vector.broadcast %1933 : f32 to vector<1x256xf32>
    %1935 = arith.mulf %1934, %1920 : vector<1x256xf32>
    %1936 = arith.addf %1919, %1935 : vector<1x256xf32>
    %1937 = vector.extract_strided_slice %1315 {offsets = [3, 0], sizes = [1, 256], strides = [1, 1]} : vector<8x256xf32> to vector<1x256xf32>
    %c175 = arith.constant 175 : index
    %1938 = memref.load %arg3[%c175] : memref<288xf32, #tpu.memory_space<smem>>
    %1939 = vector.broadcast %1938 : f32 to vector<1x256xf32>
    %1940 = arith.mulf %1939, %1937 : vector<1x256xf32>
    %1941 = arith.addf %1924, %1940 : vector<1x256xf32>
    %c211 = arith.constant 211 : index
    %1942 = memref.load %arg3[%c211] : memref<288xf32, #tpu.memory_space<smem>>
    %1943 = vector.broadcast %1942 : f32 to vector<1x256xf32>
    %1944 = arith.mulf %1943, %1937 : vector<1x256xf32>
    %1945 = arith.addf %1928, %1944 : vector<1x256xf32>
    %c247 = arith.constant 247 : index
    %1946 = memref.load %arg3[%c247] : memref<288xf32, #tpu.memory_space<smem>>
    %1947 = vector.broadcast %1946 : f32 to vector<1x256xf32>
    %1948 = arith.mulf %1947, %1937 : vector<1x256xf32>
    %1949 = arith.addf %1932, %1948 : vector<1x256xf32>
    %c283 = arith.constant 283 : index
    %1950 = memref.load %arg3[%c283] : memref<288xf32, #tpu.memory_space<smem>>
    %1951 = vector.broadcast %1950 : f32 to vector<1x256xf32>
    %1952 = arith.mulf %1951, %1937 : vector<1x256xf32>
    %1953 = arith.addf %1936, %1952 : vector<1x256xf32>
    %1954 = vector.extract_strided_slice %1315 {offsets = [4, 0], sizes = [1, 256], strides = [1, 1]} : vector<8x256xf32> to vector<1x256xf32>
    %c148_250 = arith.constant 148 : index
    %1955 = memref.load %arg3[%c148_250] : memref<288xf32, #tpu.memory_space<smem>>
    %1956 = vector.broadcast %1955 : f32 to vector<1x256xf32>
    %1957 = arith.mulf %1956, %1954 : vector<1x256xf32>
    %1958 = arith.addf %1873, %1957 : vector<1x256xf32>
    %c184_251 = arith.constant 184 : index
    %1959 = memref.load %arg3[%c184_251] : memref<288xf32, #tpu.memory_space<smem>>
    %1960 = vector.broadcast %1959 : f32 to vector<1x256xf32>
    %1961 = arith.mulf %1960, %1954 : vector<1x256xf32>
    %1962 = arith.addf %1877, %1961 : vector<1x256xf32>
    %c220_252 = arith.constant 220 : index
    %1963 = memref.load %arg3[%c220_252] : memref<288xf32, #tpu.memory_space<smem>>
    %1964 = vector.broadcast %1963 : f32 to vector<1x256xf32>
    %1965 = arith.mulf %1964, %1954 : vector<1x256xf32>
    %1966 = arith.addf %1881, %1965 : vector<1x256xf32>
    %c256_253 = arith.constant 256 : index
    %1967 = memref.load %arg3[%c256_253] : memref<288xf32, #tpu.memory_space<smem>>
    %1968 = vector.broadcast %1967 : f32 to vector<1x256xf32>
    %1969 = arith.mulf %1968, %1954 : vector<1x256xf32>
    %1970 = arith.addf %1885, %1969 : vector<1x256xf32>
    %1971 = vector.extract_strided_slice %1315 {offsets = [5, 0], sizes = [1, 256], strides = [1, 1]} : vector<8x256xf32> to vector<1x256xf32>
    %c157_254 = arith.constant 157 : index
    %1972 = memref.load %arg3[%c157_254] : memref<288xf32, #tpu.memory_space<smem>>
    %1973 = vector.broadcast %1972 : f32 to vector<1x256xf32>
    %1974 = arith.mulf %1973, %1971 : vector<1x256xf32>
    %1975 = arith.addf %1958, %1974 : vector<1x256xf32>
    %c193_255 = arith.constant 193 : index
    %1976 = memref.load %arg3[%c193_255] : memref<288xf32, #tpu.memory_space<smem>>
    %1977 = vector.broadcast %1976 : f32 to vector<1x256xf32>
    %1978 = arith.mulf %1977, %1971 : vector<1x256xf32>
    %1979 = arith.addf %1962, %1978 : vector<1x256xf32>
    %c229_256 = arith.constant 229 : index
    %1980 = memref.load %arg3[%c229_256] : memref<288xf32, #tpu.memory_space<smem>>
    %1981 = vector.broadcast %1980 : f32 to vector<1x256xf32>
    %1982 = arith.mulf %1981, %1971 : vector<1x256xf32>
    %1983 = arith.addf %1966, %1982 : vector<1x256xf32>
    %c265_257 = arith.constant 265 : index
    %1984 = memref.load %arg3[%c265_257] : memref<288xf32, #tpu.memory_space<smem>>
    %1985 = vector.broadcast %1984 : f32 to vector<1x256xf32>
    %1986 = arith.mulf %1985, %1971 : vector<1x256xf32>
    %1987 = arith.addf %1970, %1986 : vector<1x256xf32>
    %1988 = vector.extract_strided_slice %1315 {offsets = [6, 0], sizes = [1, 256], strides = [1, 1]} : vector<8x256xf32> to vector<1x256xf32>
    %c166_258 = arith.constant 166 : index
    %1989 = memref.load %arg3[%c166_258] : memref<288xf32, #tpu.memory_space<smem>>
    %1990 = vector.broadcast %1989 : f32 to vector<1x256xf32>
    %1991 = arith.mulf %1990, %1988 : vector<1x256xf32>
    %1992 = arith.addf %1975, %1991 : vector<1x256xf32>
    %c202_259 = arith.constant 202 : index
    %1993 = memref.load %arg3[%c202_259] : memref<288xf32, #tpu.memory_space<smem>>
    %1994 = vector.broadcast %1993 : f32 to vector<1x256xf32>
    %1995 = arith.mulf %1994, %1988 : vector<1x256xf32>
    %1996 = arith.addf %1979, %1995 : vector<1x256xf32>
    %c238_260 = arith.constant 238 : index
    %1997 = memref.load %arg3[%c238_260] : memref<288xf32, #tpu.memory_space<smem>>
    %1998 = vector.broadcast %1997 : f32 to vector<1x256xf32>
    %1999 = arith.mulf %1998, %1988 : vector<1x256xf32>
    %2000 = arith.addf %1983, %1999 : vector<1x256xf32>
    %c274_261 = arith.constant 274 : index
    %2001 = memref.load %arg3[%c274_261] : memref<288xf32, #tpu.memory_space<smem>>
    %2002 = vector.broadcast %2001 : f32 to vector<1x256xf32>
    %2003 = arith.mulf %2002, %1988 : vector<1x256xf32>
    %2004 = arith.addf %1987, %2003 : vector<1x256xf32>
    %2005 = vector.extract_strided_slice %1315 {offsets = [7, 0], sizes = [1, 256], strides = [1, 1]} : vector<8x256xf32> to vector<1x256xf32>
    %c175_262 = arith.constant 175 : index
    %2006 = memref.load %arg3[%c175_262] : memref<288xf32, #tpu.memory_space<smem>>
    %2007 = vector.broadcast %2006 : f32 to vector<1x256xf32>
    %2008 = arith.mulf %2007, %2005 : vector<1x256xf32>
    %2009 = arith.addf %1992, %2008 : vector<1x256xf32>
    %c211_263 = arith.constant 211 : index
    %2010 = memref.load %arg3[%c211_263] : memref<288xf32, #tpu.memory_space<smem>>
    %2011 = vector.broadcast %2010 : f32 to vector<1x256xf32>
    %2012 = arith.mulf %2011, %2005 : vector<1x256xf32>
    %2013 = arith.addf %1996, %2012 : vector<1x256xf32>
    %c247_264 = arith.constant 247 : index
    %2014 = memref.load %arg3[%c247_264] : memref<288xf32, #tpu.memory_space<smem>>
    %2015 = vector.broadcast %2014 : f32 to vector<1x256xf32>
    %2016 = arith.mulf %2015, %2005 : vector<1x256xf32>
    %2017 = arith.addf %2000, %2016 : vector<1x256xf32>
    %c283_265 = arith.constant 283 : index
    %2018 = memref.load %arg3[%c283_265] : memref<288xf32, #tpu.memory_space<smem>>
    %2019 = vector.broadcast %2018 : f32 to vector<1x256xf32>
    %2020 = arith.mulf %2019, %2005 : vector<1x256xf32>
    %2021 = arith.addf %2004, %2020 : vector<1x256xf32>
    %c254_i32 = arith.constant 254 : i32
    %2022 = tpu.dynamic_rotate %1315 by %c254_i32 dim 1 : vector<8x256xf32>, i32 -> vector<8x256xf32>
    %c14_i32_266 = arith.constant 14 : i32
    %2023 = vector.broadcast %c14_i32_266 : i32 to vector<1x256xi32>
    %2024 = arith.cmpi slt, %2, %2023 : vector<1x256xi32>
    %cst_267 = arith.constant 0.000000e+00 : f32
    %2025 = vector.shape_cast %2024 : vector<1x256xi1> to vector<1x256xi1>
    %2026 = vector.broadcast %2025 : vector<1x256xi1> to vector<8x256xi1>
    %2027 = vector.broadcast %cst_267 : f32 to vector<8x256xf32>
    %2028 = arith.select %2026, %2022, %2027 : vector<8x256xi1>, vector<8x256xf32>
    %2029 = vector.extract_strided_slice %2028 {offsets = [0, 0], sizes = [1, 256], strides = [1, 1]} : vector<8x256xf32> to vector<1x256xf32>
    %c149 = arith.constant 149 : index
    %2030 = memref.load %arg3[%c149] : memref<288xf32, #tpu.memory_space<smem>>
    %2031 = vector.broadcast %2030 : f32 to vector<1x256xf32>
    %2032 = arith.mulf %2031, %2029 : vector<1x256xf32>
    %2033 = arith.addf %1941, %2032 : vector<1x256xf32>
    %c185 = arith.constant 185 : index
    %2034 = memref.load %arg3[%c185] : memref<288xf32, #tpu.memory_space<smem>>
    %2035 = vector.broadcast %2034 : f32 to vector<1x256xf32>
    %2036 = arith.mulf %2035, %2029 : vector<1x256xf32>
    %2037 = arith.addf %1945, %2036 : vector<1x256xf32>
    %c221 = arith.constant 221 : index
    %2038 = memref.load %arg3[%c221] : memref<288xf32, #tpu.memory_space<smem>>
    %2039 = vector.broadcast %2038 : f32 to vector<1x256xf32>
    %2040 = arith.mulf %2039, %2029 : vector<1x256xf32>
    %2041 = arith.addf %1949, %2040 : vector<1x256xf32>
    %c257 = arith.constant 257 : index
    %2042 = memref.load %arg3[%c257] : memref<288xf32, #tpu.memory_space<smem>>
    %2043 = vector.broadcast %2042 : f32 to vector<1x256xf32>
    %2044 = arith.mulf %2043, %2029 : vector<1x256xf32>
    %2045 = arith.addf %1953, %2044 : vector<1x256xf32>
    %2046 = vector.extract_strided_slice %2028 {offsets = [1, 0], sizes = [1, 256], strides = [1, 1]} : vector<8x256xf32> to vector<1x256xf32>
    %c158 = arith.constant 158 : index
    %2047 = memref.load %arg3[%c158] : memref<288xf32, #tpu.memory_space<smem>>
    %2048 = vector.broadcast %2047 : f32 to vector<1x256xf32>
    %2049 = arith.mulf %2048, %2046 : vector<1x256xf32>
    %2050 = arith.addf %2033, %2049 : vector<1x256xf32>
    %c194 = arith.constant 194 : index
    %2051 = memref.load %arg3[%c194] : memref<288xf32, #tpu.memory_space<smem>>
    %2052 = vector.broadcast %2051 : f32 to vector<1x256xf32>
    %2053 = arith.mulf %2052, %2046 : vector<1x256xf32>
    %2054 = arith.addf %2037, %2053 : vector<1x256xf32>
    %c230 = arith.constant 230 : index
    %2055 = memref.load %arg3[%c230] : memref<288xf32, #tpu.memory_space<smem>>
    %2056 = vector.broadcast %2055 : f32 to vector<1x256xf32>
    %2057 = arith.mulf %2056, %2046 : vector<1x256xf32>
    %2058 = arith.addf %2041, %2057 : vector<1x256xf32>
    %c266 = arith.constant 266 : index
    %2059 = memref.load %arg3[%c266] : memref<288xf32, #tpu.memory_space<smem>>
    %2060 = vector.broadcast %2059 : f32 to vector<1x256xf32>
    %2061 = arith.mulf %2060, %2046 : vector<1x256xf32>
    %2062 = arith.addf %2045, %2061 : vector<1x256xf32>
    %2063 = vector.extract_strided_slice %2028 {offsets = [2, 0], sizes = [1, 256], strides = [1, 1]} : vector<8x256xf32> to vector<1x256xf32>
    %c167 = arith.constant 167 : index
    %2064 = memref.load %arg3[%c167] : memref<288xf32, #tpu.memory_space<smem>>
    %2065 = vector.broadcast %2064 : f32 to vector<1x256xf32>
    %2066 = arith.mulf %2065, %2063 : vector<1x256xf32>
    %2067 = arith.addf %2050, %2066 : vector<1x256xf32>
    %c203 = arith.constant 203 : index
    %2068 = memref.load %arg3[%c203] : memref<288xf32, #tpu.memory_space<smem>>
    %2069 = vector.broadcast %2068 : f32 to vector<1x256xf32>
    %2070 = arith.mulf %2069, %2063 : vector<1x256xf32>
    %2071 = arith.addf %2054, %2070 : vector<1x256xf32>
    %c239 = arith.constant 239 : index
    %2072 = memref.load %arg3[%c239] : memref<288xf32, #tpu.memory_space<smem>>
    %2073 = vector.broadcast %2072 : f32 to vector<1x256xf32>
    %2074 = arith.mulf %2073, %2063 : vector<1x256xf32>
    %2075 = arith.addf %2058, %2074 : vector<1x256xf32>
    %c275 = arith.constant 275 : index
    %2076 = memref.load %arg3[%c275] : memref<288xf32, #tpu.memory_space<smem>>
    %2077 = vector.broadcast %2076 : f32 to vector<1x256xf32>
    %2078 = arith.mulf %2077, %2063 : vector<1x256xf32>
    %2079 = arith.addf %2062, %2078 : vector<1x256xf32>
    %2080 = vector.extract_strided_slice %2028 {offsets = [3, 0], sizes = [1, 256], strides = [1, 1]} : vector<8x256xf32> to vector<1x256xf32>
    %c176 = arith.constant 176 : index
    %2081 = memref.load %arg3[%c176] : memref<288xf32, #tpu.memory_space<smem>>
    %2082 = vector.broadcast %2081 : f32 to vector<1x256xf32>
    %2083 = arith.mulf %2082, %2080 : vector<1x256xf32>
    %2084 = arith.addf %2067, %2083 : vector<1x256xf32>
    %c212 = arith.constant 212 : index
    %2085 = memref.load %arg3[%c212] : memref<288xf32, #tpu.memory_space<smem>>
    %2086 = vector.broadcast %2085 : f32 to vector<1x256xf32>
    %2087 = arith.mulf %2086, %2080 : vector<1x256xf32>
    %2088 = arith.addf %2071, %2087 : vector<1x256xf32>
    %c248 = arith.constant 248 : index
    %2089 = memref.load %arg3[%c248] : memref<288xf32, #tpu.memory_space<smem>>
    %2090 = vector.broadcast %2089 : f32 to vector<1x256xf32>
    %2091 = arith.mulf %2090, %2080 : vector<1x256xf32>
    %2092 = arith.addf %2075, %2091 : vector<1x256xf32>
    %c284 = arith.constant 284 : index
    %2093 = memref.load %arg3[%c284] : memref<288xf32, #tpu.memory_space<smem>>
    %2094 = vector.broadcast %2093 : f32 to vector<1x256xf32>
    %2095 = arith.mulf %2094, %2080 : vector<1x256xf32>
    %2096 = arith.addf %2079, %2095 : vector<1x256xf32>
    %2097 = vector.extract_strided_slice %2028 {offsets = [4, 0], sizes = [1, 256], strides = [1, 1]} : vector<8x256xf32> to vector<1x256xf32>
    %c149_268 = arith.constant 149 : index
    %2098 = memref.load %arg3[%c149_268] : memref<288xf32, #tpu.memory_space<smem>>
    %2099 = vector.broadcast %2098 : f32 to vector<1x256xf32>
    %2100 = arith.mulf %2099, %2097 : vector<1x256xf32>
    %2101 = arith.addf %2009, %2100 : vector<1x256xf32>
    %c185_269 = arith.constant 185 : index
    %2102 = memref.load %arg3[%c185_269] : memref<288xf32, #tpu.memory_space<smem>>
    %2103 = vector.broadcast %2102 : f32 to vector<1x256xf32>
    %2104 = arith.mulf %2103, %2097 : vector<1x256xf32>
    %2105 = arith.addf %2013, %2104 : vector<1x256xf32>
    %c221_270 = arith.constant 221 : index
    %2106 = memref.load %arg3[%c221_270] : memref<288xf32, #tpu.memory_space<smem>>
    %2107 = vector.broadcast %2106 : f32 to vector<1x256xf32>
    %2108 = arith.mulf %2107, %2097 : vector<1x256xf32>
    %2109 = arith.addf %2017, %2108 : vector<1x256xf32>
    %c257_271 = arith.constant 257 : index
    %2110 = memref.load %arg3[%c257_271] : memref<288xf32, #tpu.memory_space<smem>>
    %2111 = vector.broadcast %2110 : f32 to vector<1x256xf32>
    %2112 = arith.mulf %2111, %2097 : vector<1x256xf32>
    %2113 = arith.addf %2021, %2112 : vector<1x256xf32>
    %2114 = vector.extract_strided_slice %2028 {offsets = [5, 0], sizes = [1, 256], strides = [1, 1]} : vector<8x256xf32> to vector<1x256xf32>
    %c158_272 = arith.constant 158 : index
    %2115 = memref.load %arg3[%c158_272] : memref<288xf32, #tpu.memory_space<smem>>
    %2116 = vector.broadcast %2115 : f32 to vector<1x256xf32>
    %2117 = arith.mulf %2116, %2114 : vector<1x256xf32>
    %2118 = arith.addf %2101, %2117 : vector<1x256xf32>
    %c194_273 = arith.constant 194 : index
    %2119 = memref.load %arg3[%c194_273] : memref<288xf32, #tpu.memory_space<smem>>
    %2120 = vector.broadcast %2119 : f32 to vector<1x256xf32>
    %2121 = arith.mulf %2120, %2114 : vector<1x256xf32>
    %2122 = arith.addf %2105, %2121 : vector<1x256xf32>
    %c230_274 = arith.constant 230 : index
    %2123 = memref.load %arg3[%c230_274] : memref<288xf32, #tpu.memory_space<smem>>
    %2124 = vector.broadcast %2123 : f32 to vector<1x256xf32>
    %2125 = arith.mulf %2124, %2114 : vector<1x256xf32>
    %2126 = arith.addf %2109, %2125 : vector<1x256xf32>
    %c266_275 = arith.constant 266 : index
    %2127 = memref.load %arg3[%c266_275] : memref<288xf32, #tpu.memory_space<smem>>
    %2128 = vector.broadcast %2127 : f32 to vector<1x256xf32>
    %2129 = arith.mulf %2128, %2114 : vector<1x256xf32>
    %2130 = arith.addf %2113, %2129 : vector<1x256xf32>
    %2131 = vector.extract_strided_slice %2028 {offsets = [6, 0], sizes = [1, 256], strides = [1, 1]} : vector<8x256xf32> to vector<1x256xf32>
    %c167_276 = arith.constant 167 : index
    %2132 = memref.load %arg3[%c167_276] : memref<288xf32, #tpu.memory_space<smem>>
    %2133 = vector.broadcast %2132 : f32 to vector<1x256xf32>
    %2134 = arith.mulf %2133, %2131 : vector<1x256xf32>
    %2135 = arith.addf %2118, %2134 : vector<1x256xf32>
    %c203_277 = arith.constant 203 : index
    %2136 = memref.load %arg3[%c203_277] : memref<288xf32, #tpu.memory_space<smem>>
    %2137 = vector.broadcast %2136 : f32 to vector<1x256xf32>
    %2138 = arith.mulf %2137, %2131 : vector<1x256xf32>
    %2139 = arith.addf %2122, %2138 : vector<1x256xf32>
    %c239_278 = arith.constant 239 : index
    %2140 = memref.load %arg3[%c239_278] : memref<288xf32, #tpu.memory_space<smem>>
    %2141 = vector.broadcast %2140 : f32 to vector<1x256xf32>
    %2142 = arith.mulf %2141, %2131 : vector<1x256xf32>
    %2143 = arith.addf %2126, %2142 : vector<1x256xf32>
    %c275_279 = arith.constant 275 : index
    %2144 = memref.load %arg3[%c275_279] : memref<288xf32, #tpu.memory_space<smem>>
    %2145 = vector.broadcast %2144 : f32 to vector<1x256xf32>
    %2146 = arith.mulf %2145, %2131 : vector<1x256xf32>
    %2147 = arith.addf %2130, %2146 : vector<1x256xf32>
    %2148 = vector.extract_strided_slice %2028 {offsets = [7, 0], sizes = [1, 256], strides = [1, 1]} : vector<8x256xf32> to vector<1x256xf32>
    %c176_280 = arith.constant 176 : index
    %2149 = memref.load %arg3[%c176_280] : memref<288xf32, #tpu.memory_space<smem>>
    %2150 = vector.broadcast %2149 : f32 to vector<1x256xf32>
    %2151 = arith.mulf %2150, %2148 : vector<1x256xf32>
    %2152 = arith.addf %2135, %2151 : vector<1x256xf32>
    %c212_281 = arith.constant 212 : index
    %2153 = memref.load %arg3[%c212_281] : memref<288xf32, #tpu.memory_space<smem>>
    %2154 = vector.broadcast %2153 : f32 to vector<1x256xf32>
    %2155 = arith.mulf %2154, %2148 : vector<1x256xf32>
    %2156 = arith.addf %2139, %2155 : vector<1x256xf32>
    %c248_282 = arith.constant 248 : index
    %2157 = memref.load %arg3[%c248_282] : memref<288xf32, #tpu.memory_space<smem>>
    %2158 = vector.broadcast %2157 : f32 to vector<1x256xf32>
    %2159 = arith.mulf %2158, %2148 : vector<1x256xf32>
    %2160 = arith.addf %2143, %2159 : vector<1x256xf32>
    %c284_283 = arith.constant 284 : index
    %2161 = memref.load %arg3[%c284_283] : memref<288xf32, #tpu.memory_space<smem>>
    %2162 = vector.broadcast %2161 : f32 to vector<1x256xf32>
    %2163 = arith.mulf %2162, %2148 : vector<1x256xf32>
    %2164 = arith.addf %2147, %2163 : vector<1x256xf32>
    %c226_i32 = arith.constant 226 : i32
    %2165 = tpu.dynamic_rotate %1315 by %c226_i32 dim 1 : vector<8x256xf32>, i32 -> vector<8x256xf32>
    %c14_i32_284 = arith.constant 14 : i32
    %2166 = vector.broadcast %c14_i32_284 : i32 to vector<1x256xi32>
    %2167 = arith.cmpi slt, %1, %2166 : vector<1x256xi32>
    %c2_i32_285 = arith.constant 2 : i32
    %2168 = vector.broadcast %c2_i32_285 : i32 to vector<1x256xi32>
    %2169 = arith.cmpi sge, %2, %2168 : vector<1x256xi32>
    %2170 = arith.andi %2167, %2169 : vector<1x256xi1>
    %cst_286 = arith.constant 0.000000e+00 : f32
    %2171 = vector.shape_cast %2170 : vector<1x256xi1> to vector<1x256xi1>
    %2172 = vector.broadcast %2171 : vector<1x256xi1> to vector<8x256xi1>
    %2173 = vector.broadcast %cst_286 : f32 to vector<8x256xf32>
    %2174 = arith.select %2172, %2165, %2173 : vector<8x256xi1>, vector<8x256xf32>
    %2175 = vector.extract_strided_slice %2174 {offsets = [0, 0], sizes = [1, 256], strides = [1, 1]} : vector<8x256xf32> to vector<1x256xf32>
    %c150 = arith.constant 150 : index
    %2176 = memref.load %arg3[%c150] : memref<288xf32, #tpu.memory_space<smem>>
    %2177 = vector.broadcast %2176 : f32 to vector<1x256xf32>
    %2178 = arith.mulf %2177, %2175 : vector<1x256xf32>
    %2179 = arith.addf %2084, %2178 : vector<1x256xf32>
    %c186 = arith.constant 186 : index
    %2180 = memref.load %arg3[%c186] : memref<288xf32, #tpu.memory_space<smem>>
    %2181 = vector.broadcast %2180 : f32 to vector<1x256xf32>
    %2182 = arith.mulf %2181, %2175 : vector<1x256xf32>
    %2183 = arith.addf %2088, %2182 : vector<1x256xf32>
    %c222 = arith.constant 222 : index
    %2184 = memref.load %arg3[%c222] : memref<288xf32, #tpu.memory_space<smem>>
    %2185 = vector.broadcast %2184 : f32 to vector<1x256xf32>
    %2186 = arith.mulf %2185, %2175 : vector<1x256xf32>
    %2187 = arith.addf %2092, %2186 : vector<1x256xf32>
    %c258 = arith.constant 258 : index
    %2188 = memref.load %arg3[%c258] : memref<288xf32, #tpu.memory_space<smem>>
    %2189 = vector.broadcast %2188 : f32 to vector<1x256xf32>
    %2190 = arith.mulf %2189, %2175 : vector<1x256xf32>
    %2191 = arith.addf %2096, %2190 : vector<1x256xf32>
    %2192 = vector.extract_strided_slice %2174 {offsets = [1, 0], sizes = [1, 256], strides = [1, 1]} : vector<8x256xf32> to vector<1x256xf32>
    %c159 = arith.constant 159 : index
    %2193 = memref.load %arg3[%c159] : memref<288xf32, #tpu.memory_space<smem>>
    %2194 = vector.broadcast %2193 : f32 to vector<1x256xf32>
    %2195 = arith.mulf %2194, %2192 : vector<1x256xf32>
    %2196 = arith.addf %2179, %2195 : vector<1x256xf32>
    %c195 = arith.constant 195 : index
    %2197 = memref.load %arg3[%c195] : memref<288xf32, #tpu.memory_space<smem>>
    %2198 = vector.broadcast %2197 : f32 to vector<1x256xf32>
    %2199 = arith.mulf %2198, %2192 : vector<1x256xf32>
    %2200 = arith.addf %2183, %2199 : vector<1x256xf32>
    %c231 = arith.constant 231 : index
    %2201 = memref.load %arg3[%c231] : memref<288xf32, #tpu.memory_space<smem>>
    %2202 = vector.broadcast %2201 : f32 to vector<1x256xf32>
    %2203 = arith.mulf %2202, %2192 : vector<1x256xf32>
    %2204 = arith.addf %2187, %2203 : vector<1x256xf32>
    %c267 = arith.constant 267 : index
    %2205 = memref.load %arg3[%c267] : memref<288xf32, #tpu.memory_space<smem>>
    %2206 = vector.broadcast %2205 : f32 to vector<1x256xf32>
    %2207 = arith.mulf %2206, %2192 : vector<1x256xf32>
    %2208 = arith.addf %2191, %2207 : vector<1x256xf32>
    %2209 = vector.extract_strided_slice %2174 {offsets = [2, 0], sizes = [1, 256], strides = [1, 1]} : vector<8x256xf32> to vector<1x256xf32>
    %c168 = arith.constant 168 : index
    %2210 = memref.load %arg3[%c168] : memref<288xf32, #tpu.memory_space<smem>>
    %2211 = vector.broadcast %2210 : f32 to vector<1x256xf32>
    %2212 = arith.mulf %2211, %2209 : vector<1x256xf32>
    %2213 = arith.addf %2196, %2212 : vector<1x256xf32>
    %c204 = arith.constant 204 : index
    %2214 = memref.load %arg3[%c204] : memref<288xf32, #tpu.memory_space<smem>>
    %2215 = vector.broadcast %2214 : f32 to vector<1x256xf32>
    %2216 = arith.mulf %2215, %2209 : vector<1x256xf32>
    %2217 = arith.addf %2200, %2216 : vector<1x256xf32>
    %c240 = arith.constant 240 : index
    %2218 = memref.load %arg3[%c240] : memref<288xf32, #tpu.memory_space<smem>>
    %2219 = vector.broadcast %2218 : f32 to vector<1x256xf32>
    %2220 = arith.mulf %2219, %2209 : vector<1x256xf32>
    %2221 = arith.addf %2204, %2220 : vector<1x256xf32>
    %c276 = arith.constant 276 : index
    %2222 = memref.load %arg3[%c276] : memref<288xf32, #tpu.memory_space<smem>>
    %2223 = vector.broadcast %2222 : f32 to vector<1x256xf32>
    %2224 = arith.mulf %2223, %2209 : vector<1x256xf32>
    %2225 = arith.addf %2208, %2224 : vector<1x256xf32>
    %2226 = vector.extract_strided_slice %2174 {offsets = [3, 0], sizes = [1, 256], strides = [1, 1]} : vector<8x256xf32> to vector<1x256xf32>
    %c177 = arith.constant 177 : index
    %2227 = memref.load %arg3[%c177] : memref<288xf32, #tpu.memory_space<smem>>
    %2228 = vector.broadcast %2227 : f32 to vector<1x256xf32>
    %2229 = arith.mulf %2228, %2226 : vector<1x256xf32>
    %2230 = arith.addf %2213, %2229 : vector<1x256xf32>
    %c213 = arith.constant 213 : index
    %2231 = memref.load %arg3[%c213] : memref<288xf32, #tpu.memory_space<smem>>
    %2232 = vector.broadcast %2231 : f32 to vector<1x256xf32>
    %2233 = arith.mulf %2232, %2226 : vector<1x256xf32>
    %2234 = arith.addf %2217, %2233 : vector<1x256xf32>
    %c249 = arith.constant 249 : index
    %2235 = memref.load %arg3[%c249] : memref<288xf32, #tpu.memory_space<smem>>
    %2236 = vector.broadcast %2235 : f32 to vector<1x256xf32>
    %2237 = arith.mulf %2236, %2226 : vector<1x256xf32>
    %2238 = arith.addf %2221, %2237 : vector<1x256xf32>
    %c285 = arith.constant 285 : index
    %2239 = memref.load %arg3[%c285] : memref<288xf32, #tpu.memory_space<smem>>
    %2240 = vector.broadcast %2239 : f32 to vector<1x256xf32>
    %2241 = arith.mulf %2240, %2226 : vector<1x256xf32>
    %2242 = arith.addf %2225, %2241 : vector<1x256xf32>
    %2243 = vector.extract_strided_slice %2174 {offsets = [4, 0], sizes = [1, 256], strides = [1, 1]} : vector<8x256xf32> to vector<1x256xf32>
    %c150_287 = arith.constant 150 : index
    %2244 = memref.load %arg3[%c150_287] : memref<288xf32, #tpu.memory_space<smem>>
    %2245 = vector.broadcast %2244 : f32 to vector<1x256xf32>
    %2246 = arith.mulf %2245, %2243 : vector<1x256xf32>
    %2247 = arith.addf %2152, %2246 : vector<1x256xf32>
    %c186_288 = arith.constant 186 : index
    %2248 = memref.load %arg3[%c186_288] : memref<288xf32, #tpu.memory_space<smem>>
    %2249 = vector.broadcast %2248 : f32 to vector<1x256xf32>
    %2250 = arith.mulf %2249, %2243 : vector<1x256xf32>
    %2251 = arith.addf %2156, %2250 : vector<1x256xf32>
    %c222_289 = arith.constant 222 : index
    %2252 = memref.load %arg3[%c222_289] : memref<288xf32, #tpu.memory_space<smem>>
    %2253 = vector.broadcast %2252 : f32 to vector<1x256xf32>
    %2254 = arith.mulf %2253, %2243 : vector<1x256xf32>
    %2255 = arith.addf %2160, %2254 : vector<1x256xf32>
    %c258_290 = arith.constant 258 : index
    %2256 = memref.load %arg3[%c258_290] : memref<288xf32, #tpu.memory_space<smem>>
    %2257 = vector.broadcast %2256 : f32 to vector<1x256xf32>
    %2258 = arith.mulf %2257, %2243 : vector<1x256xf32>
    %2259 = arith.addf %2164, %2258 : vector<1x256xf32>
    %2260 = vector.extract_strided_slice %2174 {offsets = [5, 0], sizes = [1, 256], strides = [1, 1]} : vector<8x256xf32> to vector<1x256xf32>
    %c159_291 = arith.constant 159 : index
    %2261 = memref.load %arg3[%c159_291] : memref<288xf32, #tpu.memory_space<smem>>
    %2262 = vector.broadcast %2261 : f32 to vector<1x256xf32>
    %2263 = arith.mulf %2262, %2260 : vector<1x256xf32>
    %2264 = arith.addf %2247, %2263 : vector<1x256xf32>
    %c195_292 = arith.constant 195 : index
    %2265 = memref.load %arg3[%c195_292] : memref<288xf32, #tpu.memory_space<smem>>
    %2266 = vector.broadcast %2265 : f32 to vector<1x256xf32>
    %2267 = arith.mulf %2266, %2260 : vector<1x256xf32>
    %2268 = arith.addf %2251, %2267 : vector<1x256xf32>
    %c231_293 = arith.constant 231 : index
    %2269 = memref.load %arg3[%c231_293] : memref<288xf32, #tpu.memory_space<smem>>
    %2270 = vector.broadcast %2269 : f32 to vector<1x256xf32>
    %2271 = arith.mulf %2270, %2260 : vector<1x256xf32>
    %2272 = arith.addf %2255, %2271 : vector<1x256xf32>
    %c267_294 = arith.constant 267 : index
    %2273 = memref.load %arg3[%c267_294] : memref<288xf32, #tpu.memory_space<smem>>
    %2274 = vector.broadcast %2273 : f32 to vector<1x256xf32>
    %2275 = arith.mulf %2274, %2260 : vector<1x256xf32>
    %2276 = arith.addf %2259, %2275 : vector<1x256xf32>
    %2277 = vector.extract_strided_slice %2174 {offsets = [6, 0], sizes = [1, 256], strides = [1, 1]} : vector<8x256xf32> to vector<1x256xf32>
    %c168_295 = arith.constant 168 : index
    %2278 = memref.load %arg3[%c168_295] : memref<288xf32, #tpu.memory_space<smem>>
    %2279 = vector.broadcast %2278 : f32 to vector<1x256xf32>
    %2280 = arith.mulf %2279, %2277 : vector<1x256xf32>
    %2281 = arith.addf %2264, %2280 : vector<1x256xf32>
    %c204_296 = arith.constant 204 : index
    %2282 = memref.load %arg3[%c204_296] : memref<288xf32, #tpu.memory_space<smem>>
    %2283 = vector.broadcast %2282 : f32 to vector<1x256xf32>
    %2284 = arith.mulf %2283, %2277 : vector<1x256xf32>
    %2285 = arith.addf %2268, %2284 : vector<1x256xf32>
    %c240_297 = arith.constant 240 : index
    %2286 = memref.load %arg3[%c240_297] : memref<288xf32, #tpu.memory_space<smem>>
    %2287 = vector.broadcast %2286 : f32 to vector<1x256xf32>
    %2288 = arith.mulf %2287, %2277 : vector<1x256xf32>
    %2289 = arith.addf %2272, %2288 : vector<1x256xf32>
    %c276_298 = arith.constant 276 : index
    %2290 = memref.load %arg3[%c276_298] : memref<288xf32, #tpu.memory_space<smem>>
    %2291 = vector.broadcast %2290 : f32 to vector<1x256xf32>
    %2292 = arith.mulf %2291, %2277 : vector<1x256xf32>
    %2293 = arith.addf %2276, %2292 : vector<1x256xf32>
    %2294 = vector.extract_strided_slice %2174 {offsets = [7, 0], sizes = [1, 256], strides = [1, 1]} : vector<8x256xf32> to vector<1x256xf32>
    %c177_299 = arith.constant 177 : index
    %2295 = memref.load %arg3[%c177_299] : memref<288xf32, #tpu.memory_space<smem>>
    %2296 = vector.broadcast %2295 : f32 to vector<1x256xf32>
    %2297 = arith.mulf %2296, %2294 : vector<1x256xf32>
    %2298 = arith.addf %2281, %2297 : vector<1x256xf32>
    %c213_300 = arith.constant 213 : index
    %2299 = memref.load %arg3[%c213_300] : memref<288xf32, #tpu.memory_space<smem>>
    %2300 = vector.broadcast %2299 : f32 to vector<1x256xf32>
    %2301 = arith.mulf %2300, %2294 : vector<1x256xf32>
    %2302 = arith.addf %2285, %2301 : vector<1x256xf32>
    %c249_301 = arith.constant 249 : index
    %2303 = memref.load %arg3[%c249_301] : memref<288xf32, #tpu.memory_space<smem>>
    %2304 = vector.broadcast %2303 : f32 to vector<1x256xf32>
    %2305 = arith.mulf %2304, %2294 : vector<1x256xf32>
    %2306 = arith.addf %2289, %2305 : vector<1x256xf32>
    %c285_302 = arith.constant 285 : index
    %2307 = memref.load %arg3[%c285_302] : memref<288xf32, #tpu.memory_space<smem>>
    %2308 = vector.broadcast %2307 : f32 to vector<1x256xf32>
    %2309 = arith.mulf %2308, %2294 : vector<1x256xf32>
    %2310 = arith.addf %2293, %2309 : vector<1x256xf32>
    %c224_i32 = arith.constant 224 : i32
    %2311 = tpu.dynamic_rotate %1315 by %c224_i32 dim 1 : vector<8x256xf32>, i32 -> vector<8x256xf32>
    %c14_i32_303 = arith.constant 14 : i32
    %2312 = vector.broadcast %c14_i32_303 : i32 to vector<1x256xi32>
    %2313 = arith.cmpi slt, %1, %2312 : vector<1x256xi32>
    %cst_304 = arith.constant 0.000000e+00 : f32
    %2314 = vector.shape_cast %2313 : vector<1x256xi1> to vector<1x256xi1>
    %2315 = vector.broadcast %2314 : vector<1x256xi1> to vector<8x256xi1>
    %2316 = vector.broadcast %cst_304 : f32 to vector<8x256xf32>
    %2317 = arith.select %2315, %2311, %2316 : vector<8x256xi1>, vector<8x256xf32>
    %2318 = vector.extract_strided_slice %2317 {offsets = [0, 0], sizes = [1, 256], strides = [1, 1]} : vector<8x256xf32> to vector<1x256xf32>
    %c151 = arith.constant 151 : index
    %2319 = memref.load %arg3[%c151] : memref<288xf32, #tpu.memory_space<smem>>
    %2320 = vector.broadcast %2319 : f32 to vector<1x256xf32>
    %2321 = arith.mulf %2320, %2318 : vector<1x256xf32>
    %2322 = arith.addf %2230, %2321 : vector<1x256xf32>
    %c187 = arith.constant 187 : index
    %2323 = memref.load %arg3[%c187] : memref<288xf32, #tpu.memory_space<smem>>
    %2324 = vector.broadcast %2323 : f32 to vector<1x256xf32>
    %2325 = arith.mulf %2324, %2318 : vector<1x256xf32>
    %2326 = arith.addf %2234, %2325 : vector<1x256xf32>
    %c223 = arith.constant 223 : index
    %2327 = memref.load %arg3[%c223] : memref<288xf32, #tpu.memory_space<smem>>
    %2328 = vector.broadcast %2327 : f32 to vector<1x256xf32>
    %2329 = arith.mulf %2328, %2318 : vector<1x256xf32>
    %2330 = arith.addf %2238, %2329 : vector<1x256xf32>
    %c259 = arith.constant 259 : index
    %2331 = memref.load %arg3[%c259] : memref<288xf32, #tpu.memory_space<smem>>
    %2332 = vector.broadcast %2331 : f32 to vector<1x256xf32>
    %2333 = arith.mulf %2332, %2318 : vector<1x256xf32>
    %2334 = arith.addf %2242, %2333 : vector<1x256xf32>
    %2335 = vector.extract_strided_slice %2317 {offsets = [1, 0], sizes = [1, 256], strides = [1, 1]} : vector<8x256xf32> to vector<1x256xf32>
    %c160 = arith.constant 160 : index
    %2336 = memref.load %arg3[%c160] : memref<288xf32, #tpu.memory_space<smem>>
    %2337 = vector.broadcast %2336 : f32 to vector<1x256xf32>
    %2338 = arith.mulf %2337, %2335 : vector<1x256xf32>
    %2339 = arith.addf %2322, %2338 : vector<1x256xf32>
    %c196 = arith.constant 196 : index
    %2340 = memref.load %arg3[%c196] : memref<288xf32, #tpu.memory_space<smem>>
    %2341 = vector.broadcast %2340 : f32 to vector<1x256xf32>
    %2342 = arith.mulf %2341, %2335 : vector<1x256xf32>
    %2343 = arith.addf %2326, %2342 : vector<1x256xf32>
    %c232 = arith.constant 232 : index
    %2344 = memref.load %arg3[%c232] : memref<288xf32, #tpu.memory_space<smem>>
    %2345 = vector.broadcast %2344 : f32 to vector<1x256xf32>
    %2346 = arith.mulf %2345, %2335 : vector<1x256xf32>
    %2347 = arith.addf %2330, %2346 : vector<1x256xf32>
    %c268 = arith.constant 268 : index
    %2348 = memref.load %arg3[%c268] : memref<288xf32, #tpu.memory_space<smem>>
    %2349 = vector.broadcast %2348 : f32 to vector<1x256xf32>
    %2350 = arith.mulf %2349, %2335 : vector<1x256xf32>
    %2351 = arith.addf %2334, %2350 : vector<1x256xf32>
    %2352 = vector.extract_strided_slice %2317 {offsets = [2, 0], sizes = [1, 256], strides = [1, 1]} : vector<8x256xf32> to vector<1x256xf32>
    %c169 = arith.constant 169 : index
    %2353 = memref.load %arg3[%c169] : memref<288xf32, #tpu.memory_space<smem>>
    %2354 = vector.broadcast %2353 : f32 to vector<1x256xf32>
    %2355 = arith.mulf %2354, %2352 : vector<1x256xf32>
    %2356 = arith.addf %2339, %2355 : vector<1x256xf32>
    %c205 = arith.constant 205 : index
    %2357 = memref.load %arg3[%c205] : memref<288xf32, #tpu.memory_space<smem>>
    %2358 = vector.broadcast %2357 : f32 to vector<1x256xf32>
    %2359 = arith.mulf %2358, %2352 : vector<1x256xf32>
    %2360 = arith.addf %2343, %2359 : vector<1x256xf32>
    %c241 = arith.constant 241 : index
    %2361 = memref.load %arg3[%c241] : memref<288xf32, #tpu.memory_space<smem>>
    %2362 = vector.broadcast %2361 : f32 to vector<1x256xf32>
    %2363 = arith.mulf %2362, %2352 : vector<1x256xf32>
    %2364 = arith.addf %2347, %2363 : vector<1x256xf32>
    %c277 = arith.constant 277 : index
    %2365 = memref.load %arg3[%c277] : memref<288xf32, #tpu.memory_space<smem>>
    %2366 = vector.broadcast %2365 : f32 to vector<1x256xf32>
    %2367 = arith.mulf %2366, %2352 : vector<1x256xf32>
    %2368 = arith.addf %2351, %2367 : vector<1x256xf32>
    %2369 = vector.extract_strided_slice %2317 {offsets = [3, 0], sizes = [1, 256], strides = [1, 1]} : vector<8x256xf32> to vector<1x256xf32>
    %c178 = arith.constant 178 : index
    %2370 = memref.load %arg3[%c178] : memref<288xf32, #tpu.memory_space<smem>>
    %2371 = vector.broadcast %2370 : f32 to vector<1x256xf32>
    %2372 = arith.mulf %2371, %2369 : vector<1x256xf32>
    %2373 = arith.addf %2356, %2372 : vector<1x256xf32>
    %c214 = arith.constant 214 : index
    %2374 = memref.load %arg3[%c214] : memref<288xf32, #tpu.memory_space<smem>>
    %2375 = vector.broadcast %2374 : f32 to vector<1x256xf32>
    %2376 = arith.mulf %2375, %2369 : vector<1x256xf32>
    %2377 = arith.addf %2360, %2376 : vector<1x256xf32>
    %c250 = arith.constant 250 : index
    %2378 = memref.load %arg3[%c250] : memref<288xf32, #tpu.memory_space<smem>>
    %2379 = vector.broadcast %2378 : f32 to vector<1x256xf32>
    %2380 = arith.mulf %2379, %2369 : vector<1x256xf32>
    %2381 = arith.addf %2364, %2380 : vector<1x256xf32>
    %c286 = arith.constant 286 : index
    %2382 = memref.load %arg3[%c286] : memref<288xf32, #tpu.memory_space<smem>>
    %2383 = vector.broadcast %2382 : f32 to vector<1x256xf32>
    %2384 = arith.mulf %2383, %2369 : vector<1x256xf32>
    %2385 = arith.addf %2368, %2384 : vector<1x256xf32>
    %2386 = vector.extract_strided_slice %2317 {offsets = [4, 0], sizes = [1, 256], strides = [1, 1]} : vector<8x256xf32> to vector<1x256xf32>
    %c151_305 = arith.constant 151 : index
    %2387 = memref.load %arg3[%c151_305] : memref<288xf32, #tpu.memory_space<smem>>
    %2388 = vector.broadcast %2387 : f32 to vector<1x256xf32>
    %2389 = arith.mulf %2388, %2386 : vector<1x256xf32>
    %2390 = arith.addf %2298, %2389 : vector<1x256xf32>
    %c187_306 = arith.constant 187 : index
    %2391 = memref.load %arg3[%c187_306] : memref<288xf32, #tpu.memory_space<smem>>
    %2392 = vector.broadcast %2391 : f32 to vector<1x256xf32>
    %2393 = arith.mulf %2392, %2386 : vector<1x256xf32>
    %2394 = arith.addf %2302, %2393 : vector<1x256xf32>
    %c223_307 = arith.constant 223 : index
    %2395 = memref.load %arg3[%c223_307] : memref<288xf32, #tpu.memory_space<smem>>
    %2396 = vector.broadcast %2395 : f32 to vector<1x256xf32>
    %2397 = arith.mulf %2396, %2386 : vector<1x256xf32>
    %2398 = arith.addf %2306, %2397 : vector<1x256xf32>
    %c259_308 = arith.constant 259 : index
    %2399 = memref.load %arg3[%c259_308] : memref<288xf32, #tpu.memory_space<smem>>
    %2400 = vector.broadcast %2399 : f32 to vector<1x256xf32>
    %2401 = arith.mulf %2400, %2386 : vector<1x256xf32>
    %2402 = arith.addf %2310, %2401 : vector<1x256xf32>
    %2403 = vector.extract_strided_slice %2317 {offsets = [5, 0], sizes = [1, 256], strides = [1, 1]} : vector<8x256xf32> to vector<1x256xf32>
    %c160_309 = arith.constant 160 : index
    %2404 = memref.load %arg3[%c160_309] : memref<288xf32, #tpu.memory_space<smem>>
    %2405 = vector.broadcast %2404 : f32 to vector<1x256xf32>
    %2406 = arith.mulf %2405, %2403 : vector<1x256xf32>
    %2407 = arith.addf %2390, %2406 : vector<1x256xf32>
    %c196_310 = arith.constant 196 : index
    %2408 = memref.load %arg3[%c196_310] : memref<288xf32, #tpu.memory_space<smem>>
    %2409 = vector.broadcast %2408 : f32 to vector<1x256xf32>
    %2410 = arith.mulf %2409, %2403 : vector<1x256xf32>
    %2411 = arith.addf %2394, %2410 : vector<1x256xf32>
    %c232_311 = arith.constant 232 : index
    %2412 = memref.load %arg3[%c232_311] : memref<288xf32, #tpu.memory_space<smem>>
    %2413 = vector.broadcast %2412 : f32 to vector<1x256xf32>
    %2414 = arith.mulf %2413, %2403 : vector<1x256xf32>
    %2415 = arith.addf %2398, %2414 : vector<1x256xf32>
    %c268_312 = arith.constant 268 : index
    %2416 = memref.load %arg3[%c268_312] : memref<288xf32, #tpu.memory_space<smem>>
    %2417 = vector.broadcast %2416 : f32 to vector<1x256xf32>
    %2418 = arith.mulf %2417, %2403 : vector<1x256xf32>
    %2419 = arith.addf %2402, %2418 : vector<1x256xf32>
    %2420 = vector.extract_strided_slice %2317 {offsets = [6, 0], sizes = [1, 256], strides = [1, 1]} : vector<8x256xf32> to vector<1x256xf32>
    %c169_313 = arith.constant 169 : index
    %2421 = memref.load %arg3[%c169_313] : memref<288xf32, #tpu.memory_space<smem>>
    %2422 = vector.broadcast %2421 : f32 to vector<1x256xf32>
    %2423 = arith.mulf %2422, %2420 : vector<1x256xf32>
    %2424 = arith.addf %2407, %2423 : vector<1x256xf32>
    %c205_314 = arith.constant 205 : index
    %2425 = memref.load %arg3[%c205_314] : memref<288xf32, #tpu.memory_space<smem>>
    %2426 = vector.broadcast %2425 : f32 to vector<1x256xf32>
    %2427 = arith.mulf %2426, %2420 : vector<1x256xf32>
    %2428 = arith.addf %2411, %2427 : vector<1x256xf32>
    %c241_315 = arith.constant 241 : index
    %2429 = memref.load %arg3[%c241_315] : memref<288xf32, #tpu.memory_space<smem>>
    %2430 = vector.broadcast %2429 : f32 to vector<1x256xf32>
    %2431 = arith.mulf %2430, %2420 : vector<1x256xf32>
    %2432 = arith.addf %2415, %2431 : vector<1x256xf32>
    %c277_316 = arith.constant 277 : index
    %2433 = memref.load %arg3[%c277_316] : memref<288xf32, #tpu.memory_space<smem>>
    %2434 = vector.broadcast %2433 : f32 to vector<1x256xf32>
    %2435 = arith.mulf %2434, %2420 : vector<1x256xf32>
    %2436 = arith.addf %2419, %2435 : vector<1x256xf32>
    %2437 = vector.extract_strided_slice %2317 {offsets = [7, 0], sizes = [1, 256], strides = [1, 1]} : vector<8x256xf32> to vector<1x256xf32>
    %c178_317 = arith.constant 178 : index
    %2438 = memref.load %arg3[%c178_317] : memref<288xf32, #tpu.memory_space<smem>>
    %2439 = vector.broadcast %2438 : f32 to vector<1x256xf32>
    %2440 = arith.mulf %2439, %2437 : vector<1x256xf32>
    %2441 = arith.addf %2424, %2440 : vector<1x256xf32>
    %c214_318 = arith.constant 214 : index
    %2442 = memref.load %arg3[%c214_318] : memref<288xf32, #tpu.memory_space<smem>>
    %2443 = vector.broadcast %2442 : f32 to vector<1x256xf32>
    %2444 = arith.mulf %2443, %2437 : vector<1x256xf32>
    %2445 = arith.addf %2428, %2444 : vector<1x256xf32>
    %c250_319 = arith.constant 250 : index
    %2446 = memref.load %arg3[%c250_319] : memref<288xf32, #tpu.memory_space<smem>>
    %2447 = vector.broadcast %2446 : f32 to vector<1x256xf32>
    %2448 = arith.mulf %2447, %2437 : vector<1x256xf32>
    %2449 = arith.addf %2432, %2448 : vector<1x256xf32>
    %c286_320 = arith.constant 286 : index
    %2450 = memref.load %arg3[%c286_320] : memref<288xf32, #tpu.memory_space<smem>>
    %2451 = vector.broadcast %2450 : f32 to vector<1x256xf32>
    %2452 = arith.mulf %2451, %2437 : vector<1x256xf32>
    %2453 = arith.addf %2436, %2452 : vector<1x256xf32>
    %c222_i32 = arith.constant 222 : i32
    %2454 = tpu.dynamic_rotate %1315 by %c222_i32 dim 1 : vector<8x256xf32>, i32 -> vector<8x256xf32>
    %c14_i32_321 = arith.constant 14 : i32
    %2455 = vector.broadcast %c14_i32_321 : i32 to vector<1x256xi32>
    %2456 = arith.cmpi slt, %1, %2455 : vector<1x256xi32>
    %c14_i32_322 = arith.constant 14 : i32
    %2457 = vector.broadcast %c14_i32_322 : i32 to vector<1x256xi32>
    %2458 = arith.cmpi slt, %2, %2457 : vector<1x256xi32>
    %2459 = arith.andi %2456, %2458 : vector<1x256xi1>
    %cst_323 = arith.constant 0.000000e+00 : f32
    %2460 = vector.shape_cast %2459 : vector<1x256xi1> to vector<1x256xi1>
    %2461 = vector.broadcast %2460 : vector<1x256xi1> to vector<8x256xi1>
    %2462 = vector.broadcast %cst_323 : f32 to vector<8x256xf32>
    %2463 = arith.select %2461, %2454, %2462 : vector<8x256xi1>, vector<8x256xf32>
    %2464 = vector.extract_strided_slice %2463 {offsets = [0, 0], sizes = [1, 256], strides = [1, 1]} : vector<8x256xf32> to vector<1x256xf32>
    %c152 = arith.constant 152 : index
    %2465 = memref.load %arg3[%c152] : memref<288xf32, #tpu.memory_space<smem>>
    %2466 = vector.broadcast %2465 : f32 to vector<1x256xf32>
    %2467 = arith.mulf %2466, %2464 : vector<1x256xf32>
    %2468 = arith.addf %2373, %2467 : vector<1x256xf32>
    %c188 = arith.constant 188 : index
    %2469 = memref.load %arg3[%c188] : memref<288xf32, #tpu.memory_space<smem>>
    %2470 = vector.broadcast %2469 : f32 to vector<1x256xf32>
    %2471 = arith.mulf %2470, %2464 : vector<1x256xf32>
    %2472 = arith.addf %2377, %2471 : vector<1x256xf32>
    %c224 = arith.constant 224 : index
    %2473 = memref.load %arg3[%c224] : memref<288xf32, #tpu.memory_space<smem>>
    %2474 = vector.broadcast %2473 : f32 to vector<1x256xf32>
    %2475 = arith.mulf %2474, %2464 : vector<1x256xf32>
    %2476 = arith.addf %2381, %2475 : vector<1x256xf32>
    %c260 = arith.constant 260 : index
    %2477 = memref.load %arg3[%c260] : memref<288xf32, #tpu.memory_space<smem>>
    %2478 = vector.broadcast %2477 : f32 to vector<1x256xf32>
    %2479 = arith.mulf %2478, %2464 : vector<1x256xf32>
    %2480 = arith.addf %2385, %2479 : vector<1x256xf32>
    %2481 = vector.extract_strided_slice %2463 {offsets = [1, 0], sizes = [1, 256], strides = [1, 1]} : vector<8x256xf32> to vector<1x256xf32>
    %c161 = arith.constant 161 : index
    %2482 = memref.load %arg3[%c161] : memref<288xf32, #tpu.memory_space<smem>>
    %2483 = vector.broadcast %2482 : f32 to vector<1x256xf32>
    %2484 = arith.mulf %2483, %2481 : vector<1x256xf32>
    %2485 = arith.addf %2468, %2484 : vector<1x256xf32>
    %c197 = arith.constant 197 : index
    %2486 = memref.load %arg3[%c197] : memref<288xf32, #tpu.memory_space<smem>>
    %2487 = vector.broadcast %2486 : f32 to vector<1x256xf32>
    %2488 = arith.mulf %2487, %2481 : vector<1x256xf32>
    %2489 = arith.addf %2472, %2488 : vector<1x256xf32>
    %c233 = arith.constant 233 : index
    %2490 = memref.load %arg3[%c233] : memref<288xf32, #tpu.memory_space<smem>>
    %2491 = vector.broadcast %2490 : f32 to vector<1x256xf32>
    %2492 = arith.mulf %2491, %2481 : vector<1x256xf32>
    %2493 = arith.addf %2476, %2492 : vector<1x256xf32>
    %c269 = arith.constant 269 : index
    %2494 = memref.load %arg3[%c269] : memref<288xf32, #tpu.memory_space<smem>>
    %2495 = vector.broadcast %2494 : f32 to vector<1x256xf32>
    %2496 = arith.mulf %2495, %2481 : vector<1x256xf32>
    %2497 = arith.addf %2480, %2496 : vector<1x256xf32>
    %2498 = vector.extract_strided_slice %2463 {offsets = [2, 0], sizes = [1, 256], strides = [1, 1]} : vector<8x256xf32> to vector<1x256xf32>
    %c170 = arith.constant 170 : index
    %2499 = memref.load %arg3[%c170] : memref<288xf32, #tpu.memory_space<smem>>
    %2500 = vector.broadcast %2499 : f32 to vector<1x256xf32>
    %2501 = arith.mulf %2500, %2498 : vector<1x256xf32>
    %2502 = arith.addf %2485, %2501 : vector<1x256xf32>
    %c206 = arith.constant 206 : index
    %2503 = memref.load %arg3[%c206] : memref<288xf32, #tpu.memory_space<smem>>
    %2504 = vector.broadcast %2503 : f32 to vector<1x256xf32>
    %2505 = arith.mulf %2504, %2498 : vector<1x256xf32>
    %2506 = arith.addf %2489, %2505 : vector<1x256xf32>
    %c242 = arith.constant 242 : index
    %2507 = memref.load %arg3[%c242] : memref<288xf32, #tpu.memory_space<smem>>
    %2508 = vector.broadcast %2507 : f32 to vector<1x256xf32>
    %2509 = arith.mulf %2508, %2498 : vector<1x256xf32>
    %2510 = arith.addf %2493, %2509 : vector<1x256xf32>
    %c278 = arith.constant 278 : index
    %2511 = memref.load %arg3[%c278] : memref<288xf32, #tpu.memory_space<smem>>
    %2512 = vector.broadcast %2511 : f32 to vector<1x256xf32>
    %2513 = arith.mulf %2512, %2498 : vector<1x256xf32>
    %2514 = arith.addf %2497, %2513 : vector<1x256xf32>
    %2515 = vector.extract_strided_slice %2463 {offsets = [3, 0], sizes = [1, 256], strides = [1, 1]} : vector<8x256xf32> to vector<1x256xf32>
    %c179 = arith.constant 179 : index
    %2516 = memref.load %arg3[%c179] : memref<288xf32, #tpu.memory_space<smem>>
    %2517 = vector.broadcast %2516 : f32 to vector<1x256xf32>
    %2518 = arith.mulf %2517, %2515 : vector<1x256xf32>
    %2519 = arith.addf %2502, %2518 : vector<1x256xf32>
    %c215 = arith.constant 215 : index
    %2520 = memref.load %arg3[%c215] : memref<288xf32, #tpu.memory_space<smem>>
    %2521 = vector.broadcast %2520 : f32 to vector<1x256xf32>
    %2522 = arith.mulf %2521, %2515 : vector<1x256xf32>
    %2523 = arith.addf %2506, %2522 : vector<1x256xf32>
    %c251 = arith.constant 251 : index
    %2524 = memref.load %arg3[%c251] : memref<288xf32, #tpu.memory_space<smem>>
    %2525 = vector.broadcast %2524 : f32 to vector<1x256xf32>
    %2526 = arith.mulf %2525, %2515 : vector<1x256xf32>
    %2527 = arith.addf %2510, %2526 : vector<1x256xf32>
    %c287 = arith.constant 287 : index
    %2528 = memref.load %arg3[%c287] : memref<288xf32, #tpu.memory_space<smem>>
    %2529 = vector.broadcast %2528 : f32 to vector<1x256xf32>
    %2530 = arith.mulf %2529, %2515 : vector<1x256xf32>
    %2531 = arith.addf %2514, %2530 : vector<1x256xf32>
    %2532 = vector.extract_strided_slice %2463 {offsets = [4, 0], sizes = [1, 256], strides = [1, 1]} : vector<8x256xf32> to vector<1x256xf32>
    %c152_324 = arith.constant 152 : index
    %2533 = memref.load %arg3[%c152_324] : memref<288xf32, #tpu.memory_space<smem>>
    %2534 = vector.broadcast %2533 : f32 to vector<1x256xf32>
    %2535 = arith.mulf %2534, %2532 : vector<1x256xf32>
    %2536 = arith.addf %2441, %2535 : vector<1x256xf32>
    %c188_325 = arith.constant 188 : index
    %2537 = memref.load %arg3[%c188_325] : memref<288xf32, #tpu.memory_space<smem>>
    %2538 = vector.broadcast %2537 : f32 to vector<1x256xf32>
    %2539 = arith.mulf %2538, %2532 : vector<1x256xf32>
    %2540 = arith.addf %2445, %2539 : vector<1x256xf32>
    %c224_326 = arith.constant 224 : index
    %2541 = memref.load %arg3[%c224_326] : memref<288xf32, #tpu.memory_space<smem>>
    %2542 = vector.broadcast %2541 : f32 to vector<1x256xf32>
    %2543 = arith.mulf %2542, %2532 : vector<1x256xf32>
    %2544 = arith.addf %2449, %2543 : vector<1x256xf32>
    %c260_327 = arith.constant 260 : index
    %2545 = memref.load %arg3[%c260_327] : memref<288xf32, #tpu.memory_space<smem>>
    %2546 = vector.broadcast %2545 : f32 to vector<1x256xf32>
    %2547 = arith.mulf %2546, %2532 : vector<1x256xf32>
    %2548 = arith.addf %2453, %2547 : vector<1x256xf32>
    %2549 = vector.extract_strided_slice %2463 {offsets = [5, 0], sizes = [1, 256], strides = [1, 1]} : vector<8x256xf32> to vector<1x256xf32>
    %c161_328 = arith.constant 161 : index
    %2550 = memref.load %arg3[%c161_328] : memref<288xf32, #tpu.memory_space<smem>>
    %2551 = vector.broadcast %2550 : f32 to vector<1x256xf32>
    %2552 = arith.mulf %2551, %2549 : vector<1x256xf32>
    %2553 = arith.addf %2536, %2552 : vector<1x256xf32>
    %c197_329 = arith.constant 197 : index
    %2554 = memref.load %arg3[%c197_329] : memref<288xf32, #tpu.memory_space<smem>>
    %2555 = vector.broadcast %2554 : f32 to vector<1x256xf32>
    %2556 = arith.mulf %2555, %2549 : vector<1x256xf32>
    %2557 = arith.addf %2540, %2556 : vector<1x256xf32>
    %c233_330 = arith.constant 233 : index
    %2558 = memref.load %arg3[%c233_330] : memref<288xf32, #tpu.memory_space<smem>>
    %2559 = vector.broadcast %2558 : f32 to vector<1x256xf32>
    %2560 = arith.mulf %2559, %2549 : vector<1x256xf32>
    %2561 = arith.addf %2544, %2560 : vector<1x256xf32>
    %c269_331 = arith.constant 269 : index
    %2562 = memref.load %arg3[%c269_331] : memref<288xf32, #tpu.memory_space<smem>>
    %2563 = vector.broadcast %2562 : f32 to vector<1x256xf32>
    %2564 = arith.mulf %2563, %2549 : vector<1x256xf32>
    %2565 = arith.addf %2548, %2564 : vector<1x256xf32>
    %2566 = vector.extract_strided_slice %2463 {offsets = [6, 0], sizes = [1, 256], strides = [1, 1]} : vector<8x256xf32> to vector<1x256xf32>
    %c170_332 = arith.constant 170 : index
    %2567 = memref.load %arg3[%c170_332] : memref<288xf32, #tpu.memory_space<smem>>
    %2568 = vector.broadcast %2567 : f32 to vector<1x256xf32>
    %2569 = arith.mulf %2568, %2566 : vector<1x256xf32>
    %2570 = arith.addf %2553, %2569 : vector<1x256xf32>
    %c206_333 = arith.constant 206 : index
    %2571 = memref.load %arg3[%c206_333] : memref<288xf32, #tpu.memory_space<smem>>
    %2572 = vector.broadcast %2571 : f32 to vector<1x256xf32>
    %2573 = arith.mulf %2572, %2566 : vector<1x256xf32>
    %2574 = arith.addf %2557, %2573 : vector<1x256xf32>
    %c242_334 = arith.constant 242 : index
    %2575 = memref.load %arg3[%c242_334] : memref<288xf32, #tpu.memory_space<smem>>
    %2576 = vector.broadcast %2575 : f32 to vector<1x256xf32>
    %2577 = arith.mulf %2576, %2566 : vector<1x256xf32>
    %2578 = arith.addf %2561, %2577 : vector<1x256xf32>
    %c278_335 = arith.constant 278 : index
    %2579 = memref.load %arg3[%c278_335] : memref<288xf32, #tpu.memory_space<smem>>
    %2580 = vector.broadcast %2579 : f32 to vector<1x256xf32>
    %2581 = arith.mulf %2580, %2566 : vector<1x256xf32>
    %2582 = arith.addf %2565, %2581 : vector<1x256xf32>
    %2583 = vector.extract_strided_slice %2463 {offsets = [7, 0], sizes = [1, 256], strides = [1, 1]} : vector<8x256xf32> to vector<1x256xf32>
    %c179_336 = arith.constant 179 : index
    %2584 = memref.load %arg3[%c179_336] : memref<288xf32, #tpu.memory_space<smem>>
    %2585 = vector.broadcast %2584 : f32 to vector<1x256xf32>
    %2586 = arith.mulf %2585, %2583 : vector<1x256xf32>
    %2587 = arith.addf %2570, %2586 : vector<1x256xf32>
    %c215_337 = arith.constant 215 : index
    %2588 = memref.load %arg3[%c215_337] : memref<288xf32, #tpu.memory_space<smem>>
    %2589 = vector.broadcast %2588 : f32 to vector<1x256xf32>
    %2590 = arith.mulf %2589, %2583 : vector<1x256xf32>
    %2591 = arith.addf %2574, %2590 : vector<1x256xf32>
    %c251_338 = arith.constant 251 : index
    %2592 = memref.load %arg3[%c251_338] : memref<288xf32, #tpu.memory_space<smem>>
    %2593 = vector.broadcast %2592 : f32 to vector<1x256xf32>
    %2594 = arith.mulf %2593, %2583 : vector<1x256xf32>
    %2595 = arith.addf %2578, %2594 : vector<1x256xf32>
    %c287_339 = arith.constant 287 : index
    %2596 = memref.load %arg3[%c287_339] : memref<288xf32, #tpu.memory_space<smem>>
    %2597 = vector.broadcast %2596 : f32 to vector<1x256xf32>
    %2598 = arith.mulf %2597, %2583 : vector<1x256xf32>
    %2599 = arith.addf %2582, %2598 : vector<1x256xf32>
    %c4_340 = arith.constant 4 : index
    %2600 = memref.load %arg4[%c4_340] : memref<8xf32, #tpu.memory_space<smem>>
    %2601 = vector.broadcast %2600 : f32 to vector<1x256xf32>
    %2602 = arith.addf %2519, %2601 : vector<1x256xf32>
    %c5_341 = arith.constant 5 : index
    %2603 = memref.load %arg4[%c5_341] : memref<8xf32, #tpu.memory_space<smem>>
    %2604 = vector.broadcast %2603 : f32 to vector<1x256xf32>
    %2605 = arith.addf %2523, %2604 : vector<1x256xf32>
    %c6_342 = arith.constant 6 : index
    %2606 = memref.load %arg4[%c6_342] : memref<8xf32, #tpu.memory_space<smem>>
    %2607 = vector.broadcast %2606 : f32 to vector<1x256xf32>
    %2608 = arith.addf %2527, %2607 : vector<1x256xf32>
    %c7_343 = arith.constant 7 : index
    %2609 = memref.load %arg4[%c7_343] : memref<8xf32, #tpu.memory_space<smem>>
    %2610 = vector.broadcast %2609 : f32 to vector<1x256xf32>
    %2611 = arith.addf %2531, %2610 : vector<1x256xf32>
    %c4_344 = arith.constant 4 : index
    %2612 = memref.load %arg4[%c4_344] : memref<8xf32, #tpu.memory_space<smem>>
    %2613 = vector.broadcast %2612 : f32 to vector<1x256xf32>
    %2614 = arith.addf %2587, %2613 : vector<1x256xf32>
    %c5_345 = arith.constant 5 : index
    %2615 = memref.load %arg4[%c5_345] : memref<8xf32, #tpu.memory_space<smem>>
    %2616 = vector.broadcast %2615 : f32 to vector<1x256xf32>
    %2617 = arith.addf %2591, %2616 : vector<1x256xf32>
    %c6_346 = arith.constant 6 : index
    %2618 = memref.load %arg4[%c6_346] : memref<8xf32, #tpu.memory_space<smem>>
    %2619 = vector.broadcast %2618 : f32 to vector<1x256xf32>
    %2620 = arith.addf %2595, %2619 : vector<1x256xf32>
    %c7_347 = arith.constant 7 : index
    %2621 = memref.load %arg4[%c7_347] : memref<8xf32, #tpu.memory_space<smem>>
    %2622 = vector.broadcast %2621 : f32 to vector<1x256xf32>
    %2623 = arith.addf %2599, %2622 : vector<1x256xf32>
    %2624 = tpu.concatenate %2602, %2605, %2608, %2611, %2614, %2617, %2620, %2623 in 0 : vector<1x256xf32>, vector<1x256xf32>, vector<1x256xf32>, vector<1x256xf32>, vector<1x256xf32>, vector<1x256xf32>, vector<1x256xf32>, vector<1x256xf32> -> vector<8x256xf32>
    %cst_348 = arith.constant 0.000000e+00 : f32
    %2625 = vector.broadcast %cst_348 : f32 to vector<8x256xf32>
    %2626 = arith.maximumf %2624, %2625 : vector<8x256xf32>
    %c0_349 = arith.constant 0 : index
    %c0_350 = arith.constant 0 : index
    %c0_351 = arith.constant 0 : index
    %2627 = vector.load %arg5[%c0_349, %c0_350, %c0_351] : memref<1x8x256xf32, #tpu.memory_space<vmem>>, vector<1x8x256xf32>
    %2628 = vector.shape_cast %2627 : vector<1x8x256xf32> to vector<8x256xf32>
    %2629 = vector.shape_cast %2626 : vector<8x256xf32> to vector<1x8x256xf32>
    tpu.vector_store %arg5[%c0_349, %c0_350, %c0_351], %2629 {strides = array<i32>} : memref<1x8x256xf32, #tpu.memory_space<vmem>>, vector<1x8x256xf32>,
    return
  }
  func.func @transform_0(%arg0: i32) -> (i32, i32, i32) {
    %c0_i32 = arith.constant 0 : i32
    %c0_i32_0 = arith.constant 0 : i32
    %c0_i32_1 = arith.constant 0 : i32
    return %arg0, %c0_i32, %c0_i32_0 : i32, i32, i32
  }
  func.func @transform_1(%arg0: i32) -> (i32, i32) {
    %c0_i32 = arith.constant 0 : i32
    %c0_i32_0 = arith.constant 0 : i32
    %c0_i32_1 = arith.constant 0 : i32
    return %c0_i32, %c0_i32_0 : i32, i32
  }
  func.func @transform_2(%arg0: i32) -> i32 {
    %c0_i32 = arith.constant 0 : i32
    %c0_i32_0 = arith.constant 0 : i32
    return %c0_i32 : i32
  }
  func.func @transform_3(%arg0: i32) -> i32 {
    %c0_i32 = arith.constant 0 : i32
    %c0_i32_0 = arith.constant 0 : i32
    return %c0_i32 : i32
  }
  func.func @transform_4(%arg0: i32) -> (i32, i32, i32) {
    %c0_i32 = arith.constant 0 : i32
    %c0_i32_0 = arith.constant 0 : i32
    %c0_i32_1 = arith.constant 0 : i32
    return %arg0, %c0_i32, %c0_i32_0 : i32, i32, i32
  }
}

</mosaic_0001>

<llo_original>
// kernel: tpu_custom_call.1
$region0: #{tpu_custom_call.1}
  #allocation0 [shape = 'u32[]', space=smem, size = 0x4, offset = 0x4, fixed_abs, tag = 'smem constant byte address 0x4 - core index']
  #allocation1 [shape = 'u32[72,128]{1,0:T(1,128)}', space=vmem, size = 0x9000, scoped, tag = 'internal scratch']
  %s0 = inlined_call_operand.hbm [shape: f32[1,8,256], index: 0, kind: input, shape index: {}]
  %s1 = inlined_call_operand.hbm [shape: s32[2,256], index: 1, kind: input, shape index: {}]
  %s2 = inlined_call_operand.hbm [shape: f32[288], index: 2, kind: input, shape index: {}]
  %s3 = inlined_call_operand.vmem [shape: f32[8], index: 3, kind: input, shape index: {}]
  %s4 = inlined_call_operand.hbm [shape: f32[1,8,256], index: 4, kind: output, shape index: {}]
  %s5 = sld [smem:[#allocation0]]
  $region42: #{tpu_custom_call.1} parent=0
    _
  %s7 = ssub.s32 1, %s5
  %s8 = scalar_select 0, %s7, %s5
  $region1: #{tpu_custom_call.1} parent=0
    #allocation2 [shape = 'u8[8192]{0}', space=vmem, size = 0x2000, scoped, tag = 'input window, operand 0, single buffered']
    #allocation3 [shape = 's32[1]{0}', space=sflag, size = 0x4, scoped, tag = 'scoped memory for tpu_custom_call.1']
    #allocation4 [shape = 's32[1]{0}', space=sflag, size = 0x4, scoped, tag = 'scoped memory for tpu_custom_call.1']
    #allocation5 [shape = 's32[1]{0}', space=sflag, size = 0x4, scoped, tag = 'scoped memory for tpu_custom_call.1']
    #allocation6 [shape = 's32[1]{0}', space=sflag, size = 0x4, scoped, tag = 'scoped memory for tpu_custom_call.1']
    #allocation7 [shape = 'u8[2048]{0}', space=vmem, size = 0x800, scoped, tag = 'input window, operand 1, single buffered']
    #allocation8 [shape = 's32[1]{0}', space=sflag, size = 0x4, scoped, tag = 'scoped memory for tpu_custom_call.1']
    #allocation9 [shape = 'u8[1536]{0}', space=smem, size = 0x600, scoped, tag = 'input window, operand 2, single buffered']
    #allocation10 [shape = 'u8[512]{0}', space=smem, size = 0x200, scoped, tag = 'input window, operand 3, single buffered']
    #allocation11 [shape = 'u8[8192]{0}', space=vmem, size = 0x2000, scoped, tag = 'output window, operand 0, single buffered']
    %9 = vsyncpa [#allocation3], 0
    %10 = vsyncpa [#allocation8], 0
    %11 = vsyncpa [#allocation5], 0
    %12 = vsyncpa [#allocation6], 0
    %13 = vsyncpa [#allocation4], 0
    // Predicated region
    $region2: #{tpu_custom_call.1} parent=1 // pred_check
      _
    $region3: #{tpu_custom_call.1} parent=1 // pred_check_branch
      %15 = sbr.rel (0) target = $region5
    $region4: #{tpu_custom_call.1} parent=1 // pred_region
      %17 = vsyncadd [#allocation3], 0
      %s19 = sshll.u32 %s0, 4
      %s20 = int_to_ptr.hbm [resolvable:$true] %s19
      %s21 = sshll.u32 [#allocation2], 4
      %s22 = int_to_ptr.vmem [resolvable:$true] %s21
      %24 = dma.hbm_to_vmem [thread:$0]  %s20, 256, %s22, [#allocation3]
    $region5: #{tpu_custom_call.1} parent=1 // pred_fallthru
      _
    // Predicated region
    $region6: #{tpu_custom_call.1} parent=1 // pred_check
      _
    $region7: #{tpu_custom_call.1} parent=1 // pred_check_branch
      %26 = sbr.rel (0) target = $region9
    $region8: #{tpu_custom_call.1} parent=1 // pred_region
      %28 = vsyncadd [#allocation8], 0
      %s30 = sshll.u32 %s1, 4
      %s31 = int_to_ptr.hbm [resolvable:$true] %s30
      %s32 = sshll.u32 [#allocation7], 4
      %s33 = int_to_ptr.vmem [resolvable:$true] %s32
      %35 = dma.hbm_to_vmem [thread:$0]  %s31, 64, %s33, [#allocation8]
    $region9: #{tpu_custom_call.1} parent=1 // pred_fallthru
      _
    // Predicated region
    $region10: #{tpu_custom_call.1} parent=1 // pred_check
      _
    $region11: #{tpu_custom_call.1} parent=1 // pred_check_branch
      %37 = sbr.rel (0) target = $region13
    $region12: #{tpu_custom_call.1} parent=1 // pred_region
      %39 = vsyncadd [#allocation5], 0
      %s41 = sshll.u32 %s2, 4
      %s42 = int_to_ptr.hbm [resolvable:$true] %s41
      %44 = dma.hbm_to_smem %s42, 48, [#allocation9], [#allocation5]
    $region13: #{tpu_custom_call.1} parent=1 // pred_fallthru
      _
    // Predicated region
    $region14: #{tpu_custom_call.1} parent=1 // pred_check
      _
    $region15: #{tpu_custom_call.1} parent=1 // pred_check_branch
      %46 = sbr.rel (0) target = $region17
    $region16: #{tpu_custom_call.1} parent=1 // pred_region
      %48 = vsyncadd [#allocation6], 0
      %s50 = sshll.u32 %s3, 4
      %s51 = int_to_ptr.vmem [resolvable:$true] %s50
      %53 = dma.vmem_to_smem %s51, 16, [#allocation10], [#allocation6]
    $region17: #{tpu_custom_call.1} parent=1 // pred_fallthru
      _
    // Predicated region
    $region18: #{tpu_custom_call.1} parent=1 // pred_check
      _
    $region19: #{tpu_custom_call.1} parent=1 // pred_check_branch
      %55 = sbr.rel (0) target = $region21
    $region20: #{tpu_custom_call.1} parent=1 // pred_region
      %57 = dma.done [#allocation3], 256
    $region21: #{tpu_custom_call.1} parent=1 // pred_fallthru
      _
    // Predicated region
    $region22: #{tpu_custom_call.1} parent=1 // pred_check
      _
    $region23: #{tpu_custom_call.1} parent=1 // pred_check_branch
      %59 = sbr.rel (0) target = $region25
    $region24: #{tpu_custom_call.1} parent=1 // pred_region
      %61 = dma.done [#allocation8], 64
    $region25: #{tpu_custom_call.1} parent=1 // pred_fallthru
      _
    // Predicated region
    $region26: #{tpu_custom_call.1} parent=1 // pred_check
      _
    $region27: #{tpu_custom_call.1} parent=1 // pred_check_branch
      %63 = sbr.rel (0) target = $region29
    $region28: #{tpu_custom_call.1} parent=1 // pred_region
      %65 = dma.done [#allocation5], 48
    $region29: #{tpu_custom_call.1} parent=1 // pred_fallthru
      _
    // Predicated region
    $region30: #{tpu_custom_call.1} parent=1 // pred_check
      _
    $region31: #{tpu_custom_call.1} parent=1 // pred_check_branch
      %67 = sbr.rel (0) target = $region33
    $region32: #{tpu_custom_call.1} parent=1 // pred_region
      %69 = dma.done [#allocation6], 16
    $region33: #{tpu_custom_call.1} parent=1 // pred_fallthru
      _
    %70 = sfence
    %v71 = vld [vmem:[#allocation7] sm:$0xf]
    %v72 = vld [vmem:[#allocation2] sm:$0xff]
    %v73 = vld [vmem:[#allocation2 + $0x8] sm:$0xff]
    %74 = vrot.lane.b32.xlu0 %v72, 17
    %v75 = vpop.permute.xlu0 %74
    %76 = vrot.lane.b32.xlu0 %v73, 17
    %v77 = vpop.permute.xlu0 %76
    %v78 = vlaneseq
    %v79 = vand.u32 %v78, 127
    %vm80 = vcmp.lt.s32.totalorder %v79, 17
    %v81 = vsel %vm80, %v75, %v77
    %v82 = vsel %vm80, %v77, %v75
    %vm83 = vcmp.ge.s32.totalorder %v71, 1
    %v84 = vsel %vm83, 1, 0
    %v85 = vrot.slane %v84, 7
    %v86 = vrot.slane %v85, 2
    %vm87 = vcmp.ne.s32.totalorder %v86, 0
    %vm88 = vmand %vm83, %vm87
    %v89 = vsel %vm88, 1, 0
    %v90 = vperm.slane %v89, 0
    %v91 = vperm.slane %v89, 2
    %v92 = vperm.slane %v90, 0
    %v93 = vperm.slane %v91, 0
    %vm94 = vcmp.eq.s32.totalorder %v92, 1
    %vm95 = vcmp.eq.s32.totalorder %v93, 1
    %v96 = vsel %vm94, %v82, 0.0
    %v97 = vsel %vm95, %v81, 0.0
    %s98 = sld [smem:[#allocation9]]
    %v99 = vstv %s98
    %v100 = vmul.f32 %v99, %v96
    %v101 = vmul.f32 %v99, %v97
    %s102 = sld [smem:[#allocation9 + $0x24]]
    %v103 = vstv %s102
    %v104 = vmul.f32 %v103, %v96
    %v105 = vmul.f32 %v103, %v97
    %s106 = sld [smem:[#allocation9 + $0x48]]
    %v107 = vstv %s106
    %v108 = vmul.f32 %v107, %v96
    %v109 = vmul.f32 %v107, %v97
    %s110 = sld [smem:[#allocation9 + $0x6c]]
    %v111 = vstv %s110
    %v112 = vmul.f32 %v111, %v96
    %v113 = vmul.f32 %v111, %v97
    %s114 = sld [smem:[#allocation9 + $0x9]]
    %v115 = vstv %s114
    %v116 = vmul.f32 %v115, %v96
    %v117 = vmul.f32 %v115, %v97
    %v120 = vrot.slane %v116, 1
    %v121 = vrot.slane %v117, 1
    %v124 = vadd.f32 %v100, %v120
    %v125 = vadd.f32 %v101, %v121
    %s126 = sld [smem:[#allocation9 + $0x2d]]
    %v127 = vstv %s126
    %v128 = vmul.f32 %v127, %v96
    %v129 = vmul.f32 %v127, %v97
    %v132 = vrot.slane %v128, 1
    %v133 = vrot.slane %v129, 1
    %v136 = vadd.f32 %v104, %v132
    %v137 = vadd.f32 %v105, %v133
    %s138 = sld [smem:[#allocation9 + $0x51]]
    %v139 = vstv %s138
    %v140 = vmul.f32 %v139, %v96
    %v141 = vmul.f32 %v139, %v97
    %v144 = vrot.slane %v140, 1
    %v145 = vrot.slane %v141, 1
    %v148 = vadd.f32 %v108, %v144
    %v149 = vadd.f32 %v109, %v145
    %s150 = sld [smem:[#allocation9 + $0x75]]
    %v151 = vstv %s150
    %v152 = vmul.f32 %v151, %v96
    %v153 = vmul.f32 %v151, %v97
    %v156 = vrot.slane %v152, 1
    %v157 = vrot.slane %v153, 1
    %v160 = vadd.f32 %v112, %v156
    %v161 = vadd.f32 %v113, %v157
    %s162 = sld [smem:[#allocation9 + $0x12]]
    %v163 = vstv %s162
    %v164 = vmul.f32 %v163, %v96
    %v165 = vmul.f32 %v163, %v97
    %v168 = vrot.slane %v164, 2
    %v169 = vrot.slane %v165, 2
    %v172 = vadd.f32 %v124, %v168
    %v173 = vadd.f32 %v125, %v169
    %s174 = sld [smem:[#allocation9 + $0x36]]
    %v175 = vstv %s174
    %v176 = vmul.f32 %v175, %v96
    %v177 = vmul.f32 %v175, %v97
    %v180 = vrot.slane %v176, 2
    %v181 = vrot.slane %v177, 2
    %v184 = vadd.f32 %v136, %v180
    %v185 = vadd.f32 %v137, %v181
    %s186 = sld [smem:[#allocation9 + $0x5a]]
    %v187 = vstv %s186
    %v188 = vmul.f32 %v187, %v96
    %v189 = vmul.f32 %v187, %v97
    %v192 = vrot.slane %v188, 2
    %v193 = vrot.slane %v189, 2
    %v196 = vadd.f32 %v148, %v192
    %v197 = vadd.f32 %v149, %v193
    %s198 = sld [smem:[#allocation9 + $0x7e]]
    %v199 = vstv %s198
    %v200 = vmul.f32 %v199, %v96
    %v201 = vmul.f32 %v199, %v97
    %v204 = vrot.slane %v200, 2
    %v205 = vrot.slane %v201, 2
    %v208 = vadd.f32 %v160, %v204
    %v209 = vadd.f32 %v161, %v205
    %s210 = sld [smem:[#allocation9 + $0x1b]]
    %v211 = vstv %s210
    %v212 = vmul.f32 %v211, %v96
    %v213 = vmul.f32 %v211, %v97
    %v216 = vrot.slane %v212, 3
    %v217 = vrot.slane %v213, 3
    %v220 = vadd.f32 %v172, %v216
    %v221 = vadd.f32 %v173, %v217
    %s222 = sld [smem:[#allocation9 + $0x3f]]
    %v223 = vstv %s222
    %v224 = vmul.f32 %v223, %v96
    %v225 = vmul.f32 %v223, %v97
    %v228 = vrot.slane %v224, 3
    %v229 = vrot.slane %v225, 3
    %v232 = vadd.f32 %v184, %v228
    %v233 = vadd.f32 %v185, %v229
    %s234 = sld [smem:[#allocation9 + $0x63]]
    %v235 = vstv %s234
    %v236 = vmul.f32 %v235, %v96
    %v237 = vmul.f32 %v235, %v97
    %v240 = vrot.slane %v236, 3
    %v241 = vrot.slane %v237, 3
    %v244 = vadd.f32 %v196, %v240
    %v245 = vadd.f32 %v197, %v241
    %s246 = sld [smem:[#allocation9 + $0x87]]
    %v247 = vstv %s246
    %v248 = vmul.f32 %v247, %v96
    %v249 = vmul.f32 %v247, %v97
    %v252 = vrot.slane %v248, 3
    %v253 = vrot.slane %v249, 3
    %v256 = vadd.f32 %v208, %v252
    %v257 = vadd.f32 %v209, %v253
    %258 = vrot.lane.b32.xlu0 %v72, 16
    %v259 = vpop.permute.xlu0 %258
    %260 = vrot.lane.b32.xlu0 %v73, 16
    %v261 = vpop.permute.xlu0 %260
    %vm262 = vcmp.lt.s32.totalorder %v79, 16
    %v263 = vsel %vm262, %v259, %v261
    %v264 = vsel %vm262, %v261, %v259
    %v265 = vperm.slane %v84, 0
    %v266 = vperm.slane %v84, 2
    %v267 = vperm.slane %v265, 0
    %v268 = vperm.slane %v266, 0
    %vm269 = vcmp.eq.s32.totalorder %v267, 1
    %vm270 = vcmp.eq.s32.totalorder %v268, 1
    %v271 = vsel %vm269, %v264, 0.0
    %v272 = vsel %vm270, %v263, 0.0
    %s273 = sld [smem:[#allocation9 + $0x1]]
    %v274 = vstv %s273
    %v275 = vmul.f32 %v274, %v271
    %v276 = vmul.f32 %v274, %v272
    %v277 = vadd.f32 %v220, %v275
    %v278 = vadd.f32 %v221, %v276
    %s279 = sld [smem:[#allocation9 + $0x25]]
    %v280 = vstv %s279
    %v281 = vmul.f32 %v280, %v271
    %v282 = vmul.f32 %v280, %v272
    %v283 = vadd.f32 %v232, %v281
    %v284 = vadd.f32 %v233, %v282
    %s285 = sld [smem:[#allocation9 + $0x49]]
    %v286 = vstv %s285
    %v287 = vmul.f32 %v286, %v271
    %v288 = vmul.f32 %v286, %v272
    %v289 = vadd.f32 %v244, %v287
    %v290 = vadd.f32 %v245, %v288
    %s291 = sld [smem:[#allocation9 + $0x6d]]
    %v292 = vstv %s291
    %v293 = vmul.f32 %v292, %v271
    %v294 = vmul.f32 %v292, %v272
    %v295 = vadd.f32 %v256, %v293
    %v296 = vadd.f32 %v257, %v294
    %s297 = sld [smem:[#allocation9 + $0xa]]
    %v298 = vstv %s297
    %v299 = vmul.f32 %v298, %v271
    %v300 = vmul.f32 %v298, %v272
    %v303 = vrot.slane %v299, 1
    %v304 = vrot.slane %v300, 1
    %v307 = vadd.f32 %v277, %v303
    %v308 = vadd.f32 %v278, %v304
    %s309 = sld [smem:[#allocation9 + $0x2e]]
    %v310 = vstv %s309
    %v311 = vmul.f32 %v310, %v271
    %v312 = vmul.f32 %v310, %v272
    %v315 = vrot.slane %v311, 1
    %v316 = vrot.slane %v312, 1
    %v319 = vadd.f32 %v283, %v315
    %v320 = vadd.f32 %v284, %v316
    %s321 = sld [smem:[#allocation9 + $0x52]]
    %v322 = vstv %s321
    %v323 = vmul.f32 %v322, %v271
    %v324 = vmul.f32 %v322, %v272
    %v327 = vrot.slane %v323, 1
    %v328 = vrot.slane %v324, 1
    %v331 = vadd.f32 %v289, %v327
    %v332 = vadd.f32 %v290, %v328
    %s333 = sld [smem:[#allocation9 + $0x76]]
    %v334 = vstv %s333
    %v335 = vmul.f32 %v334, %v271
    %v336 = vmul.f32 %v334, %v272
    %v339 = vrot.slane %v335, 1
    %v340 = vrot.slane %v336, 1
    %v343 = vadd.f32 %v295, %v339
    %v344 = vadd.f32 %v296, %v340
    %s345 = sld [smem:[#allocation9 + $0x13]]
    %v346 = vstv %s345
    %v347 = vmul.f32 %v346, %v271
    %v348 = vmul.f32 %v346, %v272
    %v351 = vrot.slane %v347, 2
    %v352 = vrot.slane %v348, 2
    %v355 = vadd.f32 %v307, %v351
    %v356 = vadd.f32 %v308, %v352
    %s357 = sld [smem:[#allocation9 + $0x37]]
    %v358 = vstv %s357
    %v359 = vmul.f32 %v358, %v271
    %v360 = vmul.f32 %v358, %v272
    %v363 = vrot.slane %v359, 2
    %v364 = vrot.slane %v360, 2
    %v367 = vadd.f32 %v319, %v363
    %v368 = vadd.f32 %v320, %v364
    %s369 = sld [smem:[#allocation9 + $0x5b]]
    %v370 = vstv %s369
    %v371 = vmul.f32 %v370, %v271
    %v372 = vmul.f32 %v370, %v272
    %v375 = vrot.slane %v371, 2
    %v376 = vrot.slane %v372, 2
    %v379 = vadd.f32 %v331, %v375
    %v380 = vadd.f32 %v332, %v376
    %s381 = sld [smem:[#allocation9 + $0x7f]]
    %v382 = vstv %s381
    %v383 = vmul.f32 %v382, %v271
    %v384 = vmul.f32 %v382, %v272
    %v387 = vrot.slane %v383, 2
    %v388 = vrot.slane %v384, 2
    %v391 = vadd.f32 %v343, %v387
    %v392 = vadd.f32 %v344, %v388
    %s393 = sld [smem:[#allocation9 + $0x1c]]
    %v394 = vstv %s393
    %v395 = vmul.f32 %v394, %v271
    %v396 = vmul.f32 %v394, %v272
    %v399 = vrot.slane %v395, 3
    %v400 = vrot.slane %v396, 3
    %v403 = vadd.f32 %v355, %v399
    %v404 = vadd.f32 %v356, %v400
    %s405 = sld [smem:[#allocation9 + $0x40]]
    %v406 = vstv %s405
    %v407 = vmul.f32 %v406, %v271
    %v408 = vmul.f32 %v406, %v272
    %v411 = vrot.slane %v407, 3
    %v412 = vrot.slane %v408, 3
    %v415 = vadd.f32 %v367, %v411
    %v416 = vadd.f32 %v368, %v412
    %s417 = sld [smem:[#allocation9 + $0x64]]
    %v418 = vstv %s417
    %v419 = vmul.f32 %v418, %v271
    %v420 = vmul.f32 %v418, %v272
    %v423 = vrot.slane %v419, 3
    %v424 = vrot.slane %v420, 3
    %v427 = vadd.f32 %v379, %v423
    %v428 = vadd.f32 %v380, %v424
    %s429 = sld [smem:[#allocation9 + $0x88]]
    %v430 = vstv %s429
    %v431 = vmul.f32 %v430, %v271
    %v432 = vmul.f32 %v430, %v272
    %v435 = vrot.slane %v431, 3
    %v436 = vrot.slane %v432, 3
    %v439 = vadd.f32 %v391, %v435
    %v440 = vadd.f32 %v392, %v436
    %441 = vrot.lane.b32.xlu0 %v72, 15
    %v442 = vpop.permute.xlu0 %441
    %443 = vrot.lane.b32.xlu0 %v73, 15
    %v444 = vpop.permute.xlu0 %443
    %vm445 = vcmp.lt.s32.totalorder %v79, 15
    %v446 = vsel %vm445, %v442, %v444
    %v447 = vsel %vm445, %v444, %v442
    %vm448 = vcmp.lt.s32.totalorder %v71, 15
    %v449 = vsel %vm448, 1, 0
    %v450 = vrot.slane %v449, 7
    %v451 = vrot.slane %v450, 2
    %vm452 = vcmp.ne.s32.totalorder %v451, 0
    %vm453 = vmand %vm83, %vm452
    %v454 = vsel %vm453, 1, 0
    %v455 = vperm.slane %v454, 0
    %v456 = vperm.slane %v454, 2
    %v457 = vperm.slane %v455, 0
    %v458 = vperm.slane %v456, 0
    %vm459 = vcmp.eq.s32.totalorder %v457, 1
    %vm460 = vcmp.eq.s32.totalorder %v458, 1
    %v461 = vsel %vm459, %v447, 0.0
    %v462 = vsel %vm460, %v446, 0.0
    %s463 = sld [smem:[#allocation9 + $0x2]]
    %v464 = vstv %s463
    %v465 = vmul.f32 %v464, %v461
    %v466 = vmul.f32 %v464, %v462
    %v467 = vadd.f32 %v403, %v465
    %v468 = vadd.f32 %v404, %v466
    %s469 = sld [smem:[#allocation9 + $0x26]]
    %v470 = vstv %s469
    %v471 = vmul.f32 %v470, %v461
    %v472 = vmul.f32 %v470, %v462
    %v473 = vadd.f32 %v415, %v471
    %v474 = vadd.f32 %v416, %v472
    %s475 = sld [smem:[#allocation9 + $0x4a]]
    %v476 = vstv %s475
    %v477 = vmul.f32 %v476, %v461
    %v478 = vmul.f32 %v476, %v462
    %v479 = vadd.f32 %v427, %v477
    %v480 = vadd.f32 %v428, %v478
    %s481 = sld [smem:[#allocation9 + $0x6e]]
    %v482 = vstv %s481
    %v483 = vmul.f32 %v482, %v461
    %v484 = vmul.f32 %v482, %v462
    %v485 = vadd.f32 %v439, %v483
    %v486 = vadd.f32 %v440, %v484
    %s487 = sld [smem:[#allocation9 + $0xb]]
    %v488 = vstv %s487
    %v489 = vmul.f32 %v488, %v461
    %v490 = vmul.f32 %v488, %v462
    %v493 = vrot.slane %v489, 1
    %v494 = vrot.slane %v490, 1
    %v497 = vadd.f32 %v467, %v493
    %v498 = vadd.f32 %v468, %v494
    %s499 = sld [smem:[#allocation9 + $0x2f]]
    %v500 = vstv %s499
    %v501 = vmul.f32 %v500, %v461
    %v502 = vmul.f32 %v500, %v462
    %v505 = vrot.slane %v501, 1
    %v506 = vrot.slane %v502, 1
    %v509 = vadd.f32 %v473, %v505
    %v510 = vadd.f32 %v474, %v506
    %s511 = sld [smem:[#allocation9 + $0x53]]
    %v512 = vstv %s511
    %v513 = vmul.f32 %v512, %v461
    %v514 = vmul.f32 %v512, %v462
    %v517 = vrot.slane %v513, 1
    %v518 = vrot.slane %v514, 1
    %v521 = vadd.f32 %v479, %v517
    %v522 = vadd.f32 %v480, %v518
    %s523 = sld [smem:[#allocation9 + $0x77]]
    %v524 = vstv %s523
    %v525 = vmul.f32 %v524, %v461
    %v526 = vmul.f32 %v524, %v462
    %v529 = vrot.slane %v525, 1
    %v530 = vrot.slane %v526, 1
    %v533 = vadd.f32 %v485, %v529
    %v534 = vadd.f32 %v486, %v530
    %s535 = sld [smem:[#allocation9 + $0x14]]
    %v536 = vstv %s535
    %v537 = vmul.f32 %v536, %v461
    %v538 = vmul.f32 %v536, %v462
    %v541 = vrot.slane %v537, 2
    %v542 = vrot.slane %v538, 2
    %v545 = vadd.f32 %v497, %v541
    %v546 = vadd.f32 %v498, %v542
    %s547 = sld [smem:[#allocation9 + $0x38]]
    %v548 = vstv %s547
    %v549 = vmul.f32 %v548, %v461
    %v550 = vmul.f32 %v548, %v462
    %v553 = vrot.slane %v549, 2
    %v554 = vrot.slane %v550, 2
    %v557 = vadd.f32 %v509, %v553
    %v558 = vadd.f32 %v510, %v554
    %s559 = sld [smem:[#allocation9 + $0x5c]]
    %v560 = vstv %s559
    %v561 = vmul.f32 %v560, %v461
    %v562 = vmul.f32 %v560, %v462
    %v565 = vrot.slane %v561, 2
    %v566 = vrot.slane %v562, 2
    %v569 = vadd.f32 %v521, %v565
    %v570 = vadd.f32 %v522, %v566
    %s571 = sld [smem:[#allocation9 + $0x80]]
    %v572 = vstv %s571
    %v573 = vmul.f32 %v572, %v461
    %v574 = vmul.f32 %v572, %v462
    %v577 = vrot.slane %v573, 2
    %v578 = vrot.slane %v574, 2
    %v581 = vadd.f32 %v533, %v577
    %v582 = vadd.f32 %v534, %v578
    %s583 = sld [smem:[#allocation9 + $0x1d]]
    %v584 = vstv %s583
    %v585 = vmul.f32 %v584, %v461
    %v586 = vmul.f32 %v584, %v462
    %v589 = vrot.slane %v585, 3
    %v590 = vrot.slane %v586, 3
    %v593 = vadd.f32 %v545, %v589
    %v594 = vadd.f32 %v546, %v590
    %s595 = sld [smem:[#allocation9 + $0x41]]
    %v596 = vstv %s595
    %v597 = vmul.f32 %v596, %v461
    %v598 = vmul.f32 %v596, %v462
    %v601 = vrot.slane %v597, 3
    %v602 = vrot.slane %v598, 3
    %v605 = vadd.f32 %v557, %v601
    %v606 = vadd.f32 %v558, %v602
    %s607 = sld [smem:[#allocation9 + $0x65]]
    %v608 = vstv %s607
    %v609 = vmul.f32 %v608, %v461
    %v610 = vmul.f32 %v608, %v462
    %v613 = vrot.slane %v609, 3
    %v614 = vrot.slane %v610, 3
    %v617 = vadd.f32 %v569, %v613
    %v618 = vadd.f32 %v570, %v614
    %s619 = sld [smem:[#allocation9 + $0x89]]
    %v620 = vstv %s619
    %v621 = vmul.f32 %v620, %v461
    %v622 = vmul.f32 %v620, %v462
    %v625 = vrot.slane %v621, 3
    %v626 = vrot.slane %v622, 3
    %v629 = vadd.f32 %v581, %v625
    %v630 = vadd.f32 %v582, %v626
    %631 = vrot.lane.b32.xlu0 %v72, 1
    %v632 = vpop.permute.xlu0 %631
    %633 = vrot.lane.b32.xlu0 %v73, 1
    %v634 = vpop.permute.xlu0 %633
    %vm635 = vcmp.lt.s32.totalorder %v79, 1
    %v636 = vsel %vm635, %v632, %v634
    %v637 = vsel %vm635, %v634, %v632
    %v638 = vperm.slane %v84, 1
    %v639 = vperm.slane %v84, 3
    %v640 = vperm.slane %v638, 1
    %v641 = vperm.slane %v639, 1
    %vm642 = vcmp.eq.s32.totalorder %v640, 1
    %vm643 = vcmp.eq.s32.totalorder %v641, 1
    %v644 = vsel %vm642, %v637, 0.0
    %v645 = vsel %vm643, %v636, 0.0
    %s646 = sld [smem:[#allocation9 + $0x3]]
    %v647 = vstv %s646
    %v648 = vmul.f32 %v647, %v644
    %v649 = vmul.f32 %v647, %v645
    %v650 = vadd.f32 %v593, %v648
    %v651 = vadd.f32 %v594, %v649
    %s652 = sld [smem:[#allocation9 + $0x27]]
    %v653 = vstv %s652
    %v654 = vmul.f32 %v653, %v644
    %v655 = vmul.f32 %v653, %v645
    %v656 = vadd.f32 %v605, %v654
    %v657 = vadd.f32 %v606, %v655
    %s658 = sld [smem:[#allocation9 + $0x4b]]
    %v659 = vstv %s658
    %v660 = vmul.f32 %v659, %v644
    %v661 = vmul.f32 %v659, %v645
    %v662 = vadd.f32 %v617, %v660
    %v663 = vadd.f32 %v618, %v661
    %s664 = sld [smem:[#allocation9 + $0x6f]]
    %v665 = vstv %s664
    %v666 = vmul.f32 %v665, %v644
    %v667 = vmul.f32 %v665, %v645
    %v668 = vadd.f32 %v629, %v666
    %v669 = vadd.f32 %v630, %v667
    %s670 = sld [smem:[#allocation9 + $0xc]]
    %v671 = vstv %s670
    %v672 = vmul.f32 %v671, %v644
    %v673 = vmul.f32 %v671, %v645
    %v676 = vrot.slane %v672, 1
    %v677 = vrot.slane %v673, 1
    %v680 = vadd.f32 %v650, %v676
    %v681 = vadd.f32 %v651, %v677
    %s682 = sld [smem:[#allocation9 + $0x30]]
    %v683 = vstv %s682
    %v684 = vmul.f32 %v683, %v644
    %v685 = vmul.f32 %v683, %v645
    %v688 = vrot.slane %v684, 1
    %v689 = vrot.slane %v685, 1
    %v692 = vadd.f32 %v656, %v688
    %v693 = vadd.f32 %v657, %v689
    %s694 = sld [smem:[#allocation9 + $0x54]]
    %v695 = vstv %s694
    %v696 = vmul.f32 %v695, %v644
    %v697 = vmul.f32 %v695, %v645
    %v700 = vrot.slane %v696, 1
    %v701 = vrot.slane %v697, 1
    %v704 = vadd.f32 %v662, %v700
    %v705 = vadd.f32 %v663, %v701
    %s706 = sld [smem:[#allocation9 + $0x78]]
    %v707 = vstv %s706
    %v708 = vmul.f32 %v707, %v644
    %v709 = vmul.f32 %v707, %v645
    %v712 = vrot.slane %v708, 1
    %v713 = vrot.slane %v709, 1
    %v716 = vadd.f32 %v668, %v712
    %v717 = vadd.f32 %v669, %v713
    %s718 = sld [smem:[#allocation9 + $0x15]]
    %v719 = vstv %s718
    %v720 = vmul.f32 %v719, %v644
    %v721 = vmul.f32 %v719, %v645
    %v724 = vrot.slane %v720, 2
    %v725 = vrot.slane %v721, 2
    %v728 = vadd.f32 %v680, %v724
    %v729 = vadd.f32 %v681, %v725
    %s730 = sld [smem:[#allocation9 + $0x39]]
    %v731 = vstv %s730
    %v732 = vmul.f32 %v731, %v644
    %v733 = vmul.f32 %v731, %v645
    %v736 = vrot.slane %v732, 2
    %v737 = vrot.slane %v733, 2
    %v740 = vadd.f32 %v692, %v736
    %v741 = vadd.f32 %v693, %v737
    %s742 = sld [smem:[#allocation9 + $0x5d]]
    %v743 = vstv %s742
    %v744 = vmul.f32 %v743, %v644
    %v745 = vmul.f32 %v743, %v645
    %v748 = vrot.slane %v744, 2
    %v749 = vrot.slane %v745, 2
    %v752 = vadd.f32 %v704, %v748
    %v753 = vadd.f32 %v705, %v749
    %s754 = sld [smem:[#allocation9 + $0x81]]
    %v755 = vstv %s754
    %v756 = vmul.f32 %v755, %v644
    %v757 = vmul.f32 %v755, %v645
    %v760 = vrot.slane %v756, 2
    %v761 = vrot.slane %v757, 2
    %v764 = vadd.f32 %v716, %v760
    %v765 = vadd.f32 %v717, %v761
    %s766 = sld [smem:[#allocation9 + $0x1e]]
    %v767 = vstv %s766
    %v768 = vmul.f32 %v767, %v644
    %v769 = vmul.f32 %v767, %v645
    %v772 = vrot.slane %v768, 3
    %v773 = vrot.slane %v769, 3
    %v776 = vadd.f32 %v728, %v772
    %v777 = vadd.f32 %v729, %v773
    %s778 = sld [smem:[#allocation9 + $0x42]]
    %v779 = vstv %s778
    %v780 = vmul.f32 %v779, %v644
    %v781 = vmul.f32 %v779, %v645
    %v784 = vrot.slane %v780, 3
    %v785 = vrot.slane %v781, 3
    %v788 = vadd.f32 %v740, %v784
    %v789 = vadd.f32 %v741, %v785
    %s790 = sld [smem:[#allocation9 + $0x66]]
    %v791 = vstv %s790
    %v792 = vmul.f32 %v791, %v644
    %v793 = vmul.f32 %v791, %v645
    %v796 = vrot.slane %v792, 3
    %v797 = vrot.slane %v793, 3
    %v800 = vadd.f32 %v752, %v796
    %v801 = vadd.f32 %v753, %v797
    %s802 = sld [smem:[#allocation9 + $0x8a]]
    %v803 = vstv %s802
    %v804 = vmul.f32 %v803, %v644
    %v805 = vmul.f32 %v803, %v645
    %v808 = vrot.slane %v804, 3
    %v809 = vrot.slane %v805, 3
    %v812 = vadd.f32 %v764, %v808
    %v813 = vadd.f32 %v765, %v809
    %s814 = sld [smem:[#allocation9 + $0x4]]
    %v815 = vstv %s814
    %v816 = vmul.f32 %v815, %v72
    %v817 = vmul.f32 %v815, %v73
    %v818 = vadd.f32 %v776, %v816
    %v819 = vadd.f32 %v777, %v817
    %s820 = sld [smem:[#allocation9 + $0x28]]
    %v821 = vstv %s820
    %v822 = vmul.f32 %v821, %v72
    %v823 = vmul.f32 %v821, %v73
    %v824 = vadd.f32 %v788, %v822
    %v825 = vadd.f32 %v789, %v823
    %s826 = sld [smem:[#allocation9 + $0x4c]]
    %v827 = vstv %s826
    %v828 = vmul.f32 %v827, %v72
    %v829 = vmul.f32 %v827, %v73
    %v830 = vadd.f32 %v800, %v828
    %v831 = vadd.f32 %v801, %v829
    %s832 = sld [smem:[#allocation9 + $0x70]]
    %v833 = vstv %s832
    %v834 = vmul.f32 %v833, %v72
    %v835 = vmul.f32 %v833, %v73
    %v836 = vadd.f32 %v812, %v834
    %v837 = vadd.f32 %v813, %v835
    %s838 = sld [smem:[#allocation9 + $0xd]]
    %v839 = vstv %s838
    %v840 = vmul.f32 %v839, %v72
    %v841 = vmul.f32 %v839, %v73
    %v844 = vrot.slane %v840, 1
    %v845 = vrot.slane %v841, 1
    %v848 = vadd.f32 %v818, %v844
    %v849 = vadd.f32 %v819, %v845
    %s850 = sld [smem:[#allocation9 + $0x31]]
    %v851 = vstv %s850
    %v852 = vmul.f32 %v851, %v72
    %v853 = vmul.f32 %v851, %v73
    %v856 = vrot.slane %v852, 1
    %v857 = vrot.slane %v853, 1
    %v860 = vadd.f32 %v824, %v856
    %v861 = vadd.f32 %v825, %v857
    %s862 = sld [smem:[#allocation9 + $0x55]]
    %v863 = vstv %s862
    %v864 = vmul.f32 %v863, %v72
    %v865 = vmul.f32 %v863, %v73
    %v868 = vrot.slane %v864, 1
    %v869 = vrot.slane %v865, 1
    %v872 = vadd.f32 %v830, %v868
    %v873 = vadd.f32 %v831, %v869
    %s874 = sld [smem:[#allocation9 + $0x79]]
    %v875 = vstv %s874
    %v876 = vmul.f32 %v875, %v72
    %v877 = vmul.f32 %v875, %v73
    %v880 = vrot.slane %v876, 1
    %v881 = vrot.slane %v877, 1
    %v884 = vadd.f32 %v836, %v880
    %v885 = vadd.f32 %v837, %v881
    %s886 = sld [smem:[#allocation9 + $0x16]]
    %v887 = vstv %s886
    %v888 = vmul.f32 %v887, %v72
    %v889 = vmul.f32 %v887, %v73
    %v892 = vrot.slane %v888, 2
    %v893 = vrot.slane %v889, 2
    %v896 = vadd.f32 %v848, %v892
    %v897 = vadd.f32 %v849, %v893
    %s898 = sld [smem:[#allocation9 + $0x3a]]
    %v899 = vstv %s898
    %v900 = vmul.f32 %v899, %v72
    %v901 = vmul.f32 %v899, %v73
    %v904 = vrot.slane %v900, 2
    %v905 = vrot.slane %v901, 2
    %v908 = vadd.f32 %v860, %v904
    %v909 = vadd.f32 %v861, %v905
    %s910 = sld [smem:[#allocation9 + $0x5e]]
    %v911 = vstv %s910
    %v912 = vmul.f32 %v911, %v72
    %v913 = vmul.f32 %v911, %v73
    %v916 = vrot.slane %v912, 2
    %v917 = vrot.slane %v913, 2
    %v920 = vadd.f32 %v872, %v916
    %v921 = vadd.f32 %v873, %v917
    %s922 = sld [smem:[#allocation9 + $0x82]]
    %v923 = vstv %s922
    %v924 = vmul.f32 %v923, %v72
    %v925 = vmul.f32 %v923, %v73
    %v928 = vrot.slane %v924, 2
    %v929 = vrot.slane %v925, 2
    %v932 = vadd.f32 %v884, %v928
    %v933 = vadd.f32 %v885, %v929
    %s934 = sld [smem:[#allocation9 + $0x1f]]
    %v935 = vstv %s934
    %v936 = vmul.f32 %v935, %v72
    %v937 = vmul.f32 %v935, %v73
    %v940 = vrot.slane %v936, 3
    %v941 = vrot.slane %v937, 3
    %v944 = vadd.f32 %v896, %v940
    %v945 = vadd.f32 %v897, %v941
    %s946 = sld [smem:[#allocation9 + $0x43]]
    %v947 = vstv %s946
    %v948 = vmul.f32 %v947, %v72
    %v949 = vmul.f32 %v947, %v73
    %v952 = vrot.slane %v948, 3
    %v953 = vrot.slane %v949, 3
    %v956 = vadd.f32 %v908, %v952
    %v957 = vadd.f32 %v909, %v953
    %s958 = sld [smem:[#allocation9 + $0x67]]
    %v959 = vstv %s958
    %v960 = vmul.f32 %v959, %v72
    %v961 = vmul.f32 %v959, %v73
    %v964 = vrot.slane %v960, 3
    %v965 = vrot.slane %v961, 3
    %v968 = vadd.f32 %v920, %v964
    %v969 = vadd.f32 %v921, %v965
    %s970 = sld [smem:[#allocation9 + $0x8b]]
    %v971 = vstv %s970
    %v972 = vmul.f32 %v971, %v72
    %v973 = vmul.f32 %v971, %v73
    %v976 = vrot.slane %v972, 3
    %v977 = vrot.slane %v973, 3
    %v980 = vadd.f32 %v932, %v976
    %v981 = vadd.f32 %v933, %v977
    %982 = vrot.lane.b32.xlu0 %v72, 127
    %v983 = vpop.permute.xlu0 %982
    %984 = vrot.lane.b32.xlu0 %v73, 127
    %v985 = vpop.permute.xlu0 %984
    %vm986 = vcmp.lt.s32.totalorder %v79, 127
    %v987 = vsel %vm986, %v983, %v985
    %v988 = vsel %vm986, %v985, %v983
    %v989 = vperm.slane %v449, 1
    %v990 = vperm.slane %v449, 3
    %v991 = vperm.slane %v989, 1
    %v992 = vperm.slane %v990, 1
    %vm993 = vcmp.eq.s32.totalorder %v991, 1
    %vm994 = vcmp.eq.s32.totalorder %v992, 1
    %v995 = vsel %vm993, %v987, 0.0
    %v996 = vsel %vm994, %v988, 0.0
    %s997 = sld [smem:[#allocation9 + $0x5]]
    %v998 = vstv %s997
    %v999 = vmul.f32 %v998, %v995
    %v1000 = vmul.f32 %v998, %v996
    %v1001 = vadd.f32 %v944, %v999
    %v1002 = vadd.f32 %v945, %v1000
    %s1003 = sld [smem:[#allocation9 + $0x29]]
    %v1004 = vstv %s1003
    %v1005 = vmul.f32 %v1004, %v995
    %v1006 = vmul.f32 %v1004, %v996
    %v1007 = vadd.f32 %v956, %v1005
    %v1008 = vadd.f32 %v957, %v1006
    %s1009 = sld [smem:[#allocation9 + $0x4d]]
    %v1010 = vstv %s1009
    %v1011 = vmul.f32 %v1010, %v995
    %v1012 = vmul.f32 %v1010, %v996
    %v1013 = vadd.f32 %v968, %v1011
    %v1014 = vadd.f32 %v969, %v1012
    %s1015 = sld [smem:[#allocation9 + $0x71]]
    %v1016 = vstv %s1015
    %v1017 = vmul.f32 %v1016, %v995
    %v1018 = vmul.f32 %v1016, %v996
    %v1019 = vadd.f32 %v980, %v1017
    %v1020 = vadd.f32 %v981, %v1018
    %s1021 = sld [smem:[#allocation9 + $0xe]]
    %v1022 = vstv %s1021
    %v1023 = vmul.f32 %v1022, %v995
    %v1024 = vmul.f32 %v1022, %v996
    %v1027 = vrot.slane %v1023, 1
    %v1028 = vrot.slane %v1024, 1
    %v1031 = vadd.f32 %v1001, %v1027
    %v1032 = vadd.f32 %v1002, %v1028
    %s1033 = sld [smem:[#allocation9 + $0x32]]
    %v1034 = vstv %s1033
    %v1035 = vmul.f32 %v1034, %v995
    %v1036 = vmul.f32 %v1034, %v996
    %v1039 = vrot.slane %v1035, 1
    %v1040 = vrot.slane %v1036, 1
    %v1043 = vadd.f32 %v1007, %v1039
    %v1044 = vadd.f32 %v1008, %v1040
    %s1045 = sld [smem:[#allocation9 + $0x56]]
    %v1046 = vstv %s1045
    %v1047 = vmul.f32 %v1046, %v995
    %v1048 = vmul.f32 %v1046, %v996
    %v1051 = vrot.slane %v1047, 1
    %v1052 = vrot.slane %v1048, 1
    %v1055 = vadd.f32 %v1013, %v1051
    %v1056 = vadd.f32 %v1014, %v1052
    %s1057 = sld [smem:[#allocation9 + $0x7a]]
    %v1058 = vstv %s1057
    %v1059 = vmul.f32 %v1058, %v995
    %v1060 = vmul.f32 %v1058, %v996
    %v1063 = vrot.slane %v1059, 1
    %v1064 = vrot.slane %v1060, 1
    %v1067 = vadd.f32 %v1019, %v1063
    %v1068 = vadd.f32 %v1020, %v1064
    %s1069 = sld [smem:[#allocation9 + $0x17]]
    %v1070 = vstv %s1069
    %v1071 = vmul.f32 %v1070, %v995
    %v1072 = vmul.f32 %v1070, %v996
    %v1075 = vrot.slane %v1071, 2
    %v1076 = vrot.slane %v1072, 2
    %v1079 = vadd.f32 %v1031, %v1075
    %v1080 = vadd.f32 %v1032, %v1076
    %s1081 = sld [smem:[#allocation9 + $0x3b]]
    %v1082 = vstv %s1081
    %v1083 = vmul.f32 %v1082, %v995
    %v1084 = vmul.f32 %v1082, %v996
    %v1087 = vrot.slane %v1083, 2
    %v1088 = vrot.slane %v1084, 2
    %v1091 = vadd.f32 %v1043, %v1087
    %v1092 = vadd.f32 %v1044, %v1088
    %s1093 = sld [smem:[#allocation9 + $0x5f]]
    %v1094 = vstv %s1093
    %v1095 = vmul.f32 %v1094, %v995
    %v1096 = vmul.f32 %v1094, %v996
    %v1099 = vrot.slane %v1095, 2
    %v1100 = vrot.slane %v1096, 2
    %v1103 = vadd.f32 %v1055, %v1099
    %v1104 = vadd.f32 %v1056, %v1100
    %s1105 = sld [smem:[#allocation9 + $0x83]]
    %v1106 = vstv %s1105
    %v1107 = vmul.f32 %v1106, %v995
    %v1108 = vmul.f32 %v1106, %v996
    %v1111 = vrot.slane %v1107, 2
    %v1112 = vrot.slane %v1108, 2
    %v1115 = vadd.f32 %v1067, %v1111
    %v1116 = vadd.f32 %v1068, %v1112
    %s1117 = sld [smem:[#allocation9 + $0x20]]
    %v1118 = vstv %s1117
    %v1119 = vmul.f32 %v1118, %v995
    %v1120 = vmul.f32 %v1118, %v996
    %v1123 = vrot.slane %v1119, 3
    %v1124 = vrot.slane %v1120, 3
    %v1127 = vadd.f32 %v1079, %v1123
    %v1128 = vadd.f32 %v1080, %v1124
    %s1129 = sld [smem:[#allocation9 + $0x44]]
    %v1130 = vstv %s1129
    %v1131 = vmul.f32 %v1130, %v995
    %v1132 = vmul.f32 %v1130, %v996
    %v1135 = vrot.slane %v1131, 3
    %v1136 = vrot.slane %v1132, 3
    %v1139 = vadd.f32 %v1091, %v1135
    %v1140 = vadd.f32 %v1092, %v1136
    %s1141 = sld [smem:[#allocation9 + $0x68]]
    %v1142 = vstv %s1141
    %v1143 = vmul.f32 %v1142, %v995
    %v1144 = vmul.f32 %v1142, %v996
    %v1147 = vrot.slane %v1143, 3
    %v1148 = vrot.slane %v1144, 3
    %v1151 = vadd.f32 %v1103, %v1147
    %v1152 = vadd.f32 %v1104, %v1148
    %s1153 = sld [smem:[#allocation9 + $0x8c]]
    %v1154 = vstv %s1153
    %v1155 = vmul.f32 %v1154, %v995
    %v1156 = vmul.f32 %v1154, %v996
    %v1159 = vrot.slane %v1155, 3
    %v1160 = vrot.slane %v1156, 3
    %v1163 = vadd.f32 %v1115, %v1159
    %v1164 = vadd.f32 %v1116, %v1160
    %1165 = vrot.lane.b32.xlu0 %v72, 113
    %v1166 = vpop.permute.xlu0 %1165
    %1167 = vrot.lane.b32.xlu0 %v73, 113
    %v1168 = vpop.permute.xlu0 %1167
    %vm1169 = vcmp.lt.s32.totalorder %v79, 113
    %v1170 = vsel %vm1169, %v1166, %v1168
    %v1171 = vsel %vm1169, %v1168, %v1166
    %vm1172 = vmand %vm448, %vm87
    %v1173 = vsel %vm1172, 1, 0
    %v1174 = vperm.slane %v1173, 0
    %v1175 = vperm.slane %v1173, 2
    %v1176 = vperm.slane %v1174, 0
    %v1177 = vperm.slane %v1175, 0
    %vm1178 = vcmp.eq.s32.totalorder %v1176, 1
    %vm1179 = vcmp.eq.s32.totalorder %v1177, 1
    %v1180 = vsel %vm1178, %v1170, 0.0
    %v1181 = vsel %vm1179, %v1171, 0.0
    %s1182 = sld [smem:[#allocation9 + $0x6]]
    %v1183 = vstv %s1182
    %v1184 = vmul.f32 %v1183, %v1180
    %v1185 = vmul.f32 %v1183, %v1181
    %v1186 = vadd.f32 %v1127, %v1184
    %v1187 = vadd.f32 %v1128, %v1185
    %s1188 = sld [smem:[#allocation9 + $0x2a]]
    %v1189 = vstv %s1188
    %v1190 = vmul.f32 %v1189, %v1180
    %v1191 = vmul.f32 %v1189, %v1181
    %v1192 = vadd.f32 %v1139, %v1190
    %v1193 = vadd.f32 %v1140, %v1191
    %s1194 = sld [smem:[#allocation9 + $0x4e]]
    %v1195 = vstv %s1194
    %v1196 = vmul.f32 %v1195, %v1180
    %v1197 = vmul.f32 %v1195, %v1181
    %v1198 = vadd.f32 %v1151, %v1196
    %v1199 = vadd.f32 %v1152, %v1197
    %s1200 = sld [smem:[#allocation9 + $0x72]]
    %v1201 = vstv %s1200
    %v1202 = vmul.f32 %v1201, %v1180
    %v1203 = vmul.f32 %v1201, %v1181
    %v1204 = vadd.f32 %v1163, %v1202
    %v1205 = vadd.f32 %v1164, %v1203
    %s1206 = sld [smem:[#allocation9 + $0xf]]
    %v1207 = vstv %s1206
    %v1208 = vmul.f32 %v1207, %v1180
    %v1209 = vmul.f32 %v1207, %v1181
    %v1212 = vrot.slane %v1208, 1
    %v1213 = vrot.slane %v1209, 1
    %v1216 = vadd.f32 %v1186, %v1212
    %v1217 = vadd.f32 %v1187, %v1213
    %s1218 = sld [smem:[#allocation9 + $0x33]]
    %v1219 = vstv %s1218
    %v1220 = vmul.f32 %v1219, %v1180
    %v1221 = vmul.f32 %v1219, %v1181
    %v1224 = vrot.slane %v1220, 1
    %v1225 = vrot.slane %v1221, 1
    %v1228 = vadd.f32 %v1192, %v1224
    %v1229 = vadd.f32 %v1193, %v1225
    %s1230 = sld [smem:[#allocation9 + $0x57]]
    %v1231 = vstv %s1230
    %v1232 = vmul.f32 %v1231, %v1180
    %v1233 = vmul.f32 %v1231, %v1181
    %v1236 = vrot.slane %v1232, 1
    %v1237 = vrot.slane %v1233, 1
    %v1240 = vadd.f32 %v1198, %v1236
    %v1241 = vadd.f32 %v1199, %v1237
    %s1242 = sld [smem:[#allocation9 + $0x7b]]
    %v1243 = vstv %s1242
    %v1244 = vmul.f32 %v1243, %v1180
    %v1245 = vmul.f32 %v1243, %v1181
    %v1248 = vrot.slane %v1244, 1
    %v1249 = vrot.slane %v1245, 1
    %v1252 = vadd.f32 %v1204, %v1248
    %v1253 = vadd.f32 %v1205, %v1249
    %s1254 = sld [smem:[#allocation9 + $0x18]]
    %v1255 = vstv %s1254
    %v1256 = vmul.f32 %v1255, %v1180
    %v1257 = vmul.f32 %v1255, %v1181
    %v1260 = vrot.slane %v1256, 2
    %v1261 = vrot.slane %v1257, 2
    %v1264 = vadd.f32 %v1216, %v1260
    %v1265 = vadd.f32 %v1217, %v1261
    %s1266 = sld [smem:[#allocation9 + $0x3c]]
    %v1267 = vstv %s1266
    %v1268 = vmul.f32 %v1267, %v1180
    %v1269 = vmul.f32 %v1267, %v1181
    %v1272 = vrot.slane %v1268, 2
    %v1273 = vrot.slane %v1269, 2
    %v1276 = vadd.f32 %v1228, %v1272
    %v1277 = vadd.f32 %v1229, %v1273
    %s1278 = sld [smem:[#allocation9 + $0x60]]
    %v1279 = vstv %s1278
    %v1280 = vmul.f32 %v1279, %v1180
    %v1281 = vmul.f32 %v1279, %v1181
    %v1284 = vrot.slane %v1280, 2
    %v1285 = vrot.slane %v1281, 2
    %v1288 = vadd.f32 %v1240, %v1284
    %v1289 = vadd.f32 %v1241, %v1285
    %s1290 = sld [smem:[#allocation9 + $0x84]]
    %v1291 = vstv %s1290
    %v1292 = vmul.f32 %v1291, %v1180
    %v1293 = vmul.f32 %v1291, %v1181
    %v1296 = vrot.slane %v1292, 2
    %v1297 = vrot.slane %v1293, 2
    %v1300 = vadd.f32 %v1252, %v1296
    %v1301 = vadd.f32 %v1253, %v1297
    %s1302 = sld [smem:[#allocation9 + $0x21]]
    %v1303 = vstv %s1302
    %v1304 = vmul.f32 %v1303, %v1180
    %v1305 = vmul.f32 %v1303, %v1181
    %v1308 = vrot.slane %v1304, 3
    %v1309 = vrot.slane %v1305, 3
    %v1312 = vadd.f32 %v1264, %v1308
    %v1313 = vadd.f32 %v1265, %v1309
    %s1314 = sld [smem:[#allocation9 + $0x45]]
    %v1315 = vstv %s1314
    %v1316 = vmul.f32 %v1315, %v1180
    %v1317 = vmul.f32 %v1315, %v1181
    %v1320 = vrot.slane %v1316, 3
    %v1321 = vrot.slane %v1317, 3
    %v1324 = vadd.f32 %v1276, %v1320
    %v1325 = vadd.f32 %v1277, %v1321
    %s1326 = sld [smem:[#allocation9 + $0x69]]
    %v1327 = vstv %s1326
    %v1328 = vmul.f32 %v1327, %v1180
    %v1329 = vmul.f32 %v1327, %v1181
    %v1332 = vrot.slane %v1328, 3
    %v1333 = vrot.slane %v1329, 3
    %v1336 = vadd.f32 %v1288, %v1332
    %v1337 = vadd.f32 %v1289, %v1333
    %s1338 = sld [smem:[#allocation9 + $0x8d]]
    %v1339 = vstv %s1338
    %v1340 = vmul.f32 %v1339, %v1180
    %v1341 = vmul.f32 %v1339, %v1181
    %v1344 = vrot.slane %v1340, 3
    %v1345 = vrot.slane %v1341, 3
    %v1348 = vadd.f32 %v1300, %v1344
    %v1349 = vadd.f32 %v1301, %v1345
    %1350 = vrot.lane.b32.xlu0 %v72, 112
    %v1351 = vpop.permute.xlu0 %1350
    %1352 = vrot.lane.b32.xlu0 %v73, 112
    %v1353 = vpop.permute.xlu0 %1352
    %vm1354 = vcmp.lt.s32.totalorder %v79, 112
    %v1355 = vsel %vm1354, %v1351, %v1353
    %v1356 = vsel %vm1354, %v1353, %v1351
    %v1357 = vperm.slane %v449, 0
    %v1358 = vperm.slane %v449, 2
    %v1359 = vperm.slane %v1357, 0
    %v1360 = vperm.slane %v1358, 0
    %vm1361 = vcmp.eq.s32.totalorder %v1359, 1
    %vm1362 = vcmp.eq.s32.totalorder %v1360, 1
    %v1363 = vsel %vm1361, %v1355, 0.0
    %v1364 = vsel %vm1362, %v1356, 0.0
    %s1365 = sld [smem:[#allocation9 + $0x7]]
    %v1366 = vstv %s1365
    %v1367 = vmul.f32 %v1366, %v1363
    %v1368 = vmul.f32 %v1366, %v1364
    %v1369 = vadd.f32 %v1312, %v1367
    %v1370 = vadd.f32 %v1313, %v1368
    %s1371 = sld [smem:[#allocation9 + $0x2b]]
    %v1372 = vstv %s1371
    %v1373 = vmul.f32 %v1372, %v1363
    %v1374 = vmul.f32 %v1372, %v1364
    %v1375 = vadd.f32 %v1324, %v1373
    %v1376 = vadd.f32 %v1325, %v1374
    %s1377 = sld [smem:[#allocation9 + $0x4f]]
    %v1378 = vstv %s1377
    %v1379 = vmul.f32 %v1378, %v1363
    %v1380 = vmul.f32 %v1378, %v1364
    %v1381 = vadd.f32 %v1336, %v1379
    %v1382 = vadd.f32 %v1337, %v1380
    %s1383 = sld [smem:[#allocation9 + $0x73]]
    %v1384 = vstv %s1383
    %v1385 = vmul.f32 %v1384, %v1363
    %v1386 = vmul.f32 %v1384, %v1364
    %v1387 = vadd.f32 %v1348, %v1385
    %v1388 = vadd.f32 %v1349, %v1386
    %s1389 = sld [smem:[#allocation9 + $0x10]]
    %v1390 = vstv %s1389
    %v1391 = vmul.f32 %v1390, %v1363
    %v1392 = vmul.f32 %v1390, %v1364
    %v1395 = vrot.slane %v1391, 1
    %v1396 = vrot.slane %v1392, 1
    %v1399 = vadd.f32 %v1369, %v1395
    %v1400 = vadd.f32 %v1370, %v1396
    %s1401 = sld [smem:[#allocation9 + $0x34]]
    %v1402 = vstv %s1401
    %v1403 = vmul.f32 %v1402, %v1363
    %v1404 = vmul.f32 %v1402, %v1364
    %v1407 = vrot.slane %v1403, 1
    %v1408 = vrot.slane %v1404, 1
    %v1411 = vadd.f32 %v1375, %v1407
    %v1412 = vadd.f32 %v1376, %v1408
    %s1413 = sld [smem:[#allocation9 + $0x58]]
    %v1414 = vstv %s1413
    %v1415 = vmul.f32 %v1414, %v1363
    %v1416 = vmul.f32 %v1414, %v1364
    %v1419 = vrot.slane %v1415, 1
    %v1420 = vrot.slane %v1416, 1
    %v1423 = vadd.f32 %v1381, %v1419
    %v1424 = vadd.f32 %v1382, %v1420
    %s1425 = sld [smem:[#allocation9 + $0x7c]]
    %v1426 = vstv %s1425
    %v1427 = vmul.f32 %v1426, %v1363
    %v1428 = vmul.f32 %v1426, %v1364
    %v1431 = vrot.slane %v1427, 1
    %v1432 = vrot.slane %v1428, 1
    %v1435 = vadd.f32 %v1387, %v1431
    %v1436 = vadd.f32 %v1388, %v1432
    %s1437 = sld [smem:[#allocation9 + $0x19]]
    %v1438 = vstv %s1437
    %v1439 = vmul.f32 %v1438, %v1363
    %v1440 = vmul.f32 %v1438, %v1364
    %v1443 = vrot.slane %v1439, 2
    %v1444 = vrot.slane %v1440, 2
    %v1447 = vadd.f32 %v1399, %v1443
    %v1448 = vadd.f32 %v1400, %v1444
    %s1449 = sld [smem:[#allocation9 + $0x3d]]
    %v1450 = vstv %s1449
    %v1451 = vmul.f32 %v1450, %v1363
    %v1452 = vmul.f32 %v1450, %v1364
    %v1455 = vrot.slane %v1451, 2
    %v1456 = vrot.slane %v1452, 2
    %v1459 = vadd.f32 %v1411, %v1455
    %v1460 = vadd.f32 %v1412, %v1456
    %s1461 = sld [smem:[#allocation9 + $0x61]]
    %v1462 = vstv %s1461
    %v1463 = vmul.f32 %v1462, %v1363
    %v1464 = vmul.f32 %v1462, %v1364
    %v1467 = vrot.slane %v1463, 2
    %v1468 = vrot.slane %v1464, 2
    %v1471 = vadd.f32 %v1423, %v1467
    %v1472 = vadd.f32 %v1424, %v1468
    %s1473 = sld [smem:[#allocation9 + $0x85]]
    %v1474 = vstv %s1473
    %v1475 = vmul.f32 %v1474, %v1363
    %v1476 = vmul.f32 %v1474, %v1364
    %v1479 = vrot.slane %v1475, 2
    %v1480 = vrot.slane %v1476, 2
    %v1483 = vadd.f32 %v1435, %v1479
    %v1484 = vadd.f32 %v1436, %v1480
    %s1485 = sld [smem:[#allocation9 + $0x22]]
    %v1486 = vstv %s1485
    %v1487 = vmul.f32 %v1486, %v1363
    %v1488 = vmul.f32 %v1486, %v1364
    %v1491 = vrot.slane %v1487, 3
    %v1492 = vrot.slane %v1488, 3
    %v1495 = vadd.f32 %v1447, %v1491
    %v1496 = vadd.f32 %v1448, %v1492
    %s1497 = sld [smem:[#allocation9 + $0x46]]
    %v1498 = vstv %s1497
    %v1499 = vmul.f32 %v1498, %v1363
    %v1500 = vmul.f32 %v1498, %v1364
    %v1503 = vrot.slane %v1499, 3
    %v1504 = vrot.slane %v1500, 3
    %v1507 = vadd.f32 %v1459, %v1503
    %v1508 = vadd.f32 %v1460, %v1504
    %s1509 = sld [smem:[#allocation9 + $0x6a]]
    %v1510 = vstv %s1509
    %v1511 = vmul.f32 %v1510, %v1363
    %v1512 = vmul.f32 %v1510, %v1364
    %v1515 = vrot.slane %v1511, 3
    %v1516 = vrot.slane %v1512, 3
    %v1519 = vadd.f32 %v1471, %v1515
    %v1520 = vadd.f32 %v1472, %v1516
    %s1521 = sld [smem:[#allocation9 + $0x8e]]
    %v1522 = vstv %s1521
    %v1523 = vmul.f32 %v1522, %v1363
    %v1524 = vmul.f32 %v1522, %v1364
    %v1527 = vrot.slane %v1523, 3
    %v1528 = vrot.slane %v1524, 3
    %v1531 = vadd.f32 %v1483, %v1527
    %v1532 = vadd.f32 %v1484, %v1528
    %1533 = vrot.lane.b32.xlu0 %v72, 111
    %v1534 = vpop.permute.xlu0 %1533
    %1535 = vrot.lane.b32.xlu0 %v73, 111
    %v1536 = vpop.permute.xlu0 %1535
    %vm1537 = vcmp.lt.s32.totalorder %v79, 111
    %v1538 = vsel %vm1537, %v1534, %v1536
    %v1539 = vsel %vm1537, %v1536, %v1534
    %vm1540 = vmand %vm448, %vm452
    %v1541 = vsel %vm1540, 1, 0
    %v1542 = vperm.slane %v1541, 0
    %v1543 = vperm.slane %v1541, 2
    %v1544 = vperm.slane %v1542, 0
    %v1545 = vperm.slane %v1543, 0
    %vm1546 = vcmp.eq.s32.totalorder %v1544, 1
    %vm1547 = vcmp.eq.s32.totalorder %v1545, 1
    %v1548 = vsel %vm1546, %v1538, 0.0
    %v1549 = vsel %vm1547, %v1539, 0.0
    %s1550 = sld [smem:[#allocation9 + $0x8]]
    %v1551 = vstv %s1550
    %v1552 = vmul.f32 %v1551, %v1548
    %v1553 = vmul.f32 %v1551, %v1549
    %v1554 = vadd.f32 %v1495, %v1552
    %v1555 = vadd.f32 %v1496, %v1553
    %s1556 = sld [smem:[#allocation9 + $0x2c]]
    %v1557 = vstv %s1556
    %v1558 = vmul.f32 %v1557, %v1548
    %v1559 = vmul.f32 %v1557, %v1549
    %v1560 = vadd.f32 %v1507, %v1558
    %v1561 = vadd.f32 %v1508, %v1559
    %s1562 = sld [smem:[#allocation9 + $0x50]]
    %v1563 = vstv %s1562
    %v1564 = vmul.f32 %v1563, %v1548
    %v1565 = vmul.f32 %v1563, %v1549
    %v1566 = vadd.f32 %v1519, %v1564
    %v1567 = vadd.f32 %v1520, %v1565
    %s1568 = sld [smem:[#allocation9 + $0x74]]
    %v1569 = vstv %s1568
    %v1570 = vmul.f32 %v1569, %v1548
    %v1571 = vmul.f32 %v1569, %v1549
    %v1572 = vadd.f32 %v1531, %v1570
    %v1573 = vadd.f32 %v1532, %v1571
    %s1574 = sld [smem:[#allocation9 + $0x11]]
    %v1575 = vstv %s1574
    %v1576 = vmul.f32 %v1575, %v1548
    %v1577 = vmul.f32 %v1575, %v1549
    %v1580 = vrot.slane %v1576, 1
    %v1581 = vrot.slane %v1577, 1
    %v1584 = vadd.f32 %v1554, %v1580
    %v1585 = vadd.f32 %v1555, %v1581
    %s1586 = sld [smem:[#allocation9 + $0x35]]
    %v1587 = vstv %s1586
    %v1588 = vmul.f32 %v1587, %v1548
    %v1589 = vmul.f32 %v1587, %v1549
    %v1592 = vrot.slane %v1588, 1
    %v1593 = vrot.slane %v1589, 1
    %v1596 = vadd.f32 %v1560, %v1592
    %v1597 = vadd.f32 %v1561, %v1593
    %s1598 = sld [smem:[#allocation9 + $0x59]]
    %v1599 = vstv %s1598
    %v1600 = vmul.f32 %v1599, %v1548
    %v1601 = vmul.f32 %v1599, %v1549
    %v1604 = vrot.slane %v1600, 1
    %v1605 = vrot.slane %v1601, 1
    %v1608 = vadd.f32 %v1566, %v1604
    %v1609 = vadd.f32 %v1567, %v1605
    %s1610 = sld [smem:[#allocation9 + $0x7d]]
    %v1611 = vstv %s1610
    %v1612 = vmul.f32 %v1611, %v1548
    %v1613 = vmul.f32 %v1611, %v1549
    %v1616 = vrot.slane %v1612, 1
    %v1617 = vrot.slane %v1613, 1
    %v1620 = vadd.f32 %v1572, %v1616
    %v1621 = vadd.f32 %v1573, %v1617
    %s1622 = sld [smem:[#allocation9 + $0x1a]]
    %v1623 = vstv %s1622
    %v1624 = vmul.f32 %v1623, %v1548
    %v1625 = vmul.f32 %v1623, %v1549
    %v1628 = vrot.slane %v1624, 2
    %v1629 = vrot.slane %v1625, 2
    %v1632 = vadd.f32 %v1584, %v1628
    %v1633 = vadd.f32 %v1585, %v1629
    %s1634 = sld [smem:[#allocation9 + $0x3e]]
    %v1635 = vstv %s1634
    %v1636 = vmul.f32 %v1635, %v1548
    %v1637 = vmul.f32 %v1635, %v1549
    %v1640 = vrot.slane %v1636, 2
    %v1641 = vrot.slane %v1637, 2
    %v1644 = vadd.f32 %v1596, %v1640
    %v1645 = vadd.f32 %v1597, %v1641
    %s1646 = sld [smem:[#allocation9 + $0x62]]
    %v1647 = vstv %s1646
    %v1648 = vmul.f32 %v1647, %v1548
    %v1649 = vmul.f32 %v1647, %v1549
    %v1652 = vrot.slane %v1648, 2
    %v1653 = vrot.slane %v1649, 2
    %v1656 = vadd.f32 %v1608, %v1652
    %v1657 = vadd.f32 %v1609, %v1653
    %s1658 = sld [smem:[#allocation9 + $0x86]]
    %v1659 = vstv %s1658
    %v1660 = vmul.f32 %v1659, %v1548
    %v1661 = vmul.f32 %v1659, %v1549
    %v1664 = vrot.slane %v1660, 2
    %v1665 = vrot.slane %v1661, 2
    %v1668 = vadd.f32 %v1620, %v1664
    %v1669 = vadd.f32 %v1621, %v1665
    %s1670 = sld [smem:[#allocation9 + $0x23]]
    %v1671 = vstv %s1670
    %v1672 = vmul.f32 %v1671, %v1548
    %v1673 = vmul.f32 %v1671, %v1549
    %v1676 = vrot.slane %v1672, 3
    %v1677 = vrot.slane %v1673, 3
    %v1680 = vadd.f32 %v1632, %v1676
    %v1681 = vadd.f32 %v1633, %v1677
    %s1682 = sld [smem:[#allocation9 + $0x47]]
    %v1683 = vstv %s1682
    %v1684 = vmul.f32 %v1683, %v1548
    %v1685 = vmul.f32 %v1683, %v1549
    %v1688 = vrot.slane %v1684, 3
    %v1689 = vrot.slane %v1685, 3
    %v1692 = vadd.f32 %v1644, %v1688
    %v1693 = vadd.f32 %v1645, %v1689
    %s1694 = sld [smem:[#allocation9 + $0x6b]]
    %v1695 = vstv %s1694
    %v1696 = vmul.f32 %v1695, %v1548
    %v1697 = vmul.f32 %v1695, %v1549
    %v1700 = vrot.slane %v1696, 3
    %v1701 = vrot.slane %v1697, 3
    %v1704 = vadd.f32 %v1656, %v1700
    %v1705 = vadd.f32 %v1657, %v1701
    %s1706 = sld [smem:[#allocation9 + $0x8f]]
    %v1707 = vstv %s1706
    %v1708 = vmul.f32 %v1707, %v1548
    %v1709 = vmul.f32 %v1707, %v1549
    %v1712 = vrot.slane %v1708, 3
    %v1713 = vrot.slane %v1709, 3
    %v1716 = vadd.f32 %v1668, %v1712
    %v1717 = vadd.f32 %v1669, %v1713
    %s1718 = sld [smem:[#allocation10]]
    %v1719 = vstv %s1718
    %v1720 = vadd.f32 %v1680, %v1719
    %v1721 = vadd.f32 %v1681, %v1719
    %s1722 = sld [smem:[#allocation10 + $0x1]]
    %v1723 = vstv %s1722
    %v1724 = vadd.f32 %v1692, %v1723
    %v1725 = vadd.f32 %v1693, %v1723
    %s1726 = sld [smem:[#allocation10 + $0x2]]
    %v1727 = vstv %s1726
    %v1728 = vadd.f32 %v1704, %v1727
    %v1729 = vadd.f32 %v1705, %v1727
    %s1730 = sld [smem:[#allocation10 + $0x3]]
    %v1731 = vstv %s1730
    %v1732 = vadd.f32 %v1716, %v1731
    %v1733 = vadd.f32 %v1717, %v1731
    %v1736 = vrot.slane %v1724, 7
    %v1737 = vrot.slane %v1725, 7
    %v1742 = vrot.slane %v1728, 6
    %v1743 = vrot.slane %v1729, 6
    %v1748 = vrot.slane %v1732, 5
    %v1749 = vrot.slane %v1733, 5
    %vm1752 = vcmask 1040384
    %v1753 = vsel %vm1752, %v1720, %v1736
    %v1754 = vsel %vm1752, %v1721, %v1737
    %vm1755 = vcmask 1041408
    %v1756 = vsel %vm1755, %v1753, %v1742
    %v1757 = vsel %vm1755, %v1754, %v1743
    %vm1758 = vcmask 1042432
    %v1759 = vsel %vm1758, %v1756, %v1748
    %v1760 = vsel %vm1758, %v1757, %v1749
    %vm1761 = vcmask 1043456
    %v1762 = vsel %vm1761, %v1759, %v1720
    %v1763 = vsel %vm1761, %v1760, %v1721
    %vm1764 = vcmask 1044480
    %v1765 = vsel %vm1764, %v1762, %v1736
    %v1766 = vsel %vm1764, %v1763, %v1737
    %vm1767 = vcmask 1045504
    %v1768 = vsel %vm1767, %v1765, %v1742
    %v1769 = vsel %vm1767, %v1766, %v1743
    %vm1770 = vcmask 1046528
    %v1771 = vsel %vm1770, %v1768, %v1748
    %v1772 = vsel %vm1770, %v1769, %v1749
    %v1773 = vmax.f32 %v1771, 0.0
    %v1774 = vmax.f32 %v1772, 0.0
    %1775 = vrot.lane.b32.xlu0 %v1773, 34
    %v1776 = vpop.permute.xlu0 %1775
    %1777 = vrot.lane.b32.xlu0 %v1774, 34
    %v1778 = vpop.permute.xlu0 %1777
    %vm1779 = vcmp.lt.s32.totalorder %v79, 34
    %v1780 = vsel %vm1779, %v1776, %v1778
    %v1781 = vsel %vm1779, %v1778, %v1776
    %vm1782 = vcmp.ge.s32.totalorder %v71, 2
    %v1783 = vsel %vm1782, 1, 0
    %v1784 = vrot.slane %v1783, 7
    %v1785 = vrot.slane %v1784, 2
    %vm1786 = vcmp.ne.s32.totalorder %v1785, 0
    %vm1787 = vmand %vm1782, %vm1786
    %v1788 = vsel %vm1787, 1, 0
    %v1789 = vperm.slane %v1788, 0
    %v1790 = vperm.slane %v1788, 2
    %v1791 = vperm.slane %v1789, 0
    %v1792 = vperm.slane %v1790, 0
    %vm1793 = vcmp.eq.s32.totalorder %v1791, 1
    %vm1794 = vcmp.eq.s32.totalorder %v1792, 1
    %v1795 = vsel %vm1793, %v1781, 0.0
    %v1796 = vsel %vm1794, %v1780, 0.0
    %s1797 = sld [smem:[#allocation9 + $0x90]]
    %v1798 = vstv %s1797
    %v1799 = vmul.f32 %v1798, %v1795
    %v1800 = vmul.f32 %v1798, %v1796
    %s1801 = sld [smem:[#allocation9 + $0xb4]]
    %v1802 = vstv %s1801
    %v1803 = vmul.f32 %v1802, %v1795
    %v1804 = vmul.f32 %v1802, %v1796
    %s1805 = sld [smem:[#allocation9 + $0xd8]]
    %v1806 = vstv %s1805
    %v1807 = vmul.f32 %v1806, %v1795
    %v1808 = vmul.f32 %v1806, %v1796
    %s1809 = sld [smem:[#allocation9 + $0xfc]]
    %v1810 = vstv %s1809
    %v1811 = vmul.f32 %v1810, %v1795
    %v1812 = vmul.f32 %v1810, %v1796
    %s1813 = sld [smem:[#allocation9 + $0x99]]
    %v1814 = vstv %s1813
    %v1815 = vmul.f32 %v1814, %v1795
    %v1816 = vmul.f32 %v1814, %v1796
    %v1819 = vrot.slane %v1815, 1
    %v1820 = vrot.slane %v1816, 1
    %v1823 = vadd.f32 %v1799, %v1819
    %v1824 = vadd.f32 %v1800, %v1820
    %s1825 = sld [smem:[#allocation9 + $0xbd]]
    %v1826 = vstv %s1825
    %v1827 = vmul.f32 %v1826, %v1795
    %v1828 = vmul.f32 %v1826, %v1796
    %v1831 = vrot.slane %v1827, 1
    %v1832 = vrot.slane %v1828, 1
    %v1835 = vadd.f32 %v1803, %v1831
    %v1836 = vadd.f32 %v1804, %v1832
    %s1837 = sld [smem:[#allocation9 + $0xe1]]
    %v1838 = vstv %s1837
    %v1839 = vmul.f32 %v1838, %v1795
    %v1840 = vmul.f32 %v1838, %v1796
    %v1843 = vrot.slane %v1839, 1
    %v1844 = vrot.slane %v1840, 1
    %v1847 = vadd.f32 %v1807, %v1843
    %v1848 = vadd.f32 %v1808, %v1844
    %s1849 = sld [smem:[#allocation9 + $0x105]]
    %v1850 = vstv %s1849
    %v1851 = vmul.f32 %v1850, %v1795
    %v1852 = vmul.f32 %v1850, %v1796
    %v1855 = vrot.slane %v1851, 1
    %v1856 = vrot.slane %v1852, 1
    %v1859 = vadd.f32 %v1811, %v1855
    %v1860 = vadd.f32 %v1812, %v1856
    %s1861 = sld [smem:[#allocation9 + $0xa2]]
    %v1862 = vstv %s1861
    %v1863 = vmul.f32 %v1862, %v1795
    %v1864 = vmul.f32 %v1862, %v1796
    %v1867 = vrot.slane %v1863, 2
    %v1868 = vrot.slane %v1864, 2
    %v1871 = vadd.f32 %v1823, %v1867
    %v1872 = vadd.f32 %v1824, %v1868
    %s1873 = sld [smem:[#allocation9 + $0xc6]]
    %v1874 = vstv %s1873
    %v1875 = vmul.f32 %v1874, %v1795
    %v1876 = vmul.f32 %v1874, %v1796
    %v1879 = vrot.slane %v1875, 2
    %v1880 = vrot.slane %v1876, 2
    %v1883 = vadd.f32 %v1835, %v1879
    %v1884 = vadd.f32 %v1836, %v1880
    %s1885 = sld [smem:[#allocation9 + $0xea]]
    %v1886 = vstv %s1885
    %v1887 = vmul.f32 %v1886, %v1795
    %v1888 = vmul.f32 %v1886, %v1796
    %v1891 = vrot.slane %v1887, 2
    %v1892 = vrot.slane %v1888, 2
    %v1895 = vadd.f32 %v1847, %v1891
    %v1896 = vadd.f32 %v1848, %v1892
    %s1897 = sld [smem:[#allocation9 + $0x10e]]
    %v1898 = vstv %s1897
    %v1899 = vmul.f32 %v1898, %v1795
    %v1900 = vmul.f32 %v1898, %v1796
    %v1903 = vrot.slane %v1899, 2
    %v1904 = vrot.slane %v1900, 2
    %v1907 = vadd.f32 %v1859, %v1903
    %v1908 = vadd.f32 %v1860, %v1904
    %s1909 = sld [smem:[#allocation9 + $0xab]]
    %v1910 = vstv %s1909
    %v1911 = vmul.f32 %v1910, %v1795
    %v1912 = vmul.f32 %v1910, %v1796
    %v1915 = vrot.slane %v1911, 3
    %v1916 = vrot.slane %v1912, 3
    %v1919 = vadd.f32 %v1871, %v1915
    %v1920 = vadd.f32 %v1872, %v1916
    %s1921 = sld [smem:[#allocation9 + $0xcf]]
    %v1922 = vstv %s1921
    %v1923 = vmul.f32 %v1922, %v1795
    %v1924 = vmul.f32 %v1922, %v1796
    %v1927 = vrot.slane %v1923, 3
    %v1928 = vrot.slane %v1924, 3
    %v1931 = vadd.f32 %v1883, %v1927
    %v1932 = vadd.f32 %v1884, %v1928
    %s1933 = sld [smem:[#allocation9 + $0xf3]]
    %v1934 = vstv %s1933
    %v1935 = vmul.f32 %v1934, %v1795
    %v1936 = vmul.f32 %v1934, %v1796
    %v1939 = vrot.slane %v1935, 3
    %v1940 = vrot.slane %v1936, 3
    %v1943 = vadd.f32 %v1895, %v1939
    %v1944 = vadd.f32 %v1896, %v1940
    %s1945 = sld [smem:[#allocation9 + $0x117]]
    %v1946 = vstv %s1945
    %v1947 = vmul.f32 %v1946, %v1795
    %v1948 = vmul.f32 %v1946, %v1796
    %v1951 = vrot.slane %v1947, 3
    %v1952 = vrot.slane %v1948, 3
    %v1955 = vadd.f32 %v1907, %v1951
    %v1956 = vadd.f32 %v1908, %v1952
    %1957 = vrot.lane.b32.xlu0 %v1773, 32
    %v1958 = vpop.permute.xlu0 %1957
    %1959 = vrot.lane.b32.xlu0 %v1774, 32
    %v1960 = vpop.permute.xlu0 %1959
    %vm1961 = vcmp.lt.s32.totalorder %v79, 32
    %v1962 = vsel %vm1961, %v1958, %v1960
    %v1963 = vsel %vm1961, %v1960, %v1958
    %v1964 = vperm.slane %v1783, 0
    %v1965 = vperm.slane %v1783, 2
    %v1966 = vperm.slane %v1964, 0
    %v1967 = vperm.slane %v1965, 0
    %vm1968 = vcmp.eq.s32.totalorder %v1966, 1
    %vm1969 = vcmp.eq.s32.totalorder %v1967, 1
    %v1970 = vsel %vm1968, %v1963, 0.0
    %v1971 = vsel %vm1969, %v1962, 0.0
    %s1972 = sld [smem:[#allocation9 + $0x91]]
    %v1973 = vstv %s1972
    %v1974 = vmul.f32 %v1973, %v1970
    %v1975 = vmul.f32 %v1973, %v1971
    %v1976 = vadd.f32 %v1919, %v1974
    %v1977 = vadd.f32 %v1920, %v1975
    %s1978 = sld [smem:[#allocation9 + $0xb5]]
    %v1979 = vstv %s1978
    %v1980 = vmul.f32 %v1979, %v1970
    %v1981 = vmul.f32 %v1979, %v1971
    %v1982 = vadd.f32 %v1931, %v1980
    %v1983 = vadd.f32 %v1932, %v1981
    %s1984 = sld [smem:[#allocation9 + $0xd9]]
    %v1985 = vstv %s1984
    %v1986 = vmul.f32 %v1985, %v1970
    %v1987 = vmul.f32 %v1985, %v1971
    %v1988 = vadd.f32 %v1943, %v1986
    %v1989 = vadd.f32 %v1944, %v1987
    %s1990 = sld [smem:[#allocation9 + $0xfd]]
    %v1991 = vstv %s1990
    %v1992 = vmul.f32 %v1991, %v1970
    %v1993 = vmul.f32 %v1991, %v1971
    %v1994 = vadd.f32 %v1955, %v1992
    %v1995 = vadd.f32 %v1956, %v1993
    %s1996 = sld [smem:[#allocation9 + $0x9a]]
    %v1997 = vstv %s1996
    %v1998 = vmul.f32 %v1997, %v1970
    %v1999 = vmul.f32 %v1997, %v1971
    %v2002 = vrot.slane %v1998, 1
    %v2003 = vrot.slane %v1999, 1
    %v2006 = vadd.f32 %v1976, %v2002
    %v2007 = vadd.f32 %v1977, %v2003
    %s2008 = sld [smem:[#allocation9 + $0xbe]]
    %v2009 = vstv %s2008
    %v2010 = vmul.f32 %v2009, %v1970
    %v2011 = vmul.f32 %v2009, %v1971
    %v2014 = vrot.slane %v2010, 1
    %v2015 = vrot.slane %v2011, 1
    %v2018 = vadd.f32 %v1982, %v2014
    %v2019 = vadd.f32 %v1983, %v2015
    %s2020 = sld [smem:[#allocation9 + $0xe2]]
    %v2021 = vstv %s2020
    %v2022 = vmul.f32 %v2021, %v1970
    %v2023 = vmul.f32 %v2021, %v1971
    %v2026 = vrot.slane %v2022, 1
    %v2027 = vrot.slane %v2023, 1
    %v2030 = vadd.f32 %v1988, %v2026
    %v2031 = vadd.f32 %v1989, %v2027
    %s2032 = sld [smem:[#allocation9 + $0x106]]
    %v2033 = vstv %s2032
    %v2034 = vmul.f32 %v2033, %v1970
    %v2035 = vmul.f32 %v2033, %v1971
    %v2038 = vrot.slane %v2034, 1
    %v2039 = vrot.slane %v2035, 1
    %v2042 = vadd.f32 %v1994, %v2038
    %v2043 = vadd.f32 %v1995, %v2039
    %s2044 = sld [smem:[#allocation9 + $0xa3]]
    %v2045 = vstv %s2044
    %v2046 = vmul.f32 %v2045, %v1970
    %v2047 = vmul.f32 %v2045, %v1971
    %v2050 = vrot.slane %v2046, 2
    %v2051 = vrot.slane %v2047, 2
    %v2054 = vadd.f32 %v2006, %v2050
    %v2055 = vadd.f32 %v2007, %v2051
    %s2056 = sld [smem:[#allocation9 + $0xc7]]
    %v2057 = vstv %s2056
    %v2058 = vmul.f32 %v2057, %v1970
    %v2059 = vmul.f32 %v2057, %v1971
    %v2062 = vrot.slane %v2058, 2
    %v2063 = vrot.slane %v2059, 2
    %v2066 = vadd.f32 %v2018, %v2062
    %v2067 = vadd.f32 %v2019, %v2063
    %s2068 = sld [smem:[#allocation9 + $0xeb]]
    %v2069 = vstv %s2068
    %v2070 = vmul.f32 %v2069, %v1970
    %v2071 = vmul.f32 %v2069, %v1971
    %v2074 = vrot.slane %v2070, 2
    %v2075 = vrot.slane %v2071, 2
    %v2078 = vadd.f32 %v2030, %v2074
    %v2079 = vadd.f32 %v2031, %v2075
    %s2080 = sld [smem:[#allocation9 + $0x10f]]
    %v2081 = vstv %s2080
    %v2082 = vmul.f32 %v2081, %v1970
    %v2083 = vmul.f32 %v2081, %v1971
    %v2086 = vrot.slane %v2082, 2
    %v2087 = vrot.slane %v2083, 2
    %v2090 = vadd.f32 %v2042, %v2086
    %v2091 = vadd.f32 %v2043, %v2087
    %s2092 = sld [smem:[#allocation9 + $0xac]]
    %v2093 = vstv %s2092
    %v2094 = vmul.f32 %v2093, %v1970
    %v2095 = vmul.f32 %v2093, %v1971
    %v2098 = vrot.slane %v2094, 3
    %v2099 = vrot.slane %v2095, 3
    %v2102 = vadd.f32 %v2054, %v2098
    %v2103 = vadd.f32 %v2055, %v2099
    %s2104 = sld [smem:[#allocation9 + $0xd0]]
    %v2105 = vstv %s2104
    %v2106 = vmul.f32 %v2105, %v1970
    %v2107 = vmul.f32 %v2105, %v1971
    %v2110 = vrot.slane %v2106, 3
    %v2111 = vrot.slane %v2107, 3
    %v2114 = vadd.f32 %v2066, %v2110
    %v2115 = vadd.f32 %v2067, %v2111
    %s2116 = sld [smem:[#allocation9 + $0xf4]]
    %v2117 = vstv %s2116
    %v2118 = vmul.f32 %v2117, %v1970
    %v2119 = vmul.f32 %v2117, %v1971
    %v2122 = vrot.slane %v2118, 3
    %v2123 = vrot.slane %v2119, 3
    %v2126 = vadd.f32 %v2078, %v2122
    %v2127 = vadd.f32 %v2079, %v2123
    %s2128 = sld [smem:[#allocation9 + $0x118]]
    %v2129 = vstv %s2128
    %v2130 = vmul.f32 %v2129, %v1970
    %v2131 = vmul.f32 %v2129, %v1971
    %v2134 = vrot.slane %v2130, 3
    %v2135 = vrot.slane %v2131, 3
    %v2138 = vadd.f32 %v2090, %v2134
    %v2139 = vadd.f32 %v2091, %v2135
    %2140 = vrot.lane.b32.xlu0 %v1773, 30
    %v2141 = vpop.permute.xlu0 %2140
    %2142 = vrot.lane.b32.xlu0 %v1774, 30
    %v2143 = vpop.permute.xlu0 %2142
    %vm2144 = vcmp.lt.s32.totalorder %v79, 30
    %v2145 = vsel %vm2144, %v2141, %v2143
    %v2146 = vsel %vm2144, %v2143, %v2141
    %vm2147 = vcmp.lt.s32.totalorder %v71, 14
    %v2148 = vsel %vm2147, 1, 0
    %v2149 = vrot.slane %v2148, 7
    %v2150 = vrot.slane %v2149, 2
    %vm2151 = vcmp.ne.s32.totalorder %v2150, 0
    %vm2152 = vmand %vm1782, %vm2151
    %v2153 = vsel %vm2152, 1, 0
    %v2154 = vperm.slane %v2153, 0
    %v2155 = vperm.slane %v2153, 2
    %v2156 = vperm.slane %v2154, 0
    %v2157 = vperm.slane %v2155, 0
    %vm2158 = vcmp.eq.s32.totalorder %v2156, 1
    %vm2159 = vcmp.eq.s32.totalorder %v2157, 1
    %v2160 = vsel %vm2158, %v2146, 0.0
    %v2161 = vsel %vm2159, %v2145, 0.0
    %s2162 = sld [smem:[#allocation9 + $0x92]]
    %v2163 = vstv %s2162
    %v2164 = vmul.f32 %v2163, %v2160
    %v2165 = vmul.f32 %v2163, %v2161
    %v2166 = vadd.f32 %v2102, %v2164
    %v2167 = vadd.f32 %v2103, %v2165
    %s2168 = sld [smem:[#allocation9 + $0xb6]]
    %v2169 = vstv %s2168
    %v2170 = vmul.f32 %v2169, %v2160
    %v2171 = vmul.f32 %v2169, %v2161
    %v2172 = vadd.f32 %v2114, %v2170
    %v2173 = vadd.f32 %v2115, %v2171
    %s2174 = sld [smem:[#allocation9 + $0xda]]
    %v2175 = vstv %s2174
    %v2176 = vmul.f32 %v2175, %v2160
    %v2177 = vmul.f32 %v2175, %v2161
    %v2178 = vadd.f32 %v2126, %v2176
    %v2179 = vadd.f32 %v2127, %v2177
    %s2180 = sld [smem:[#allocation9 + $0xfe]]
    %v2181 = vstv %s2180
    %v2182 = vmul.f32 %v2181, %v2160
    %v2183 = vmul.f32 %v2181, %v2161
    %v2184 = vadd.f32 %v2138, %v2182
    %v2185 = vadd.f32 %v2139, %v2183
    %s2186 = sld [smem:[#allocation9 + $0x9b]]
    %v2187 = vstv %s2186
    %v2188 = vmul.f32 %v2187, %v2160
    %v2189 = vmul.f32 %v2187, %v2161
    %v2192 = vrot.slane %v2188, 1
    %v2193 = vrot.slane %v2189, 1
    %v2196 = vadd.f32 %v2166, %v2192
    %v2197 = vadd.f32 %v2167, %v2193
    %s2198 = sld [smem:[#allocation9 + $0xbf]]
    %v2199 = vstv %s2198
    %v2200 = vmul.f32 %v2199, %v2160
    %v2201 = vmul.f32 %v2199, %v2161
    %v2204 = vrot.slane %v2200, 1
    %v2205 = vrot.slane %v2201, 1
    %v2208 = vadd.f32 %v2172, %v2204
    %v2209 = vadd.f32 %v2173, %v2205
    %s2210 = sld [smem:[#allocation9 + $0xe3]]
    %v2211 = vstv %s2210
    %v2212 = vmul.f32 %v2211, %v2160
    %v2213 = vmul.f32 %v2211, %v2161
    %v2216 = vrot.slane %v2212, 1
    %v2217 = vrot.slane %v2213, 1
    %v2220 = vadd.f32 %v2178, %v2216
    %v2221 = vadd.f32 %v2179, %v2217
    %s2222 = sld [smem:[#allocation9 + $0x107]]
    %v2223 = vstv %s2222
    %v2224 = vmul.f32 %v2223, %v2160
    %v2225 = vmul.f32 %v2223, %v2161
    %v2228 = vrot.slane %v2224, 1
    %v2229 = vrot.slane %v2225, 1
    %v2232 = vadd.f32 %v2184, %v2228
    %v2233 = vadd.f32 %v2185, %v2229
    %s2234 = sld [smem:[#allocation9 + $0xa4]]
    %v2235 = vstv %s2234
    %v2236 = vmul.f32 %v2235, %v2160
    %v2237 = vmul.f32 %v2235, %v2161
    %v2240 = vrot.slane %v2236, 2
    %v2241 = vrot.slane %v2237, 2
    %v2244 = vadd.f32 %v2196, %v2240
    %v2245 = vadd.f32 %v2197, %v2241
    %s2246 = sld [smem:[#allocation9 + $0xc8]]
    %v2247 = vstv %s2246
    %v2248 = vmul.f32 %v2247, %v2160
    %v2249 = vmul.f32 %v2247, %v2161
    %v2252 = vrot.slane %v2248, 2
    %v2253 = vrot.slane %v2249, 2
    %v2256 = vadd.f32 %v2208, %v2252
    %v2257 = vadd.f32 %v2209, %v2253
    %s2258 = sld [smem:[#allocation9 + $0xec]]
    %v2259 = vstv %s2258
    %v2260 = vmul.f32 %v2259, %v2160
    %v2261 = vmul.f32 %v2259, %v2161
    %v2264 = vrot.slane %v2260, 2
    %v2265 = vrot.slane %v2261, 2
    %v2268 = vadd.f32 %v2220, %v2264
    %v2269 = vadd.f32 %v2221, %v2265
    %s2270 = sld [smem:[#allocation9 + $0x110]]
    %v2271 = vstv %s2270
    %v2272 = vmul.f32 %v2271, %v2160
    %v2273 = vmul.f32 %v2271, %v2161
    %v2276 = vrot.slane %v2272, 2
    %v2277 = vrot.slane %v2273, 2
    %v2280 = vadd.f32 %v2232, %v2276
    %v2281 = vadd.f32 %v2233, %v2277
    %s2282 = sld [smem:[#allocation9 + $0xad]]
    %v2283 = vstv %s2282
    %v2284 = vmul.f32 %v2283, %v2160
    %v2285 = vmul.f32 %v2283, %v2161
    %v2288 = vrot.slane %v2284, 3
    %v2289 = vrot.slane %v2285, 3
    %v2292 = vadd.f32 %v2244, %v2288
    %v2293 = vadd.f32 %v2245, %v2289
    %s2294 = sld [smem:[#allocation9 + $0xd1]]
    %v2295 = vstv %s2294
    %v2296 = vmul.f32 %v2295, %v2160
    %v2297 = vmul.f32 %v2295, %v2161
    %v2300 = vrot.slane %v2296, 3
    %v2301 = vrot.slane %v2297, 3
    %v2304 = vadd.f32 %v2256, %v2300
    %v2305 = vadd.f32 %v2257, %v2301
    %s2306 = sld [smem:[#allocation9 + $0xf5]]
    %v2307 = vstv %s2306
    %v2308 = vmul.f32 %v2307, %v2160
    %v2309 = vmul.f32 %v2307, %v2161
    %v2312 = vrot.slane %v2308, 3
    %v2313 = vrot.slane %v2309, 3
    %v2316 = vadd.f32 %v2268, %v2312
    %v2317 = vadd.f32 %v2269, %v2313
    %s2318 = sld [smem:[#allocation9 + $0x119]]
    %v2319 = vstv %s2318
    %v2320 = vmul.f32 %v2319, %v2160
    %v2321 = vmul.f32 %v2319, %v2161
    %v2324 = vrot.slane %v2320, 3
    %v2325 = vrot.slane %v2321, 3
    %v2328 = vadd.f32 %v2280, %v2324
    %v2329 = vadd.f32 %v2281, %v2325
    %2330 = vrot.lane.b32.xlu0 %v1773, 2
    %v2331 = vpop.permute.xlu0 %2330
    %2332 = vrot.lane.b32.xlu0 %v1774, 2
    %v2333 = vpop.permute.xlu0 %2332
    %vm2334 = vcmp.lt.s32.totalorder %v79, 2
    %v2335 = vsel %vm2334, %v2331, %v2333
    %v2336 = vsel %vm2334, %v2333, %v2331
    %v2337 = vperm.slane %v1783, 1
    %v2338 = vperm.slane %v1783, 3
    %v2339 = vperm.slane %v2337, 1
    %v2340 = vperm.slane %v2338, 1
    %vm2341 = vcmp.eq.s32.totalorder %v2339, 1
    %vm2342 = vcmp.eq.s32.totalorder %v2340, 1
    %v2343 = vsel %vm2341, %v2336, 0.0
    %v2344 = vsel %vm2342, %v2335, 0.0
    %s2345 = sld [smem:[#allocation9 + $0x93]]
    %v2346 = vstv %s2345
    %v2347 = vmul.f32 %v2346, %v2343
    %v2348 = vmul.f32 %v2346, %v2344
    %v2349 = vadd.f32 %v2292, %v2347
    %v2350 = vadd.f32 %v2293, %v2348
    %s2351 = sld [smem:[#allocation9 + $0xb7]]
    %v2352 = vstv %s2351
    %v2353 = vmul.f32 %v2352, %v2343
    %v2354 = vmul.f32 %v2352, %v2344
    %v2355 = vadd.f32 %v2304, %v2353
    %v2356 = vadd.f32 %v2305, %v2354
    %s2357 = sld [smem:[#allocation9 + $0xdb]]
    %v2358 = vstv %s2357
    %v2359 = vmul.f32 %v2358, %v2343
    %v2360 = vmul.f32 %v2358, %v2344
    %v2361 = vadd.f32 %v2316, %v2359
    %v2362 = vadd.f32 %v2317, %v2360
    %s2363 = sld [smem:[#allocation9 + $0xff]]
    %v2364 = vstv %s2363
    %v2365 = vmul.f32 %v2364, %v2343
    %v2366 = vmul.f32 %v2364, %v2344
    %v2367 = vadd.f32 %v2328, %v2365
    %v2368 = vadd.f32 %v2329, %v2366
    %s2369 = sld [smem:[#allocation9 + $0x9c]]
    %v2370 = vstv %s2369
    %v2371 = vmul.f32 %v2370, %v2343
    %v2372 = vmul.f32 %v2370, %v2344
    %v2375 = vrot.slane %v2371, 1
    %v2376 = vrot.slane %v2372, 1
    %v2379 = vadd.f32 %v2349, %v2375
    %v2380 = vadd.f32 %v2350, %v2376
    %s2381 = sld [smem:[#allocation9 + $0xc0]]
    %v2382 = vstv %s2381
    %v2383 = vmul.f32 %v2382, %v2343
    %v2384 = vmul.f32 %v2382, %v2344
    %v2387 = vrot.slane %v2383, 1
    %v2388 = vrot.slane %v2384, 1
    %v2391 = vadd.f32 %v2355, %v2387
    %v2392 = vadd.f32 %v2356, %v2388
    %s2393 = sld [smem:[#allocation9 + $0xe4]]
    %v2394 = vstv %s2393
    %v2395 = vmul.f32 %v2394, %v2343
    %v2396 = vmul.f32 %v2394, %v2344
    %v2399 = vrot.slane %v2395, 1
    %v2400 = vrot.slane %v2396, 1
    %v2403 = vadd.f32 %v2361, %v2399
    %v2404 = vadd.f32 %v2362, %v2400
    %s2405 = sld [smem:[#allocation9 + $0x108]]
    %v2406 = vstv %s2405
    %v2407 = vmul.f32 %v2406, %v2343
    %v2408 = vmul.f32 %v2406, %v2344
    %v2411 = vrot.slane %v2407, 1
    %v2412 = vrot.slane %v2408, 1
    %v2415 = vadd.f32 %v2367, %v2411
    %v2416 = vadd.f32 %v2368, %v2412
    %s2417 = sld [smem:[#allocation9 + $0xa5]]
    %v2418 = vstv %s2417
    %v2419 = vmul.f32 %v2418, %v2343
    %v2420 = vmul.f32 %v2418, %v2344
    %v2423 = vrot.slane %v2419, 2
    %v2424 = vrot.slane %v2420, 2
    %v2427 = vadd.f32 %v2379, %v2423
    %v2428 = vadd.f32 %v2380, %v2424
    %s2429 = sld [smem:[#allocation9 + $0xc9]]
    %v2430 = vstv %s2429
    %v2431 = vmul.f32 %v2430, %v2343
    %v2432 = vmul.f32 %v2430, %v2344
    %v2435 = vrot.slane %v2431, 2
    %v2436 = vrot.slane %v2432, 2
    %v2439 = vadd.f32 %v2391, %v2435
    %v2440 = vadd.f32 %v2392, %v2436
    %s2441 = sld [smem:[#allocation9 + $0xed]]
    %v2442 = vstv %s2441
    %v2443 = vmul.f32 %v2442, %v2343
    %v2444 = vmul.f32 %v2442, %v2344
    %v2447 = vrot.slane %v2443, 2
    %v2448 = vrot.slane %v2444, 2
    %v2451 = vadd.f32 %v2403, %v2447
    %v2452 = vadd.f32 %v2404, %v2448
    %s2453 = sld [smem:[#allocation9 + $0x111]]
    %v2454 = vstv %s2453
    %v2455 = vmul.f32 %v2454, %v2343
    %v2456 = vmul.f32 %v2454, %v2344
    %v2459 = vrot.slane %v2455, 2
    %v2460 = vrot.slane %v2456, 2
    %v2463 = vadd.f32 %v2415, %v2459
    %v2464 = vadd.f32 %v2416, %v2460
    %s2465 = sld [smem:[#allocation9 + $0xae]]
    %v2466 = vstv %s2465
    %v2467 = vmul.f32 %v2466, %v2343
    %v2468 = vmul.f32 %v2466, %v2344
    %v2471 = vrot.slane %v2467, 3
    %v2472 = vrot.slane %v2468, 3
    %v2475 = vadd.f32 %v2427, %v2471
    %v2476 = vadd.f32 %v2428, %v2472
    %s2477 = sld [smem:[#allocation9 + $0xd2]]
    %v2478 = vstv %s2477
    %v2479 = vmul.f32 %v2478, %v2343
    %v2480 = vmul.f32 %v2478, %v2344
    %v2483 = vrot.slane %v2479, 3
    %v2484 = vrot.slane %v2480, 3
    %v2487 = vadd.f32 %v2439, %v2483
    %v2488 = vadd.f32 %v2440, %v2484
    %s2489 = sld [smem:[#allocation9 + $0xf6]]
    %v2490 = vstv %s2489
    %v2491 = vmul.f32 %v2490, %v2343
    %v2492 = vmul.f32 %v2490, %v2344
    %v2495 = vrot.slane %v2491, 3
    %v2496 = vrot.slane %v2492, 3
    %v2499 = vadd.f32 %v2451, %v2495
    %v2500 = vadd.f32 %v2452, %v2496
    %s2501 = sld [smem:[#allocation9 + $0x11a]]
    %v2502 = vstv %s2501
    %v2503 = vmul.f32 %v2502, %v2343
    %v2504 = vmul.f32 %v2502, %v2344
    %v2507 = vrot.slane %v2503, 3
    %v2508 = vrot.slane %v2504, 3
    %v2511 = vadd.f32 %v2463, %v2507
    %v2512 = vadd.f32 %v2464, %v2508
    %s2513 = sld [smem:[#allocation9 + $0x94]]
    %v2514 = vstv %s2513
    %v2515 = vmul.f32 %v2514, %v1773
    %v2516 = vmul.f32 %v2514, %v1774
    %v2517 = vadd.f32 %v2475, %v2515
    %v2518 = vadd.f32 %v2476, %v2516
    %s2519 = sld [smem:[#allocation9 + $0xb8]]
    %v2520 = vstv %s2519
    %v2521 = vmul.f32 %v2520, %v1773
    %v2522 = vmul.f32 %v2520, %v1774
    %v2523 = vadd.f32 %v2487, %v2521
    %v2524 = vadd.f32 %v2488, %v2522
    %s2525 = sld [smem:[#allocation9 + $0xdc]]
    %v2526 = vstv %s2525
    %v2527 = vmul.f32 %v2526, %v1773
    %v2528 = vmul.f32 %v2526, %v1774
    %v2529 = vadd.f32 %v2499, %v2527
    %v2530 = vadd.f32 %v2500, %v2528
    %s2531 = sld [smem:[#allocation9 + $0x100]]
    %v2532 = vstv %s2531
    %v2533 = vmul.f32 %v2532, %v1773
    %v2534 = vmul.f32 %v2532, %v1774
    %v2535 = vadd.f32 %v2511, %v2533
    %v2536 = vadd.f32 %v2512, %v2534
    %s2537 = sld [smem:[#allocation9 + $0x9d]]
    %v2538 = vstv %s2537
    %v2539 = vmul.f32 %v2538, %v1773
    %v2540 = vmul.f32 %v2538, %v1774
    %v2543 = vrot.slane %v2539, 1
    %v2544 = vrot.slane %v2540, 1
    %v2547 = vadd.f32 %v2517, %v2543
    %v2548 = vadd.f32 %v2518, %v2544
    %s2549 = sld [smem:[#allocation9 + $0xc1]]
    %v2550 = vstv %s2549
    %v2551 = vmul.f32 %v2550, %v1773
    %v2552 = vmul.f32 %v2550, %v1774
    %v2555 = vrot.slane %v2551, 1
    %v2556 = vrot.slane %v2552, 1
    %v2559 = vadd.f32 %v2523, %v2555
    %v2560 = vadd.f32 %v2524, %v2556
    %s2561 = sld [smem:[#allocation9 + $0xe5]]
    %v2562 = vstv %s2561
    %v2563 = vmul.f32 %v2562, %v1773
    %v2564 = vmul.f32 %v2562, %v1774
    %v2567 = vrot.slane %v2563, 1
    %v2568 = vrot.slane %v2564, 1
    %v2571 = vadd.f32 %v2529, %v2567
    %v2572 = vadd.f32 %v2530, %v2568
    %s2573 = sld [smem:[#allocation9 + $0x109]]
    %v2574 = vstv %s2573
    %v2575 = vmul.f32 %v2574, %v1773
    %v2576 = vmul.f32 %v2574, %v1774
    %v2579 = vrot.slane %v2575, 1
    %v2580 = vrot.slane %v2576, 1
    %v2583 = vadd.f32 %v2535, %v2579
    %v2584 = vadd.f32 %v2536, %v2580
    %s2585 = sld [smem:[#allocation9 + $0xa6]]
    %v2586 = vstv %s2585
    %v2587 = vmul.f32 %v2586, %v1773
    %v2588 = vmul.f32 %v2586, %v1774
    %v2591 = vrot.slane %v2587, 2
    %v2592 = vrot.slane %v2588, 2
    %v2595 = vadd.f32 %v2547, %v2591
    %v2596 = vadd.f32 %v2548, %v2592
    %s2597 = sld [smem:[#allocation9 + $0xca]]
    %v2598 = vstv %s2597
    %v2599 = vmul.f32 %v2598, %v1773
    %v2600 = vmul.f32 %v2598, %v1774
    %v2603 = vrot.slane %v2599, 2
    %v2604 = vrot.slane %v2600, 2
    %v2607 = vadd.f32 %v2559, %v2603
    %v2608 = vadd.f32 %v2560, %v2604
    %s2609 = sld [smem:[#allocation9 + $0xee]]
    %v2610 = vstv %s2609
    %v2611 = vmul.f32 %v2610, %v1773
    %v2612 = vmul.f32 %v2610, %v1774
    %v2615 = vrot.slane %v2611, 2
    %v2616 = vrot.slane %v2612, 2
    %v2619 = vadd.f32 %v2571, %v2615
    %v2620 = vadd.f32 %v2572, %v2616
    %s2621 = sld [smem:[#allocation9 + $0x112]]
    %v2622 = vstv %s2621
    %v2623 = vmul.f32 %v2622, %v1773
    %v2624 = vmul.f32 %v2622, %v1774
    %v2627 = vrot.slane %v2623, 2
    %v2628 = vrot.slane %v2624, 2
    %v2631 = vadd.f32 %v2583, %v2627
    %v2632 = vadd.f32 %v2584, %v2628
    %s2633 = sld [smem:[#allocation9 + $0xaf]]
    %v2634 = vstv %s2633
    %v2635 = vmul.f32 %v2634, %v1773
    %v2636 = vmul.f32 %v2634, %v1774
    %v2639 = vrot.slane %v2635, 3
    %v2640 = vrot.slane %v2636, 3
    %v2643 = vadd.f32 %v2595, %v2639
    %v2644 = vadd.f32 %v2596, %v2640
    %s2645 = sld [smem:[#allocation9 + $0xd3]]
    %v2646 = vstv %s2645
    %v2647 = vmul.f32 %v2646, %v1773
    %v2648 = vmul.f32 %v2646, %v1774
    %v2651 = vrot.slane %v2647, 3
    %v2652 = vrot.slane %v2648, 3
    %v2655 = vadd.f32 %v2607, %v2651
    %v2656 = vadd.f32 %v2608, %v2652
    %s2657 = sld [smem:[#allocation9 + $0xf7]]
    %v2658 = vstv %s2657
    %v2659 = vmul.f32 %v2658, %v1773
    %v2660 = vmul.f32 %v2658, %v1774
    %v2663 = vrot.slane %v2659, 3
    %v2664 = vrot.slane %v2660, 3
    %v2667 = vadd.f32 %v2619, %v2663
    %v2668 = vadd.f32 %v2620, %v2664
    %s2669 = sld [smem:[#allocation9 + $0x11b]]
    %v2670 = vstv %s2669
    %v2671 = vmul.f32 %v2670, %v1773
    %v2672 = vmul.f32 %v2670, %v1774
    %v2675 = vrot.slane %v2671, 3
    %v2676 = vrot.slane %v2672, 3
    %v2679 = vadd.f32 %v2631, %v2675
    %v2680 = vadd.f32 %v2632, %v2676
    %2681 = vrot.lane.b32.xlu0 %v1773, 126
    %v2682 = vpop.permute.xlu0 %2681
    %2683 = vrot.lane.b32.xlu0 %v1774, 126
    %v2684 = vpop.permute.xlu0 %2683
    %vm2685 = vcmp.lt.s32.totalorder %v79, 126
    %v2686 = vsel %vm2685, %v2682, %v2684
    %v2687 = vsel %vm2685, %v2684, %v2682
    %v2688 = vperm.slane %v2148, 1
    %v2689 = vperm.slane %v2148, 3
    %v2690 = vperm.slane %v2688, 1
    %v2691 = vperm.slane %v2689, 1
    %vm2692 = vcmp.eq.s32.totalorder %v2690, 1
    %vm2693 = vcmp.eq.s32.totalorder %v2691, 1
    %v2694 = vsel %vm2692, %v2686, 0.0
    %v2695 = vsel %vm2693, %v2687, 0.0
    %s2696 = sld [smem:[#allocation9 + $0x95]]
    %v2697 = vstv %s2696
    %v2698 = vmul.f32 %v2697, %v2694
    %v2699 = vmul.f32 %v2697, %v2695
    %v2700 = vadd.f32 %v2643, %v2698
    %v2701 = vadd.f32 %v2644, %v2699
    %s2702 = sld [smem:[#allocation9 + $0xb9]]
    %v2703 = vstv %s2702
    %v2704 = vmul.f32 %v2703, %v2694
    %v2705 = vmul.f32 %v2703, %v2695
    %v2706 = vadd.f32 %v2655, %v2704
    %v2707 = vadd.f32 %v2656, %v2705
    %s2708 = sld [smem:[#allocation9 + $0xdd]]
    %v2709 = vstv %s2708
    %v2710 = vmul.f32 %v2709, %v2694
    %v2711 = vmul.f32 %v2709, %v2695
    %v2712 = vadd.f32 %v2667, %v2710
    %v2713 = vadd.f32 %v2668, %v2711
    %s2714 = sld [smem:[#allocation9 + $0x101]]
    %v2715 = vstv %s2714
    %v2716 = vmul.f32 %v2715, %v2694
    %v2717 = vmul.f32 %v2715, %v2695
    %v2718 = vadd.f32 %v2679, %v2716
    %v2719 = vadd.f32 %v2680, %v2717
    %s2720 = sld [smem:[#allocation9 + $0x9e]]
    %v2721 = vstv %s2720
    %v2722 = vmul.f32 %v2721, %v2694
    %v2723 = vmul.f32 %v2721, %v2695
    %v2726 = vrot.slane %v2722, 1
    %v2727 = vrot.slane %v2723, 1
    %v2730 = vadd.f32 %v2700, %v2726
    %v2731 = vadd.f32 %v2701, %v2727
    %s2732 = sld [smem:[#allocation9 + $0xc2]]
    %v2733 = vstv %s2732
    %v2734 = vmul.f32 %v2733, %v2694
    %v2735 = vmul.f32 %v2733, %v2695
    %v2738 = vrot.slane %v2734, 1
    %v2739 = vrot.slane %v2735, 1
    %v2742 = vadd.f32 %v2706, %v2738
    %v2743 = vadd.f32 %v2707, %v2739
    %s2744 = sld [smem:[#allocation9 + $0xe6]]
    %v2745 = vstv %s2744
    %v2746 = vmul.f32 %v2745, %v2694
    %v2747 = vmul.f32 %v2745, %v2695
    %v2750 = vrot.slane %v2746, 1
    %v2751 = vrot.slane %v2747, 1
    %v2754 = vadd.f32 %v2712, %v2750
    %v2755 = vadd.f32 %v2713, %v2751
    %s2756 = sld [smem:[#allocation9 + $0x10a]]
    %v2757 = vstv %s2756
    %v2758 = vmul.f32 %v2757, %v2694
    %v2759 = vmul.f32 %v2757, %v2695
    %v2762 = vrot.slane %v2758, 1
    %v2763 = vrot.slane %v2759, 1
    %v2766 = vadd.f32 %v2718, %v2762
    %v2767 = vadd.f32 %v2719, %v2763
    %s2768 = sld [smem:[#allocation9 + $0xa7]]
    %v2769 = vstv %s2768
    %v2770 = vmul.f32 %v2769, %v2694
    %v2771 = vmul.f32 %v2769, %v2695
    %v2774 = vrot.slane %v2770, 2
    %v2775 = vrot.slane %v2771, 2
    %v2778 = vadd.f32 %v2730, %v2774
    %v2779 = vadd.f32 %v2731, %v2775
    %s2780 = sld [smem:[#allocation9 + $0xcb]]
    %v2781 = vstv %s2780
    %v2782 = vmul.f32 %v2781, %v2694
    %v2783 = vmul.f32 %v2781, %v2695
    %v2786 = vrot.slane %v2782, 2
    %v2787 = vrot.slane %v2783, 2
    %v2790 = vadd.f32 %v2742, %v2786
    %v2791 = vadd.f32 %v2743, %v2787
    %s2792 = sld [smem:[#allocation9 + $0xef]]
    %v2793 = vstv %s2792
    %v2794 = vmul.f32 %v2793, %v2694
    %v2795 = vmul.f32 %v2793, %v2695
    %v2798 = vrot.slane %v2794, 2
    %v2799 = vrot.slane %v2795, 2
    %v2802 = vadd.f32 %v2754, %v2798
    %v2803 = vadd.f32 %v2755, %v2799
    %s2804 = sld [smem:[#allocation9 + $0x113]]
    %v2805 = vstv %s2804
    %v2806 = vmul.f32 %v2805, %v2694
    %v2807 = vmul.f32 %v2805, %v2695
    %v2810 = vrot.slane %v2806, 2
    %v2811 = vrot.slane %v2807, 2
    %v2814 = vadd.f32 %v2766, %v2810
    %v2815 = vadd.f32 %v2767, %v2811
    %s2816 = sld [smem:[#allocation9 + $0xb0]]
    %v2817 = vstv %s2816
    %v2818 = vmul.f32 %v2817, %v2694
    %v2819 = vmul.f32 %v2817, %v2695
    %v2822 = vrot.slane %v2818, 3
    %v2823 = vrot.slane %v2819, 3
    %v2826 = vadd.f32 %v2778, %v2822
    %v2827 = vadd.f32 %v2779, %v2823
    %s2828 = sld [smem:[#allocation9 + $0xd4]]
    %v2829 = vstv %s2828
    %v2830 = vmul.f32 %v2829, %v2694
    %v2831 = vmul.f32 %v2829, %v2695
    %v2834 = vrot.slane %v2830, 3
    %v2835 = vrot.slane %v2831, 3
    %v2838 = vadd.f32 %v2790, %v2834
    %v2839 = vadd.f32 %v2791, %v2835
    %s2840 = sld [smem:[#allocation9 + $0xf8]]
    %v2841 = vstv %s2840
    %v2842 = vmul.f32 %v2841, %v2694
    %v2843 = vmul.f32 %v2841, %v2695
    %v2846 = vrot.slane %v2842, 3
    %v2847 = vrot.slane %v2843, 3
    %v2850 = vadd.f32 %v2802, %v2846
    %v2851 = vadd.f32 %v2803, %v2847
    %s2852 = sld [smem:[#allocation9 + $0x11c]]
    %v2853 = vstv %s2852
    %v2854 = vmul.f32 %v2853, %v2694
    %v2855 = vmul.f32 %v2853, %v2695
    %v2858 = vrot.slane %v2854, 3
    %v2859 = vrot.slane %v2855, 3
    %v2862 = vadd.f32 %v2814, %v2858
    %v2863 = vadd.f32 %v2815, %v2859
    %2864 = vrot.lane.b32.xlu0 %v1773, 98
    %v2865 = vpop.permute.xlu0 %2864
    %2866 = vrot.lane.b32.xlu0 %v1774, 98
    %v2867 = vpop.permute.xlu0 %2866
    %vm2868 = vcmp.lt.s32.totalorder %v79, 98
    %v2869 = vsel %vm2868, %v2865, %v2867
    %v2870 = vsel %vm2868, %v2867, %v2865
    %vm2871 = vmand %vm2147, %vm1786
    %v2872 = vsel %vm2871, 1, 0
    %v2873 = vperm.slane %v2872, 0
    %v2874 = vperm.slane %v2872, 2
    %v2875 = vperm.slane %v2873, 0
    %v2876 = vperm.slane %v2874, 0
    %vm2877 = vcmp.eq.s32.totalorder %v2875, 1
    %vm2878 = vcmp.eq.s32.totalorder %v2876, 1
    %v2879 = vsel %vm2877, %v2869, 0.0
    %v2880 = vsel %vm2878, %v2870, 0.0
    %s2881 = sld [smem:[#allocation9 + $0x96]]
    %v2882 = vstv %s2881
    %v2883 = vmul.f32 %v2882, %v2879
    %v2884 = vmul.f32 %v2882, %v2880
    %v2885 = vadd.f32 %v2826, %v2883
    %v2886 = vadd.f32 %v2827, %v2884
    %s2887 = sld [smem:[#allocation9 + $0xba]]
    %v2888 = vstv %s2887
    %v2889 = vmul.f32 %v2888, %v2879
    %v2890 = vmul.f32 %v2888, %v2880
    %v2891 = vadd.f32 %v2838, %v2889
    %v2892 = vadd.f32 %v2839, %v2890
    %s2893 = sld [smem:[#allocation9 + $0xde]]
    %v2894 = vstv %s2893
    %v2895 = vmul.f32 %v2894, %v2879
    %v2896 = vmul.f32 %v2894, %v2880
    %v2897 = vadd.f32 %v2850, %v2895
    %v2898 = vadd.f32 %v2851, %v2896
    %s2899 = sld [smem:[#allocation9 + $0x102]]
    %v2900 = vstv %s2899
    %v2901 = vmul.f32 %v2900, %v2879
    %v2902 = vmul.f32 %v2900, %v2880
    %v2903 = vadd.f32 %v2862, %v2901
    %v2904 = vadd.f32 %v2863, %v2902
    %s2905 = sld [smem:[#allocation9 + $0x9f]]
    %v2906 = vstv %s2905
    %v2907 = vmul.f32 %v2906, %v2879
    %v2908 = vmul.f32 %v2906, %v2880
    %v2911 = vrot.slane %v2907, 1
    %v2912 = vrot.slane %v2908, 1
    %v2915 = vadd.f32 %v2885, %v2911
    %v2916 = vadd.f32 %v2886, %v2912
    %s2917 = sld [smem:[#allocation9 + $0xc3]]
    %v2918 = vstv %s2917
    %v2919 = vmul.f32 %v2918, %v2879
    %v2920 = vmul.f32 %v2918, %v2880
    %v2923 = vrot.slane %v2919, 1
    %v2924 = vrot.slane %v2920, 1
    %v2927 = vadd.f32 %v2891, %v2923
    %v2928 = vadd.f32 %v2892, %v2924
    %s2929 = sld [smem:[#allocation9 + $0xe7]]
    %v2930 = vstv %s2929
    %v2931 = vmul.f32 %v2930, %v2879
    %v2932 = vmul.f32 %v2930, %v2880
    %v2935 = vrot.slane %v2931, 1
    %v2936 = vrot.slane %v2932, 1
    %v2939 = vadd.f32 %v2897, %v2935
    %v2940 = vadd.f32 %v2898, %v2936
    %s2941 = sld [smem:[#allocation9 + $0x10b]]
    %v2942 = vstv %s2941
    %v2943 = vmul.f32 %v2942, %v2879
    %v2944 = vmul.f32 %v2942, %v2880
    %v2947 = vrot.slane %v2943, 1
    %v2948 = vrot.slane %v2944, 1
    %v2951 = vadd.f32 %v2903, %v2947
    %v2952 = vadd.f32 %v2904, %v2948
    %s2953 = sld [smem:[#allocation9 + $0xa8]]
    %v2954 = vstv %s2953
    %v2955 = vmul.f32 %v2954, %v2879
    %v2956 = vmul.f32 %v2954, %v2880
    %v2959 = vrot.slane %v2955, 2
    %v2960 = vrot.slane %v2956, 2
    %v2963 = vadd.f32 %v2915, %v2959
    %v2964 = vadd.f32 %v2916, %v2960
    %s2965 = sld [smem:[#allocation9 + $0xcc]]
    %v2966 = vstv %s2965
    %v2967 = vmul.f32 %v2966, %v2879
    %v2968 = vmul.f32 %v2966, %v2880
    %v2971 = vrot.slane %v2967, 2
    %v2972 = vrot.slane %v2968, 2
    %v2975 = vadd.f32 %v2927, %v2971
    %v2976 = vadd.f32 %v2928, %v2972
    %s2977 = sld [smem:[#allocation9 + $0xf0]]
    %v2978 = vstv %s2977
    %v2979 = vmul.f32 %v2978, %v2879
    %v2980 = vmul.f32 %v2978, %v2880
    %v2983 = vrot.slane %v2979, 2
    %v2984 = vrot.slane %v2980, 2
    %v2987 = vadd.f32 %v2939, %v2983
    %v2988 = vadd.f32 %v2940, %v2984
    %s2989 = sld [smem:[#allocation9 + $0x114]]
    %v2990 = vstv %s2989
    %v2991 = vmul.f32 %v2990, %v2879
    %v2992 = vmul.f32 %v2990, %v2880
    %v2995 = vrot.slane %v2991, 2
    %v2996 = vrot.slane %v2992, 2
    %v2999 = vadd.f32 %v2951, %v2995
    %v3000 = vadd.f32 %v2952, %v2996
    %s3001 = sld [smem:[#allocation9 + $0xb1]]
    %v3002 = vstv %s3001
    %v3003 = vmul.f32 %v3002, %v2879
    %v3004 = vmul.f32 %v3002, %v2880
    %v3007 = vrot.slane %v3003, 3
    %v3008 = vrot.slane %v3004, 3
    %v3011 = vadd.f32 %v2963, %v3007
    %v3012 = vadd.f32 %v2964, %v3008
    %s3013 = sld [smem:[#allocation9 + $0xd5]]
    %v3014 = vstv %s3013
    %v3015 = vmul.f32 %v3014, %v2879
    %v3016 = vmul.f32 %v3014, %v2880
    %v3019 = vrot.slane %v3015, 3
    %v3020 = vrot.slane %v3016, 3
    %v3023 = vadd.f32 %v2975, %v3019
    %v3024 = vadd.f32 %v2976, %v3020
    %s3025 = sld [smem:[#allocation9 + $0xf9]]
    %v3026 = vstv %s3025
    %v3027 = vmul.f32 %v3026, %v2879
    %v3028 = vmul.f32 %v3026, %v2880
    %v3031 = vrot.slane %v3027, 3
    %v3032 = vrot.slane %v3028, 3
    %v3035 = vadd.f32 %v2987, %v3031
    %v3036 = vadd.f32 %v2988, %v3032
    %s3037 = sld [smem:[#allocation9 + $0x11d]]
    %v3038 = vstv %s3037
    %v3039 = vmul.f32 %v3038, %v2879
    %v3040 = vmul.f32 %v3038, %v2880
    %v3043 = vrot.slane %v3039, 3
    %v3044 = vrot.slane %v3040, 3
    %v3047 = vadd.f32 %v2999, %v3043
    %v3048 = vadd.f32 %v3000, %v3044
    %3049 = vrot.lane.b32.xlu0 %v1773, 96
    %v3050 = vpop.permute.xlu0 %3049
    %3051 = vrot.lane.b32.xlu0 %v1774, 96
    %v3052 = vpop.permute.xlu0 %3051
    %vm3053 = vcmp.lt.s32.totalorder %v79, 96
    %v3054 = vsel %vm3053, %v3050, %v3052
    %v3055 = vsel %vm3053, %v3052, %v3050
    %v3056 = vperm.slane %v2148, 0
    %v3057 = vperm.slane %v2148, 2
    %v3058 = vperm.slane %v3056, 0
    %v3059 = vperm.slane %v3057, 0
    %vm3060 = vcmp.eq.s32.totalorder %v3058, 1
    %vm3061 = vcmp.eq.s32.totalorder %v3059, 1
    %v3062 = vsel %vm3060, %v3054, 0.0
    %v3063 = vsel %vm3061, %v3055, 0.0
    %s3064 = sld [smem:[#allocation9 + $0x97]]
    %v3065 = vstv %s3064
    %v3066 = vmul.f32 %v3065, %v3062
    %v3067 = vmul.f32 %v3065, %v3063
    %v3068 = vadd.f32 %v3011, %v3066
    %v3069 = vadd.f32 %v3012, %v3067
    %s3070 = sld [smem:[#allocation9 + $0xbb]]
    %v3071 = vstv %s3070
    %v3072 = vmul.f32 %v3071, %v3062
    %v3073 = vmul.f32 %v3071, %v3063
    %v3074 = vadd.f32 %v3023, %v3072
    %v3075 = vadd.f32 %v3024, %v3073
    %s3076 = sld [smem:[#allocation9 + $0xdf]]
    %v3077 = vstv %s3076
    %v3078 = vmul.f32 %v3077, %v3062
    %v3079 = vmul.f32 %v3077, %v3063
    %v3080 = vadd.f32 %v3035, %v3078
    %v3081 = vadd.f32 %v3036, %v3079
    %s3082 = sld [smem:[#allocation9 + $0x103]]
    %v3083 = vstv %s3082
    %v3084 = vmul.f32 %v3083, %v3062
    %v3085 = vmul.f32 %v3083, %v3063
    %v3086 = vadd.f32 %v3047, %v3084
    %v3087 = vadd.f32 %v3048, %v3085
    %s3088 = sld [smem:[#allocation9 + $0xa0]]
    %v3089 = vstv %s3088
    %v3090 = vmul.f32 %v3089, %v3062
    %v3091 = vmul.f32 %v3089, %v3063
    %v3094 = vrot.slane %v3090, 1
    %v3095 = vrot.slane %v3091, 1
    %v3098 = vadd.f32 %v3068, %v3094
    %v3099 = vadd.f32 %v3069, %v3095
    %s3100 = sld [smem:[#allocation9 + $0xc4]]
    %v3101 = vstv %s3100
    %v3102 = vmul.f32 %v3101, %v3062
    %v3103 = vmul.f32 %v3101, %v3063
    %v3106 = vrot.slane %v3102, 1
    %v3107 = vrot.slane %v3103, 1
    %v3110 = vadd.f32 %v3074, %v3106
    %v3111 = vadd.f32 %v3075, %v3107
    %s3112 = sld [smem:[#allocation9 + $0xe8]]
    %v3113 = vstv %s3112
    %v3114 = vmul.f32 %v3113, %v3062
    %v3115 = vmul.f32 %v3113, %v3063
    %v3118 = vrot.slane %v3114, 1
    %v3119 = vrot.slane %v3115, 1
    %v3122 = vadd.f32 %v3080, %v3118
    %v3123 = vadd.f32 %v3081, %v3119
    %s3124 = sld [smem:[#allocation9 + $0x10c]]
    %v3125 = vstv %s3124
    %v3126 = vmul.f32 %v3125, %v3062
    %v3127 = vmul.f32 %v3125, %v3063
    %v3130 = vrot.slane %v3126, 1
    %v3131 = vrot.slane %v3127, 1
    %v3134 = vadd.f32 %v3086, %v3130
    %v3135 = vadd.f32 %v3087, %v3131
    %s3136 = sld [smem:[#allocation9 + $0xa9]]
    %v3137 = vstv %s3136
    %v3138 = vmul.f32 %v3137, %v3062
    %v3139 = vmul.f32 %v3137, %v3063
    %v3142 = vrot.slane %v3138, 2
    %v3143 = vrot.slane %v3139, 2
    %v3146 = vadd.f32 %v3098, %v3142
    %v3147 = vadd.f32 %v3099, %v3143
    %s3148 = sld [smem:[#allocation9 + $0xcd]]
    %v3149 = vstv %s3148
    %v3150 = vmul.f32 %v3149, %v3062
    %v3151 = vmul.f32 %v3149, %v3063
    %v3154 = vrot.slane %v3150, 2
    %v3155 = vrot.slane %v3151, 2
    %v3158 = vadd.f32 %v3110, %v3154
    %v3159 = vadd.f32 %v3111, %v3155
    %s3160 = sld [smem:[#allocation9 + $0xf1]]
    %v3161 = vstv %s3160
    %v3162 = vmul.f32 %v3161, %v3062
    %v3163 = vmul.f32 %v3161, %v3063
    %v3166 = vrot.slane %v3162, 2
    %v3167 = vrot.slane %v3163, 2
    %v3170 = vadd.f32 %v3122, %v3166
    %v3171 = vadd.f32 %v3123, %v3167
    %s3172 = sld [smem:[#allocation9 + $0x115]]
    %v3173 = vstv %s3172
    %v3174 = vmul.f32 %v3173, %v3062
    %v3175 = vmul.f32 %v3173, %v3063
    %v3178 = vrot.slane %v3174, 2
    %v3179 = vrot.slane %v3175, 2
    %v3182 = vadd.f32 %v3134, %v3178
    %v3183 = vadd.f32 %v3135, %v3179
    %s3184 = sld [smem:[#allocation9 + $0xb2]]
    %v3185 = vstv %s3184
    %v3186 = vmul.f32 %v3185, %v3062
    %v3187 = vmul.f32 %v3185, %v3063
    %v3190 = vrot.slane %v3186, 3
    %v3191 = vrot.slane %v3187, 3
    %v3194 = vadd.f32 %v3146, %v3190
    %v3195 = vadd.f32 %v3147, %v3191
    %s3196 = sld [smem:[#allocation9 + $0xd6]]
    %v3197 = vstv %s3196
    %v3198 = vmul.f32 %v3197, %v3062
    %v3199 = vmul.f32 %v3197, %v3063
    %v3202 = vrot.slane %v3198, 3
    %v3203 = vrot.slane %v3199, 3
    %v3206 = vadd.f32 %v3158, %v3202
    %v3207 = vadd.f32 %v3159, %v3203
    %s3208 = sld [smem:[#allocation9 + $0xfa]]
    %v3209 = vstv %s3208
    %v3210 = vmul.f32 %v3209, %v3062
    %v3211 = vmul.f32 %v3209, %v3063
    %v3214 = vrot.slane %v3210, 3
    %v3215 = vrot.slane %v3211, 3
    %v3218 = vadd.f32 %v3170, %v3214
    %v3219 = vadd.f32 %v3171, %v3215
    %s3220 = sld [smem:[#allocation9 + $0x11e]]
    %v3221 = vstv %s3220
    %v3222 = vmul.f32 %v3221, %v3062
    %v3223 = vmul.f32 %v3221, %v3063
    %v3226 = vrot.slane %v3222, 3
    %v3227 = vrot.slane %v3223, 3
    %v3230 = vadd.f32 %v3182, %v3226
    %v3231 = vadd.f32 %v3183, %v3227
    %3232 = vrot.lane.b32.xlu0 %v1773, 94
    %v3233 = vpop.permute.xlu0 %3232
    %3234 = vrot.lane.b32.xlu0 %v1774, 94
    %v3235 = vpop.permute.xlu0 %3234
    %vm3236 = vcmp.lt.s32.totalorder %v79, 94
    %v3237 = vsel %vm3236, %v3233, %v3235
    %v3238 = vsel %vm3236, %v3235, %v3233
    %vm3239 = vmand %vm2147, %vm2151
    %v3240 = vsel %vm3239, 1, 0
    %v3241 = vperm.slane %v3240, 0
    %v3242 = vperm.slane %v3240, 2
    %v3243 = vperm.slane %v3241, 0
    %v3244 = vperm.slane %v3242, 0
    %vm3245 = vcmp.eq.s32.totalorder %v3243, 1
    %vm3246 = vcmp.eq.s32.totalorder %v3244, 1
    %v3247 = vsel %vm3245, %v3237, 0.0
    %v3248 = vsel %vm3246, %v3238, 0.0
    %s3249 = sld [smem:[#allocation9 + $0x98]]
    %v3250 = vstv %s3249
    %v3251 = vmul.f32 %v3250, %v3247
    %v3252 = vmul.f32 %v3250, %v3248
    %v3253 = vadd.f32 %v3194, %v3251
    %v3254 = vadd.f32 %v3195, %v3252
    %s3255 = sld [smem:[#allocation9 + $0xbc]]
    %v3256 = vstv %s3255
    %v3257 = vmul.f32 %v3256, %v3247
    %v3258 = vmul.f32 %v3256, %v3248
    %v3259 = vadd.f32 %v3206, %v3257
    %v3260 = vadd.f32 %v3207, %v3258
    %s3261 = sld [smem:[#allocation9 + $0xe0]]
    %v3262 = vstv %s3261
    %v3263 = vmul.f32 %v3262, %v3247
    %v3264 = vmul.f32 %v3262, %v3248
    %v3265 = vadd.f32 %v3218, %v3263
    %v3266 = vadd.f32 %v3219, %v3264
    %s3267 = sld [smem:[#allocation9 + $0x104]]
    %v3268 = vstv %s3267
    %v3269 = vmul.f32 %v3268, %v3247
    %v3270 = vmul.f32 %v3268, %v3248
    %v3271 = vadd.f32 %v3230, %v3269
    %v3272 = vadd.f32 %v3231, %v3270
    %s3273 = sld [smem:[#allocation9 + $0xa1]]
    %v3274 = vstv %s3273
    %v3275 = vmul.f32 %v3274, %v3247
    %v3276 = vmul.f32 %v3274, %v3248
    %v3279 = vrot.slane %v3275, 1
    %v3280 = vrot.slane %v3276, 1
    %v3283 = vadd.f32 %v3253, %v3279
    %v3284 = vadd.f32 %v3254, %v3280
    %s3285 = sld [smem:[#allocation9 + $0xc5]]
    %v3286 = vstv %s3285
    %v3287 = vmul.f32 %v3286, %v3247
    %v3288 = vmul.f32 %v3286, %v3248
    %v3291 = vrot.slane %v3287, 1
    %v3292 = vrot.slane %v3288, 1
    %v3295 = vadd.f32 %v3259, %v3291
    %v3296 = vadd.f32 %v3260, %v3292
    %s3297 = sld [smem:[#allocation9 + $0xe9]]
    %v3298 = vstv %s3297
    %v3299 = vmul.f32 %v3298, %v3247
    %v3300 = vmul.f32 %v3298, %v3248
    %v3303 = vrot.slane %v3299, 1
    %v3304 = vrot.slane %v3300, 1
    %v3307 = vadd.f32 %v3265, %v3303
    %v3308 = vadd.f32 %v3266, %v3304
    %s3309 = sld [smem:[#allocation9 + $0x10d]]
    %v3310 = vstv %s3309
    %v3311 = vmul.f32 %v3310, %v3247
    %v3312 = vmul.f32 %v3310, %v3248
    %v3315 = vrot.slane %v3311, 1
    %v3316 = vrot.slane %v3312, 1
    %v3319 = vadd.f32 %v3271, %v3315
    %v3320 = vadd.f32 %v3272, %v3316
    %s3321 = sld [smem:[#allocation9 + $0xaa]]
    %v3322 = vstv %s3321
    %v3323 = vmul.f32 %v3322, %v3247
    %v3324 = vmul.f32 %v3322, %v3248
    %v3327 = vrot.slane %v3323, 2
    %v3328 = vrot.slane %v3324, 2
    %v3331 = vadd.f32 %v3283, %v3327
    %v3332 = vadd.f32 %v3284, %v3328
    %s3333 = sld [smem:[#allocation9 + $0xce]]
    %v3334 = vstv %s3333
    %v3335 = vmul.f32 %v3334, %v3247
    %v3336 = vmul.f32 %v3334, %v3248
    %v3339 = vrot.slane %v3335, 2
    %v3340 = vrot.slane %v3336, 2
    %v3343 = vadd.f32 %v3295, %v3339
    %v3344 = vadd.f32 %v3296, %v3340
    %s3345 = sld [smem:[#allocation9 + $0xf2]]
    %v3346 = vstv %s3345
    %v3347 = vmul.f32 %v3346, %v3247
    %v3348 = vmul.f32 %v3346, %v3248
    %v3351 = vrot.slane %v3347, 2
    %v3352 = vrot.slane %v3348, 2
    %v3355 = vadd.f32 %v3307, %v3351
    %v3356 = vadd.f32 %v3308, %v3352
    %s3357 = sld [smem:[#allocation9 + $0x116]]
    %v3358 = vstv %s3357
    %v3359 = vmul.f32 %v3358, %v3247
    %v3360 = vmul.f32 %v3358, %v3248
    %v3363 = vrot.slane %v3359, 2
    %v3364 = vrot.slane %v3360, 2
    %v3367 = vadd.f32 %v3319, %v3363
    %v3368 = vadd.f32 %v3320, %v3364
    %s3369 = sld [smem:[#allocation9 + $0xb3]]
    %v3370 = vstv %s3369
    %v3371 = vmul.f32 %v3370, %v3247
    %v3372 = vmul.f32 %v3370, %v3248
    %v3375 = vrot.slane %v3371, 3
    %v3376 = vrot.slane %v3372, 3
    %v3379 = vadd.f32 %v3331, %v3375
    %v3380 = vadd.f32 %v3332, %v3376
    %s3381 = sld [smem:[#allocation9 + $0xd7]]
    %v3382 = vstv %s3381
    %v3383 = vmul.f32 %v3382, %v3247
    %v3384 = vmul.f32 %v3382, %v3248
    %v3387 = vrot.slane %v3383, 3
    %v3388 = vrot.slane %v3384, 3
    %v3391 = vadd.f32 %v3343, %v3387
    %v3392 = vadd.f32 %v3344, %v3388
    %s3393 = sld [smem:[#allocation9 + $0xfb]]
    %v3394 = vstv %s3393
    %v3395 = vmul.f32 %v3394, %v3247
    %v3396 = vmul.f32 %v3394, %v3248
    %v3399 = vrot.slane %v3395, 3
    %v3400 = vrot.slane %v3396, 3
    %v3403 = vadd.f32 %v3355, %v3399
    %v3404 = vadd.f32 %v3356, %v3400
    %s3405 = sld [smem:[#allocation9 + $0x11f]]
    %v3406 = vstv %s3405
    %v3407 = vmul.f32 %v3406, %v3247
    %v3408 = vmul.f32 %v3406, %v3248
    %v3411 = vrot.slane %v3407, 3
    %v3412 = vrot.slane %v3408, 3
    %v3415 = vadd.f32 %v3367, %v3411
    %v3416 = vadd.f32 %v3368, %v3412
    %s3417 = sld [smem:[#allocation10 + $0x4]]
    %v3418 = vstv %s3417
    %v3419 = vadd.f32 %v3379, %v3418
    %v3420 = vadd.f32 %v3380, %v3418
    %s3421 = sld [smem:[#allocation10 + $0x5]]
    %v3422 = vstv %s3421
    %v3423 = vadd.f32 %v3391, %v3422
    %v3424 = vadd.f32 %v3392, %v3422
    %s3425 = sld [smem:[#allocation10 + $0x6]]
    %v3426 = vstv %s3425
    %v3427 = vadd.f32 %v3403, %v3426
    %v3428 = vadd.f32 %v3404, %v3426
    %s3429 = sld [smem:[#allocation10 + $0x7]]
    %v3430 = vstv %s3429
    %v3431 = vadd.f32 %v3415, %v3430
    %v3432 = vadd.f32 %v3416, %v3430
    %v3435 = vrot.slane %v3423, 7
    %v3436 = vrot.slane %v3424, 7
    %v3441 = vrot.slane %v3427, 6
    %v3442 = vrot.slane %v3428, 6
    %v3447 = vrot.slane %v3431, 5
    %v3448 = vrot.slane %v3432, 5
    %v3451 = vsel %vm1752, %v3419, %v3435
    %v3452 = vsel %vm1752, %v3420, %v3436
    %v3453 = vsel %vm1755, %v3451, %v3441
    %v3454 = vsel %vm1755, %v3452, %v3442
    %v3455 = vsel %vm1758, %v3453, %v3447
    %v3456 = vsel %vm1758, %v3454, %v3448
    %v3457 = vsel %vm1761, %v3455, %v3419
    %v3458 = vsel %vm1761, %v3456, %v3420
    %v3459 = vsel %vm1764, %v3457, %v3435
    %v3460 = vsel %vm1764, %v3458, %v3436
    %v3461 = vsel %vm1767, %v3459, %v3441
    %v3462 = vsel %vm1767, %v3460, %v3442
    %v3463 = vsel %vm1770, %v3461, %v3447
    %v3464 = vsel %vm1770, %v3462, %v3448
    %v3465 = vmax.f32 %v3463, 0.0
    %v3466 = vmax.f32 %v3464, 0.0
    %3467 = vst [vmem:[#allocation11] sm:$0xff] %v3465
    %3468 = vst [vmem:[#allocation11 + $0x8] sm:$0xff] %v3466
    // Predicated region
    $region34: #{tpu_custom_call.1} parent=1 // pred_check
      _
    $region35: #{tpu_custom_call.1} parent=1 // pred_check_branch
      %3470 = sbr.rel (0) target = $region37
    $region36: #{tpu_custom_call.1} parent=1 // pred_region
      %3472 = vsyncadd [#allocation4], 0
      %s3474 = sshll.u32 [#allocation11], 4
      %s3475 = int_to_ptr.vmem [resolvable:$true] %s3474
      %s3476 = sshll.u32 %s4, 4
      %s3477 = int_to_ptr.hbm [resolvable:$true] %s3476
      %3479 = dma.vmem_to_hbm [thread:$0]  %s3475, 256, %s3477, [#allocation4]
    $region37: #{tpu_custom_call.1} parent=1 // pred_fallthru
      _
    // Predicated region
    $region38: #{tpu_custom_call.1} parent=1 // pred_check
      _
    $region39: #{tpu_custom_call.1} parent=1 // pred_check_branch
      %3481 = sbr.rel (0) target = $region41
    $region40: #{tpu_custom_call.1} parent=1 // pred_region
      %3483 = dma.done [#allocation4], 256
    $region41: #{tpu_custom_call.1} parent=1 // pred_fallthru
      _
    %3484 = vsyncpa [#allocation3], 1
    %3485 = vsyncpa [#allocation8], 1
    %3486 = vsyncpa [#allocation4], 1
    %3487 = vsyncpa [#allocation5], 1
    %3488 = vsyncpa [#allocation6], 1

</llo_original>
